<compile_context>
chip_gen: v5e
topology: v5e:2x2
jax: 0.10.0
libtpu: 0.0.40
codegen_flags: <defaults>
</compile_context>

<pallas_src>
import math

import jax
import jax.numpy as jnp
from jax import lax
from jax.experimental import pallas as pl
from jax.experimental.pallas import tpu as pltpu

BN_EPS = 1e-5
LANES = 128          # pad the fc output to a lane-dense width
NEG_INF = -1e30

# (in_channels, out_channels, stride) for the 6 residual blocks
BLOCK_CFG = ((64, 64, 1), (64, 64, 1),
             (64, 128, 2), (128, 128, 1),
             (128, 256, 2), (256, 256, 1))


# ----------------------------------------------------------------------------
# In-kernel helpers (batch is folded into the row / M dimension everywhere)
# ----------------------------------------------------------------------------
def _shift_rows(x, d, fill):
    """shifted[r] = x[r + d]; rows shifted in from outside the array get `fill`."""
    if d == 0:
        return x
    rows, cols = x.shape
    if abs(d) >= rows:
        return jnp.full((rows, cols), fill, x.dtype)
    pad = jnp.full((abs(d), cols), fill, x.dtype)
    if d > 0:
        return jnp.concatenate([x[d:, :], pad], axis=0)
    return jnp.concatenate([pad, x[:rows + d, :]], axis=0)


def _local_index(rows, cols, length):
    """Per-row local (within-sample) index, broadcast to (rows, cols)."""
    idx = lax.broadcasted_iota(jnp.int32, (rows, cols), 0)
    if length < rows:            # several samples stacked along the row axis
        idx = idx % length
    return idx


def _conv_taps(xb, length, k, pad):
    """Mini im2col along lanes: (R, C) -> (R, k*C); tap t holds x[row + t - pad].

    The per-sample zero halo (samples of `length` rows stacked along rows) is
    realised by masking the shifted taps.
    """
    if k == 1:
        return xb
    rows, cols = xb.shape
    local = _local_index(rows, cols, length)
    taps = []
    for ti in range(k):
        d = ti - pad
        sh = _shift_rows(xb, d, 0.0)
        if d != 0:
            valid = (local + d >= 0) & (local + d < length)
            sh = jnp.where(valid, sh, jnp.zeros_like(sh))
        taps.append(sh)
    return jnp.concatenate(taps, axis=1)


def _conv_bn(x, length, w_ref, bias, *, k, pad, sel=None, relu=True, res=None):
    """Conv1d (BN scale pre-folded into w) as ONE matmul + bias (+res) (+relu).

    x:      (bb*length, C_in) f32, channels-last, batch folded into rows.
    w_ref:  (k*C_in, C_out) bf16 Ref.
    sel:    optional (bb*l_out, bb*length) bf16 row-selection matrix (stride).
    """
    lhs = _conv_taps(x.astype(jnp.bfloat16), length, k, pad)
    if sel is not None:      # apply the stride BEFORE the main matmul
        lhs = jnp.dot(sel, lhs,
                      preferred_element_type=jnp.float32).astype(jnp.bfloat16)
    out = jnp.dot(lhs, w_ref[...], preferred_element_type=jnp.float32) + bias
    if res is not None:
        out = out + res
    if relu:
        out = jnp.maximum(out, 0.0)
    return out


def _max_pool_3_2_1(x, length, sel):
    """MaxPool1d(3, stride=2, padding=1); `sel` (f32) applies the stride."""
    rows, cols = x.shape
    local = _local_index(rows, cols, length)
    m = x
    for d in (-1, 1):
        sh = _shift_rows(x, d, NEG_INF)
        valid = (local + d >= 0) & (local + d < length)
        sh = jnp.where(valid, sh, jnp.full_like(sh, NEG_INF))
        m = jnp.maximum(m, sh)
    return jnp.dot(sel, m, preferred_element_type=jnp.float32)


# ----------------------------------------------------------------------------
# Fused whole-network kernel (one grid step = one batch block of bb samples)
# ----------------------------------------------------------------------------
def _build_kernel(bb, block_meta):
    """block_meta: tuple of (stride, has_shortcut) per residual block."""

    def kernel(*refs):
        out_ref = refs[-1]
        it = iter(refs[:-1])
        x_ref = next(it)
        ln_s = next(it)[...]
        ln_b = next(it)[...]
        pool = next(it)[...]
        c1_w = next(it)
        c1_b = next(it)[...]
        sel_c1 = next(it)[...]
        sel_mp = next(it)[...]
        blocks = []
        for (stride, has_sc) in block_meta:
            w1 = next(it)
            b1 = next(it)[...]
            w2 = next(it)
            b2 = next(it)[...]
            ws = bs = sel = None
            if has_sc:
                ws = next(it)
                bs = next(it)[...]
            if stride != 1:
                sel = next(it)[...]
            blocks.append((stride, w1, b1, w2, b2, ws, bs, sel))
        fc_w = next(it)[...]
        fc_b = next(it)[...]

        # ---- whole batch block processed at once (batch folded into rows) ----
        x = x_ref[0]                                   # (bb*T8, C_in) f32
        x = x * ln_s + ln_b                            # input BatchNorm1d (eval)
        t = jnp.dot(pool, x,
                    preferred_element_type=jnp.float32)   # AvgPool1d(8, 8)
        length = t.shape[0] // bb

        # conv1 (k=7, s=2, p=3) + bn1 + relu
        t = _conv_bn(t, length, c1_w, c1_b, k=7, pad=3, sel=sel_c1)
        length = (length - 1) // 2 + 1

        # MaxPool1d(3, 2, 1)
        t = _max_pool_3_2_1(t, length, sel_mp)
        length = (length - 1) // 2 + 1

        # 6 residual blocks
        for (stride, w1, b1, w2, b2, ws, bs, sel) in blocks:
            h = _conv_bn(t, length, w1, b1, k=3, pad=1, sel=sel)
            sc = t if ws is None else _conv_bn(t, length, ws, bs,
                                               k=1, pad=0, sel=sel, relu=False)
            length = (length - 1) // stride + 1
            t = _conv_bn(h, length, w2, b2, k=3, pad=1, res=sc)

        if length > 1:                                 # AdaptiveAvgPool1d(1)
            t = jnp.mean(t.reshape(bb, length, t.shape[1]), axis=1)
        # Dropout(0.5) is identity in eval mode.
        logits = jnp.dot(t.astype(jnp.bfloat16), fc_w,
                         preferred_element_type=jnp.float32) + fc_b
        out_ref[0] = logits                            # one dense (bb, 128) store

    return kernel


# ----------------------------------------------------------------------------
# Parameters (deterministic, mimicking the module's __init__)
# ----------------------------------------------------------------------------
def _conv_init(key, c_out, c_in, k):
    # kaiming_normal_(mode='fan_out', nonlinearity='relu'): std=sqrt(2/(c_out*k))
    std = math.sqrt(2.0 / (c_out * k))
    return jax.random.normal(key, (c_out, c_in, k), jnp.float32) * std


def _bn_affine(c):
    # eval-mode BN with running_mean=0, running_var=1, gamma=1, beta=0
    scale = jnp.full((c,), 1.0 / math.sqrt(1.0 + BN_EPS), jnp.float32)
    bias = jnp.zeros((c,), jnp.float32)
    return scale, bias


def make_params(key, dim_input, dim_output):
    keys = jax.random.split(key, 32)
    ln_s, ln_b = _bn_affine(dim_input)
    bn1_s, bn1_b = _bn_affine(64)
    params = {"ln_s": ln_s, "ln_b": ln_b,
              "conv1_w": _conv_init(keys[0], 64, dim_input, 7),
              "bn1_s": bn1_s, "bn1_b": bn1_b,
              "blocks": []}
    ki = 1
    for (c_in, c_out, stride) in BLOCK_CFG:
        s1, b1 = _bn_affine(c_out)
        s2, b2 = _bn_affine(c_out)
        blk = {"w1": _conv_init(keys[ki], c_out, c_in, 3), "s1": s1, "b1": b1,
               "w2": _conv_init(keys[ki + 1], c_out, c_out, 3), "s2": s2, "b2": b2}
        ki += 2
        if stride != 1 or c_in != c_out:
            ss, bs = _bn_affine(c_out)
            blk["ws"] = _conv_init(keys[ki], c_out, c_in, 1)
            blk["ss"] = ss
            blk["bs"] = bs
            ki += 1
        params["blocks"].append(blk)
    # Linear(256, dim_output): PyTorch default uniform(-1/sqrt(fan_in), +)
    bound = 1.0 / math.sqrt(256.0)
    params["fc_w"] = jax.random.uniform(keys[ki], (dim_output, 256),
                                        jnp.float32, -bound, bound)
    params["fc_b"] = jax.random.uniform(keys[ki + 1], (dim_output,),
                                        jnp.float32, -bound, bound)
    return params


# ----------------------------------------------------------------------------
# Host-side weight folding / selection-matrix construction
# ----------------------------------------------------------------------------
def _fold_conv(w_oik, bn_scale, bn_bias):
    """(C_out, C_in, k) conv weight -> (k*C_in, C_out) bf16 with BN scale folded."""
    c_out, c_in, k = w_oik.shape
    w = jnp.transpose(w_oik, (2, 1, 0)).reshape(k * c_in, c_out)
    w = w * bn_scale[None, :]
    return w.astype(jnp.bfloat16), bn_bias.reshape(1, -1).astype(jnp.float32)


def _stride_sel(bb, l_in, stride, dtype):
    """Block-diagonal row selection: out row (b, j) <- in row (b, j*stride)."""
    l_out = (l_in - 1) // stride + 1
    r = jnp.arange(bb * l_out)
    src = (r // l_out) * l_in + (r % l_out) * stride
    return (src[:, None] == jnp.arange(bb * l_in)[None, :]).astype(dtype)


def _avg_pool_matrix(bb, t8, k):
    """Block-diagonal AvgPool1d(k, k) matrix: (bb*t8//k, bb*t8) f32."""
    l_out = t8 // k
    r = jnp.arange(bb * l_out)
    start = (r // l_out) * t8 + (r % l_out) * k
    cols = jnp.arange(bb * t8)[None, :]
    m = (cols >= start[:, None]) & (cols < start[:, None] + k)
    return m.astype(jnp.float32) * (1.0 / k)


# ----------------------------------------------------------------------------
# Forward (single pallas_call, batch grid)
# ----------------------------------------------------------------------------
@jax.jit
def resnet_wifi_forward(x, params):
    # x: (B, T, C_in) -- same tensor the PyTorch module receives
    batch, t_len, c_in = x.shape
    n_out = params["fc_b"].shape[0]
    n_pad = ((n_out + LANES - 1) // LANES) * LANES

    # Batch grid: 2 steps when possible (both v7x TensorCores + input-DMA
    # pipelining); samples within a step are folded into the matmul M dim.
    n_steps = 2 if (batch >= 2 and batch % 2 == 0) else 1
    bb = batch // n_steps

    t8 = (t_len // 8) * 8                      # AvgPool1d(8,8) floor mode
    l_pool = t8 // 8
    l_c1 = (l_pool - 1) // 2 + 1               # after conv1 (stride 2)
    l_mp = (l_c1 - 1) // 2 + 1                 # after maxpool (stride 2)

    x_flat = x[:, :t8, :].astype(jnp.float32).reshape(n_steps, bb * t8, c_in)

    args = [x_flat,
            params["ln_s"].reshape(1, -1).astype(jnp.float32),
            params["ln_b"].reshape(1, -1).astype(jnp.float32),
            _avg_pool_matrix(bb, t8, 8)]
    args += list(_fold_conv(params["conv1_w"], params["bn1_s"], params["bn1_b"]))
    args += [_stride_sel(bb, l_pool, 2, jnp.bfloat16),
             _stride_sel(bb, l_c1, 2, jnp.float32)]

    length = l_mp
    block_meta = []
    for cfg, blk in zip(BLOCK_CFG, params["blocks"]):
        cin_, cout_, stride = cfg
        has_sc = (stride != 1) or (cin_ != cout_)
        block_meta.append((stride, has_sc))
        args += list(_fold_conv(blk["w1"], blk["s1"], blk["b1"]))
        args += list(_fold_conv(blk["w2"], blk["s2"], blk["b2"]))
        if has_sc:
            args += list(_fold_conv(blk["ws"], blk["ss"], blk["bs"]))
        if stride != 1:
            args.append(_stride_sel(bb, length, stride, jnp.bfloat16))
        length = (length - 1) // stride + 1

    # fc: y = x @ W.T + b, padded to a lane-dense (256, n_pad) weight
    fc_w = jnp.pad(params["fc_w"].T,
                   ((0, 0), (0, n_pad - n_out))).astype(jnp.bfloat16)
    fc_b = jnp.pad(params["fc_b"].reshape(1, -1),
                   ((0, 0), (0, n_pad - n_out))).astype(jnp.float32)
    args += [fc_w, fc_b]

    in_specs = [pl.BlockSpec((1, bb * t8, c_in), lambda i: (i, 0, 0))]
    # Weights / selection matrices: whole-array blocks, constant index map
    # (fetched once, kept resident across grid steps).
    in_specs += [pl.BlockSpec(a.shape, lambda i: (0, 0)) for a in args[1:]]

    out = pl.pallas_call(
        _build_kernel(bb, tuple(block_meta)),
        grid=(n_steps,),
        out_shape=jax.ShapeDtypeStruct((n_steps, bb, n_pad), jnp.float32),
        in_specs=in_specs,
        out_specs=pl.BlockSpec((1, bb, n_pad), lambda i: (i, 0, 0)),
        compiler_params=pltpu.CompilerParams(
            dimension_semantics=("parallel",)),
    )(*args)
    return out.reshape(batch, n_pad)[:, :n_out]


# ----------------------------------------------------------------------------
if __name__ == "__main__":
    B, T, C_IN = 2, 128, 8        # var_x_shape = (T, C_IN)
    N_CLASSES = 6                 # var_y_shape = (N_CLASSES,)

    key = jax.random.PRNGKey(0)
    k_in, k_par = jax.random.split(key)
    x = jax.random.normal(k_in, (B, T, C_IN), jnp.float32)
    params = make_params(k_par, C_IN, N_CLASSES)

    out = resnet_wifi_forward(x, params)
    out = jax.block_until_ready(out)
    assert out.shape == (B, N_CLASSES), out.shape
    assert bool(jnp.all(jnp.isfinite(out)))
    print("KERNEL_OK")
</pallas_src>

<mosaic_0001>
module attributes {stable_mosaic.version = 11 : i64} {
  func.func @kernel(%arg0: i32, %arg1: memref<1x128x8xf32, #tpu.memory_space<vmem>>, %arg2: memref<1x8xf32, #tpu.memory_space<vmem>>, %arg3: memref<1x8xf32, #tpu.memory_space<vmem>>, %arg4: memref<16x128xf32, #tpu.memory_space<vmem>>, %arg5: memref<56x64xbf16, #tpu.memory_space<vmem>>, %arg6: memref<1x64xf32, #tpu.memory_space<vmem>>, %arg7: memref<8x16xbf16, #tpu.memory_space<vmem>>, %arg8: memref<4x8xf32, #tpu.memory_space<vmem>>, %arg9: memref<192x64xbf16, #tpu.memory_space<vmem>>, %arg10: memref<1x64xf32, #tpu.memory_space<vmem>>, %arg11: memref<192x64xbf16, #tpu.memory_space<vmem>>, %arg12: memref<1x64xf32, #tpu.memory_space<vmem>>, %arg13: memref<192x64xbf16, #tpu.memory_space<vmem>>, %arg14: memref<1x64xf32, #tpu.memory_space<vmem>>, %arg15: memref<192x64xbf16, #tpu.memory_space<vmem>>, %arg16: memref<1x64xf32, #tpu.memory_space<vmem>>, %arg17: memref<192x128xbf16, #tpu.memory_space<vmem>>, %arg18: memref<1x128xf32, #tpu.memory_space<vmem>>, %arg19: memref<384x128xbf16, #tpu.memory_space<vmem>>, %arg20: memref<1x128xf32, #tpu.memory_space<vmem>>, %arg21: memref<64x128xbf16, #tpu.memory_space<vmem>>, %arg22: memref<1x128xf32, #tpu.memory_space<vmem>>, %arg23: memref<2x4xbf16, #tpu.memory_space<vmem>>, %arg24: memref<384x128xbf16, #tpu.memory_space<vmem>>, %arg25: memref<1x128xf32, #tpu.memory_space<vmem>>, %arg26: memref<384x128xbf16, #tpu.memory_space<vmem>>, %arg27: memref<1x128xf32, #tpu.memory_space<vmem>>, %arg28: memref<384x256xbf16, #tpu.memory_space<vmem>>, %arg29: memref<1x256xf32, #tpu.memory_space<vmem>>, %arg30: memref<768x256xbf16, #tpu.memory_space<vmem>>, %arg31: memref<1x256xf32, #tpu.memory_space<vmem>>, %arg32: memref<128x256xbf16, #tpu.memory_space<vmem>>, %arg33: memref<1x256xf32, #tpu.memory_space<vmem>>, %arg34: memref<1x2xbf16, #tpu.memory_space<vmem>>, %arg35: memref<768x256xbf16, #tpu.memory_space<vmem>>, %arg36: memref<1x256xf32, #tpu.memory_space<vmem>>, %arg37: memref<768x256xbf16, #tpu.memory_space<vmem>>, %arg38: memref<1x256xf32, #tpu.memory_space<vmem>>, %arg39: memref<256x128xbf16, #tpu.memory_space<vmem>>, %arg40: memref<1x128xf32, #tpu.memory_space<vmem>>, %arg41: memref<1x1x128xf32, #tpu.memory_space<vmem>>) attributes {dimension_semantics = [#tpu.dimension_semantics<parallel>], iteration_bounds = array<i64: 2>, scalar_prefetch = 0 : i64, scratch_operands = 0 : i64, tpu.core_type = #tpu.core_type<tc>, window_params = [{transform_indices = @transform_0, window_bounds = array<i64: 1, 128, 8>}, {pipeline_mode = #tpu.pipeline_mode<synchronous>, transform_indices = @transform_1, window_bounds = array<i64: 1, 8>}, {pipeline_mode = #tpu.pipeline_mode<synchronous>, transform_indices = @transform_2, window_bounds = array<i64: 1, 8>}, {pipeline_mode = #tpu.pipeline_mode<synchronous>, transform_indices = @transform_3, window_bounds = array<i64: 16, 128>}, {pipeline_mode = #tpu.pipeline_mode<synchronous>, transform_indices = @transform_4, window_bounds = array<i64: 56, 64>}, {pipeline_mode = #tpu.pipeline_mode<synchronous>, transform_indices = @transform_5, window_bounds = array<i64: 1, 64>}, {pipeline_mode = #tpu.pipeline_mode<synchronous>, transform_indices = @transform_6, window_bounds = array<i64: 8, 16>}, {pipeline_mode = #tpu.pipeline_mode<synchronous>, transform_indices = @transform_7, window_bounds = array<i64: 4, 8>}, {pipeline_mode = #tpu.pipeline_mode<synchronous>, transform_indices = @transform_8, window_bounds = array<i64: 192, 64>}, {pipeline_mode = #tpu.pipeline_mode<synchronous>, transform_indices = @transform_9, window_bounds = array<i64: 1, 64>}, {pipeline_mode = #tpu.pipeline_mode<synchronous>, transform_indices = @transform_10, window_bounds = array<i64: 192, 64>}, {pipeline_mode = #tpu.pipeline_mode<synchronous>, transform_indices = @transform_11, window_bounds = array<i64: 1, 64>}, {pipeline_mode = #tpu.pipeline_mode<synchronous>, transform_indices = @transform_12, window_bounds = array<i64: 192, 64>}, {pipeline_mode = #tpu.pipeline_mode<synchronous>, transform_indices = @transform_13, window_bounds = array<i64: 1, 64>}, {pipeline_mode = #tpu.pipeline_mode<synchronous>, transform_indices = @transform_14, window_bounds = array<i64: 192, 64>}, {pipeline_mode = #tpu.pipeline_mode<synchronous>, transform_indices = @transform_15, window_bounds = array<i64: 1, 64>}, {pipeline_mode = #tpu.pipeline_mode<synchronous>, transform_indices = @transform_16, window_bounds = array<i64: 192, 128>}, {pipeline_mode = #tpu.pipeline_mode<synchronous>, transform_indices = @transform_17, window_bounds = array<i64: 1, 128>}, {pipeline_mode = #tpu.pipeline_mode<synchronous>, transform_indices = @transform_18, window_bounds = array<i64: 384, 128>}, {pipeline_mode = #tpu.pipeline_mode<synchronous>, transform_indices = @transform_19, window_bounds = array<i64: 1, 128>}, {pipeline_mode = #tpu.pipeline_mode<synchronous>, transform_indices = @transform_20, window_bounds = array<i64: 64, 128>}, {pipeline_mode = #tpu.pipeline_mode<synchronous>, transform_indices = @transform_21, window_bounds = array<i64: 1, 128>}, {pipeline_mode = #tpu.pipeline_mode<synchronous>, transform_indices = @transform_22, window_bounds = array<i64: 2, 4>}, {pipeline_mode = #tpu.pipeline_mode<synchronous>, transform_indices = @transform_23, window_bounds = array<i64: 384, 128>}, {pipeline_mode = #tpu.pipeline_mode<synchronous>, transform_indices = @transform_24, window_bounds = array<i64: 1, 128>}, {pipeline_mode = #tpu.pipeline_mode<synchronous>, transform_indices = @transform_25, window_bounds = array<i64: 384, 128>}, {pipeline_mode = #tpu.pipeline_mode<synchronous>, transform_indices = @transform_26, window_bounds = array<i64: 1, 128>}, {pipeline_mode = #tpu.pipeline_mode<synchronous>, transform_indices = @transform_27, window_bounds = array<i64: 384, 256>}, {pipeline_mode = #tpu.pipeline_mode<synchronous>, transform_indices = @transform_28, window_bounds = array<i64: 1, 256>}, {pipeline_mode = #tpu.pipeline_mode<synchronous>, transform_indices = @transform_29, window_bounds = array<i64: 768, 256>}, {pipeline_mode = #tpu.pipeline_mode<synchronous>, transform_indices = @transform_30, window_bounds = array<i64: 1, 256>}, {pipeline_mode = #tpu.pipeline_mode<synchronous>, transform_indices = @transform_31, window_bounds = array<i64: 128, 256>}, {pipeline_mode = #tpu.pipeline_mode<synchronous>, transform_indices = @transform_32, window_bounds = array<i64: 1, 256>}, {pipeline_mode = #tpu.pipeline_mode<synchronous>, transform_indices = @transform_33, window_bounds = array<i64: 1, 2>}, {pipeline_mode = #tpu.pipeline_mode<synchronous>, transform_indices = @transform_34, window_bounds = array<i64: 768, 256>}, {pipeline_mode = #tpu.pipeline_mode<synchronous>, transform_indices = @transform_35, window_bounds = array<i64: 1, 256>}, {pipeline_mode = #tpu.pipeline_mode<synchronous>, transform_indices = @transform_36, window_bounds = array<i64: 768, 256>}, {pipeline_mode = #tpu.pipeline_mode<synchronous>, transform_indices = @transform_37, window_bounds = array<i64: 1, 256>}, {pipeline_mode = #tpu.pipeline_mode<synchronous>, transform_indices = @transform_38, window_bounds = array<i64: 256, 128>}, {pipeline_mode = #tpu.pipeline_mode<synchronous>, transform_indices = @transform_39, window_bounds = array<i64: 1, 128>}, {transform_indices = @transform_40, window_bounds = array<i64: 1, 1, 128>}]} {
    %c0 = arith.constant 0 : index
    %c0_0 = arith.constant 0 : index
    %0 = vector.load %arg2[%c0, %c0_0] : memref<1x8xf32, #tpu.memory_space<vmem>>, vector<1x8xf32>
    %c0_1 = arith.constant 0 : index
    %c0_2 = arith.constant 0 : index
    %1 = vector.load %arg3[%c0_1, %c0_2] : memref<1x8xf32, #tpu.memory_space<vmem>>, vector<1x8xf32>
    %c0_3 = arith.constant 0 : index
    %c0_4 = arith.constant 0 : index
    %2 = vector.load %arg4[%c0_3, %c0_4] : memref<16x128xf32, #tpu.memory_space<vmem>>, vector<16x128xf32>
    %c0_5 = arith.constant 0 : index
    %c0_6 = arith.constant 0 : index
    %3 = vector.load %arg6[%c0_5, %c0_6] : memref<1x64xf32, #tpu.memory_space<vmem>>, vector<1x64xf32>
    %c0_7 = arith.constant 0 : index
    %c0_8 = arith.constant 0 : index
    %4 = vector.load %arg7[%c0_7, %c0_8] : memref<8x16xbf16, #tpu.memory_space<vmem>>, vector<8x16xbf16>
    %c0_9 = arith.constant 0 : index
    %c0_10 = arith.constant 0 : index
    %5 = vector.load %arg8[%c0_9, %c0_10] : memref<4x8xf32, #tpu.memory_space<vmem>>, vector<4x8xf32>
    %c0_11 = arith.constant 0 : index
    %c0_12 = arith.constant 0 : index
    %6 = vector.load %arg10[%c0_11, %c0_12] : memref<1x64xf32, #tpu.memory_space<vmem>>, vector<1x64xf32>
    %c0_13 = arith.constant 0 : index
    %c0_14 = arith.constant 0 : index
    %7 = vector.load %arg12[%c0_13, %c0_14] : memref<1x64xf32, #tpu.memory_space<vmem>>, vector<1x64xf32>
    %c0_15 = arith.constant 0 : index
    %c0_16 = arith.constant 0 : index
    %8 = vector.load %arg14[%c0_15, %c0_16] : memref<1x64xf32, #tpu.memory_space<vmem>>, vector<1x64xf32>
    %c0_17 = arith.constant 0 : index
    %c0_18 = arith.constant 0 : index
    %9 = vector.load %arg16[%c0_17, %c0_18] : memref<1x64xf32, #tpu.memory_space<vmem>>, vector<1x64xf32>
    %c0_19 = arith.constant 0 : index
    %c0_20 = arith.constant 0 : index
    %10 = vector.load %arg18[%c0_19, %c0_20] : memref<1x128xf32, #tpu.memory_space<vmem>>, vector<1x128xf32>
    %c0_21 = arith.constant 0 : index
    %c0_22 = arith.constant 0 : index
    %11 = vector.load %arg20[%c0_21, %c0_22] : memref<1x128xf32, #tpu.memory_space<vmem>>, vector<1x128xf32>
    %c0_23 = arith.constant 0 : index
    %c0_24 = arith.constant 0 : index
    %12 = vector.load %arg22[%c0_23, %c0_24] : memref<1x128xf32, #tpu.memory_space<vmem>>, vector<1x128xf32>
    %c0_25 = arith.constant 0 : index
    %c0_26 = arith.constant 0 : index
    %13 = vector.load %arg23[%c0_25, %c0_26] : memref<2x4xbf16, #tpu.memory_space<vmem>>, vector<2x4xbf16>
    %c0_27 = arith.constant 0 : index
    %c0_28 = arith.constant 0 : index
    %14 = vector.load %arg25[%c0_27, %c0_28] : memref<1x128xf32, #tpu.memory_space<vmem>>, vector<1x128xf32>
    %c0_29 = arith.constant 0 : index
    %c0_30 = arith.constant 0 : index
    %15 = vector.load %arg27[%c0_29, %c0_30] : memref<1x128xf32, #tpu.memory_space<vmem>>, vector<1x128xf32>
    %c0_31 = arith.constant 0 : index
    %c0_32 = arith.constant 0 : index
    %16 = vector.load %arg29[%c0_31, %c0_32] : memref<1x256xf32, #tpu.memory_space<vmem>>, vector<1x256xf32>
    %c0_33 = arith.constant 0 : index
    %c0_34 = arith.constant 0 : index
    %17 = vector.load %arg31[%c0_33, %c0_34] : memref<1x256xf32, #tpu.memory_space<vmem>>, vector<1x256xf32>
    %c0_35 = arith.constant 0 : index
    %c0_36 = arith.constant 0 : index
    %18 = vector.load %arg33[%c0_35, %c0_36] : memref<1x256xf32, #tpu.memory_space<vmem>>, vector<1x256xf32>
    %c0_37 = arith.constant 0 : index
    %c0_38 = arith.constant 0 : index
    %19 = vector.load %arg34[%c0_37, %c0_38] : memref<1x2xbf16, #tpu.memory_space<vmem>>, vector<1x2xbf16>
    %c0_39 = arith.constant 0 : index
    %c0_40 = arith.constant 0 : index
    %20 = vector.load %arg36[%c0_39, %c0_40] : memref<1x256xf32, #tpu.memory_space<vmem>>, vector<1x256xf32>
    %c0_41 = arith.constant 0 : index
    %c0_42 = arith.constant 0 : index
    %21 = vector.load %arg38[%c0_41, %c0_42] : memref<1x256xf32, #tpu.memory_space<vmem>>, vector<1x256xf32>
    %c0_43 = arith.constant 0 : index
    %c0_44 = arith.constant 0 : index
    %22 = vector.load %arg39[%c0_43, %c0_44] : memref<256x128xbf16, #tpu.memory_space<vmem>>, vector<256x128xbf16>
    %c0_45 = arith.constant 0 : index
    %c0_46 = arith.constant 0 : index
    %23 = vector.load %arg40[%c0_45, %c0_46] : memref<1x128xf32, #tpu.memory_space<vmem>>, vector<1x128xf32>
    %c0_47 = arith.constant 0 : index
    %c0_48 = arith.constant 0 : index
    %c0_49 = arith.constant 0 : index
    %24 = vector.load %arg1[%c0_47, %c0_48, %c0_49] : memref<1x128x8xf32, #tpu.memory_space<vmem>>, vector<1x128x8xf32>
    %25 = vector.shape_cast %24 : vector<1x128x8xf32> to vector<128x8xf32>
    %26 = vector.broadcast %0 : vector<1x8xf32> to vector<128x8xf32>
    %27 = arith.mulf %25, %26 : vector<128x8xf32>
    %28 = vector.broadcast %1 : vector<1x8xf32> to vector<128x8xf32>
    %29 = arith.addf %27, %28 : vector<128x8xf32>
    %cst = arith.constant dense<0.000000e+00> : vector<16x8xf32>
    %30 = tpu.matmul %2, %29, %cst {dimension_numbers = #tpu.dot_dimension_numbers<[1], [0], [0], [1], [0, 0, 1, 1], [], []>} : vector<16x128xf32>, vector<128x8xf32>, vector<16x8xf32> -> vector<16x8xf32>
    %31 = arith.truncf %30 : vector<16x8xf32> to vector<16x8xbf16>
    %32 = tpu.iota {dimensions = array<i32: 0>} : vector<16x8xi32>
    %cst_50 = arith.constant 0.000000e+00 : bf16
    %33 = vector.broadcast %cst_50 : bf16 to vector<3x8xbf16>
    %34 = vector.extract_strided_slice %31 {offsets = [0, 0], sizes = [13, 8], strides = [1, 1]} : vector<16x8xbf16> to vector<13x8xbf16>
    %35 = tpu.concatenate %33, %34 in 0 : vector<3x8xbf16>, vector<13x8xbf16> -> vector<16x8xbf16>
    %c-3_i32 = arith.constant -3 : i32
    %36 = vector.broadcast %c-3_i32 : i32 to vector<16x8xi32>
    %37 = arith.addi %32, %36 : vector<16x8xi32>
    %c0_i32 = arith.constant 0 : i32
    %38 = vector.broadcast %c0_i32 : i32 to vector<16x8xi32>
    %39 = arith.cmpi sge, %37, %38 : vector<16x8xi32>
    %c-3_i32_51 = arith.constant -3 : i32
    %40 = vector.broadcast %c-3_i32_51 : i32 to vector<16x8xi32>
    %41 = arith.addi %32, %40 : vector<16x8xi32>
    %c16_i32 = arith.constant 16 : i32
    %42 = vector.broadcast %c16_i32 : i32 to vector<16x8xi32>
    %43 = arith.cmpi slt, %41, %42 : vector<16x8xi32>
    %44 = arith.andi %39, %43 : vector<16x8xi1>
    %cst_52 = arith.constant 0.000000e+00 : bf16
    %45 = vector.broadcast %cst_52 : bf16 to vector<16x8xbf16>
    %46 = arith.select %44, %35, %45 : vector<16x8xi1>, vector<16x8xbf16>
    %cst_53 = arith.constant 0.000000e+00 : bf16
    %47 = vector.broadcast %cst_53 : bf16 to vector<2x8xbf16>
    %48 = vector.extract_strided_slice %31 {offsets = [0, 0], sizes = [14, 8], strides = [1, 1]} : vector<16x8xbf16> to vector<14x8xbf16>
    %49 = tpu.concatenate %47, %48 in 0 : vector<2x8xbf16>, vector<14x8xbf16> -> vector<16x8xbf16>
    %c-2_i32 = arith.constant -2 : i32
    %50 = vector.broadcast %c-2_i32 : i32 to vector<16x8xi32>
    %51 = arith.addi %32, %50 : vector<16x8xi32>
    %c0_i32_54 = arith.constant 0 : i32
    %52 = vector.broadcast %c0_i32_54 : i32 to vector<16x8xi32>
    %53 = arith.cmpi sge, %51, %52 : vector<16x8xi32>
    %c-2_i32_55 = arith.constant -2 : i32
    %54 = vector.broadcast %c-2_i32_55 : i32 to vector<16x8xi32>
    %55 = arith.addi %32, %54 : vector<16x8xi32>
    %c16_i32_56 = arith.constant 16 : i32
    %56 = vector.broadcast %c16_i32_56 : i32 to vector<16x8xi32>
    %57 = arith.cmpi slt, %55, %56 : vector<16x8xi32>
    %58 = arith.andi %53, %57 : vector<16x8xi1>
    %cst_57 = arith.constant 0.000000e+00 : bf16
    %59 = vector.broadcast %cst_57 : bf16 to vector<16x8xbf16>
    %60 = arith.select %58, %49, %59 : vector<16x8xi1>, vector<16x8xbf16>
    %cst_58 = arith.constant 0.000000e+00 : bf16
    %61 = vector.broadcast %cst_58 : bf16 to vector<1x8xbf16>
    %62 = vector.extract_strided_slice %31 {offsets = [0, 0], sizes = [15, 8], strides = [1, 1]} : vector<16x8xbf16> to vector<15x8xbf16>
    %63 = tpu.concatenate %61, %62 in 0 : vector<1x8xbf16>, vector<15x8xbf16> -> vector<16x8xbf16>
    %c-1_i32 = arith.constant -1 : i32
    %64 = vector.broadcast %c-1_i32 : i32 to vector<16x8xi32>
    %65 = arith.addi %32, %64 : vector<16x8xi32>
    %c0_i32_59 = arith.constant 0 : i32
    %66 = vector.broadcast %c0_i32_59 : i32 to vector<16x8xi32>
    %67 = arith.cmpi sge, %65, %66 : vector<16x8xi32>
    %c-1_i32_60 = arith.constant -1 : i32
    %68 = vector.broadcast %c-1_i32_60 : i32 to vector<16x8xi32>
    %69 = arith.addi %32, %68 : vector<16x8xi32>
    %c16_i32_61 = arith.constant 16 : i32
    %70 = vector.broadcast %c16_i32_61 : i32 to vector<16x8xi32>
    %71 = arith.cmpi slt, %69, %70 : vector<16x8xi32>
    %72 = arith.andi %67, %71 : vector<16x8xi1>
    %cst_62 = arith.constant 0.000000e+00 : bf16
    %73 = vector.broadcast %cst_62 : bf16 to vector<16x8xbf16>
    %74 = arith.select %72, %63, %73 : vector<16x8xi1>, vector<16x8xbf16>
    %cst_63 = arith.constant 0.000000e+00 : bf16
    %75 = vector.broadcast %cst_63 : bf16 to vector<1x8xbf16>
    %76 = vector.extract_strided_slice %31 {offsets = [1, 0], sizes = [15, 8], strides = [1, 1]} : vector<16x8xbf16> to vector<15x8xbf16>
    %77 = tpu.concatenate %76, %75 in 0 : vector<15x8xbf16>, vector<1x8xbf16> -> vector<16x8xbf16>
    %c1_i32 = arith.constant 1 : i32
    %78 = vector.broadcast %c1_i32 : i32 to vector<16x8xi32>
    %79 = arith.addi %32, %78 : vector<16x8xi32>
    %c0_i32_64 = arith.constant 0 : i32
    %80 = vector.broadcast %c0_i32_64 : i32 to vector<16x8xi32>
    %81 = arith.cmpi sge, %79, %80 : vector<16x8xi32>
    %c1_i32_65 = arith.constant 1 : i32
    %82 = vector.broadcast %c1_i32_65 : i32 to vector<16x8xi32>
    %83 = arith.addi %32, %82 : vector<16x8xi32>
    %c16_i32_66 = arith.constant 16 : i32
    %84 = vector.broadcast %c16_i32_66 : i32 to vector<16x8xi32>
    %85 = arith.cmpi slt, %83, %84 : vector<16x8xi32>
    %86 = arith.andi %81, %85 : vector<16x8xi1>
    %cst_67 = arith.constant 0.000000e+00 : bf16
    %87 = vector.broadcast %cst_67 : bf16 to vector<16x8xbf16>
    %88 = arith.select %86, %77, %87 : vector<16x8xi1>, vector<16x8xbf16>
    %cst_68 = arith.constant 0.000000e+00 : bf16
    %89 = vector.broadcast %cst_68 : bf16 to vector<2x8xbf16>
    %90 = vector.extract_strided_slice %31 {offsets = [2, 0], sizes = [14, 8], strides = [1, 1]} : vector<16x8xbf16> to vector<14x8xbf16>
    %91 = tpu.concatenate %90, %89 in 0 : vector<14x8xbf16>, vector<2x8xbf16> -> vector<16x8xbf16>
    %c2_i32 = arith.constant 2 : i32
    %92 = vector.broadcast %c2_i32 : i32 to vector<16x8xi32>
    %93 = arith.addi %32, %92 : vector<16x8xi32>
    %c0_i32_69 = arith.constant 0 : i32
    %94 = vector.broadcast %c0_i32_69 : i32 to vector<16x8xi32>
    %95 = arith.cmpi sge, %93, %94 : vector<16x8xi32>
    %c2_i32_70 = arith.constant 2 : i32
    %96 = vector.broadcast %c2_i32_70 : i32 to vector<16x8xi32>
    %97 = arith.addi %32, %96 : vector<16x8xi32>
    %c16_i32_71 = arith.constant 16 : i32
    %98 = vector.broadcast %c16_i32_71 : i32 to vector<16x8xi32>
    %99 = arith.cmpi slt, %97, %98 : vector<16x8xi32>
    %100 = arith.andi %95, %99 : vector<16x8xi1>
    %cst_72 = arith.constant 0.000000e+00 : bf16
    %101 = vector.broadcast %cst_72 : bf16 to vector<16x8xbf16>
    %102 = arith.select %100, %91, %101 : vector<16x8xi1>, vector<16x8xbf16>
    %cst_73 = arith.constant 0.000000e+00 : bf16
    %103 = vector.broadcast %cst_73 : bf16 to vector<3x8xbf16>
    %104 = vector.extract_strided_slice %31 {offsets = [3, 0], sizes = [13, 8], strides = [1, 1]} : vector<16x8xbf16> to vector<13x8xbf16>
    %105 = tpu.concatenate %104, %103 in 0 : vector<13x8xbf16>, vector<3x8xbf16> -> vector<16x8xbf16>
    %c3_i32 = arith.constant 3 : i32
    %106 = vector.broadcast %c3_i32 : i32 to vector<16x8xi32>
    %107 = arith.addi %32, %106 : vector<16x8xi32>
    %c0_i32_74 = arith.constant 0 : i32
    %108 = vector.broadcast %c0_i32_74 : i32 to vector<16x8xi32>
    %109 = arith.cmpi sge, %107, %108 : vector<16x8xi32>
    %c3_i32_75 = arith.constant 3 : i32
    %110 = vector.broadcast %c3_i32_75 : i32 to vector<16x8xi32>
    %111 = arith.addi %32, %110 : vector<16x8xi32>
    %c16_i32_76 = arith.constant 16 : i32
    %112 = vector.broadcast %c16_i32_76 : i32 to vector<16x8xi32>
    %113 = arith.cmpi slt, %111, %112 : vector<16x8xi32>
    %114 = arith.andi %109, %113 : vector<16x8xi1>
    %cst_77 = arith.constant 0.000000e+00 : bf16
    %115 = vector.broadcast %cst_77 : bf16 to vector<16x8xbf16>
    %116 = arith.select %114, %105, %115 : vector<16x8xi1>, vector<16x8xbf16>
    %117 = tpu.concatenate %46, %60, %74, %31, %88, %102, %116 in 1 : vector<16x8xbf16>, vector<16x8xbf16>, vector<16x8xbf16>, vector<16x8xbf16>, vector<16x8xbf16>, vector<16x8xbf16>, vector<16x8xbf16> -> vector<16x56xbf16>
    %cst_78 = arith.constant dense<0.000000e+00> : vector<8x56xf32>
    %118 = tpu.matmul %4, %117, %cst_78 {dimension_numbers = #tpu.dot_dimension_numbers<[1], [0], [0], [1], [0, 0, 1, 1], [], []>} : vector<8x16xbf16>, vector<16x56xbf16>, vector<8x56xf32> -> vector<8x56xf32>
    %119 = arith.truncf %118 : vector<8x56xf32> to vector<8x56xbf16>
    %c0_79 = arith.constant 0 : index
    %c0_80 = arith.constant 0 : index
    %120 = vector.load %arg5[%c0_79, %c0_80] : memref<56x64xbf16, #tpu.memory_space<vmem>>, vector<56x64xbf16>
    %cst_81 = arith.constant dense<0.000000e+00> : vector<8x64xf32>
    %121 = tpu.matmul %119, %120, %cst_81 {dimension_numbers = #tpu.dot_dimension_numbers<[1], [0], [0], [1], [0, 0, 1, 1], [], []>} : vector<8x56xbf16>, vector<56x64xbf16>, vector<8x64xf32> -> vector<8x64xf32>
    %122 = vector.broadcast %3 : vector<1x64xf32> to vector<8x64xf32>
    %123 = arith.addf %121, %122 : vector<8x64xf32>
    %cst_82 = arith.constant 0.000000e+00 : f32
    %124 = vector.broadcast %cst_82 : f32 to vector<8x64xf32>
    %125 = arith.maximumf %123, %124 : vector<8x64xf32>
    %126 = tpu.iota {dimensions = array<i32: 0>} : vector<8x64xi32>
    %cst_83 = arith.constant -1.000000e+30 : f32
    %127 = vector.broadcast %cst_83 : f32 to vector<1x64xf32>
    %128 = vector.extract_strided_slice %125 {offsets = [0, 0], sizes = [7, 64], strides = [1, 1]} : vector<8x64xf32> to vector<7x64xf32>
    %129 = tpu.concatenate %127, %128 in 0 : vector<1x64xf32>, vector<7x64xf32> -> vector<8x64xf32>
    %c-1_i32_84 = arith.constant -1 : i32
    %130 = vector.broadcast %c-1_i32_84 : i32 to vector<8x64xi32>
    %131 = arith.addi %126, %130 : vector<8x64xi32>
    %c0_i32_85 = arith.constant 0 : i32
    %132 = vector.broadcast %c0_i32_85 : i32 to vector<8x64xi32>
    %133 = arith.cmpi sge, %131, %132 : vector<8x64xi32>
    %c-1_i32_86 = arith.constant -1 : i32
    %134 = vector.broadcast %c-1_i32_86 : i32 to vector<8x64xi32>
    %135 = arith.addi %126, %134 : vector<8x64xi32>
    %c8_i32 = arith.constant 8 : i32
    %136 = vector.broadcast %c8_i32 : i32 to vector<8x64xi32>
    %137 = arith.cmpi slt, %135, %136 : vector<8x64xi32>
    %138 = arith.andi %133, %137 : vector<8x64xi1>
    %cst_87 = arith.constant -1.000000e+30 : f32
    %139 = vector.broadcast %cst_87 : f32 to vector<8x64xf32>
    %140 = arith.select %138, %129, %139 : vector<8x64xi1>, vector<8x64xf32>
    %141 = arith.maximumf %125, %140 : vector<8x64xf32>
    %cst_88 = arith.constant -1.000000e+30 : f32
    %142 = vector.broadcast %cst_88 : f32 to vector<1x64xf32>
    %143 = vector.extract_strided_slice %125 {offsets = [1, 0], sizes = [7, 64], strides = [1, 1]} : vector<8x64xf32> to vector<7x64xf32>
    %144 = tpu.concatenate %143, %142 in 0 : vector<7x64xf32>, vector<1x64xf32> -> vector<8x64xf32>
    %c1_i32_89 = arith.constant 1 : i32
    %145 = vector.broadcast %c1_i32_89 : i32 to vector<8x64xi32>
    %146 = arith.addi %126, %145 : vector<8x64xi32>
    %c0_i32_90 = arith.constant 0 : i32
    %147 = vector.broadcast %c0_i32_90 : i32 to vector<8x64xi32>
    %148 = arith.cmpi sge, %146, %147 : vector<8x64xi32>
    %c1_i32_91 = arith.constant 1 : i32
    %149 = vector.broadcast %c1_i32_91 : i32 to vector<8x64xi32>
    %150 = arith.addi %126, %149 : vector<8x64xi32>
    %c8_i32_92 = arith.constant 8 : i32
    %151 = vector.broadcast %c8_i32_92 : i32 to vector<8x64xi32>
    %152 = arith.cmpi slt, %150, %151 : vector<8x64xi32>
    %153 = arith.andi %148, %152 : vector<8x64xi1>
    %cst_93 = arith.constant -1.000000e+30 : f32
    %154 = vector.broadcast %cst_93 : f32 to vector<8x64xf32>
    %155 = arith.select %153, %144, %154 : vector<8x64xi1>, vector<8x64xf32>
    %156 = arith.maximumf %141, %155 : vector<8x64xf32>
    %cst_94 = arith.constant dense<0.000000e+00> : vector<4x64xf32>
    %157 = tpu.matmul %5, %156, %cst_94 {dimension_numbers = #tpu.dot_dimension_numbers<[1], [0], [0], [1], [0, 0, 1, 1], [], []>} : vector<4x8xf32>, vector<8x64xf32>, vector<4x64xf32> -> vector<4x64xf32>
    %158 = arith.truncf %157 : vector<4x64xf32> to vector<4x64xbf16>
    %159 = tpu.iota {dimensions = array<i32: 0>} : vector<4x64xi32>
    %cst_95 = arith.constant 0.000000e+00 : bf16
    %160 = vector.broadcast %cst_95 : bf16 to vector<1x64xbf16>
    %161 = vector.extract_strided_slice %158 {offsets = [0, 0], sizes = [3, 64], strides = [1, 1]} : vector<4x64xbf16> to vector<3x64xbf16>
    %162 = tpu.concatenate %160, %161 in 0 : vector<1x64xbf16>, vector<3x64xbf16> -> vector<4x64xbf16>
    %c-1_i32_96 = arith.constant -1 : i32
    %163 = vector.broadcast %c-1_i32_96 : i32 to vector<4x64xi32>
    %164 = arith.addi %159, %163 : vector<4x64xi32>
    %c0_i32_97 = arith.constant 0 : i32
    %165 = vector.broadcast %c0_i32_97 : i32 to vector<4x64xi32>
    %166 = arith.cmpi sge, %164, %165 : vector<4x64xi32>
    %c-1_i32_98 = arith.constant -1 : i32
    %167 = vector.broadcast %c-1_i32_98 : i32 to vector<4x64xi32>
    %168 = arith.addi %159, %167 : vector<4x64xi32>
    %c4_i32 = arith.constant 4 : i32
    %169 = vector.broadcast %c4_i32 : i32 to vector<4x64xi32>
    %170 = arith.cmpi slt, %168, %169 : vector<4x64xi32>
    %171 = arith.andi %166, %170 : vector<4x64xi1>
    %cst_99 = arith.constant 0.000000e+00 : bf16
    %172 = vector.broadcast %cst_99 : bf16 to vector<4x64xbf16>
    %173 = arith.select %171, %162, %172 : vector<4x64xi1>, vector<4x64xbf16>
    %cst_100 = arith.constant 0.000000e+00 : bf16
    %174 = vector.broadcast %cst_100 : bf16 to vector<1x64xbf16>
    %175 = vector.extract_strided_slice %158 {offsets = [1, 0], sizes = [3, 64], strides = [1, 1]} : vector<4x64xbf16> to vector<3x64xbf16>
    %176 = tpu.concatenate %175, %174 in 0 : vector<3x64xbf16>, vector<1x64xbf16> -> vector<4x64xbf16>
    %c1_i32_101 = arith.constant 1 : i32
    %177 = vector.broadcast %c1_i32_101 : i32 to vector<4x64xi32>
    %178 = arith.addi %159, %177 : vector<4x64xi32>
    %c0_i32_102 = arith.constant 0 : i32
    %179 = vector.broadcast %c0_i32_102 : i32 to vector<4x64xi32>
    %180 = arith.cmpi sge, %178, %179 : vector<4x64xi32>
    %c1_i32_103 = arith.constant 1 : i32
    %181 = vector.broadcast %c1_i32_103 : i32 to vector<4x64xi32>
    %182 = arith.addi %159, %181 : vector<4x64xi32>
    %c4_i32_104 = arith.constant 4 : i32
    %183 = vector.broadcast %c4_i32_104 : i32 to vector<4x64xi32>
    %184 = arith.cmpi slt, %182, %183 : vector<4x64xi32>
    %185 = arith.andi %180, %184 : vector<4x64xi1>
    %cst_105 = arith.constant 0.000000e+00 : bf16
    %186 = vector.broadcast %cst_105 : bf16 to vector<4x64xbf16>
    %187 = arith.select %185, %176, %186 : vector<4x64xi1>, vector<4x64xbf16>
    %188 = tpu.concatenate %173, %158, %187 in 1 : vector<4x64xbf16>, vector<4x64xbf16>, vector<4x64xbf16> -> vector<4x192xbf16>
    %c0_106 = arith.constant 0 : index
    %c0_107 = arith.constant 0 : index
    %189 = vector.load %arg9[%c0_106, %c0_107] : memref<192x64xbf16, #tpu.memory_space<vmem>>, vector<192x64xbf16>
    %cst_108 = arith.constant dense<0.000000e+00> : vector<4x64xf32>
    %190 = tpu.matmul %188, %189, %cst_108 {dimension_numbers = #tpu.dot_dimension_numbers<[1], [0], [0], [1], [0, 0, 1, 1], [], []>} : vector<4x192xbf16>, vector<192x64xbf16>, vector<4x64xf32> -> vector<4x64xf32>
    %191 = vector.broadcast %6 : vector<1x64xf32> to vector<4x64xf32>
    %192 = arith.addf %190, %191 : vector<4x64xf32>
    %cst_109 = arith.constant 0.000000e+00 : f32
    %193 = vector.broadcast %cst_109 : f32 to vector<4x64xf32>
    %194 = arith.maximumf %192, %193 : vector<4x64xf32>
    %195 = arith.truncf %194 : vector<4x64xf32> to vector<4x64xbf16>
    %196 = tpu.iota {dimensions = array<i32: 0>} : vector<4x64xi32>
    %cst_110 = arith.constant 0.000000e+00 : bf16
    %197 = vector.broadcast %cst_110 : bf16 to vector<1x64xbf16>
    %198 = vector.extract_strided_slice %195 {offsets = [0, 0], sizes = [3, 64], strides = [1, 1]} : vector<4x64xbf16> to vector<3x64xbf16>
    %199 = tpu.concatenate %197, %198 in 0 : vector<1x64xbf16>, vector<3x64xbf16> -> vector<4x64xbf16>
    %c-1_i32_111 = arith.constant -1 : i32
    %200 = vector.broadcast %c-1_i32_111 : i32 to vector<4x64xi32>
    %201 = arith.addi %196, %200 : vector<4x64xi32>
    %c0_i32_112 = arith.constant 0 : i32
    %202 = vector.broadcast %c0_i32_112 : i32 to vector<4x64xi32>
    %203 = arith.cmpi sge, %201, %202 : vector<4x64xi32>
    %c-1_i32_113 = arith.constant -1 : i32
    %204 = vector.broadcast %c-1_i32_113 : i32 to vector<4x64xi32>
    %205 = arith.addi %196, %204 : vector<4x64xi32>
    %c4_i32_114 = arith.constant 4 : i32
    %206 = vector.broadcast %c4_i32_114 : i32 to vector<4x64xi32>
    %207 = arith.cmpi slt, %205, %206 : vector<4x64xi32>
    %208 = arith.andi %203, %207 : vector<4x64xi1>
    %cst_115 = arith.constant 0.000000e+00 : bf16
    %209 = vector.broadcast %cst_115 : bf16 to vector<4x64xbf16>
    %210 = arith.select %208, %199, %209 : vector<4x64xi1>, vector<4x64xbf16>
    %cst_116 = arith.constant 0.000000e+00 : bf16
    %211 = vector.broadcast %cst_116 : bf16 to vector<1x64xbf16>
    %212 = vector.extract_strided_slice %195 {offsets = [1, 0], sizes = [3, 64], strides = [1, 1]} : vector<4x64xbf16> to vector<3x64xbf16>
    %213 = tpu.concatenate %212, %211 in 0 : vector<3x64xbf16>, vector<1x64xbf16> -> vector<4x64xbf16>
    %c1_i32_117 = arith.constant 1 : i32
    %214 = vector.broadcast %c1_i32_117 : i32 to vector<4x64xi32>
    %215 = arith.addi %196, %214 : vector<4x64xi32>
    %c0_i32_118 = arith.constant 0 : i32
    %216 = vector.broadcast %c0_i32_118 : i32 to vector<4x64xi32>
    %217 = arith.cmpi sge, %215, %216 : vector<4x64xi32>
    %c1_i32_119 = arith.constant 1 : i32
    %218 = vector.broadcast %c1_i32_119 : i32 to vector<4x64xi32>
    %219 = arith.addi %196, %218 : vector<4x64xi32>
    %c4_i32_120 = arith.constant 4 : i32
    %220 = vector.broadcast %c4_i32_120 : i32 to vector<4x64xi32>
    %221 = arith.cmpi slt, %219, %220 : vector<4x64xi32>
    %222 = arith.andi %217, %221 : vector<4x64xi1>
    %cst_121 = arith.constant 0.000000e+00 : bf16
    %223 = vector.broadcast %cst_121 : bf16 to vector<4x64xbf16>
    %224 = arith.select %222, %213, %223 : vector<4x64xi1>, vector<4x64xbf16>
    %225 = tpu.concatenate %210, %195, %224 in 1 : vector<4x64xbf16>, vector<4x64xbf16>, vector<4x64xbf16> -> vector<4x192xbf16>
    %c0_122 = arith.constant 0 : index
    %c0_123 = arith.constant 0 : index
    %226 = vector.load %arg11[%c0_122, %c0_123] : memref<192x64xbf16, #tpu.memory_space<vmem>>, vector<192x64xbf16>
    %cst_124 = arith.constant dense<0.000000e+00> : vector<4x64xf32>
    %227 = tpu.matmul %225, %226, %cst_124 {dimension_numbers = #tpu.dot_dimension_numbers<[1], [0], [0], [1], [0, 0, 1, 1], [], []>} : vector<4x192xbf16>, vector<192x64xbf16>, vector<4x64xf32> -> vector<4x64xf32>
    %228 = vector.broadcast %7 : vector<1x64xf32> to vector<4x64xf32>
    %229 = arith.addf %227, %228 : vector<4x64xf32>
    %230 = arith.addf %229, %157 : vector<4x64xf32>
    %cst_125 = arith.constant 0.000000e+00 : f32
    %231 = vector.broadcast %cst_125 : f32 to vector<4x64xf32>
    %232 = arith.maximumf %230, %231 : vector<4x64xf32>
    %233 = arith.truncf %232 : vector<4x64xf32> to vector<4x64xbf16>
    %234 = tpu.iota {dimensions = array<i32: 0>} : vector<4x64xi32>
    %cst_126 = arith.constant 0.000000e+00 : bf16
    %235 = vector.broadcast %cst_126 : bf16 to vector<1x64xbf16>
    %236 = vector.extract_strided_slice %233 {offsets = [0, 0], sizes = [3, 64], strides = [1, 1]} : vector<4x64xbf16> to vector<3x64xbf16>
    %237 = tpu.concatenate %235, %236 in 0 : vector<1x64xbf16>, vector<3x64xbf16> -> vector<4x64xbf16>
    %c-1_i32_127 = arith.constant -1 : i32
    %238 = vector.broadcast %c-1_i32_127 : i32 to vector<4x64xi32>
    %239 = arith.addi %234, %238 : vector<4x64xi32>
    %c0_i32_128 = arith.constant 0 : i32
    %240 = vector.broadcast %c0_i32_128 : i32 to vector<4x64xi32>
    %241 = arith.cmpi sge, %239, %240 : vector<4x64xi32>
    %c-1_i32_129 = arith.constant -1 : i32
    %242 = vector.broadcast %c-1_i32_129 : i32 to vector<4x64xi32>
    %243 = arith.addi %234, %242 : vector<4x64xi32>
    %c4_i32_130 = arith.constant 4 : i32
    %244 = vector.broadcast %c4_i32_130 : i32 to vector<4x64xi32>
    %245 = arith.cmpi slt, %243, %244 : vector<4x64xi32>
    %246 = arith.andi %241, %245 : vector<4x64xi1>
    %cst_131 = arith.constant 0.000000e+00 : bf16
    %247 = vector.broadcast %cst_131 : bf16 to vector<4x64xbf16>
    %248 = arith.select %246, %237, %247 : vector<4x64xi1>, vector<4x64xbf16>
    %cst_132 = arith.constant 0.000000e+00 : bf16
    %249 = vector.broadcast %cst_132 : bf16 to vector<1x64xbf16>
    %250 = vector.extract_strided_slice %233 {offsets = [1, 0], sizes = [3, 64], strides = [1, 1]} : vector<4x64xbf16> to vector<3x64xbf16>
    %251 = tpu.concatenate %250, %249 in 0 : vector<3x64xbf16>, vector<1x64xbf16> -> vector<4x64xbf16>
    %c1_i32_133 = arith.constant 1 : i32
    %252 = vector.broadcast %c1_i32_133 : i32 to vector<4x64xi32>
    %253 = arith.addi %234, %252 : vector<4x64xi32>
    %c0_i32_134 = arith.constant 0 : i32
    %254 = vector.broadcast %c0_i32_134 : i32 to vector<4x64xi32>
    %255 = arith.cmpi sge, %253, %254 : vector<4x64xi32>
    %c1_i32_135 = arith.constant 1 : i32
    %256 = vector.broadcast %c1_i32_135 : i32 to vector<4x64xi32>
    %257 = arith.addi %234, %256 : vector<4x64xi32>
    %c4_i32_136 = arith.constant 4 : i32
    %258 = vector.broadcast %c4_i32_136 : i32 to vector<4x64xi32>
    %259 = arith.cmpi slt, %257, %258 : vector<4x64xi32>
    %260 = arith.andi %255, %259 : vector<4x64xi1>
    %cst_137 = arith.constant 0.000000e+00 : bf16
    %261 = vector.broadcast %cst_137 : bf16 to vector<4x64xbf16>
    %262 = arith.select %260, %251, %261 : vector<4x64xi1>, vector<4x64xbf16>
    %263 = tpu.concatenate %248, %233, %262 in 1 : vector<4x64xbf16>, vector<4x64xbf16>, vector<4x64xbf16> -> vector<4x192xbf16>
    %c0_138 = arith.constant 0 : index
    %c0_139 = arith.constant 0 : index
    %264 = vector.load %arg13[%c0_138, %c0_139] : memref<192x64xbf16, #tpu.memory_space<vmem>>, vector<192x64xbf16>
    %cst_140 = arith.constant dense<0.000000e+00> : vector<4x64xf32>
    %265 = tpu.matmul %263, %264, %cst_140 {dimension_numbers = #tpu.dot_dimension_numbers<[1], [0], [0], [1], [0, 0, 1, 1], [], []>} : vector<4x192xbf16>, vector<192x64xbf16>, vector<4x64xf32> -> vector<4x64xf32>
    %266 = vector.broadcast %8 : vector<1x64xf32> to vector<4x64xf32>
    %267 = arith.addf %265, %266 : vector<4x64xf32>
    %cst_141 = arith.constant 0.000000e+00 : f32
    %268 = vector.broadcast %cst_141 : f32 to vector<4x64xf32>
    %269 = arith.maximumf %267, %268 : vector<4x64xf32>
    %270 = arith.truncf %269 : vector<4x64xf32> to vector<4x64xbf16>
    %271 = tpu.iota {dimensions = array<i32: 0>} : vector<4x64xi32>
    %cst_142 = arith.constant 0.000000e+00 : bf16
    %272 = vector.broadcast %cst_142 : bf16 to vector<1x64xbf16>
    %273 = vector.extract_strided_slice %270 {offsets = [0, 0], sizes = [3, 64], strides = [1, 1]} : vector<4x64xbf16> to vector<3x64xbf16>
    %274 = tpu.concatenate %272, %273 in 0 : vector<1x64xbf16>, vector<3x64xbf16> -> vector<4x64xbf16>
    %c-1_i32_143 = arith.constant -1 : i32
    %275 = vector.broadcast %c-1_i32_143 : i32 to vector<4x64xi32>
    %276 = arith.addi %271, %275 : vector<4x64xi32>
    %c0_i32_144 = arith.constant 0 : i32
    %277 = vector.broadcast %c0_i32_144 : i32 to vector<4x64xi32>
    %278 = arith.cmpi sge, %276, %277 : vector<4x64xi32>
    %c-1_i32_145 = arith.constant -1 : i32
    %279 = vector.broadcast %c-1_i32_145 : i32 to vector<4x64xi32>
    %280 = arith.addi %271, %279 : vector<4x64xi32>
    %c4_i32_146 = arith.constant 4 : i32
    %281 = vector.broadcast %c4_i32_146 : i32 to vector<4x64xi32>
    %282 = arith.cmpi slt, %280, %281 : vector<4x64xi32>
    %283 = arith.andi %278, %282 : vector<4x64xi1>
    %cst_147 = arith.constant 0.000000e+00 : bf16
    %284 = vector.broadcast %cst_147 : bf16 to vector<4x64xbf16>
    %285 = arith.select %283, %274, %284 : vector<4x64xi1>, vector<4x64xbf16>
    %cst_148 = arith.constant 0.000000e+00 : bf16
    %286 = vector.broadcast %cst_148 : bf16 to vector<1x64xbf16>
    %287 = vector.extract_strided_slice %270 {offsets = [1, 0], sizes = [3, 64], strides = [1, 1]} : vector<4x64xbf16> to vector<3x64xbf16>
    %288 = tpu.concatenate %287, %286 in 0 : vector<3x64xbf16>, vector<1x64xbf16> -> vector<4x64xbf16>
    %c1_i32_149 = arith.constant 1 : i32
    %289 = vector.broadcast %c1_i32_149 : i32 to vector<4x64xi32>
    %290 = arith.addi %271, %289 : vector<4x64xi32>
    %c0_i32_150 = arith.constant 0 : i32
    %291 = vector.broadcast %c0_i32_150 : i32 to vector<4x64xi32>
    %292 = arith.cmpi sge, %290, %291 : vector<4x64xi32>
    %c1_i32_151 = arith.constant 1 : i32
    %293 = vector.broadcast %c1_i32_151 : i32 to vector<4x64xi32>
    %294 = arith.addi %271, %293 : vector<4x64xi32>
    %c4_i32_152 = arith.constant 4 : i32
    %295 = vector.broadcast %c4_i32_152 : i32 to vector<4x64xi32>
    %296 = arith.cmpi slt, %294, %295 : vector<4x64xi32>
    %297 = arith.andi %292, %296 : vector<4x64xi1>
    %cst_153 = arith.constant 0.000000e+00 : bf16
    %298 = vector.broadcast %cst_153 : bf16 to vector<4x64xbf16>
    %299 = arith.select %297, %288, %298 : vector<4x64xi1>, vector<4x64xbf16>
    %300 = tpu.concatenate %285, %270, %299 in 1 : vector<4x64xbf16>, vector<4x64xbf16>, vector<4x64xbf16> -> vector<4x192xbf16>
    %c0_154 = arith.constant 0 : index
    %c0_155 = arith.constant 0 : index
    %301 = vector.load %arg15[%c0_154, %c0_155] : memref<192x64xbf16, #tpu.memory_space<vmem>>, vector<192x64xbf16>
    %cst_156 = arith.constant dense<0.000000e+00> : vector<4x64xf32>
    %302 = tpu.matmul %300, %301, %cst_156 {dimension_numbers = #tpu.dot_dimension_numbers<[1], [0], [0], [1], [0, 0, 1, 1], [], []>} : vector<4x192xbf16>, vector<192x64xbf16>, vector<4x64xf32> -> vector<4x64xf32>
    %303 = vector.broadcast %9 : vector<1x64xf32> to vector<4x64xf32>
    %304 = arith.addf %302, %303 : vector<4x64xf32>
    %305 = arith.addf %304, %232 : vector<4x64xf32>
    %cst_157 = arith.constant 0.000000e+00 : f32
    %306 = vector.broadcast %cst_157 : f32 to vector<4x64xf32>
    %307 = arith.maximumf %305, %306 : vector<4x64xf32>
    %308 = arith.truncf %307 : vector<4x64xf32> to vector<4x64xbf16>
    %309 = tpu.iota {dimensions = array<i32: 0>} : vector<4x64xi32>
    %cst_158 = arith.constant 0.000000e+00 : bf16
    %310 = vector.broadcast %cst_158 : bf16 to vector<1x64xbf16>
    %311 = vector.extract_strided_slice %308 {offsets = [0, 0], sizes = [3, 64], strides = [1, 1]} : vector<4x64xbf16> to vector<3x64xbf16>
    %312 = tpu.concatenate %310, %311 in 0 : vector<1x64xbf16>, vector<3x64xbf16> -> vector<4x64xbf16>
    %c-1_i32_159 = arith.constant -1 : i32
    %313 = vector.broadcast %c-1_i32_159 : i32 to vector<4x64xi32>
    %314 = arith.addi %309, %313 : vector<4x64xi32>
    %c0_i32_160 = arith.constant 0 : i32
    %315 = vector.broadcast %c0_i32_160 : i32 to vector<4x64xi32>
    %316 = arith.cmpi sge, %314, %315 : vector<4x64xi32>
    %c-1_i32_161 = arith.constant -1 : i32
    %317 = vector.broadcast %c-1_i32_161 : i32 to vector<4x64xi32>
    %318 = arith.addi %309, %317 : vector<4x64xi32>
    %c4_i32_162 = arith.constant 4 : i32
    %319 = vector.broadcast %c4_i32_162 : i32 to vector<4x64xi32>
    %320 = arith.cmpi slt, %318, %319 : vector<4x64xi32>
    %321 = arith.andi %316, %320 : vector<4x64xi1>
    %cst_163 = arith.constant 0.000000e+00 : bf16
    %322 = vector.broadcast %cst_163 : bf16 to vector<4x64xbf16>
    %323 = arith.select %321, %312, %322 : vector<4x64xi1>, vector<4x64xbf16>
    %cst_164 = arith.constant 0.000000e+00 : bf16
    %324 = vector.broadcast %cst_164 : bf16 to vector<1x64xbf16>
    %325 = vector.extract_strided_slice %308 {offsets = [1, 0], sizes = [3, 64], strides = [1, 1]} : vector<4x64xbf16> to vector<3x64xbf16>
    %326 = tpu.concatenate %325, %324 in 0 : vector<3x64xbf16>, vector<1x64xbf16> -> vector<4x64xbf16>
    %c1_i32_165 = arith.constant 1 : i32
    %327 = vector.broadcast %c1_i32_165 : i32 to vector<4x64xi32>
    %328 = arith.addi %309, %327 : vector<4x64xi32>
    %c0_i32_166 = arith.constant 0 : i32
    %329 = vector.broadcast %c0_i32_166 : i32 to vector<4x64xi32>
    %330 = arith.cmpi sge, %328, %329 : vector<4x64xi32>
    %c1_i32_167 = arith.constant 1 : i32
    %331 = vector.broadcast %c1_i32_167 : i32 to vector<4x64xi32>
    %332 = arith.addi %309, %331 : vector<4x64xi32>
    %c4_i32_168 = arith.constant 4 : i32
    %333 = vector.broadcast %c4_i32_168 : i32 to vector<4x64xi32>
    %334 = arith.cmpi slt, %332, %333 : vector<4x64xi32>
    %335 = arith.andi %330, %334 : vector<4x64xi1>
    %cst_169 = arith.constant 0.000000e+00 : bf16
    %336 = vector.broadcast %cst_169 : bf16 to vector<4x64xbf16>
    %337 = arith.select %335, %326, %336 : vector<4x64xi1>, vector<4x64xbf16>
    %338 = tpu.concatenate %323, %308, %337 in 1 : vector<4x64xbf16>, vector<4x64xbf16>, vector<4x64xbf16> -> vector<4x192xbf16>
    %cst_170 = arith.constant dense<0.000000e+00> : vector<2x192xf32>
    %339 = tpu.matmul %13, %338, %cst_170 {dimension_numbers = #tpu.dot_dimension_numbers<[1], [0], [0], [1], [0, 0, 1, 1], [], []>} : vector<2x4xbf16>, vector<4x192xbf16>, vector<2x192xf32> -> vector<2x192xf32>
    %340 = arith.truncf %339 : vector<2x192xf32> to vector<2x192xbf16>
    %c0_171 = arith.constant 0 : index
    %c0_172 = arith.constant 0 : index
    %341 = vector.load %arg17[%c0_171, %c0_172] : memref<192x128xbf16, #tpu.memory_space<vmem>>, vector<192x128xbf16>
    %cst_173 = arith.constant dense<0.000000e+00> : vector<2x128xf32>
    %342 = tpu.matmul %340, %341, %cst_173 {dimension_numbers = #tpu.dot_dimension_numbers<[1], [0], [0], [1], [0, 0, 1, 1], [], []>} : vector<2x192xbf16>, vector<192x128xbf16>, vector<2x128xf32> -> vector<2x128xf32>
    %343 = vector.broadcast %10 : vector<1x128xf32> to vector<2x128xf32>
    %344 = arith.addf %342, %343 : vector<2x128xf32>
    %cst_174 = arith.constant 0.000000e+00 : f32
    %345 = vector.broadcast %cst_174 : f32 to vector<2x128xf32>
    %346 = arith.maximumf %344, %345 : vector<2x128xf32>
    %347 = arith.truncf %307 : vector<4x64xf32> to vector<4x64xbf16>
    %cst_175 = arith.constant dense<0.000000e+00> : vector<2x64xf32>
    %348 = tpu.matmul %13, %347, %cst_175 {dimension_numbers = #tpu.dot_dimension_numbers<[1], [0], [0], [1], [0, 0, 1, 1], [], []>} : vector<2x4xbf16>, vector<4x64xbf16>, vector<2x64xf32> -> vector<2x64xf32>
    %349 = arith.truncf %348 : vector<2x64xf32> to vector<2x64xbf16>
    %c0_176 = arith.constant 0 : index
    %c0_177 = arith.constant 0 : index
    %350 = vector.load %arg21[%c0_176, %c0_177] : memref<64x128xbf16, #tpu.memory_space<vmem>>, vector<64x128xbf16>
    %cst_178 = arith.constant dense<0.000000e+00> : vector<2x128xf32>
    %351 = tpu.matmul %349, %350, %cst_178 {dimension_numbers = #tpu.dot_dimension_numbers<[1], [0], [0], [1], [0, 0, 1, 1], [], []>} : vector<2x64xbf16>, vector<64x128xbf16>, vector<2x128xf32> -> vector<2x128xf32>
    %352 = vector.broadcast %12 : vector<1x128xf32> to vector<2x128xf32>
    %353 = arith.addf %351, %352 : vector<2x128xf32>
    %354 = arith.truncf %346 : vector<2x128xf32> to vector<2x128xbf16>
    %355 = tpu.iota {dimensions = array<i32: 0>} : vector<2x128xi32>
    %cst_179 = arith.constant 0.000000e+00 : bf16
    %356 = vector.broadcast %cst_179 : bf16 to vector<1x128xbf16>
    %357 = vector.extract_strided_slice %354 {offsets = [0, 0], sizes = [1, 128], strides = [1, 1]} : vector<2x128xbf16> to vector<1x128xbf16>
    %358 = tpu.concatenate %356, %357 in 0 : vector<1x128xbf16>, vector<1x128xbf16> -> vector<2x128xbf16>
    %c-1_i32_180 = arith.constant -1 : i32
    %359 = vector.broadcast %c-1_i32_180 : i32 to vector<2x128xi32>
    %360 = arith.addi %355, %359 : vector<2x128xi32>
    %c0_i32_181 = arith.constant 0 : i32
    %361 = vector.broadcast %c0_i32_181 : i32 to vector<2x128xi32>
    %362 = arith.cmpi sge, %360, %361 : vector<2x128xi32>
    %c-1_i32_182 = arith.constant -1 : i32
    %363 = vector.broadcast %c-1_i32_182 : i32 to vector<2x128xi32>
    %364 = arith.addi %355, %363 : vector<2x128xi32>
    %c2_i32_183 = arith.constant 2 : i32
    %365 = vector.broadcast %c2_i32_183 : i32 to vector<2x128xi32>
    %366 = arith.cmpi slt, %364, %365 : vector<2x128xi32>
    %367 = arith.andi %362, %366 : vector<2x128xi1>
    %cst_184 = arith.constant 0.000000e+00 : bf16
    %368 = vector.broadcast %cst_184 : bf16 to vector<2x128xbf16>
    %369 = arith.select %367, %358, %368 : vector<2x128xi1>, vector<2x128xbf16>
    %cst_185 = arith.constant 0.000000e+00 : bf16
    %370 = vector.broadcast %cst_185 : bf16 to vector<1x128xbf16>
    %371 = vector.extract_strided_slice %354 {offsets = [1, 0], sizes = [1, 128], strides = [1, 1]} : vector<2x128xbf16> to vector<1x128xbf16>
    %372 = tpu.concatenate %371, %370 in 0 : vector<1x128xbf16>, vector<1x128xbf16> -> vector<2x128xbf16>
    %c1_i32_186 = arith.constant 1 : i32
    %373 = vector.broadcast %c1_i32_186 : i32 to vector<2x128xi32>
    %374 = arith.addi %355, %373 : vector<2x128xi32>
    %c0_i32_187 = arith.constant 0 : i32
    %375 = vector.broadcast %c0_i32_187 : i32 to vector<2x128xi32>
    %376 = arith.cmpi sge, %374, %375 : vector<2x128xi32>
    %c1_i32_188 = arith.constant 1 : i32
    %377 = vector.broadcast %c1_i32_188 : i32 to vector<2x128xi32>
    %378 = arith.addi %355, %377 : vector<2x128xi32>
    %c2_i32_189 = arith.constant 2 : i32
    %379 = vector.broadcast %c2_i32_189 : i32 to vector<2x128xi32>
    %380 = arith.cmpi slt, %378, %379 : vector<2x128xi32>
    %381 = arith.andi %376, %380 : vector<2x128xi1>
    %cst_190 = arith.constant 0.000000e+00 : bf16
    %382 = vector.broadcast %cst_190 : bf16 to vector<2x128xbf16>
    %383 = arith.select %381, %372, %382 : vector<2x128xi1>, vector<2x128xbf16>
    %384 = tpu.concatenate %369, %354, %383 in 1 : vector<2x128xbf16>, vector<2x128xbf16>, vector<2x128xbf16> -> vector<2x384xbf16>
    %c0_191 = arith.constant 0 : index
    %c0_192 = arith.constant 0 : index
    %385 = vector.load %arg19[%c0_191, %c0_192] : memref<384x128xbf16, #tpu.memory_space<vmem>>, vector<384x128xbf16>
    %cst_193 = arith.constant dense<0.000000e+00> : vector<2x128xf32>
    %386 = tpu.matmul %384, %385, %cst_193 {dimension_numbers = #tpu.dot_dimension_numbers<[1], [0], [0], [1], [0, 0, 1, 1], [], []>} : vector<2x384xbf16>, vector<384x128xbf16>, vector<2x128xf32> -> vector<2x128xf32>
    %387 = vector.broadcast %11 : vector<1x128xf32> to vector<2x128xf32>
    %388 = arith.addf %386, %387 : vector<2x128xf32>
    %389 = arith.addf %388, %353 : vector<2x128xf32>
    %cst_194 = arith.constant 0.000000e+00 : f32
    %390 = vector.broadcast %cst_194 : f32 to vector<2x128xf32>
    %391 = arith.maximumf %389, %390 : vector<2x128xf32>
    %392 = arith.truncf %391 : vector<2x128xf32> to vector<2x128xbf16>
    %393 = tpu.iota {dimensions = array<i32: 0>} : vector<2x128xi32>
    %cst_195 = arith.constant 0.000000e+00 : bf16
    %394 = vector.broadcast %cst_195 : bf16 to vector<1x128xbf16>
    %395 = vector.extract_strided_slice %392 {offsets = [0, 0], sizes = [1, 128], strides = [1, 1]} : vector<2x128xbf16> to vector<1x128xbf16>
    %396 = tpu.concatenate %394, %395 in 0 : vector<1x128xbf16>, vector<1x128xbf16> -> vector<2x128xbf16>
    %c-1_i32_196 = arith.constant -1 : i32
    %397 = vector.broadcast %c-1_i32_196 : i32 to vector<2x128xi32>
    %398 = arith.addi %393, %397 : vector<2x128xi32>
    %c0_i32_197 = arith.constant 0 : i32
    %399 = vector.broadcast %c0_i32_197 : i32 to vector<2x128xi32>
    %400 = arith.cmpi sge, %398, %399 : vector<2x128xi32>
    %c-1_i32_198 = arith.constant -1 : i32
    %401 = vector.broadcast %c-1_i32_198 : i32 to vector<2x128xi32>
    %402 = arith.addi %393, %401 : vector<2x128xi32>
    %c2_i32_199 = arith.constant 2 : i32
    %403 = vector.broadcast %c2_i32_199 : i32 to vector<2x128xi32>
    %404 = arith.cmpi slt, %402, %403 : vector<2x128xi32>
    %405 = arith.andi %400, %404 : vector<2x128xi1>
    %cst_200 = arith.constant 0.000000e+00 : bf16
    %406 = vector.broadcast %cst_200 : bf16 to vector<2x128xbf16>
    %407 = arith.select %405, %396, %406 : vector<2x128xi1>, vector<2x128xbf16>
    %cst_201 = arith.constant 0.000000e+00 : bf16
    %408 = vector.broadcast %cst_201 : bf16 to vector<1x128xbf16>
    %409 = vector.extract_strided_slice %392 {offsets = [1, 0], sizes = [1, 128], strides = [1, 1]} : vector<2x128xbf16> to vector<1x128xbf16>
    %410 = tpu.concatenate %409, %408 in 0 : vector<1x128xbf16>, vector<1x128xbf16> -> vector<2x128xbf16>
    %c1_i32_202 = arith.constant 1 : i32
    %411 = vector.broadcast %c1_i32_202 : i32 to vector<2x128xi32>
    %412 = arith.addi %393, %411 : vector<2x128xi32>
    %c0_i32_203 = arith.constant 0 : i32
    %413 = vector.broadcast %c0_i32_203 : i32 to vector<2x128xi32>
    %414 = arith.cmpi sge, %412, %413 : vector<2x128xi32>
    %c1_i32_204 = arith.constant 1 : i32
    %415 = vector.broadcast %c1_i32_204 : i32 to vector<2x128xi32>
    %416 = arith.addi %393, %415 : vector<2x128xi32>
    %c2_i32_205 = arith.constant 2 : i32
    %417 = vector.broadcast %c2_i32_205 : i32 to vector<2x128xi32>
    %418 = arith.cmpi slt, %416, %417 : vector<2x128xi32>
    %419 = arith.andi %414, %418 : vector<2x128xi1>
    %cst_206 = arith.constant 0.000000e+00 : bf16
    %420 = vector.broadcast %cst_206 : bf16 to vector<2x128xbf16>
    %421 = arith.select %419, %410, %420 : vector<2x128xi1>, vector<2x128xbf16>
    %422 = tpu.concatenate %407, %392, %421 in 1 : vector<2x128xbf16>, vector<2x128xbf16>, vector<2x128xbf16> -> vector<2x384xbf16>
    %c0_207 = arith.constant 0 : index
    %c0_208 = arith.constant 0 : index
    %423 = vector.load %arg24[%c0_207, %c0_208] : memref<384x128xbf16, #tpu.memory_space<vmem>>, vector<384x128xbf16>
    %cst_209 = arith.constant dense<0.000000e+00> : vector<2x128xf32>
    %424 = tpu.matmul %422, %423, %cst_209 {dimension_numbers = #tpu.dot_dimension_numbers<[1], [0], [0], [1], [0, 0, 1, 1], [], []>} : vector<2x384xbf16>, vector<384x128xbf16>, vector<2x128xf32> -> vector<2x128xf32>
    %425 = vector.broadcast %14 : vector<1x128xf32> to vector<2x128xf32>
    %426 = arith.addf %424, %425 : vector<2x128xf32>
    %cst_210 = arith.constant 0.000000e+00 : f32
    %427 = vector.broadcast %cst_210 : f32 to vector<2x128xf32>
    %428 = arith.maximumf %426, %427 : vector<2x128xf32>
    %429 = arith.truncf %428 : vector<2x128xf32> to vector<2x128xbf16>
    %430 = tpu.iota {dimensions = array<i32: 0>} : vector<2x128xi32>
    %cst_211 = arith.constant 0.000000e+00 : bf16
    %431 = vector.broadcast %cst_211 : bf16 to vector<1x128xbf16>
    %432 = vector.extract_strided_slice %429 {offsets = [0, 0], sizes = [1, 128], strides = [1, 1]} : vector<2x128xbf16> to vector<1x128xbf16>
    %433 = tpu.concatenate %431, %432 in 0 : vector<1x128xbf16>, vector<1x128xbf16> -> vector<2x128xbf16>
    %c-1_i32_212 = arith.constant -1 : i32
    %434 = vector.broadcast %c-1_i32_212 : i32 to vector<2x128xi32>
    %435 = arith.addi %430, %434 : vector<2x128xi32>
    %c0_i32_213 = arith.constant 0 : i32
    %436 = vector.broadcast %c0_i32_213 : i32 to vector<2x128xi32>
    %437 = arith.cmpi sge, %435, %436 : vector<2x128xi32>
    %c-1_i32_214 = arith.constant -1 : i32
    %438 = vector.broadcast %c-1_i32_214 : i32 to vector<2x128xi32>
    %439 = arith.addi %430, %438 : vector<2x128xi32>
    %c2_i32_215 = arith.constant 2 : i32
    %440 = vector.broadcast %c2_i32_215 : i32 to vector<2x128xi32>
    %441 = arith.cmpi slt, %439, %440 : vector<2x128xi32>
    %442 = arith.andi %437, %441 : vector<2x128xi1>
    %cst_216 = arith.constant 0.000000e+00 : bf16
    %443 = vector.broadcast %cst_216 : bf16 to vector<2x128xbf16>
    %444 = arith.select %442, %433, %443 : vector<2x128xi1>, vector<2x128xbf16>
    %cst_217 = arith.constant 0.000000e+00 : bf16
    %445 = vector.broadcast %cst_217 : bf16 to vector<1x128xbf16>
    %446 = vector.extract_strided_slice %429 {offsets = [1, 0], sizes = [1, 128], strides = [1, 1]} : vector<2x128xbf16> to vector<1x128xbf16>
    %447 = tpu.concatenate %446, %445 in 0 : vector<1x128xbf16>, vector<1x128xbf16> -> vector<2x128xbf16>
    %c1_i32_218 = arith.constant 1 : i32
    %448 = vector.broadcast %c1_i32_218 : i32 to vector<2x128xi32>
    %449 = arith.addi %430, %448 : vector<2x128xi32>
    %c0_i32_219 = arith.constant 0 : i32
    %450 = vector.broadcast %c0_i32_219 : i32 to vector<2x128xi32>
    %451 = arith.cmpi sge, %449, %450 : vector<2x128xi32>
    %c1_i32_220 = arith.constant 1 : i32
    %452 = vector.broadcast %c1_i32_220 : i32 to vector<2x128xi32>
    %453 = arith.addi %430, %452 : vector<2x128xi32>
    %c2_i32_221 = arith.constant 2 : i32
    %454 = vector.broadcast %c2_i32_221 : i32 to vector<2x128xi32>
    %455 = arith.cmpi slt, %453, %454 : vector<2x128xi32>
    %456 = arith.andi %451, %455 : vector<2x128xi1>
    %cst_222 = arith.constant 0.000000e+00 : bf16
    %457 = vector.broadcast %cst_222 : bf16 to vector<2x128xbf16>
    %458 = arith.select %456, %447, %457 : vector<2x128xi1>, vector<2x128xbf16>
    %459 = tpu.concatenate %444, %429, %458 in 1 : vector<2x128xbf16>, vector<2x128xbf16>, vector<2x128xbf16> -> vector<2x384xbf16>
    %c0_223 = arith.constant 0 : index
    %c0_224 = arith.constant 0 : index
    %460 = vector.load %arg26[%c0_223, %c0_224] : memref<384x128xbf16, #tpu.memory_space<vmem>>, vector<384x128xbf16>
    %cst_225 = arith.constant dense<0.000000e+00> : vector<2x128xf32>
    %461 = tpu.matmul %459, %460, %cst_225 {dimension_numbers = #tpu.dot_dimension_numbers<[1], [0], [0], [1], [0, 0, 1, 1], [], []>} : vector<2x384xbf16>, vector<384x128xbf16>, vector<2x128xf32> -> vector<2x128xf32>
    %462 = vector.broadcast %15 : vector<1x128xf32> to vector<2x128xf32>
    %463 = arith.addf %461, %462 : vector<2x128xf32>
    %464 = arith.addf %463, %391 : vector<2x128xf32>
    %cst_226 = arith.constant 0.000000e+00 : f32
    %465 = vector.broadcast %cst_226 : f32 to vector<2x128xf32>
    %466 = arith.maximumf %464, %465 : vector<2x128xf32>
    %467 = arith.truncf %466 : vector<2x128xf32> to vector<2x128xbf16>
    %468 = tpu.iota {dimensions = array<i32: 0>} : vector<2x128xi32>
    %cst_227 = arith.constant 0.000000e+00 : bf16
    %469 = vector.broadcast %cst_227 : bf16 to vector<1x128xbf16>
    %470 = vector.extract_strided_slice %467 {offsets = [0, 0], sizes = [1, 128], strides = [1, 1]} : vector<2x128xbf16> to vector<1x128xbf16>
    %471 = tpu.concatenate %469, %470 in 0 : vector<1x128xbf16>, vector<1x128xbf16> -> vector<2x128xbf16>
    %c-1_i32_228 = arith.constant -1 : i32
    %472 = vector.broadcast %c-1_i32_228 : i32 to vector<2x128xi32>
    %473 = arith.addi %468, %472 : vector<2x128xi32>
    %c0_i32_229 = arith.constant 0 : i32
    %474 = vector.broadcast %c0_i32_229 : i32 to vector<2x128xi32>
    %475 = arith.cmpi sge, %473, %474 : vector<2x128xi32>
    %c-1_i32_230 = arith.constant -1 : i32
    %476 = vector.broadcast %c-1_i32_230 : i32 to vector<2x128xi32>
    %477 = arith.addi %468, %476 : vector<2x128xi32>
    %c2_i32_231 = arith.constant 2 : i32
    %478 = vector.broadcast %c2_i32_231 : i32 to vector<2x128xi32>
    %479 = arith.cmpi slt, %477, %478 : vector<2x128xi32>
    %480 = arith.andi %475, %479 : vector<2x128xi1>
    %cst_232 = arith.constant 0.000000e+00 : bf16
    %481 = vector.broadcast %cst_232 : bf16 to vector<2x128xbf16>
    %482 = arith.select %480, %471, %481 : vector<2x128xi1>, vector<2x128xbf16>
    %cst_233 = arith.constant 0.000000e+00 : bf16
    %483 = vector.broadcast %cst_233 : bf16 to vector<1x128xbf16>
    %484 = vector.extract_strided_slice %467 {offsets = [1, 0], sizes = [1, 128], strides = [1, 1]} : vector<2x128xbf16> to vector<1x128xbf16>
    %485 = tpu.concatenate %484, %483 in 0 : vector<1x128xbf16>, vector<1x128xbf16> -> vector<2x128xbf16>
    %c1_i32_234 = arith.constant 1 : i32
    %486 = vector.broadcast %c1_i32_234 : i32 to vector<2x128xi32>
    %487 = arith.addi %468, %486 : vector<2x128xi32>
    %c0_i32_235 = arith.constant 0 : i32
    %488 = vector.broadcast %c0_i32_235 : i32 to vector<2x128xi32>
    %489 = arith.cmpi sge, %487, %488 : vector<2x128xi32>
    %c1_i32_236 = arith.constant 1 : i32
    %490 = vector.broadcast %c1_i32_236 : i32 to vector<2x128xi32>
    %491 = arith.addi %468, %490 : vector<2x128xi32>
    %c2_i32_237 = arith.constant 2 : i32
    %492 = vector.broadcast %c2_i32_237 : i32 to vector<2x128xi32>
    %493 = arith.cmpi slt, %491, %492 : vector<2x128xi32>
    %494 = arith.andi %489, %493 : vector<2x128xi1>
    %cst_238 = arith.constant 0.000000e+00 : bf16
    %495 = vector.broadcast %cst_238 : bf16 to vector<2x128xbf16>
    %496 = arith.select %494, %485, %495 : vector<2x128xi1>, vector<2x128xbf16>
    %497 = tpu.concatenate %482, %467, %496 in 1 : vector<2x128xbf16>, vector<2x128xbf16>, vector<2x128xbf16> -> vector<2x384xbf16>
    %cst_239 = arith.constant dense<0.000000e+00> : vector<1x384xf32>
    %498 = tpu.matmul %19, %497, %cst_239 {dimension_numbers = #tpu.dot_dimension_numbers<[1], [0], [0], [1], [0, 0, 1, 1], [], []>} : vector<1x2xbf16>, vector<2x384xbf16>, vector<1x384xf32> -> vector<1x384xf32>
    %499 = arith.truncf %498 : vector<1x384xf32> to vector<1x384xbf16>
    %c0_240 = arith.constant 0 : index
    %c0_241 = arith.constant 0 : index
    %500 = vector.load %arg28[%c0_240, %c0_241] : memref<384x256xbf16, #tpu.memory_space<vmem>>, vector<384x256xbf16>
    %cst_242 = arith.constant dense<0.000000e+00> : vector<1x256xf32>
    %501 = tpu.matmul %499, %500, %cst_242 {dimension_numbers = #tpu.dot_dimension_numbers<[1], [0], [0], [1], [0, 0, 1, 1], [], []>} : vector<1x384xbf16>, vector<384x256xbf16>, vector<1x256xf32> -> vector<1x256xf32>
    %502 = arith.addf %501, %16 : vector<1x256xf32>
    %cst_243 = arith.constant 0.000000e+00 : f32
    %503 = vector.broadcast %cst_243 : f32 to vector<1x256xf32>
    %504 = arith.maximumf %502, %503 : vector<1x256xf32>
    %505 = arith.truncf %466 : vector<2x128xf32> to vector<2x128xbf16>
    %cst_244 = arith.constant dense<0.000000e+00> : vector<1x128xf32>
    %506 = tpu.matmul %19, %505, %cst_244 {dimension_numbers = #tpu.dot_dimension_numbers<[1], [0], [0], [1], [0, 0, 1, 1], [], []>} : vector<1x2xbf16>, vector<2x128xbf16>, vector<1x128xf32> -> vector<1x128xf32>
    %507 = arith.truncf %506 : vector<1x128xf32> to vector<1x128xbf16>
    %c0_245 = arith.constant 0 : index
    %c0_246 = arith.constant 0 : index
    %508 = vector.load %arg32[%c0_245, %c0_246] : memref<128x256xbf16, #tpu.memory_space<vmem>>, vector<128x256xbf16>
    %cst_247 = arith.constant dense<0.000000e+00> : vector<1x256xf32>
    %509 = tpu.matmul %507, %508, %cst_247 {dimension_numbers = #tpu.dot_dimension_numbers<[1], [0], [0], [1], [0, 0, 1, 1], [], []>} : vector<1x128xbf16>, vector<128x256xbf16>, vector<1x256xf32> -> vector<1x256xf32>
    %510 = arith.addf %509, %18 : vector<1x256xf32>
    %511 = arith.truncf %504 : vector<1x256xf32> to vector<1x256xbf16>
    %512 = tpu.iota {dimensions = array<i32: 0>} : vector<1x256xi32>
    %cst_248 = arith.constant 0.000000e+00 : bf16
    %513 = vector.broadcast %cst_248 : bf16 to vector<1x256xbf16>
    %c-1_i32_249 = arith.constant -1 : i32
    %514 = vector.broadcast %c-1_i32_249 : i32 to vector<1x256xi32>
    %515 = arith.addi %512, %514 : vector<1x256xi32>
    %c0_i32_250 = arith.constant 0 : i32
    %516 = vector.broadcast %c0_i32_250 : i32 to vector<1x256xi32>
    %517 = arith.cmpi sge, %515, %516 : vector<1x256xi32>
    %c-1_i32_251 = arith.constant -1 : i32
    %518 = vector.broadcast %c-1_i32_251 : i32 to vector<1x256xi32>
    %519 = arith.addi %512, %518 : vector<1x256xi32>
    %c1_i32_252 = arith.constant 1 : i32
    %520 = vector.broadcast %c1_i32_252 : i32 to vector<1x256xi32>
    %521 = arith.cmpi slt, %519, %520 : vector<1x256xi32>
    %522 = arith.andi %517, %521 : vector<1x256xi1>
    %cst_253 = arith.constant 0.000000e+00 : bf16
    %523 = vector.broadcast %cst_253 : bf16 to vector<1x256xbf16>
    %524 = arith.select %522, %513, %523 : vector<1x256xi1>, vector<1x256xbf16>
    %cst_254 = arith.constant 0.000000e+00 : bf16
    %525 = vector.broadcast %cst_254 : bf16 to vector<1x256xbf16>
    %c1_i32_255 = arith.constant 1 : i32
    %526 = vector.broadcast %c1_i32_255 : i32 to vector<1x256xi32>
    %527 = arith.addi %512, %526 : vector<1x256xi32>
    %c0_i32_256 = arith.constant 0 : i32
    %528 = vector.broadcast %c0_i32_256 : i32 to vector<1x256xi32>
    %529 = arith.cmpi sge, %527, %528 : vector<1x256xi32>
    %c1_i32_257 = arith.constant 1 : i32
    %530 = vector.broadcast %c1_i32_257 : i32 to vector<1x256xi32>
    %531 = arith.addi %512, %530 : vector<1x256xi32>
    %c1_i32_258 = arith.constant 1 : i32
    %532 = vector.broadcast %c1_i32_258 : i32 to vector<1x256xi32>
    %533 = arith.cmpi slt, %531, %532 : vector<1x256xi32>
    %534 = arith.andi %529, %533 : vector<1x256xi1>
    %cst_259 = arith.constant 0.000000e+00 : bf16
    %535 = vector.broadcast %cst_259 : bf16 to vector<1x256xbf16>
    %536 = arith.select %534, %525, %535 : vector<1x256xi1>, vector<1x256xbf16>
    %537 = tpu.concatenate %524, %511, %536 in 1 : vector<1x256xbf16>, vector<1x256xbf16>, vector<1x256xbf16> -> vector<1x768xbf16>
    %c0_260 = arith.constant 0 : index
    %c0_261 = arith.constant 0 : index
    %538 = vector.load %arg30[%c0_260, %c0_261] : memref<768x256xbf16, #tpu.memory_space<vmem>>, vector<768x256xbf16>
    %cst_262 = arith.constant dense<0.000000e+00> : vector<1x256xf32>
    %539 = tpu.matmul %537, %538, %cst_262 {dimension_numbers = #tpu.dot_dimension_numbers<[1], [0], [0], [1], [0, 0, 1, 1], [], []>} : vector<1x768xbf16>, vector<768x256xbf16>, vector<1x256xf32> -> vector<1x256xf32>
    %540 = arith.addf %539, %17 : vector<1x256xf32>
    %541 = arith.addf %540, %510 : vector<1x256xf32>
    %cst_263 = arith.constant 0.000000e+00 : f32
    %542 = vector.broadcast %cst_263 : f32 to vector<1x256xf32>
    %543 = arith.maximumf %541, %542 : vector<1x256xf32>
    %544 = arith.truncf %543 : vector<1x256xf32> to vector<1x256xbf16>
    %545 = tpu.iota {dimensions = array<i32: 0>} : vector<1x256xi32>
    %cst_264 = arith.constant 0.000000e+00 : bf16
    %546 = vector.broadcast %cst_264 : bf16 to vector<1x256xbf16>
    %c-1_i32_265 = arith.constant -1 : i32
    %547 = vector.broadcast %c-1_i32_265 : i32 to vector<1x256xi32>
    %548 = arith.addi %545, %547 : vector<1x256xi32>
    %c0_i32_266 = arith.constant 0 : i32
    %549 = vector.broadcast %c0_i32_266 : i32 to vector<1x256xi32>
    %550 = arith.cmpi sge, %548, %549 : vector<1x256xi32>
    %c-1_i32_267 = arith.constant -1 : i32
    %551 = vector.broadcast %c-1_i32_267 : i32 to vector<1x256xi32>
    %552 = arith.addi %545, %551 : vector<1x256xi32>
    %c1_i32_268 = arith.constant 1 : i32
    %553 = vector.broadcast %c1_i32_268 : i32 to vector<1x256xi32>
    %554 = arith.cmpi slt, %552, %553 : vector<1x256xi32>
    %555 = arith.andi %550, %554 : vector<1x256xi1>
    %cst_269 = arith.constant 0.000000e+00 : bf16
    %556 = vector.broadcast %cst_269 : bf16 to vector<1x256xbf16>
    %557 = arith.select %555, %546, %556 : vector<1x256xi1>, vector<1x256xbf16>
    %cst_270 = arith.constant 0.000000e+00 : bf16
    %558 = vector.broadcast %cst_270 : bf16 to vector<1x256xbf16>
    %c1_i32_271 = arith.constant 1 : i32
    %559 = vector.broadcast %c1_i32_271 : i32 to vector<1x256xi32>
    %560 = arith.addi %545, %559 : vector<1x256xi32>
    %c0_i32_272 = arith.constant 0 : i32
    %561 = vector.broadcast %c0_i32_272 : i32 to vector<1x256xi32>
    %562 = arith.cmpi sge, %560, %561 : vector<1x256xi32>
    %c1_i32_273 = arith.constant 1 : i32
    %563 = vector.broadcast %c1_i32_273 : i32 to vector<1x256xi32>
    %564 = arith.addi %545, %563 : vector<1x256xi32>
    %c1_i32_274 = arith.constant 1 : i32
    %565 = vector.broadcast %c1_i32_274 : i32 to vector<1x256xi32>
    %566 = arith.cmpi slt, %564, %565 : vector<1x256xi32>
    %567 = arith.andi %562, %566 : vector<1x256xi1>
    %cst_275 = arith.constant 0.000000e+00 : bf16
    %568 = vector.broadcast %cst_275 : bf16 to vector<1x256xbf16>
    %569 = arith.select %567, %558, %568 : vector<1x256xi1>, vector<1x256xbf16>
    %570 = tpu.concatenate %557, %544, %569 in 1 : vector<1x256xbf16>, vector<1x256xbf16>, vector<1x256xbf16> -> vector<1x768xbf16>
    %c0_276 = arith.constant 0 : index
    %c0_277 = arith.constant 0 : index
    %571 = vector.load %arg35[%c0_276, %c0_277] : memref<768x256xbf16, #tpu.memory_space<vmem>>, vector<768x256xbf16>
    %cst_278 = arith.constant dense<0.000000e+00> : vector<1x256xf32>
    %572 = tpu.matmul %570, %571, %cst_278 {dimension_numbers = #tpu.dot_dimension_numbers<[1], [0], [0], [1], [0, 0, 1, 1], [], []>} : vector<1x768xbf16>, vector<768x256xbf16>, vector<1x256xf32> -> vector<1x256xf32>
    %573 = arith.addf %572, %20 : vector<1x256xf32>
    %cst_279 = arith.constant 0.000000e+00 : f32
    %574 = vector.broadcast %cst_279 : f32 to vector<1x256xf32>
    %575 = arith.maximumf %573, %574 : vector<1x256xf32>
    %576 = arith.truncf %575 : vector<1x256xf32> to vector<1x256xbf16>
    %577 = tpu.iota {dimensions = array<i32: 0>} : vector<1x256xi32>
    %cst_280 = arith.constant 0.000000e+00 : bf16
    %578 = vector.broadcast %cst_280 : bf16 to vector<1x256xbf16>
    %c-1_i32_281 = arith.constant -1 : i32
    %579 = vector.broadcast %c-1_i32_281 : i32 to vector<1x256xi32>
    %580 = arith.addi %577, %579 : vector<1x256xi32>
    %c0_i32_282 = arith.constant 0 : i32
    %581 = vector.broadcast %c0_i32_282 : i32 to vector<1x256xi32>
    %582 = arith.cmpi sge, %580, %581 : vector<1x256xi32>
    %c-1_i32_283 = arith.constant -1 : i32
    %583 = vector.broadcast %c-1_i32_283 : i32 to vector<1x256xi32>
    %584 = arith.addi %577, %583 : vector<1x256xi32>
    %c1_i32_284 = arith.constant 1 : i32
    %585 = vector.broadcast %c1_i32_284 : i32 to vector<1x256xi32>
    %586 = arith.cmpi slt, %584, %585 : vector<1x256xi32>
    %587 = arith.andi %582, %586 : vector<1x256xi1>
    %cst_285 = arith.constant 0.000000e+00 : bf16
    %588 = vector.broadcast %cst_285 : bf16 to vector<1x256xbf16>
    %589 = arith.select %587, %578, %588 : vector<1x256xi1>, vector<1x256xbf16>
    %cst_286 = arith.constant 0.000000e+00 : bf16
    %590 = vector.broadcast %cst_286 : bf16 to vector<1x256xbf16>
    %c1_i32_287 = arith.constant 1 : i32
    %591 = vector.broadcast %c1_i32_287 : i32 to vector<1x256xi32>
    %592 = arith.addi %577, %591 : vector<1x256xi32>
    %c0_i32_288 = arith.constant 0 : i32
    %593 = vector.broadcast %c0_i32_288 : i32 to vector<1x256xi32>
    %594 = arith.cmpi sge, %592, %593 : vector<1x256xi32>
    %c1_i32_289 = arith.constant 1 : i32
    %595 = vector.broadcast %c1_i32_289 : i32 to vector<1x256xi32>
    %596 = arith.addi %577, %595 : vector<1x256xi32>
    %c1_i32_290 = arith.constant 1 : i32
    %597 = vector.broadcast %c1_i32_290 : i32 to vector<1x256xi32>
    %598 = arith.cmpi slt, %596, %597 : vector<1x256xi32>
    %599 = arith.andi %594, %598 : vector<1x256xi1>
    %cst_291 = arith.constant 0.000000e+00 : bf16
    %600 = vector.broadcast %cst_291 : bf16 to vector<1x256xbf16>
    %601 = arith.select %599, %590, %600 : vector<1x256xi1>, vector<1x256xbf16>
    %602 = tpu.concatenate %589, %576, %601 in 1 : vector<1x256xbf16>, vector<1x256xbf16>, vector<1x256xbf16> -> vector<1x768xbf16>
    %c0_292 = arith.constant 0 : index
    %c0_293 = arith.constant 0 : index
    %603 = vector.load %arg37[%c0_292, %c0_293] : memref<768x256xbf16, #tpu.memory_space<vmem>>, vector<768x256xbf16>
    %cst_294 = arith.constant dense<0.000000e+00> : vector<1x256xf32>
    %604 = tpu.matmul %602, %603, %cst_294 {dimension_numbers = #tpu.dot_dimension_numbers<[1], [0], [0], [1], [0, 0, 1, 1], [], []>} : vector<1x768xbf16>, vector<768x256xbf16>, vector<1x256xf32> -> vector<1x256xf32>
    %605 = arith.addf %604, %21 : vector<1x256xf32>
    %606 = arith.addf %605, %543 : vector<1x256xf32>
    %cst_295 = arith.constant 0.000000e+00 : f32
    %607 = vector.broadcast %cst_295 : f32 to vector<1x256xf32>
    %608 = arith.maximumf %606, %607 : vector<1x256xf32>
    %609 = arith.truncf %608 : vector<1x256xf32> to vector<1x256xbf16>
    %cst_296 = arith.constant dense<0.000000e+00> : vector<1x128xf32>
    %610 = tpu.matmul %609, %22, %cst_296 {dimension_numbers = #tpu.dot_dimension_numbers<[1], [0], [0], [1], [0, 0, 1, 1], [], []>} : vector<1x256xbf16>, vector<256x128xbf16>, vector<1x128xf32> -> vector<1x128xf32>
    %611 = arith.addf %610, %23 : vector<1x128xf32>
    %c0_297 = arith.constant 0 : index
    %c0_298 = arith.constant 0 : index
    %c0_299 = arith.constant 0 : index
    %612 = vector.load %arg41[%c0_297, %c0_298, %c0_299] : memref<1x1x128xf32, #tpu.memory_space<vmem>>, vector<1x1x128xf32>
    %613 = vector.shape_cast %612 : vector<1x1x128xf32> to vector<1x128xf32>
    %614 = vector.shape_cast %611 : vector<1x128xf32> to vector<1x1x128xf32>
    tpu.vector_store %arg41[%c0_297, %c0_298, %c0_299], %614 {strides = array<i32>} : memref<1x1x128xf32, #tpu.memory_space<vmem>>, vector<1x1x128xf32>,
    return
  }
  func.func @transform_0(%arg0: i32) -> (i32, i32, i32) {
    %c0_i32 = arith.constant 0 : i32
    %c0_i32_0 = arith.constant 0 : i32
    %c0_i32_1 = arith.constant 0 : i32
    return %arg0, %c0_i32, %c0_i32_0 : i32, i32, i32
  }
  func.func @transform_1(%arg0: i32) -> (i32, i32) {
    %c0_i32 = arith.constant 0 : i32
    %c0_i32_0 = arith.constant 0 : i32
    %c0_i32_1 = arith.constant 0 : i32
    return %c0_i32, %c0_i32_0 : i32, i32
  }
  func.func @transform_2(%arg0: i32) -> (i32, i32) {
    %c0_i32 = arith.constant 0 : i32
    %c0_i32_0 = arith.constant 0 : i32
    %c0_i32_1 = arith.constant 0 : i32
    return %c0_i32, %c0_i32_0 : i32, i32
  }
  func.func @transform_3(%arg0: i32) -> (i32, i32) {
    %c0_i32 = arith.constant 0 : i32
    %c0_i32_0 = arith.constant 0 : i32
    %c0_i32_1 = arith.constant 0 : i32
    return %c0_i32, %c0_i32_0 : i32, i32
  }
  func.func @transform_4(%arg0: i32) -> (i32, i32) {
    %c0_i32 = arith.constant 0 : i32
    %c0_i32_0 = arith.constant 0 : i32
    %c0_i32_1 = arith.constant 0 : i32
    return %c0_i32, %c0_i32_0 : i32, i32
  }
  func.func @transform_5(%arg0: i32) -> (i32, i32) {
    %c0_i32 = arith.constant 0 : i32
    %c0_i32_0 = arith.constant 0 : i32
    %c0_i32_1 = arith.constant 0 : i32
    return %c0_i32, %c0_i32_0 : i32, i32
  }
  func.func @transform_6(%arg0: i32) -> (i32, i32) {
    %c0_i32 = arith.constant 0 : i32
    %c0_i32_0 = arith.constant 0 : i32
    %c0_i32_1 = arith.constant 0 : i32
    return %c0_i32, %c0_i32_0 : i32, i32
  }
  func.func @transform_7(%arg0: i32) -> (i32, i32) {
    %c0_i32 = arith.constant 0 : i32
    %c0_i32_0 = arith.constant 0 : i32
    %c0_i32_1 = arith.constant 0 : i32
    return %c0_i32, %c0_i32_0 : i32, i32
  }
  func.func @transform_8(%arg0: i32) -> (i32, i32) {
    %c0_i32 = arith.constant 0 : i32
    %c0_i32_0 = arith.constant 0 : i32
    %c0_i32_1 = arith.constant 0 : i32
    return %c0_i32, %c0_i32_0 : i32, i32
  }
  func.func @transform_9(%arg0: i32) -> (i32, i32) {
    %c0_i32 = arith.constant 0 : i32
    %c0_i32_0 = arith.constant 0 : i32
    %c0_i32_1 = arith.constant 0 : i32
    return %c0_i32, %c0_i32_0 : i32, i32
  }
  func.func @transform_10(%arg0: i32) -> (i32, i32) {
    %c0_i32 = arith.constant 0 : i32
    %c0_i32_0 = arith.constant 0 : i32
    %c0_i32_1 = arith.constant 0 : i32
    return %c0_i32, %c0_i32_0 : i32, i32
  }
  func.func @transform_11(%arg0: i32) -> (i32, i32) {
    %c0_i32 = arith.constant 0 : i32
    %c0_i32_0 = arith.constant 0 : i32
    %c0_i32_1 = arith.constant 0 : i32
    return %c0_i32, %c0_i32_0 : i32, i32
  }
  func.func @transform_12(%arg0: i32) -> (i32, i32) {
    %c0_i32 = arith.constant 0 : i32
    %c0_i32_0 = arith.constant 0 : i32
    %c0_i32_1 = arith.constant 0 : i32
    return %c0_i32, %c0_i32_0 : i32, i32
  }
  func.func @transform_13(%arg0: i32) -> (i32, i32) {
    %c0_i32 = arith.constant 0 : i32
    %c0_i32_0 = arith.constant 0 : i32
    %c0_i32_1 = arith.constant 0 : i32
    return %c0_i32, %c0_i32_0 : i32, i32
  }
  func.func @transform_14(%arg0: i32) -> (i32, i32) {
    %c0_i32 = arith.constant 0 : i32
    %c0_i32_0 = arith.constant 0 : i32
    %c0_i32_1 = arith.constant 0 : i32
    return %c0_i32, %c0_i32_0 : i32, i32
  }
  func.func @transform_15(%arg0: i32) -> (i32, i32) {
    %c0_i32 = arith.constant 0 : i32
    %c0_i32_0 = arith.constant 0 : i32
    %c0_i32_1 = arith.constant 0 : i32
    return %c0_i32, %c0_i32_0 : i32, i32
  }
  func.func @transform_16(%arg0: i32) -> (i32, i32) {
    %c0_i32 = arith.constant 0 : i32
    %c0_i32_0 = arith.constant 0 : i32
    %c0_i32_1 = arith.constant 0 : i32
    return %c0_i32, %c0_i32_0 : i32, i32
  }
  func.func @transform_17(%arg0: i32) -> (i32, i32) {
    %c0_i32 = arith.constant 0 : i32
    %c0_i32_0 = arith.constant 0 : i32
    %c0_i32_1 = arith.constant 0 : i32
    return %c0_i32, %c0_i32_0 : i32, i32
  }
  func.func @transform_18(%arg0: i32) -> (i32, i32) {
    %c0_i32 = arith.constant 0 : i32
    %c0_i32_0 = arith.constant 0 : i32
    %c0_i32_1 = arith.constant 0 : i32
    return %c0_i32, %c0_i32_0 : i32, i32
  }
  func.func @transform_19(%arg0: i32) -> (i32, i32) {
    %c0_i32 = arith.constant 0 : i32
    %c0_i32_0 = arith.constant 0 : i32
    %c0_i32_1 = arith.constant 0 : i32
    return %c0_i32, %c0_i32_0 : i32, i32
  }
  func.func @transform_20(%arg0: i32) -> (i32, i32) {
    %c0_i32 = arith.constant 0 : i32
    %c0_i32_0 = arith.constant 0 : i32
    %c0_i32_1 = arith.constant 0 : i32
    return %c0_i32, %c0_i32_0 : i32, i32
  }
  func.func @transform_21(%arg0: i32) -> (i32, i32) {
    %c0_i32 = arith.constant 0 : i32
    %c0_i32_0 = arith.constant 0 : i32
    %c0_i32_1 = arith.constant 0 : i32
    return %c0_i32, %c0_i32_0 : i32, i32
  }
  func.func @transform_22(%arg0: i32) -> (i32, i32) {
    %c0_i32 = arith.constant 0 : i32
    %c0_i32_0 = arith.constant 0 : i32
    %c0_i32_1 = arith.constant 0 : i32
    return %c0_i32, %c0_i32_0 : i32, i32
  }
  func.func @transform_23(%arg0: i32) -> (i32, i32) {
    %c0_i32 = arith.constant 0 : i32
    %c0_i32_0 = arith.constant 0 : i32
    %c0_i32_1 = arith.constant 0 : i32
    return %c0_i32, %c0_i32_0 : i32, i32
  }
  func.func @transform_24(%arg0: i32) -> (i32, i32) {
    %c0_i32 = arith.constant 0 : i32
    %c0_i32_0 = arith.constant 0 : i32
    %c0_i32_1 = arith.constant 0 : i32
    return %c0_i32, %c0_i32_0 : i32, i32
  }
  func.func @transform_25(%arg0: i32) -> (i32, i32) {
    %c0_i32 = arith.constant 0 : i32
    %c0_i32_0 = arith.constant 0 : i32
    %c0_i32_1 = arith.constant 0 : i32
    return %c0_i32, %c0_i32_0 : i32, i32
  }
  func.func @transform_26(%arg0: i32) -> (i32, i32) {
    %c0_i32 = arith.constant 0 : i32
    %c0_i32_0 = arith.constant 0 : i32
    %c0_i32_1 = arith.constant 0 : i32
    return %c0_i32, %c0_i32_0 : i32, i32
  }
  func.func @transform_27(%arg0: i32) -> (i32, i32) {
    %c0_i32 = arith.constant 0 : i32
    %c0_i32_0 = arith.constant 0 : i32
    %c0_i32_1 = arith.constant 0 : i32
    return %c0_i32, %c0_i32_0 : i32, i32
  }
  func.func @transform_28(%arg0: i32) -> (i32, i32) {
    %c0_i32 = arith.constant 0 : i32
    %c0_i32_0 = arith.constant 0 : i32
    %c0_i32_1 = arith.constant 0 : i32
    return %c0_i32, %c0_i32_0 : i32, i32
  }
  func.func @transform_29(%arg0: i32) -> (i32, i32) {
    %c0_i32 = arith.constant 0 : i32
    %c0_i32_0 = arith.constant 0 : i32
    %c0_i32_1 = arith.constant 0 : i32
    return %c0_i32, %c0_i32_0 : i32, i32
  }
  func.func @transform_30(%arg0: i32) -> (i32, i32) {
    %c0_i32 = arith.constant 0 : i32
    %c0_i32_0 = arith.constant 0 : i32
    %c0_i32_1 = arith.constant 0 : i32
    return %c0_i32, %c0_i32_0 : i32, i32
  }
  func.func @transform_31(%arg0: i32) -> (i32, i32) {
    %c0_i32 = arith.constant 0 : i32
    %c0_i32_0 = arith.constant 0 : i32
    %c0_i32_1 = arith.constant 0 : i32
    return %c0_i32, %c0_i32_0 : i32, i32
  }
  func.func @transform_32(%arg0: i32) -> (i32, i32) {
    %c0_i32 = arith.constant 0 : i32
    %c0_i32_0 = arith.constant 0 : i32
    %c0_i32_1 = arith.constant 0 : i32
    return %c0_i32, %c0_i32_0 : i32, i32
  }
  func.func @transform_33(%arg0: i32) -> (i32, i32) {
    %c0_i32 = arith.constant 0 : i32
    %c0_i32_0 = arith.constant 0 : i32
    %c0_i32_1 = arith.constant 0 : i32
    return %c0_i32, %c0_i32_0 : i32, i32
  }
  func.func @transform_34(%arg0: i32) -> (i32, i32) {
    %c0_i32 = arith.constant 0 : i32
    %c0_i32_0 = arith.constant 0 : i32
    %c0_i32_1 = arith.constant 0 : i32
    return %c0_i32, %c0_i32_0 : i32, i32
  }
  func.func @transform_35(%arg0: i32) -> (i32, i32) {
    %c0_i32 = arith.constant 0 : i32
    %c0_i32_0 = arith.constant 0 : i32
    %c0_i32_1 = arith.constant 0 : i32
    return %c0_i32, %c0_i32_0 : i32, i32
  }
  func.func @transform_36(%arg0: i32) -> (i32, i32) {
    %c0_i32 = arith.constant 0 : i32
    %c0_i32_0 = arith.constant 0 : i32
    %c0_i32_1 = arith.constant 0 : i32
    return %c0_i32, %c0_i32_0 : i32, i32
  }
  func.func @transform_37(%arg0: i32) -> (i32, i32) {
    %c0_i32 = arith.constant 0 : i32
    %c0_i32_0 = arith.constant 0 : i32
    %c0_i32_1 = arith.constant 0 : i32
    return %c0_i32, %c0_i32_0 : i32, i32
  }
  func.func @transform_38(%arg0: i32) -> (i32, i32) {
    %c0_i32 = arith.constant 0 : i32
    %c0_i32_0 = arith.constant 0 : i32
    %c0_i32_1 = arith.constant 0 : i32
    return %c0_i32, %c0_i32_0 : i32, i32
  }
  func.func @transform_39(%arg0: i32) -> (i32, i32) {
    %c0_i32 = arith.constant 0 : i32
    %c0_i32_0 = arith.constant 0 : i32
    %c0_i32_1 = arith.constant 0 : i32
    return %c0_i32, %c0_i32_0 : i32, i32
  }
  func.func @transform_40(%arg0: i32) -> (i32, i32, i32) {
    %c0_i32 = arith.constant 0 : i32
    %c0_i32_0 = arith.constant 0 : i32
    %c0_i32_1 = arith.constant 0 : i32
    return %arg0, %c0_i32, %c0_i32_0 : i32, i32, i32
  }
}

</mosaic_0001>

<llo_original>
// kernel: resnet_wifi_forward.1
$region0: #{resnet_wifi_forward.1}
  #allocation0 [shape = 'u32[]', space=smem, size = 0x4, offset = 0x4, fixed_abs, tag = 'smem constant byte address 0x4 - core index']
  #allocation1 [shape = 'u32[72,128]{1,0:T(1,128)}', space=vmem, size = 0x9000, scoped, tag = 'internal scratch']
  %s0 = inlined_call_operand.smem [shape: u32[41], index: -1, kind: input, shape index: {}]
  %s1 = sld [smem:[%s0]]
  %s2 = scalar_lea.smem %s0, 1
  %s3 = sld [smem:[%s2]]
  %s4 = scalar_lea.smem %s0, 2
  %s5 = sld [smem:[%s4]]
  %s6 = scalar_lea.smem %s0, 3
  %s7 = sld [smem:[%s6]]
  %s8 = scalar_lea.smem %s0, 4
  %s9 = sld [smem:[%s8]]
  %s10 = scalar_lea.smem %s0, 5
  %s11 = sld [smem:[%s10]]
  %s12 = scalar_lea.smem %s0, 6
  %s13 = sld [smem:[%s12]]
  %s14 = scalar_lea.smem %s0, 7
  %s15 = sld [smem:[%s14]]
  %s16 = scalar_lea.smem %s0, 8
  %s17 = sld [smem:[%s16]]
  %s18 = scalar_lea.smem %s0, 9
  %s19 = sld [smem:[%s18]]
  %s20 = scalar_lea.smem %s0, 10
  %s21 = sld [smem:[%s20]]
  %s22 = scalar_lea.smem %s0, 11
  %s23 = sld [smem:[%s22]]
  %s24 = scalar_lea.smem %s0, 12
  %s25 = sld [smem:[%s24]]
  %s26 = scalar_lea.smem %s0, 13
  %s27 = sld [smem:[%s26]]
  %s28 = scalar_lea.smem %s0, 14
  %s29 = sld [smem:[%s28]]
  %s30 = scalar_lea.smem %s0, 15
  %s31 = sld [smem:[%s30]]
  %s32 = scalar_lea.smem %s0, 16
  %s33 = sld [smem:[%s32]]
  %s34 = scalar_lea.smem %s0, 17
  %s35 = sld [smem:[%s34]]
  %s36 = scalar_lea.smem %s0, 18
  %s37 = sld [smem:[%s36]]
  %s38 = scalar_lea.smem %s0, 19
  %s39 = sld [smem:[%s38]]
  %s40 = scalar_lea.smem %s0, 20
  %s41 = sld [smem:[%s40]]
  %s42 = scalar_lea.smem %s0, 21
  %s43 = sld [smem:[%s42]]
  %s44 = scalar_lea.smem %s0, 22
  %s45 = sld [smem:[%s44]]
  %s46 = scalar_lea.smem %s0, 23
  %s47 = sld [smem:[%s46]]
  %s48 = scalar_lea.smem %s0, 24
  %s49 = sld [smem:[%s48]]
  %s50 = scalar_lea.smem %s0, 25
  %s51 = sld [smem:[%s50]]
  %s52 = scalar_lea.smem %s0, 26
  %s53 = sld [smem:[%s52]]
  %s54 = scalar_lea.smem %s0, 27
  %s55 = sld [smem:[%s54]]
  %s56 = scalar_lea.smem %s0, 28
  %s57 = sld [smem:[%s56]]
  %s58 = scalar_lea.smem %s0, 29
  %s59 = sld [smem:[%s58]]
  %s60 = scalar_lea.smem %s0, 30
  %s61 = sld [smem:[%s60]]
  %s62 = scalar_lea.smem %s0, 31
  %s63 = sld [smem:[%s62]]
  %s64 = scalar_lea.smem %s0, 32
  %s65 = sld [smem:[%s64]]
  %s66 = scalar_lea.smem %s0, 33
  %s67 = sld [smem:[%s66]]
  %s68 = scalar_lea.smem %s0, 34
  %s69 = sld [smem:[%s68]]
  %s70 = scalar_lea.smem %s0, 35
  %s71 = sld [smem:[%s70]]
  %s72 = scalar_lea.smem %s0, 36
  %s73 = sld [smem:[%s72]]
  %s74 = scalar_lea.smem %s0, 37
  %s75 = sld [smem:[%s74]]
  %s76 = scalar_lea.smem %s0, 38
  %s77 = sld [smem:[%s76]]
  %s78 = scalar_lea.smem %s0, 39
  %s79 = sld [smem:[%s78]]
  %s80 = scalar_lea.smem %s0, 40
  %s81 = sld [smem:[%s80]]
  %s82 = sld [smem:[#allocation0]]
  $region193: #{resnet_wifi_forward.1} parent=0
    _
  %s84 = ssub.s32 1, %s82
  %s85 = scalar_select 0, %s84, %s82
  $region1: #{resnet_wifi_forward.1} parent=0
    #allocation2 [shape = 'u8[1024]{0}', space=vmem, size = 0x400, scoped, tag = 'output window, operand 0']
    #allocation3 [shape = 's32[2]{0}', space=sflag, size = 0x8, scoped, tag = 'scoped memory for resnet_wifi_forward.1']
    %86 = vsyncpa [#allocation3], 0
    %s87 = scalar_lea.sflag [#allocation3], 1
    %88 = vsyncpa %s87, 0
    loop: start=0, step=1, limit=4
    $region2: #{resnet_wifi_forward.1} parent=1 // loop_pre_header
      _
    $region3: #{resnet_wifi_forward.1} parent=1 // loop_header
      %s90 = sphi 0, %s94
      %p91 = scmp.ge.s32.totalorder %s90, 4
      %s100 = sphi 0, %s102
      %s103 = sphi 0, %s100
      %s104 = sphi 0, %s103
      %s120 = sphi 0, %s104
      %s124 = sphi 0, %s124
      %s126 = sphi 0, %s124
      %s127 = sphi 0, %s126
      %s141 = sphi 0, %s127
      %s145 = sphi 0, %s145
      %s147 = sphi 0, %s145
      %s148 = sphi 0, %s147
      %s162 = sphi 0, %s148
      %s166 = sphi 0, %s166
      %s168 = sphi 0, %s166
      %s169 = sphi 0, %s168
      %s183 = sphi 0, %s169
      %s187 = sphi 0, %s187
      %s189 = sphi 0, %s187
      %s190 = sphi 0, %s189
      %s204 = sphi 0, %s190
      %s208 = sphi 0, %s208
      %s210 = sphi 0, %s208
      %s211 = sphi 0, %s210
      %s225 = sphi 0, %s211
      %s229 = sphi 0, %s229
      %s231 = sphi 0, %s229
      %s232 = sphi 0, %s231
      %s246 = sphi 0, %s232
      %s250 = sphi 0, %s250
      %s252 = sphi 0, %s250
      %s253 = sphi 0, %s252
      %s267 = sphi 0, %s253
      %s271 = sphi 0, %s271
      %s273 = sphi 0, %s271
      %s274 = sphi 0, %s273
      %s288 = sphi 0, %s274
      %s292 = sphi 0, %s292
      %s294 = sphi 0, %s292
      %s295 = sphi 0, %s294
      %s309 = sphi 0, %s295
      %s313 = sphi 0, %s313
      %s315 = sphi 0, %s313
      %s316 = sphi 0, %s315
      %s330 = sphi 0, %s316
      %s334 = sphi 0, %s334
      %s336 = sphi 0, %s334
      %s337 = sphi 0, %s336
      %s351 = sphi 0, %s337
      %s355 = sphi 0, %s355
      %s357 = sphi 0, %s355
      %s358 = sphi 0, %s357
      %s372 = sphi 0, %s358
      %s376 = sphi 0, %s376
      %s378 = sphi 0, %s376
      %s379 = sphi 0, %s378
      %s393 = sphi 0, %s379
      %s397 = sphi 0, %s397
      %s399 = sphi 0, %s397
      %s400 = sphi 0, %s399
      %s414 = sphi 0, %s400
      %s418 = sphi 0, %s418
      %s420 = sphi 0, %s418
      %s421 = sphi 0, %s420
      %s435 = sphi 0, %s421
      %s439 = sphi 0, %s439
      %s441 = sphi 0, %s439
      %s442 = sphi 0, %s441
      %s456 = sphi 0, %s442
      %s460 = sphi 0, %s460
      %s462 = sphi 0, %s460
      %s463 = sphi 0, %s462
      %s477 = sphi 0, %s463
      %s481 = sphi 0, %s481
      %s483 = sphi 0, %s481
      %s484 = sphi 0, %s483
      %s498 = sphi 0, %s484
      %s502 = sphi 0, %s502
      %s504 = sphi 0, %s502
      %s505 = sphi 0, %s504
      %s519 = sphi 0, %s505
      %s523 = sphi 0, %s523
      %s525 = sphi 0, %s523
      %s526 = sphi 0, %s525
      %s540 = sphi 0, %s526
      %s544 = sphi 0, %s544
      %s546 = sphi 0, %s544
      %s547 = sphi 0, %s546
      %s561 = sphi 0, %s547
      %s565 = sphi 0, %s565
      %s567 = sphi 0, %s565
      %s568 = sphi 0, %s567
      %s582 = sphi 0, %s568
      %s586 = sphi 0, %s586
      %s588 = sphi 0, %s586
      %s589 = sphi 0, %s588
      %s603 = sphi 0, %s589
      %s607 = sphi 0, %s607
      %s609 = sphi 0, %s607
      %s610 = sphi 0, %s609
      %s624 = sphi 0, %s610
      %s628 = sphi 0, %s628
      %s630 = sphi 0, %s628
      %s631 = sphi 0, %s630
      %s645 = sphi 0, %s631
      %s649 = sphi 0, %s649
      %s651 = sphi 0, %s649
      %s652 = sphi 0, %s651
      %s666 = sphi 0, %s652
      %s670 = sphi 0, %s670
      %s672 = sphi 0, %s670
      %s673 = sphi 0, %s672
      %s687 = sphi 0, %s673
      %s691 = sphi 0, %s691
      %s693 = sphi 0, %s691
      %s694 = sphi 0, %s693
      %s708 = sphi 0, %s694
      %s712 = sphi 0, %s712
      %s714 = sphi 0, %s712
      %s715 = sphi 0, %s714
      %s729 = sphi 0, %s715
      %s733 = sphi 0, %s733
      %s735 = sphi 0, %s733
      %s736 = sphi 0, %s735
      %s750 = sphi 0, %s736
      %s754 = sphi 0, %s754
      %s756 = sphi 0, %s754
      %s757 = sphi 0, %s756
      %s771 = sphi 0, %s757
      %s775 = sphi 0, %s775
      %s777 = sphi 0, %s775
      %s778 = sphi 0, %s777
      %s792 = sphi 0, %s778
      %s796 = sphi 0, %s796
      %s798 = sphi 0, %s796
      %s799 = sphi 0, %s798
      %s813 = sphi 0, %s799
      %s817 = sphi 0, %s817
      %s819 = sphi 0, %s817
      %s820 = sphi 0, %s819
      %s834 = sphi 0, %s820
      %s838 = sphi 0, %s838
      %s840 = sphi 0, %s838
      %s841 = sphi 0, %s840
      %s855 = sphi 0, %s841
      %s859 = sphi 0, %s859
      %s861 = sphi 0, %s859
      %s862 = sphi 0, %s861
      %s876 = sphi 0, %s862
      %s880 = sphi 0, %s880
      %s882 = sphi 0, %s880
      %s883 = sphi 0, %s882
      %s897 = sphi 0, %s883
      %s901 = sphi 0, %s901
      %s903 = sphi 0, %s901
      %s904 = sphi 0, %s903
      %s918 = sphi 0, %s904
      %s922 = sphi 0, %s922
      %s924 = sphi 0, %s922
      %s925 = sphi 0, %s924
      %s939 = sphi 0, %s925
      %s945 = sphi 0, %s947
      %s948 = sphi 0, %s945
      %s949 = sphi 0, %s948
      %s965 = sphi 0, %s949
    $region4: #{resnet_wifi_forward.1} parent=1 // loop_header_branch
      %93 = sbr.rel (%p91) target = $region8
    $region5: #{resnet_wifi_forward.1} parent=1 // loop_body
      %s95 = ssub.s32 %s90, 1
      %s96 = ssub.s32 %s90, 2
      %s97 = sadd.s32 %s90, 1
      %s98 = ssub.s32 %s90, %s97
      %p99 = scmp.eq.s32.totalorder %s98, 0
      %s101 = sadd.s32 %s100, 1
      %s102 = scalar_select %p99, %s100, %s101
      %p105 = pneg %p99
      %p106 = scmp.eq.s32.totalorder %s90, 1
      %p107 = por %p105, %p106
      %p108 = scmp.ne.s32.totalorder %s100, %s103
      %p109 = scmp.eq.s32.totalorder %s90, 0
      %p110 = por %p108, %p109
      %p111 = scmp.ne.s32.totalorder %s100, %s103
      %p112 = scmp.eq.s32.totalorder %s95, 1
      %p113 = por %p111, %p112
      %p114 = scmp.ne.s32.totalorder %s103, %s104
      %p115 = scmp.eq.s32.totalorder %s95, 0
      %p116 = por %p114, %p115
      %p117 = scmp.ne.s32.totalorder %s103, %s104
      %p118 = scmp.eq.s32.totalorder %s96, 1
      %p119 = por %p117, %p118
      %p121 = scmp.ne.s32.totalorder %s104, %s120
      %p122 = scmp.eq.s32.totalorder %s96, 0
      %p123 = por %p121, %p122
      %s125 = sadd.s32 %s124, 1
      %p128 = scmp.eq.s32.totalorder %s90, 1
      %p129 = scmp.ne.s32.totalorder %s124, %s126
      %p130 = scmp.eq.s32.totalorder %s90, 0
      %p131 = por %p129, %p130
      %p132 = scmp.ne.s32.totalorder %s124, %s126
      %p133 = scmp.eq.s32.totalorder %s95, 1
      %p134 = por %p132, %p133
      %p135 = scmp.ne.s32.totalorder %s126, %s127
      %p136 = scmp.eq.s32.totalorder %s95, 0
      %p137 = por %p135, %p136
      %p138 = scmp.ne.s32.totalorder %s126, %s127
      %p139 = scmp.eq.s32.totalorder %s96, 1
      %p140 = por %p138, %p139
      %p142 = scmp.ne.s32.totalorder %s127, %s141
      %p143 = scmp.eq.s32.totalorder %s96, 0
      %p144 = por %p142, %p143
      %s146 = sadd.s32 %s145, 1
      %p149 = scmp.eq.s32.totalorder %s90, 1
      %p150 = scmp.ne.s32.totalorder %s145, %s147
      %p151 = scmp.eq.s32.totalorder %s90, 0
      %p152 = por %p150, %p151
      %p153 = scmp.ne.s32.totalorder %s145, %s147
      %p154 = scmp.eq.s32.totalorder %s95, 1
      %p155 = por %p153, %p154
      %p156 = scmp.ne.s32.totalorder %s147, %s148
      %p157 = scmp.eq.s32.totalorder %s95, 0
      %p158 = por %p156, %p157
      %p159 = scmp.ne.s32.totalorder %s147, %s148
      %p160 = scmp.eq.s32.totalorder %s96, 1
      %p161 = por %p159, %p160
      %p163 = scmp.ne.s32.totalorder %s148, %s162
      %p164 = scmp.eq.s32.totalorder %s96, 0
      %p165 = por %p163, %p164
      %s167 = sadd.s32 %s166, 1
      %p170 = scmp.eq.s32.totalorder %s90, 1
      %p171 = scmp.ne.s32.totalorder %s166, %s168
      %p172 = scmp.eq.s32.totalorder %s90, 0
      %p173 = por %p171, %p172
      %p174 = scmp.ne.s32.totalorder %s166, %s168
      %p175 = scmp.eq.s32.totalorder %s95, 1
      %p176 = por %p174, %p175
      %p177 = scmp.ne.s32.totalorder %s168, %s169
      %p178 = scmp.eq.s32.totalorder %s95, 0
      %p179 = por %p177, %p178
      %p180 = scmp.ne.s32.totalorder %s168, %s169
      %p181 = scmp.eq.s32.totalorder %s96, 1
      %p182 = por %p180, %p181
      %p184 = scmp.ne.s32.totalorder %s169, %s183
      %p185 = scmp.eq.s32.totalorder %s96, 0
      %p186 = por %p184, %p185
      %s188 = sadd.s32 %s187, 1
      %p191 = scmp.eq.s32.totalorder %s90, 1
      %p192 = scmp.ne.s32.totalorder %s187, %s189
      %p193 = scmp.eq.s32.totalorder %s90, 0
      %p194 = por %p192, %p193
      %p195 = scmp.ne.s32.totalorder %s187, %s189
      %p196 = scmp.eq.s32.totalorder %s95, 1
      %p197 = por %p195, %p196
      %p198 = scmp.ne.s32.totalorder %s189, %s190
      %p199 = scmp.eq.s32.totalorder %s95, 0
      %p200 = por %p198, %p199
      %p201 = scmp.ne.s32.totalorder %s189, %s190
      %p202 = scmp.eq.s32.totalorder %s96, 1
      %p203 = por %p201, %p202
      %p205 = scmp.ne.s32.totalorder %s190, %s204
      %p206 = scmp.eq.s32.totalorder %s96, 0
      %p207 = por %p205, %p206
      %s209 = sadd.s32 %s208, 1
      %p212 = scmp.eq.s32.totalorder %s90, 1
      %p213 = scmp.ne.s32.totalorder %s208, %s210
      %p214 = scmp.eq.s32.totalorder %s90, 0
      %p215 = por %p213, %p214
      %p216 = scmp.ne.s32.totalorder %s208, %s210
      %p217 = scmp.eq.s32.totalorder %s95, 1
      %p218 = por %p216, %p217
      %p219 = scmp.ne.s32.totalorder %s210, %s211
      %p220 = scmp.eq.s32.totalorder %s95, 0
      %p221 = por %p219, %p220
      %p222 = scmp.ne.s32.totalorder %s210, %s211
      %p223 = scmp.eq.s32.totalorder %s96, 1
      %p224 = por %p222, %p223
      %p226 = scmp.ne.s32.totalorder %s211, %s225
      %p227 = scmp.eq.s32.totalorder %s96, 0
      %p228 = por %p226, %p227
      %s230 = sadd.s32 %s229, 1
      %p233 = scmp.eq.s32.totalorder %s90, 1
      %p234 = scmp.ne.s32.totalorder %s229, %s231
      %p235 = scmp.eq.s32.totalorder %s90, 0
      %p236 = por %p234, %p235
      %p237 = scmp.ne.s32.totalorder %s229, %s231
      %p238 = scmp.eq.s32.totalorder %s95, 1
      %p239 = por %p237, %p238
      %p240 = scmp.ne.s32.totalorder %s231, %s232
      %p241 = scmp.eq.s32.totalorder %s95, 0
      %p242 = por %p240, %p241
      %p243 = scmp.ne.s32.totalorder %s231, %s232
      %p244 = scmp.eq.s32.totalorder %s96, 1
      %p245 = por %p243, %p244
      %p247 = scmp.ne.s32.totalorder %s232, %s246
      %p248 = scmp.eq.s32.totalorder %s96, 0
      %p249 = por %p247, %p248
      %s251 = sadd.s32 %s250, 1
      %p254 = scmp.eq.s32.totalorder %s90, 1
      %p255 = scmp.ne.s32.totalorder %s250, %s252
      %p256 = scmp.eq.s32.totalorder %s90, 0
      %p257 = por %p255, %p256
      %p258 = scmp.ne.s32.totalorder %s250, %s252
      %p259 = scmp.eq.s32.totalorder %s95, 1
      %p260 = por %p258, %p259
      %p261 = scmp.ne.s32.totalorder %s252, %s253
      %p262 = scmp.eq.s32.totalorder %s95, 0
      %p263 = por %p261, %p262
      %p264 = scmp.ne.s32.totalorder %s252, %s253
      %p265 = scmp.eq.s32.totalorder %s96, 1
      %p266 = por %p264, %p265
      %p268 = scmp.ne.s32.totalorder %s253, %s267
      %p269 = scmp.eq.s32.totalorder %s96, 0
      %p270 = por %p268, %p269
      %s272 = sadd.s32 %s271, 1
      %p275 = scmp.eq.s32.totalorder %s90, 1
      %p276 = scmp.ne.s32.totalorder %s271, %s273
      %p277 = scmp.eq.s32.totalorder %s90, 0
      %p278 = por %p276, %p277
      %p279 = scmp.ne.s32.totalorder %s271, %s273
      %p280 = scmp.eq.s32.totalorder %s95, 1
      %p281 = por %p279, %p280
      %p282 = scmp.ne.s32.totalorder %s273, %s274
      %p283 = scmp.eq.s32.totalorder %s95, 0
      %p284 = por %p282, %p283
      %p285 = scmp.ne.s32.totalorder %s273, %s274
      %p286 = scmp.eq.s32.totalorder %s96, 1
      %p287 = por %p285, %p286
      %p289 = scmp.ne.s32.totalorder %s274, %s288
      %p290 = scmp.eq.s32.totalorder %s96, 0
      %p291 = por %p289, %p290
      %s293 = sadd.s32 %s292, 1
      %p296 = scmp.eq.s32.totalorder %s90, 1
      %p297 = scmp.ne.s32.totalorder %s292, %s294
      %p298 = scmp.eq.s32.totalorder %s90, 0
      %p299 = por %p297, %p298
      %p300 = scmp.ne.s32.totalorder %s292, %s294
      %p301 = scmp.eq.s32.totalorder %s95, 1
      %p302 = por %p300, %p301
      %p303 = scmp.ne.s32.totalorder %s294, %s295
      %p304 = scmp.eq.s32.totalorder %s95, 0
      %p305 = por %p303, %p304
      %p306 = scmp.ne.s32.totalorder %s294, %s295
      %p307 = scmp.eq.s32.totalorder %s96, 1
      %p308 = por %p306, %p307
      %p310 = scmp.ne.s32.totalorder %s295, %s309
      %p311 = scmp.eq.s32.totalorder %s96, 0
      %p312 = por %p310, %p311
      %s314 = sadd.s32 %s313, 1
      %p317 = scmp.eq.s32.totalorder %s90, 1
      %p318 = scmp.ne.s32.totalorder %s313, %s315
      %p319 = scmp.eq.s32.totalorder %s90, 0
      %p320 = por %p318, %p319
      %p321 = scmp.ne.s32.totalorder %s313, %s315
      %p322 = scmp.eq.s32.totalorder %s95, 1
      %p323 = por %p321, %p322
      %p324 = scmp.ne.s32.totalorder %s315, %s316
      %p325 = scmp.eq.s32.totalorder %s95, 0
      %p326 = por %p324, %p325
      %p327 = scmp.ne.s32.totalorder %s315, %s316
      %p328 = scmp.eq.s32.totalorder %s96, 1
      %p329 = por %p327, %p328
      %p331 = scmp.ne.s32.totalorder %s316, %s330
      %p332 = scmp.eq.s32.totalorder %s96, 0
      %p333 = por %p331, %p332
      %s335 = sadd.s32 %s334, 1
      %p338 = scmp.eq.s32.totalorder %s90, 1
      %p339 = scmp.ne.s32.totalorder %s334, %s336
      %p340 = scmp.eq.s32.totalorder %s90, 0
      %p341 = por %p339, %p340
      %p342 = scmp.ne.s32.totalorder %s334, %s336
      %p343 = scmp.eq.s32.totalorder %s95, 1
      %p344 = por %p342, %p343
      %p345 = scmp.ne.s32.totalorder %s336, %s337
      %p346 = scmp.eq.s32.totalorder %s95, 0
      %p347 = por %p345, %p346
      %p348 = scmp.ne.s32.totalorder %s336, %s337
      %p349 = scmp.eq.s32.totalorder %s96, 1
      %p350 = por %p348, %p349
      %p352 = scmp.ne.s32.totalorder %s337, %s351
      %p353 = scmp.eq.s32.totalorder %s96, 0
      %p354 = por %p352, %p353
      %s356 = sadd.s32 %s355, 1
      %p359 = scmp.eq.s32.totalorder %s90, 1
      %p360 = scmp.ne.s32.totalorder %s355, %s357
      %p361 = scmp.eq.s32.totalorder %s90, 0
      %p362 = por %p360, %p361
      %p363 = scmp.ne.s32.totalorder %s355, %s357
      %p364 = scmp.eq.s32.totalorder %s95, 1
      %p365 = por %p363, %p364
      %p366 = scmp.ne.s32.totalorder %s357, %s358
      %p367 = scmp.eq.s32.totalorder %s95, 0
      %p368 = por %p366, %p367
      %p369 = scmp.ne.s32.totalorder %s357, %s358
      %p370 = scmp.eq.s32.totalorder %s96, 1
      %p371 = por %p369, %p370
      %p373 = scmp.ne.s32.totalorder %s358, %s372
      %p374 = scmp.eq.s32.totalorder %s96, 0
      %p375 = por %p373, %p374
      %s377 = sadd.s32 %s376, 1
      %p380 = scmp.eq.s32.totalorder %s90, 1
      %p381 = scmp.ne.s32.totalorder %s376, %s378
      %p382 = scmp.eq.s32.totalorder %s90, 0
      %p383 = por %p381, %p382
      %p384 = scmp.ne.s32.totalorder %s376, %s378
      %p385 = scmp.eq.s32.totalorder %s95, 1
      %p386 = por %p384, %p385
      %p387 = scmp.ne.s32.totalorder %s378, %s379
      %p388 = scmp.eq.s32.totalorder %s95, 0
      %p389 = por %p387, %p388
      %p390 = scmp.ne.s32.totalorder %s378, %s379
      %p391 = scmp.eq.s32.totalorder %s96, 1
      %p392 = por %p390, %p391
      %p394 = scmp.ne.s32.totalorder %s379, %s393
      %p395 = scmp.eq.s32.totalorder %s96, 0
      %p396 = por %p394, %p395
      %s398 = sadd.s32 %s397, 1
      %p401 = scmp.eq.s32.totalorder %s90, 1
      %p402 = scmp.ne.s32.totalorder %s397, %s399
      %p403 = scmp.eq.s32.totalorder %s90, 0
      %p404 = por %p402, %p403
      %p405 = scmp.ne.s32.totalorder %s397, %s399
      %p406 = scmp.eq.s32.totalorder %s95, 1
      %p407 = por %p405, %p406
      %p408 = scmp.ne.s32.totalorder %s399, %s400
      %p409 = scmp.eq.s32.totalorder %s95, 0
      %p410 = por %p408, %p409
      %p411 = scmp.ne.s32.totalorder %s399, %s400
      %p412 = scmp.eq.s32.totalorder %s96, 1
      %p413 = por %p411, %p412
      %p415 = scmp.ne.s32.totalorder %s400, %s414
      %p416 = scmp.eq.s32.totalorder %s96, 0
      %p417 = por %p415, %p416
      %s419 = sadd.s32 %s418, 1
      %p422 = scmp.eq.s32.totalorder %s90, 1
      %p423 = scmp.ne.s32.totalorder %s418, %s420
      %p424 = scmp.eq.s32.totalorder %s90, 0
      %p425 = por %p423, %p424
      %p426 = scmp.ne.s32.totalorder %s418, %s420
      %p427 = scmp.eq.s32.totalorder %s95, 1
      %p428 = por %p426, %p427
      %p429 = scmp.ne.s32.totalorder %s420, %s421
      %p430 = scmp.eq.s32.totalorder %s95, 0
      %p431 = por %p429, %p430
      %p432 = scmp.ne.s32.totalorder %s420, %s421
      %p433 = scmp.eq.s32.totalorder %s96, 1
      %p434 = por %p432, %p433
      %p436 = scmp.ne.s32.totalorder %s421, %s435
      %p437 = scmp.eq.s32.totalorder %s96, 0
      %p438 = por %p436, %p437
      %s440 = sadd.s32 %s439, 1
      %p443 = scmp.eq.s32.totalorder %s90, 1
      %p444 = scmp.ne.s32.totalorder %s439, %s441
      %p445 = scmp.eq.s32.totalorder %s90, 0
      %p446 = por %p444, %p445
      %p447 = scmp.ne.s32.totalorder %s439, %s441
      %p448 = scmp.eq.s32.totalorder %s95, 1
      %p449 = por %p447, %p448
      %p450 = scmp.ne.s32.totalorder %s441, %s442
      %p451 = scmp.eq.s32.totalorder %s95, 0
      %p452 = por %p450, %p451
      %p453 = scmp.ne.s32.totalorder %s441, %s442
      %p454 = scmp.eq.s32.totalorder %s96, 1
      %p455 = por %p453, %p454
      %p457 = scmp.ne.s32.totalorder %s442, %s456
      %p458 = scmp.eq.s32.totalorder %s96, 0
      %p459 = por %p457, %p458
      %s461 = sadd.s32 %s460, 1
      %p464 = scmp.eq.s32.totalorder %s90, 1
      %p465 = scmp.ne.s32.totalorder %s460, %s462
      %p466 = scmp.eq.s32.totalorder %s90, 0
      %p467 = por %p465, %p466
      %p468 = scmp.ne.s32.totalorder %s460, %s462
      %p469 = scmp.eq.s32.totalorder %s95, 1
      %p470 = por %p468, %p469
      %p471 = scmp.ne.s32.totalorder %s462, %s463
      %p472 = scmp.eq.s32.totalorder %s95, 0
      %p473 = por %p471, %p472
      %p474 = scmp.ne.s32.totalorder %s462, %s463
      %p475 = scmp.eq.s32.totalorder %s96, 1
      %p476 = por %p474, %p475
      %p478 = scmp.ne.s32.totalorder %s463, %s477
      %p479 = scmp.eq.s32.totalorder %s96, 0
      %p480 = por %p478, %p479
      %s482 = sadd.s32 %s481, 1
      %p485 = scmp.eq.s32.totalorder %s90, 1
      %p486 = scmp.ne.s32.totalorder %s481, %s483
      %p487 = scmp.eq.s32.totalorder %s90, 0
      %p488 = por %p486, %p487
      %p489 = scmp.ne.s32.totalorder %s481, %s483
      %p490 = scmp.eq.s32.totalorder %s95, 1
      %p491 = por %p489, %p490
      %p492 = scmp.ne.s32.totalorder %s483, %s484
      %p493 = scmp.eq.s32.totalorder %s95, 0
      %p494 = por %p492, %p493
      %p495 = scmp.ne.s32.totalorder %s483, %s484
      %p496 = scmp.eq.s32.totalorder %s96, 1
      %p497 = por %p495, %p496
      %p499 = scmp.ne.s32.totalorder %s484, %s498
      %p500 = scmp.eq.s32.totalorder %s96, 0
      %p501 = por %p499, %p500
      %s503 = sadd.s32 %s502, 1
      %p506 = scmp.eq.s32.totalorder %s90, 1
      %p507 = scmp.ne.s32.totalorder %s502, %s504
      %p508 = scmp.eq.s32.totalorder %s90, 0
      %p509 = por %p507, %p508
      %p510 = scmp.ne.s32.totalorder %s502, %s504
      %p511 = scmp.eq.s32.totalorder %s95, 1
      %p512 = por %p510, %p511
      %p513 = scmp.ne.s32.totalorder %s504, %s505
      %p514 = scmp.eq.s32.totalorder %s95, 0
      %p515 = por %p513, %p514
      %p516 = scmp.ne.s32.totalorder %s504, %s505
      %p517 = scmp.eq.s32.totalorder %s96, 1
      %p518 = por %p516, %p517
      %p520 = scmp.ne.s32.totalorder %s505, %s519
      %p521 = scmp.eq.s32.totalorder %s96, 0
      %p522 = por %p520, %p521
      %s524 = sadd.s32 %s523, 1
      %p527 = scmp.eq.s32.totalorder %s90, 1
      %p528 = scmp.ne.s32.totalorder %s523, %s525
      %p529 = scmp.eq.s32.totalorder %s90, 0
      %p530 = por %p528, %p529
      %p531 = scmp.ne.s32.totalorder %s523, %s525
      %p532 = scmp.eq.s32.totalorder %s95, 1
      %p533 = por %p531, %p532
      %p534 = scmp.ne.s32.totalorder %s525, %s526
      %p535 = scmp.eq.s32.totalorder %s95, 0
      %p536 = por %p534, %p535
      %p537 = scmp.ne.s32.totalorder %s525, %s526
      %p538 = scmp.eq.s32.totalorder %s96, 1
      %p539 = por %p537, %p538
      %p541 = scmp.ne.s32.totalorder %s526, %s540
      %p542 = scmp.eq.s32.totalorder %s96, 0
      %p543 = por %p541, %p542
      %s545 = sadd.s32 %s544, 1
      %p548 = scmp.eq.s32.totalorder %s90, 1
      %p549 = scmp.ne.s32.totalorder %s544, %s546
      %p550 = scmp.eq.s32.totalorder %s90, 0
      %p551 = por %p549, %p550
      %p552 = scmp.ne.s32.totalorder %s544, %s546
      %p553 = scmp.eq.s32.totalorder %s95, 1
      %p554 = por %p552, %p553
      %p555 = scmp.ne.s32.totalorder %s546, %s547
      %p556 = scmp.eq.s32.totalorder %s95, 0
      %p557 = por %p555, %p556
      %p558 = scmp.ne.s32.totalorder %s546, %s547
      %p559 = scmp.eq.s32.totalorder %s96, 1
      %p560 = por %p558, %p559
      %p562 = scmp.ne.s32.totalorder %s547, %s561
      %p563 = scmp.eq.s32.totalorder %s96, 0
      %p564 = por %p562, %p563
      %s566 = sadd.s32 %s565, 1
      %p569 = scmp.eq.s32.totalorder %s90, 1
      %p570 = scmp.ne.s32.totalorder %s565, %s567
      %p571 = scmp.eq.s32.totalorder %s90, 0
      %p572 = por %p570, %p571
      %p573 = scmp.ne.s32.totalorder %s565, %s567
      %p574 = scmp.eq.s32.totalorder %s95, 1
      %p575 = por %p573, %p574
      %p576 = scmp.ne.s32.totalorder %s567, %s568
      %p577 = scmp.eq.s32.totalorder %s95, 0
      %p578 = por %p576, %p577
      %p579 = scmp.ne.s32.totalorder %s567, %s568
      %p580 = scmp.eq.s32.totalorder %s96, 1
      %p581 = por %p579, %p580
      %p583 = scmp.ne.s32.totalorder %s568, %s582
      %p584 = scmp.eq.s32.totalorder %s96, 0
      %p585 = por %p583, %p584
      %s587 = sadd.s32 %s586, 1
      %p590 = scmp.eq.s32.totalorder %s90, 1
      %p591 = scmp.ne.s32.totalorder %s586, %s588
      %p592 = scmp.eq.s32.totalorder %s90, 0
      %p593 = por %p591, %p592
      %p594 = scmp.ne.s32.totalorder %s586, %s588
      %p595 = scmp.eq.s32.totalorder %s95, 1
      %p596 = por %p594, %p595
      %p597 = scmp.ne.s32.totalorder %s588, %s589
      %p598 = scmp.eq.s32.totalorder %s95, 0
      %p599 = por %p597, %p598
      %p600 = scmp.ne.s32.totalorder %s588, %s589
      %p601 = scmp.eq.s32.totalorder %s96, 1
      %p602 = por %p600, %p601
      %p604 = scmp.ne.s32.totalorder %s589, %s603
      %p605 = scmp.eq.s32.totalorder %s96, 0
      %p606 = por %p604, %p605
      %s608 = sadd.s32 %s607, 1
      %p611 = scmp.eq.s32.totalorder %s90, 1
      %p612 = scmp.ne.s32.totalorder %s607, %s609
      %p613 = scmp.eq.s32.totalorder %s90, 0
      %p614 = por %p612, %p613
      %p615 = scmp.ne.s32.totalorder %s607, %s609
      %p616 = scmp.eq.s32.totalorder %s95, 1
      %p617 = por %p615, %p616
      %p618 = scmp.ne.s32.totalorder %s609, %s610
      %p619 = scmp.eq.s32.totalorder %s95, 0
      %p620 = por %p618, %p619
      %p621 = scmp.ne.s32.totalorder %s609, %s610
      %p622 = scmp.eq.s32.totalorder %s96, 1
      %p623 = por %p621, %p622
      %p625 = scmp.ne.s32.totalorder %s610, %s624
      %p626 = scmp.eq.s32.totalorder %s96, 0
      %p627 = por %p625, %p626
      %s629 = sadd.s32 %s628, 1
      %p632 = scmp.eq.s32.totalorder %s90, 1
      %p633 = scmp.ne.s32.totalorder %s628, %s630
      %p634 = scmp.eq.s32.totalorder %s90, 0
      %p635 = por %p633, %p634
      %p636 = scmp.ne.s32.totalorder %s628, %s630
      %p637 = scmp.eq.s32.totalorder %s95, 1
      %p638 = por %p636, %p637
      %p639 = scmp.ne.s32.totalorder %s630, %s631
      %p640 = scmp.eq.s32.totalorder %s95, 0
      %p641 = por %p639, %p640
      %p642 = scmp.ne.s32.totalorder %s630, %s631
      %p643 = scmp.eq.s32.totalorder %s96, 1
      %p644 = por %p642, %p643
      %p646 = scmp.ne.s32.totalorder %s631, %s645
      %p647 = scmp.eq.s32.totalorder %s96, 0
      %p648 = por %p646, %p647
      %s650 = sadd.s32 %s649, 1
      %p653 = scmp.eq.s32.totalorder %s90, 1
      %p654 = scmp.ne.s32.totalorder %s649, %s651
      %p655 = scmp.eq.s32.totalorder %s90, 0
      %p656 = por %p654, %p655
      %p657 = scmp.ne.s32.totalorder %s649, %s651
      %p658 = scmp.eq.s32.totalorder %s95, 1
      %p659 = por %p657, %p658
      %p660 = scmp.ne.s32.totalorder %s651, %s652
      %p661 = scmp.eq.s32.totalorder %s95, 0
      %p662 = por %p660, %p661
      %p663 = scmp.ne.s32.totalorder %s651, %s652
      %p664 = scmp.eq.s32.totalorder %s96, 1
      %p665 = por %p663, %p664
      %p667 = scmp.ne.s32.totalorder %s652, %s666
      %p668 = scmp.eq.s32.totalorder %s96, 0
      %p669 = por %p667, %p668
      %s671 = sadd.s32 %s670, 1
      %p674 = scmp.eq.s32.totalorder %s90, 1
      %p675 = scmp.ne.s32.totalorder %s670, %s672
      %p676 = scmp.eq.s32.totalorder %s90, 0
      %p677 = por %p675, %p676
      %p678 = scmp.ne.s32.totalorder %s670, %s672
      %p679 = scmp.eq.s32.totalorder %s95, 1
      %p680 = por %p678, %p679
      %p681 = scmp.ne.s32.totalorder %s672, %s673
      %p682 = scmp.eq.s32.totalorder %s95, 0
      %p683 = por %p681, %p682
      %p684 = scmp.ne.s32.totalorder %s672, %s673
      %p685 = scmp.eq.s32.totalorder %s96, 1
      %p686 = por %p684, %p685
      %p688 = scmp.ne.s32.totalorder %s673, %s687
      %p689 = scmp.eq.s32.totalorder %s96, 0
      %p690 = por %p688, %p689
      %s692 = sadd.s32 %s691, 1
      %p695 = scmp.eq.s32.totalorder %s90, 1
      %p696 = scmp.ne.s32.totalorder %s691, %s693
      %p697 = scmp.eq.s32.totalorder %s90, 0
      %p698 = por %p696, %p697
      %p699 = scmp.ne.s32.totalorder %s691, %s693
      %p700 = scmp.eq.s32.totalorder %s95, 1
      %p701 = por %p699, %p700
      %p702 = scmp.ne.s32.totalorder %s693, %s694
      %p703 = scmp.eq.s32.totalorder %s95, 0
      %p704 = por %p702, %p703
      %p705 = scmp.ne.s32.totalorder %s693, %s694
      %p706 = scmp.eq.s32.totalorder %s96, 1
      %p707 = por %p705, %p706
      %p709 = scmp.ne.s32.totalorder %s694, %s708
      %p710 = scmp.eq.s32.totalorder %s96, 0
      %p711 = por %p709, %p710
      %s713 = sadd.s32 %s712, 1
      %p716 = scmp.eq.s32.totalorder %s90, 1
      %p717 = scmp.ne.s32.totalorder %s712, %s714
      %p718 = scmp.eq.s32.totalorder %s90, 0
      %p719 = por %p717, %p718
      %p720 = scmp.ne.s32.totalorder %s712, %s714
      %p721 = scmp.eq.s32.totalorder %s95, 1
      %p722 = por %p720, %p721
      %p723 = scmp.ne.s32.totalorder %s714, %s715
      %p724 = scmp.eq.s32.totalorder %s95, 0
      %p725 = por %p723, %p724
      %p726 = scmp.ne.s32.totalorder %s714, %s715
      %p727 = scmp.eq.s32.totalorder %s96, 1
      %p728 = por %p726, %p727
      %p730 = scmp.ne.s32.totalorder %s715, %s729
      %p731 = scmp.eq.s32.totalorder %s96, 0
      %p732 = por %p730, %p731
      %s734 = sadd.s32 %s733, 1
      %p737 = scmp.eq.s32.totalorder %s90, 1
      %p738 = scmp.ne.s32.totalorder %s733, %s735
      %p739 = scmp.eq.s32.totalorder %s90, 0
      %p740 = por %p738, %p739
      %p741 = scmp.ne.s32.totalorder %s733, %s735
      %p742 = scmp.eq.s32.totalorder %s95, 1
      %p743 = por %p741, %p742
      %p744 = scmp.ne.s32.totalorder %s735, %s736
      %p745 = scmp.eq.s32.totalorder %s95, 0
      %p746 = por %p744, %p745
      %p747 = scmp.ne.s32.totalorder %s735, %s736
      %p748 = scmp.eq.s32.totalorder %s96, 1
      %p749 = por %p747, %p748
      %p751 = scmp.ne.s32.totalorder %s736, %s750
      %p752 = scmp.eq.s32.totalorder %s96, 0
      %p753 = por %p751, %p752
      %s755 = sadd.s32 %s754, 1
      %p758 = scmp.eq.s32.totalorder %s90, 1
      %p759 = scmp.ne.s32.totalorder %s754, %s756
      %p760 = scmp.eq.s32.totalorder %s90, 0
      %p761 = por %p759, %p760
      %p762 = scmp.ne.s32.totalorder %s754, %s756
      %p763 = scmp.eq.s32.totalorder %s95, 1
      %p764 = por %p762, %p763
      %p765 = scmp.ne.s32.totalorder %s756, %s757
      %p766 = scmp.eq.s32.totalorder %s95, 0
      %p767 = por %p765, %p766
      %p768 = scmp.ne.s32.totalorder %s756, %s757
      %p769 = scmp.eq.s32.totalorder %s96, 1
      %p770 = por %p768, %p769
      %p772 = scmp.ne.s32.totalorder %s757, %s771
      %p773 = scmp.eq.s32.totalorder %s96, 0
      %p774 = por %p772, %p773
      %s776 = sadd.s32 %s775, 1
      %p779 = scmp.eq.s32.totalorder %s90, 1
      %p780 = scmp.ne.s32.totalorder %s775, %s777
      %p781 = scmp.eq.s32.totalorder %s90, 0
      %p782 = por %p780, %p781
      %p783 = scmp.ne.s32.totalorder %s775, %s777
      %p784 = scmp.eq.s32.totalorder %s95, 1
      %p785 = por %p783, %p784
      %p786 = scmp.ne.s32.totalorder %s777, %s778
      %p787 = scmp.eq.s32.totalorder %s95, 0
      %p788 = por %p786, %p787
      %p789 = scmp.ne.s32.totalorder %s777, %s778
      %p790 = scmp.eq.s32.totalorder %s96, 1
      %p791 = por %p789, %p790
      %p793 = scmp.ne.s32.totalorder %s778, %s792
      %p794 = scmp.eq.s32.totalorder %s96, 0
      %p795 = por %p793, %p794
      %s797 = sadd.s32 %s796, 1
      %p800 = scmp.eq.s32.totalorder %s90, 1
      %p801 = scmp.ne.s32.totalorder %s796, %s798
      %p802 = scmp.eq.s32.totalorder %s90, 0
      %p803 = por %p801, %p802
      %p804 = scmp.ne.s32.totalorder %s796, %s798
      %p805 = scmp.eq.s32.totalorder %s95, 1
      %p806 = por %p804, %p805
      %p807 = scmp.ne.s32.totalorder %s798, %s799
      %p808 = scmp.eq.s32.totalorder %s95, 0
      %p809 = por %p807, %p808
      %p810 = scmp.ne.s32.totalorder %s798, %s799
      %p811 = scmp.eq.s32.totalorder %s96, 1
      %p812 = por %p810, %p811
      %p814 = scmp.ne.s32.totalorder %s799, %s813
      %p815 = scmp.eq.s32.totalorder %s96, 0
      %p816 = por %p814, %p815
      %s818 = sadd.s32 %s817, 1
      %p821 = scmp.eq.s32.totalorder %s90, 1
      %p822 = scmp.ne.s32.totalorder %s817, %s819
      %p823 = scmp.eq.s32.totalorder %s90, 0
      %p824 = por %p822, %p823
      %p825 = scmp.ne.s32.totalorder %s817, %s819
      %p826 = scmp.eq.s32.totalorder %s95, 1
      %p827 = por %p825, %p826
      %p828 = scmp.ne.s32.totalorder %s819, %s820
      %p829 = scmp.eq.s32.totalorder %s95, 0
      %p830 = por %p828, %p829
      %p831 = scmp.ne.s32.totalorder %s819, %s820
      %p832 = scmp.eq.s32.totalorder %s96, 1
      %p833 = por %p831, %p832
      %p835 = scmp.ne.s32.totalorder %s820, %s834
      %p836 = scmp.eq.s32.totalorder %s96, 0
      %p837 = por %p835, %p836
      %s839 = sadd.s32 %s838, 1
      %p842 = scmp.eq.s32.totalorder %s90, 1
      %p843 = scmp.ne.s32.totalorder %s838, %s840
      %p844 = scmp.eq.s32.totalorder %s90, 0
      %p845 = por %p843, %p844
      %p846 = scmp.ne.s32.totalorder %s838, %s840
      %p847 = scmp.eq.s32.totalorder %s95, 1
      %p848 = por %p846, %p847
      %p849 = scmp.ne.s32.totalorder %s840, %s841
      %p850 = scmp.eq.s32.totalorder %s95, 0
      %p851 = por %p849, %p850
      %p852 = scmp.ne.s32.totalorder %s840, %s841
      %p853 = scmp.eq.s32.totalorder %s96, 1
      %p854 = por %p852, %p853
      %p856 = scmp.ne.s32.totalorder %s841, %s855
      %p857 = scmp.eq.s32.totalorder %s96, 0
      %p858 = por %p856, %p857
      %s860 = sadd.s32 %s859, 1
      %p863 = scmp.eq.s32.totalorder %s90, 1
      %p864 = scmp.ne.s32.totalorder %s859, %s861
      %p865 = scmp.eq.s32.totalorder %s90, 0
      %p866 = por %p864, %p865
      %p867 = scmp.ne.s32.totalorder %s859, %s861
      %p868 = scmp.eq.s32.totalorder %s95, 1
      %p869 = por %p867, %p868
      %p870 = scmp.ne.s32.totalorder %s861, %s862
      %p871 = scmp.eq.s32.totalorder %s95, 0
      %p872 = por %p870, %p871
      %p873 = scmp.ne.s32.totalorder %s861, %s862
      %p874 = scmp.eq.s32.totalorder %s96, 1
      %p875 = por %p873, %p874
      %p877 = scmp.ne.s32.totalorder %s862, %s876
      %p878 = scmp.eq.s32.totalorder %s96, 0
      %p879 = por %p877, %p878
      %s881 = sadd.s32 %s880, 1
      %p884 = scmp.eq.s32.totalorder %s90, 1
      %p885 = scmp.ne.s32.totalorder %s880, %s882
      %p886 = scmp.eq.s32.totalorder %s90, 0
      %p887 = por %p885, %p886
      %p888 = scmp.ne.s32.totalorder %s880, %s882
      %p889 = scmp.eq.s32.totalorder %s95, 1
      %p890 = por %p888, %p889
      %p891 = scmp.ne.s32.totalorder %s882, %s883
      %p892 = scmp.eq.s32.totalorder %s95, 0
      %p893 = por %p891, %p892
      %p894 = scmp.ne.s32.totalorder %s882, %s883
      %p895 = scmp.eq.s32.totalorder %s96, 1
      %p896 = por %p894, %p895
      %p898 = scmp.ne.s32.totalorder %s883, %s897
      %p899 = scmp.eq.s32.totalorder %s96, 0
      %p900 = por %p898, %p899
      %s902 = sadd.s32 %s901, 1
      %p905 = scmp.eq.s32.totalorder %s90, 1
      %p906 = scmp.ne.s32.totalorder %s901, %s903
      %p907 = scmp.eq.s32.totalorder %s90, 0
      %p908 = por %p906, %p907
      %p909 = scmp.ne.s32.totalorder %s901, %s903
      %p910 = scmp.eq.s32.totalorder %s95, 1
      %p911 = por %p909, %p910
      %p912 = scmp.ne.s32.totalorder %s903, %s904
      %p913 = scmp.eq.s32.totalorder %s95, 0
      %p914 = por %p912, %p913
      %p915 = scmp.ne.s32.totalorder %s903, %s904
      %p916 = scmp.eq.s32.totalorder %s96, 1
      %p917 = por %p915, %p916
      %p919 = scmp.ne.s32.totalorder %s904, %s918
      %p920 = scmp.eq.s32.totalorder %s96, 0
      %p921 = por %p919, %p920
      %s923 = sadd.s32 %s922, 1
      %p926 = scmp.eq.s32.totalorder %s90, 1
      %p927 = scmp.ne.s32.totalorder %s922, %s924
      %p928 = scmp.eq.s32.totalorder %s90, 0
      %p929 = por %p927, %p928
      %p930 = scmp.ne.s32.totalorder %s922, %s924
      %p931 = scmp.eq.s32.totalorder %s95, 1
      %p932 = por %p930, %p931
      %p933 = scmp.ne.s32.totalorder %s924, %s925
      %p934 = scmp.eq.s32.totalorder %s95, 0
      %p935 = por %p933, %p934
      %p936 = scmp.ne.s32.totalorder %s924, %s925
      %p937 = scmp.eq.s32.totalorder %s96, 1
      %p938 = por %p936, %p937
      %p940 = scmp.ne.s32.totalorder %s925, %s939
      %p941 = scmp.eq.s32.totalorder %s96, 0
      %p942 = por %p940, %p941
      %s943 = ssub.s32 %s90, %s97
      %p944 = scmp.eq.s32.totalorder %s943, 0
      %s946 = sadd.s32 %s945, 1
      %s947 = scalar_select %p944, %s945, %s946
      %p950 = pneg %p944
      %p951 = scmp.eq.s32.totalorder %s90, 1
      %p952 = por %p950, %p951
      %p953 = scmp.ne.s32.totalorder %s945, %s948
      %p954 = scmp.eq.s32.totalorder %s90, 0
      %p955 = por %p953, %p954
      %p956 = scmp.ne.s32.totalorder %s945, %s948
      %p957 = scmp.eq.s32.totalorder %s95, 1
      %p958 = por %p956, %p957
      %p959 = scmp.ne.s32.totalorder %s948, %s949
      %p960 = scmp.eq.s32.totalorder %s95, 0
      %p961 = por %p959, %p960
      %p962 = scmp.ne.s32.totalorder %s948, %s949
      %p963 = scmp.eq.s32.totalorder %s96, 1
      %p964 = por %p962, %p963
      %p966 = scmp.ne.s32.totalorder %s949, %s965
      %p967 = scmp.eq.s32.totalorder %s96, 0
      %p968 = por %p966, %p967
      %p969 = scmp.le.s32.totalorder 1, %s90
      %p970 = scmp.lt.s32.totalorder %s90, 3
      %p971 = pnand %p969, %p970
      %p972 = pneg %p971
      // Predicated region
      $region9: #{resnet_wifi_forward.1} parent=5 // pred_check
        _
      $region10: #{resnet_wifi_forward.1} parent=5 // pred_check_branch
        %974 = sbr.rel (%p971) target = $region12
      $region11: #{resnet_wifi_forward.1} parent=5 // pred_region
        %s975 = ssub.s32 %s90, 1
        // Predicated region
        $region13: #{resnet_wifi_forward.1} parent=11 // pred_check
          %p976 = pneg %p137
        $region14: #{resnet_wifi_forward.1} parent=11 // pred_check_branch
          %978 = sbr.rel (%p976) target = $region16
        $region15: #{resnet_wifi_forward.1} parent=11 // pred_region
          _
        $region16: #{resnet_wifi_forward.1} parent=11 // pred_fallthru
          _
        // Predicated region
        $region17: #{resnet_wifi_forward.1} parent=11 // pred_check
          %p979 = pneg %p158
        $region18: #{resnet_wifi_forward.1} parent=11 // pred_check_branch
          %981 = sbr.rel (%p979) target = $region20
        $region19: #{resnet_wifi_forward.1} parent=11 // pred_region
          _
        $region20: #{resnet_wifi_forward.1} parent=11 // pred_fallthru
          _
        // Predicated region
        $region21: #{resnet_wifi_forward.1} parent=11 // pred_check
          %p982 = pneg %p179
        $region22: #{resnet_wifi_forward.1} parent=11 // pred_check_branch
          %984 = sbr.rel (%p982) target = $region24
        $region23: #{resnet_wifi_forward.1} parent=11 // pred_region
          _
        $region24: #{resnet_wifi_forward.1} parent=11 // pred_fallthru
          _
        // Predicated region
        $region25: #{resnet_wifi_forward.1} parent=11 // pred_check
          %p985 = pneg %p200
        $region26: #{resnet_wifi_forward.1} parent=11 // pred_check_branch
          %987 = sbr.rel (%p985) target = $region28
        $region27: #{resnet_wifi_forward.1} parent=11 // pred_region
          _
        $region28: #{resnet_wifi_forward.1} parent=11 // pred_fallthru
          _
        // Predicated region
        $region29: #{resnet_wifi_forward.1} parent=11 // pred_check
          %p988 = pneg %p221
        $region30: #{resnet_wifi_forward.1} parent=11 // pred_check_branch
          %990 = sbr.rel (%p988) target = $region32
        $region31: #{resnet_wifi_forward.1} parent=11 // pred_region
          _
        $region32: #{resnet_wifi_forward.1} parent=11 // pred_fallthru
          _
        // Predicated region
        $region33: #{resnet_wifi_forward.1} parent=11 // pred_check
          %p991 = pneg %p242
        $region34: #{resnet_wifi_forward.1} parent=11 // pred_check_branch
          %993 = sbr.rel (%p991) target = $region36
        $region35: #{resnet_wifi_forward.1} parent=11 // pred_region
          _
        $region36: #{resnet_wifi_forward.1} parent=11 // pred_fallthru
          _
        // Predicated region
        $region37: #{resnet_wifi_forward.1} parent=11 // pred_check
          %p994 = pneg %p263
        $region38: #{resnet_wifi_forward.1} parent=11 // pred_check_branch
          %996 = sbr.rel (%p994) target = $region40
        $region39: #{resnet_wifi_forward.1} parent=11 // pred_region
          _
        $region40: #{resnet_wifi_forward.1} parent=11 // pred_fallthru
          _
        // Predicated region
        $region41: #{resnet_wifi_forward.1} parent=11 // pred_check
          %p997 = pneg %p284
        $region42: #{resnet_wifi_forward.1} parent=11 // pred_check_branch
          %999 = sbr.rel (%p997) target = $region44
        $region43: #{resnet_wifi_forward.1} parent=11 // pred_region
          _
        $region44: #{resnet_wifi_forward.1} parent=11 // pred_fallthru
          _
        // Predicated region
        $region45: #{resnet_wifi_forward.1} parent=11 // pred_check
          %p1000 = pneg %p305
        $region46: #{resnet_wifi_forward.1} parent=11 // pred_check_branch
          %1002 = sbr.rel (%p1000) target = $region48
        $region47: #{resnet_wifi_forward.1} parent=11 // pred_region
          _
        $region48: #{resnet_wifi_forward.1} parent=11 // pred_fallthru
          _
        // Predicated region
        $region49: #{resnet_wifi_forward.1} parent=11 // pred_check
          %p1003 = pneg %p326
        $region50: #{resnet_wifi_forward.1} parent=11 // pred_check_branch
          %1005 = sbr.rel (%p1003) target = $region52
        $region51: #{resnet_wifi_forward.1} parent=11 // pred_region
          _
        $region52: #{resnet_wifi_forward.1} parent=11 // pred_fallthru
          _
        // Predicated region
        $region53: #{resnet_wifi_forward.1} parent=11 // pred_check
          %p1006 = pneg %p347
        $region54: #{resnet_wifi_forward.1} parent=11 // pred_check_branch
          %1008 = sbr.rel (%p1006) target = $region56
        $region55: #{resnet_wifi_forward.1} parent=11 // pred_region
          _
        $region56: #{resnet_wifi_forward.1} parent=11 // pred_fallthru
          _
        // Predicated region
        $region57: #{resnet_wifi_forward.1} parent=11 // pred_check
          %p1009 = pneg %p368
        $region58: #{resnet_wifi_forward.1} parent=11 // pred_check_branch
          %1011 = sbr.rel (%p1009) target = $region60
        $region59: #{resnet_wifi_forward.1} parent=11 // pred_region
          _
        $region60: #{resnet_wifi_forward.1} parent=11 // pred_fallthru
          _
        // Predicated region
        $region61: #{resnet_wifi_forward.1} parent=11 // pred_check
          %p1012 = pneg %p389
        $region62: #{resnet_wifi_forward.1} parent=11 // pred_check_branch
          %1014 = sbr.rel (%p1012) target = $region64
        $region63: #{resnet_wifi_forward.1} parent=11 // pred_region
          _
        $region64: #{resnet_wifi_forward.1} parent=11 // pred_fallthru
          _
        // Predicated region
        $region65: #{resnet_wifi_forward.1} parent=11 // pred_check
          %p1015 = pneg %p410
        $region66: #{resnet_wifi_forward.1} parent=11 // pred_check_branch
          %1017 = sbr.rel (%p1015) target = $region68
        $region67: #{resnet_wifi_forward.1} parent=11 // pred_region
          _
        $region68: #{resnet_wifi_forward.1} parent=11 // pred_fallthru
          _
        // Predicated region
        $region69: #{resnet_wifi_forward.1} parent=11 // pred_check
          %p1018 = pneg %p431
        $region70: #{resnet_wifi_forward.1} parent=11 // pred_check_branch
          %1020 = sbr.rel (%p1018) target = $region72
        $region71: #{resnet_wifi_forward.1} parent=11 // pred_region
          _
        $region72: #{resnet_wifi_forward.1} parent=11 // pred_fallthru
          _
        // Predicated region
        $region73: #{resnet_wifi_forward.1} parent=11 // pred_check
          %p1021 = pneg %p452
        $region74: #{resnet_wifi_forward.1} parent=11 // pred_check_branch
          %1023 = sbr.rel (%p1021) target = $region76
        $region75: #{resnet_wifi_forward.1} parent=11 // pred_region
          _
        $region76: #{resnet_wifi_forward.1} parent=11 // pred_fallthru
          _
        // Predicated region
        $region77: #{resnet_wifi_forward.1} parent=11 // pred_check
          %p1024 = pneg %p473
        $region78: #{resnet_wifi_forward.1} parent=11 // pred_check_branch
          %1026 = sbr.rel (%p1024) target = $region80
        $region79: #{resnet_wifi_forward.1} parent=11 // pred_region
          _
        $region80: #{resnet_wifi_forward.1} parent=11 // pred_fallthru
          _
        // Predicated region
        $region81: #{resnet_wifi_forward.1} parent=11 // pred_check
          %p1027 = pneg %p494
        $region82: #{resnet_wifi_forward.1} parent=11 // pred_check_branch
          %1029 = sbr.rel (%p1027) target = $region84
        $region83: #{resnet_wifi_forward.1} parent=11 // pred_region
          _
        $region84: #{resnet_wifi_forward.1} parent=11 // pred_fallthru
          _
        // Predicated region
        $region85: #{resnet_wifi_forward.1} parent=11 // pred_check
          %p1030 = pneg %p515
        $region86: #{resnet_wifi_forward.1} parent=11 // pred_check_branch
          %1032 = sbr.rel (%p1030) target = $region88
        $region87: #{resnet_wifi_forward.1} parent=11 // pred_region
          _
        $region88: #{resnet_wifi_forward.1} parent=11 // pred_fallthru
          _
        // Predicated region
        $region89: #{resnet_wifi_forward.1} parent=11 // pred_check
          %p1033 = pneg %p536
        $region90: #{resnet_wifi_forward.1} parent=11 // pred_check_branch
          %1035 = sbr.rel (%p1033) target = $region92
        $region91: #{resnet_wifi_forward.1} parent=11 // pred_region
          _
        $region92: #{resnet_wifi_forward.1} parent=11 // pred_fallthru
          _
        // Predicated region
        $region93: #{resnet_wifi_forward.1} parent=11 // pred_check
          %p1036 = pneg %p557
        $region94: #{resnet_wifi_forward.1} parent=11 // pred_check_branch
          %1038 = sbr.rel (%p1036) target = $region96
        $region95: #{resnet_wifi_forward.1} parent=11 // pred_region
          _
        $region96: #{resnet_wifi_forward.1} parent=11 // pred_fallthru
          _
        // Predicated region
        $region97: #{resnet_wifi_forward.1} parent=11 // pred_check
          %p1039 = pneg %p578
        $region98: #{resnet_wifi_forward.1} parent=11 // pred_check_branch
          %1041 = sbr.rel (%p1039) target = $region100
        $region99: #{resnet_wifi_forward.1} parent=11 // pred_region
          _
        $region100: #{resnet_wifi_forward.1} parent=11 // pred_fallthru
          _
        // Predicated region
        $region101: #{resnet_wifi_forward.1} parent=11 // pred_check
          %p1042 = pneg %p599
        $region102: #{resnet_wifi_forward.1} parent=11 // pred_check_branch
          %1044 = sbr.rel (%p1042) target = $region104
        $region103: #{resnet_wifi_forward.1} parent=11 // pred_region
          _
        $region104: #{resnet_wifi_forward.1} parent=11 // pred_fallthru
          _
        // Predicated region
        $region105: #{resnet_wifi_forward.1} parent=11 // pred_check
          %p1045 = pneg %p620
        $region106: #{resnet_wifi_forward.1} parent=11 // pred_check_branch
          %1047 = sbr.rel (%p1045) target = $region108
        $region107: #{resnet_wifi_forward.1} parent=11 // pred_region
          _
        $region108: #{resnet_wifi_forward.1} parent=11 // pred_fallthru
          _
        // Predicated region
        $region109: #{resnet_wifi_forward.1} parent=11 // pred_check
          %p1048 = pneg %p641
        $region110: #{resnet_wifi_forward.1} parent=11 // pred_check_branch
          %1050 = sbr.rel (%p1048) target = $region112
        $region111: #{resnet_wifi_forward.1} parent=11 // pred_region
          _
        $region112: #{resnet_wifi_forward.1} parent=11 // pred_fallthru
          _
        // Predicated region
        $region113: #{resnet_wifi_forward.1} parent=11 // pred_check
          %p1051 = pneg %p662
        $region114: #{resnet_wifi_forward.1} parent=11 // pred_check_branch
          %1053 = sbr.rel (%p1051) target = $region116
        $region115: #{resnet_wifi_forward.1} parent=11 // pred_region
          _
        $region116: #{resnet_wifi_forward.1} parent=11 // pred_fallthru
          _
        // Predicated region
        $region117: #{resnet_wifi_forward.1} parent=11 // pred_check
          %p1054 = pneg %p683
        $region118: #{resnet_wifi_forward.1} parent=11 // pred_check_branch
          %1056 = sbr.rel (%p1054) target = $region120
        $region119: #{resnet_wifi_forward.1} parent=11 // pred_region
          _
        $region120: #{resnet_wifi_forward.1} parent=11 // pred_fallthru
          _
        // Predicated region
        $region121: #{resnet_wifi_forward.1} parent=11 // pred_check
          %p1057 = pneg %p704
        $region122: #{resnet_wifi_forward.1} parent=11 // pred_check_branch
          %1059 = sbr.rel (%p1057) target = $region124
        $region123: #{resnet_wifi_forward.1} parent=11 // pred_region
          _
        $region124: #{resnet_wifi_forward.1} parent=11 // pred_fallthru
          _
        // Predicated region
        $region125: #{resnet_wifi_forward.1} parent=11 // pred_check
          %p1060 = pneg %p725
        $region126: #{resnet_wifi_forward.1} parent=11 // pred_check_branch
          %1062 = sbr.rel (%p1060) target = $region128
        $region127: #{resnet_wifi_forward.1} parent=11 // pred_region
          _
        $region128: #{resnet_wifi_forward.1} parent=11 // pred_fallthru
          _
        // Predicated region
        $region129: #{resnet_wifi_forward.1} parent=11 // pred_check
          %p1063 = pneg %p746
        $region130: #{resnet_wifi_forward.1} parent=11 // pred_check_branch
          %1065 = sbr.rel (%p1063) target = $region132
        $region131: #{resnet_wifi_forward.1} parent=11 // pred_region
          _
        $region132: #{resnet_wifi_forward.1} parent=11 // pred_fallthru
          _
        // Predicated region
        $region133: #{resnet_wifi_forward.1} parent=11 // pred_check
          %p1066 = pneg %p767
        $region134: #{resnet_wifi_forward.1} parent=11 // pred_check_branch
          %1068 = sbr.rel (%p1066) target = $region136
        $region135: #{resnet_wifi_forward.1} parent=11 // pred_region
          _
        $region136: #{resnet_wifi_forward.1} parent=11 // pred_fallthru
          _
        // Predicated region
        $region137: #{resnet_wifi_forward.1} parent=11 // pred_check
          %p1069 = pneg %p788
        $region138: #{resnet_wifi_forward.1} parent=11 // pred_check_branch
          %1071 = sbr.rel (%p1069) target = $region140
        $region139: #{resnet_wifi_forward.1} parent=11 // pred_region
          _
        $region140: #{resnet_wifi_forward.1} parent=11 // pred_fallthru
          _
        // Predicated region
        $region141: #{resnet_wifi_forward.1} parent=11 // pred_check
          %p1072 = pneg %p809
        $region142: #{resnet_wifi_forward.1} parent=11 // pred_check_branch
          %1074 = sbr.rel (%p1072) target = $region144
        $region143: #{resnet_wifi_forward.1} parent=11 // pred_region
          _
        $region144: #{resnet_wifi_forward.1} parent=11 // pred_fallthru
          _
        // Predicated region
        $region145: #{resnet_wifi_forward.1} parent=11 // pred_check
          %p1075 = pneg %p830
        $region146: #{resnet_wifi_forward.1} parent=11 // pred_check_branch
          %1077 = sbr.rel (%p1075) target = $region148
        $region147: #{resnet_wifi_forward.1} parent=11 // pred_region
          _
        $region148: #{resnet_wifi_forward.1} parent=11 // pred_fallthru
          _
        // Predicated region
        $region149: #{resnet_wifi_forward.1} parent=11 // pred_check
          %p1078 = pneg %p851
        $region150: #{resnet_wifi_forward.1} parent=11 // pred_check_branch
          %1080 = sbr.rel (%p1078) target = $region152
        $region151: #{resnet_wifi_forward.1} parent=11 // pred_region
          _
        $region152: #{resnet_wifi_forward.1} parent=11 // pred_fallthru
          _
        // Predicated region
        $region153: #{resnet_wifi_forward.1} parent=11 // pred_check
          %p1081 = pneg %p872
        $region154: #{resnet_wifi_forward.1} parent=11 // pred_check_branch
          %1083 = sbr.rel (%p1081) target = $region156
        $region155: #{resnet_wifi_forward.1} parent=11 // pred_region
          _
        $region156: #{resnet_wifi_forward.1} parent=11 // pred_fallthru
          _
        // Predicated region
        $region157: #{resnet_wifi_forward.1} parent=11 // pred_check
          %p1084 = pneg %p893
        $region158: #{resnet_wifi_forward.1} parent=11 // pred_check_branch
          %1086 = sbr.rel (%p1084) target = $region160
        $region159: #{resnet_wifi_forward.1} parent=11 // pred_region
          _
        $region160: #{resnet_wifi_forward.1} parent=11 // pred_fallthru
          _
        // Predicated region
        $region161: #{resnet_wifi_forward.1} parent=11 // pred_check
          %p1087 = pneg %p914
        $region162: #{resnet_wifi_forward.1} parent=11 // pred_check_branch
          %1089 = sbr.rel (%p1087) target = $region164
        $region163: #{resnet_wifi_forward.1} parent=11 // pred_region
          _
        $region164: #{resnet_wifi_forward.1} parent=11 // pred_fallthru
          _
        // Predicated region
        $region165: #{resnet_wifi_forward.1} parent=11 // pred_check
          %p1090 = pneg %p935
        $region166: #{resnet_wifi_forward.1} parent=11 // pred_check_branch
          %1092 = sbr.rel (%p1090) target = $region168
        $region167: #{resnet_wifi_forward.1} parent=11 // pred_region
          _
        $region168: #{resnet_wifi_forward.1} parent=11 // pred_fallthru
          _
      $region12: #{resnet_wifi_forward.1} parent=5 // pred_fallthru
        _
      %p1093 = scmp.lt.s32.totalorder %s90, 2
      // Predicated region
      $region169: #{resnet_wifi_forward.1} parent=5 // pred_check
        %p1094 = pneg %p1093
      $region170: #{resnet_wifi_forward.1} parent=5 // pred_check_branch
        %1096 = sbr.rel (%p1094) target = $region172
      $region171: #{resnet_wifi_forward.1} parent=5 // pred_region
        // Predicated region
        $region173: #{resnet_wifi_forward.1} parent=171 // pred_check
          %p1097 = pneg %p110
        $region174: #{resnet_wifi_forward.1} parent=171 // pred_check_branch
          %1099 = sbr.rel (%p1097) target = $region176
        $region175: #{resnet_wifi_forward.1} parent=171 // pred_region
          %p1100 = scmp.lt.s32.totalorder %s90, 1
          %s1101 = scalar_select %p1100, %s90, 1
          %s1102 = smul.addr %s1101, 16
          %s1103 = smul.addr %s1102, 8
          %s1104 = scalar_lea.vmem %s1, %s1103
        $region176: #{resnet_wifi_forward.1} parent=171 // pred_fallthru
          _
      $region172: #{resnet_wifi_forward.1} parent=5 // pred_fallthru
        _
      %p1105 = scmp.le.s32.totalorder 1, %s90
      %p1106 = scmp.lt.s32.totalorder %s90, 3
      %p1107 = pnand %p1105, %p1106
      %p1108 = pneg %p1107
      // Predicated region
      $region177: #{resnet_wifi_forward.1} parent=5 // pred_check
        _
      $region178: #{resnet_wifi_forward.1} parent=5 // pred_check_branch
        %1110 = sbr.rel (%p1107) target = $region180
      $region179: #{resnet_wifi_forward.1} parent=5 // pred_region
        %s1111 = ssub.s32 %s90, 1
        %p1112 = scmp.lt.s32.totalorder %s95, 1
        %s1113 = scalar_select %p1112, %s95, 1
        %s1114 = smul.addr %s1113, 16
        %s1115 = smul.addr %s1114, 8
        %s1116 = scalar_lea.vmem %s1, %s1115
        %p1117 = pneg %p116
        %p1118 = pneg %p113
        %p1119 = pneg %p137
        %p1120 = pneg %p134
        %p1121 = pneg %p158
        %p1122 = pneg %p155
        %p1123 = pneg %p179
        %p1124 = pneg %p176
        %p1125 = pneg %p200
        %p1126 = pneg %p197
        %p1127 = pneg %p221
        %p1128 = pneg %p218
        %p1129 = pneg %p242
        %p1130 = pneg %p239
        %p1131 = pneg %p263
        %p1132 = pneg %p260
        %p1133 = pneg %p284
        %p1134 = pneg %p281
        %p1135 = pneg %p305
        %p1136 = pneg %p302
        %p1137 = pneg %p326
        %p1138 = pneg %p323
        %p1139 = pneg %p347
        %p1140 = pneg %p344
        %p1141 = pneg %p368
        %p1142 = pneg %p365
        %p1143 = pneg %p389
        %p1144 = pneg %p386
        %p1145 = pneg %p410
        %p1146 = pneg %p407
        %p1147 = pneg %p431
        %p1148 = pneg %p428
        %p1149 = pneg %p452
        %p1150 = pneg %p449
        %p1151 = pneg %p473
        %p1152 = pneg %p470
        %p1153 = pneg %p494
        %p1154 = pneg %p491
        %p1155 = pneg %p515
        %p1156 = pneg %p512
        %p1157 = pneg %p536
        %p1158 = pneg %p533
        %p1159 = pneg %p557
        %p1160 = pneg %p554
        %p1161 = pneg %p578
        %p1162 = pneg %p575
        %p1163 = pneg %p599
        %p1164 = pneg %p596
        %p1165 = pneg %p620
        %p1166 = pneg %p617
        %p1167 = pneg %p641
        %p1168 = pneg %p638
        %p1169 = pneg %p662
        %p1170 = pneg %p659
        %p1171 = pneg %p683
        %p1172 = pneg %p680
        %p1173 = pneg %p704
        %p1174 = pneg %p701
        %p1175 = pneg %p725
        %p1176 = pneg %p722
        %p1177 = pneg %p746
        %p1178 = pneg %p743
        %p1179 = pneg %p767
        %p1180 = pneg %p764
        %p1181 = pneg %p788
        %p1182 = pneg %p785
        %p1183 = pneg %p809
        %p1184 = pneg %p806
        %p1185 = pneg %p830
        %p1186 = pneg %p827
        %p1187 = pneg %p851
        %p1188 = pneg %p848
        %p1189 = pneg %p872
        %p1190 = pneg %p869
        %p1191 = pneg %p893
        %p1192 = pneg %p890
        %p1193 = pneg %p914
        %p1194 = pneg %p911
        %p1195 = pneg %p935
        %p1196 = pneg %p932
        %p1197 = pneg %p961
        %p1198 = pneg %p958
        %s1199 = sand.u32 %s948, 1
        %s1200 = scalar_lea.sflag [#allocation3], %s1199
        %s1201 = sand.u32 %s948, 1
        %s1202 = scalar_lea.vmem [#allocation2], %s1201
        %p1203 = scmp.lt.s32.totalorder %s95, 1
        %s1204 = scalar_select %p1203, %s95, 1
        %s1205 = smul.addr %s1204, 16
        %s1206 = smul.addr %s1205, 8
        %s1207 = scalar_lea.vmem %s1, %s1206
        %v1211 = vld [vmem:[%s3] sm:$0x1]
        %v1212 = vld [vmem:[%s5] sm:$0x1]
        %v1213 = vld [vmem:[%s7] sm:$0xff]
        %v1214 = vld [vmem:[%s7 + $0x8] sm:$0xff]
        %v1215 = vld [vmem:[%s11] sm:$0x1]
        %v1216 = vld [vmem:[%s13] sm:$0xf]
        %v1217 = vld [vmem:[%s15] sm:$0xf]
        %v1218 = vld [vmem:[%s19] sm:$0x1]
        %v1219 = vld [vmem:[%s23] sm:$0x1]
        %v1220 = vld [vmem:[%s27] sm:$0x1]
        %v1221 = vld [vmem:[%s31] sm:$0x1]
        %v1222 = vld [vmem:[%s35] sm:$0x1]
        %v1223 = vld [vmem:[%s39] sm:$0x1]
        %v1224 = vld [vmem:[%s43] sm:$0x1]
        %v1225 = vld [vmem:[%s45] sm:$0x1]
        %v1226 = vld [vmem:[%s49] sm:$0x1]
        %v1227 = vld [vmem:[%s53] sm:$0x1]
        %v1228 = vld [vmem:[%s57] sm:$0x3]
        %v1229 = vld [vmem:[%s61] sm:$0x3]
        %v1230 = vld [vmem:[%s65] sm:$0x3]
        %v1231 = vld [vmem:[%s67] sm:$0x1]
        %v1232 = vld [vmem:[%s71] sm:$0x3]
        %v1233 = vld [vmem:[%s75] sm:$0x3]
        %v1234 = vld [vmem:[%s77] sm:$0xf]
        %v1235 = vld [vmem:[%s77 + $0x4] sm:$0xf]
        %v1236 = vld [vmem:[%s77 + $0x8] sm:$0xf]
        %v1237 = vld [vmem:[%s77 + $0xc] sm:$0xf]
        %v1238 = vld [vmem:[%s77 + $0x10] sm:$0xf]
        %v1239 = vld [vmem:[%s77 + $0x14] sm:$0xf]
        %v1240 = vld [vmem:[%s77 + $0x18] sm:$0xf]
        %v1241 = vld [vmem:[%s77 + $0x1c] sm:$0xf]
        %v1242 = vld [vmem:[%s77 + $0x20] sm:$0xf]
        %v1243 = vld [vmem:[%s77 + $0x24] sm:$0xf]
        %v1244 = vld [vmem:[%s77 + $0x28] sm:$0xf]
        %v1245 = vld [vmem:[%s77 + $0x2c] sm:$0xf]
        %v1246 = vld [vmem:[%s77 + $0x30] sm:$0xf]
        %v1247 = vld [vmem:[%s77 + $0x34] sm:$0xf]
        %v1248 = vld [vmem:[%s77 + $0x38] sm:$0xf]
        %v1249 = vld [vmem:[%s77 + $0x3c] sm:$0xf]
        %v1250 = vld [vmem:[%s77 + $0x40] sm:$0xf]
        %v1251 = vld [vmem:[%s77 + $0x44] sm:$0xf]
        %v1252 = vld [vmem:[%s77 + $0x48] sm:$0xf]
        %v1253 = vld [vmem:[%s77 + $0x4c] sm:$0xf]
        %v1254 = vld [vmem:[%s77 + $0x50] sm:$0xf]
        %v1255 = vld [vmem:[%s77 + $0x54] sm:$0xf]
        %v1256 = vld [vmem:[%s77 + $0x58] sm:$0xf]
        %v1257 = vld [vmem:[%s77 + $0x5c] sm:$0xf]
        %v1258 = vld [vmem:[%s77 + $0x60] sm:$0xf]
        %v1259 = vld [vmem:[%s77 + $0x64] sm:$0xf]
        %v1260 = vld [vmem:[%s77 + $0x68] sm:$0xf]
        %v1261 = vld [vmem:[%s77 + $0x6c] sm:$0xf]
        %v1262 = vld [vmem:[%s77 + $0x70] sm:$0xf]
        %v1263 = vld [vmem:[%s77 + $0x74] sm:$0xf]
        %v1264 = vld [vmem:[%s77 + $0x78] sm:$0xf]
        %v1265 = vld [vmem:[%s77 + $0x7c] sm:$0xf]
        %v1266 = vld [vmem:[%s79] sm:$0x1]
        %v1267 = vld [vmem:[%s1207] sm:$0xff]
        %v1268 = vld [vmem:[%s1207 + $0x8] sm:$0xff]
        %v1269 = vld [vmem:[%s1207 + $0x10] sm:$0xff]
        %v1270 = vld [vmem:[%s1207 + $0x18] sm:$0xff]
        %v1271 = vld [vmem:[%s1207 + $0x20] sm:$0xff]
        %v1272 = vld [vmem:[%s1207 + $0x28] sm:$0xff]
        %v1273 = vld [vmem:[%s1207 + $0x30] sm:$0xff]
        %v1274 = vld [vmem:[%s1207 + $0x38] sm:$0xff]
        %v1275 = vld [vmem:[%s1207 + $0x40] sm:$0xff]
        %v1276 = vld [vmem:[%s1207 + $0x48] sm:$0xff]
        %v1277 = vld [vmem:[%s1207 + $0x50] sm:$0xff]
        %v1278 = vld [vmem:[%s1207 + $0x58] sm:$0xff]
        %v1279 = vld [vmem:[%s1207 + $0x60] sm:$0xff]
        %v1280 = vld [vmem:[%s1207 + $0x68] sm:$0xff]
        %v1281 = vld [vmem:[%s1207 + $0x70] sm:$0xff]
        %v1282 = vld [vmem:[%s1207 + $0x78] sm:$0xff]
        %v1284 = vperm.slane %v1211, 0
        %v1286 = vmul.f32 %v1267, %v1284
        %v1287 = vmul.f32 %v1268, %v1284
        %v1288 = vmul.f32 %v1269, %v1284
        %v1289 = vmul.f32 %v1270, %v1284
        %v1290 = vmul.f32 %v1271, %v1284
        %v1291 = vmul.f32 %v1272, %v1284
        %v1292 = vmul.f32 %v1273, %v1284
        %v1293 = vmul.f32 %v1274, %v1284
        %v1294 = vmul.f32 %v1275, %v1284
        %v1295 = vmul.f32 %v1276, %v1284
        %v1296 = vmul.f32 %v1277, %v1284
        %v1297 = vmul.f32 %v1278, %v1284
        %v1298 = vmul.f32 %v1279, %v1284
        %v1299 = vmul.f32 %v1280, %v1284
        %v1300 = vmul.f32 %v1281, %v1284
        %v1301 = vmul.f32 %v1282, %v1284
        %v1303 = vperm.slane %v1212, 0
        %v1305 = vadd.f32 %v1286, %v1303
        %v1306 = vadd.f32 %v1287, %v1303
        %v1307 = vadd.f32 %v1288, %v1303
        %v1308 = vadd.f32 %v1289, %v1303
        %v1309 = vadd.f32 %v1290, %v1303
        %v1310 = vadd.f32 %v1291, %v1303
        %v1311 = vadd.f32 %v1292, %v1303
        %v1312 = vadd.f32 %v1293, %v1303
        %v1313 = vadd.f32 %v1294, %v1303
        %v1314 = vadd.f32 %v1295, %v1303
        %v1315 = vadd.f32 %v1296, %v1303
        %v1316 = vadd.f32 %v1297, %v1303
        %v1317 = vadd.f32 %v1298, %v1303
        %v1318 = vadd.f32 %v1299, %v1303
        %v1319 = vadd.f32 %v1300, %v1303
        %v1320 = vadd.f32 %v1301, %v1303
        %1321 = vmatpush.msra.mxu0 %v1320
        %1322 = vmatpush.msra.mxu0 %v1319
        %1323 = vmatpush.msra.mxu0 %v1318
        %1324 = vmatpush.msra.mxu0 %v1317
        %1325 = vmatpush.msra.mxu0 %v1316
        %1326 = vmatpush.msra.mxu0 %v1315
        %1327 = vmatpush.msra.mxu0 %v1314
        %1328 = vmatpush.msra.mxu0 %v1313
        %1329 = vmatpush.msra.mxu0 %v1312
        %1330 = vmatpush.msra.mxu0 %v1311
        %1331 = vmatpush.msra.mxu0 %v1310
        %1332 = vmatpush.msra.mxu0 %v1309
        %1333 = vmatpush.msra.mxu0 %v1308
        %1334 = vmatpush.msra.mxu0 %v1307
        %1335 = vmatpush.msra.mxu0 %v1306
        %1336 = vmatpush.msra.mxu0 %v1305
        %1337 = vmatmul.f32.gmra.mxu0 %v1213
        %v1338 = vpop.f32.mrf.mxu0
        %v1339 = vadd.f32 0.0, %v1338
        %1340 = vmatmul.f32.gmra.mxu0 %v1214
        %v1341 = vpop.f32.mrf.mxu0
        %v1342 = vadd.f32 0.0, %v1341
        %1343 = vdwg.mxu0
        %v1344 = vpack.c.bf16 %v1339, %v1339
        %v1345 = vpack.c.bf16 %v1342, %v1342
        %v1346 = vlaneseq
        %v1347 = vshrl.u32 %v1346, 7
        %v1348 = vadd.s32 %v1347, 8
        %v1351 = vunpack.c.l.b16 %v1344
        %v1352 = vunpack.c.l.b16 %v1345
        %v1353 = vpack.c.b16 %v1352, %v1351
        %v1355 = vshrl.u32 %v1353, 16
        %v1357 = vrot.slane %v1355, 6
        %v1358 = vshll.u32 %v1353, 16
        %v1360 = vrot.slane %v1358, 7
        %v1361 = vor.u32 %v1357, %v1360
        %vm1363 = vcmask 1041408
        %vm1364 = vsmask.f32 1280
        %vm1365 = vmand %vm1363, %vm1364
        %v1366 = vsel %vm1365, 0, %v1361
        %v1367 = vadd.s32 %v1347, 4294967293
        %v1368 = vadd.s32 %v1348, 4294967293
        %vm1369 = vcmp.ge.s32.totalorder %v1367, 0
        %vm1370 = vcmp.ge.s32.totalorder %v1368, 0
        %vm1371 = vcmp.lt.s32.totalorder %v1367, 16
        %vm1372 = vcmp.lt.s32.totalorder %v1368, 16
        %vm1373 = vmand %vm1369, %vm1371
        %vm1374 = vmand %vm1370, %vm1372
        %vm1375 = vmpackc.low %vm1373, %vm1373
        %vm1376 = vmpackc.low %vm1374, %vm1374
        %v1377 = vsel %vm1375, 65537, 0
        %v1378 = vsel %vm1376, 65537, 0
        %v1379 = vunpack.c.l.b16 %v1377
        %v1380 = vunpack.c.l.b16 %v1378
        %v1381 = vpack.c.b16 %v1380, %v1379
        %v1382 = vunpack.c.l.b16 %v1381
        %v1383 = vunpack.c.h.b16 %v1381
        %v1384 = vunpack.c.l.b16 0
        %v1385 = vunpack.c.h.b16 0
        %vm1386 = vcmp.ne.s32.totalorder %v1382, %v1384
        %vm1387 = vcmp.ne.s32.totalorder %v1383, %v1385
        %vm1388 = vmpackc.low %vm1387, %vm1386
        %v1389 = vsel %vm1388, %v1366, 0
        %v1390 = vrot.slane %v1353, 7
        %vm1391 = vcmask 1040384
        %v1394 = vsel %vm1391, 0, %v1390
        %v1396 = vadd.s32 %v1347, 4294967294
        %v1397 = vadd.s32 %v1348, 4294967294
        %vm1398 = vcmp.ge.s32.totalorder %v1396, 0
        %vm1399 = vcmp.ge.s32.totalorder %v1397, 0
        %vm1400 = vcmp.lt.s32.totalorder %v1396, 16
        %vm1401 = vcmp.lt.s32.totalorder %v1397, 16
        %vm1402 = vmand %vm1398, %vm1400
        %vm1403 = vmand %vm1399, %vm1401
        %vm1404 = vmpackc.low %vm1402, %vm1402
        %vm1405 = vmpackc.low %vm1403, %vm1403
        %v1406 = vsel %vm1404, 65537, 0
        %v1407 = vsel %vm1405, 65537, 0
        %v1408 = vunpack.c.l.b16 %v1406
        %v1409 = vunpack.c.l.b16 %v1407
        %v1410 = vpack.c.b16 %v1409, %v1408
        %v1411 = vunpack.c.l.b16 %v1410
        %v1412 = vunpack.c.h.b16 %v1410
        %v1413 = vunpack.c.l.b16 0
        %v1414 = vunpack.c.h.b16 0
        %vm1415 = vcmp.ne.s32.totalorder %v1411, %v1413
        %vm1416 = vcmp.ne.s32.totalorder %v1412, %v1414
        %vm1417 = vmpackc.low %vm1416, %vm1415
        %v1418 = vsel %vm1417, %v1394, 0
        %v1419 = vrot.slane %v1355, 7
        %v1420 = vor.u32 %v1419, %v1358
        %vm1422 = vcmask 1040384
        %vm1423 = vsmask.f32 256
        %vm1424 = vmand %vm1422, %vm1423
        %v1425 = vsel %vm1424, 0, %v1420
        %v1426 = vadd.s32 %v1347, 4294967295
        %v1427 = vadd.s32 %v1348, 4294967295
        %vm1428 = vcmp.ge.s32.totalorder %v1426, 0
        %vm1429 = vcmp.ge.s32.totalorder %v1427, 0
        %vm1430 = vcmp.lt.s32.totalorder %v1426, 16
        %vm1431 = vcmp.lt.s32.totalorder %v1427, 16
        %vm1432 = vmand %vm1428, %vm1430
        %vm1433 = vmand %vm1429, %vm1431
        %vm1434 = vmpackc.low %vm1432, %vm1432
        %vm1435 = vmpackc.low %vm1433, %vm1433
        %v1436 = vsel %vm1434, 65537, 0
        %v1437 = vsel %vm1435, 65537, 0
        %v1438 = vunpack.c.l.b16 %v1436
        %v1439 = vunpack.c.l.b16 %v1437
        %v1440 = vpack.c.b16 %v1439, %v1438
        %v1441 = vunpack.c.l.b16 %v1440
        %v1442 = vunpack.c.h.b16 %v1440
        %v1443 = vunpack.c.l.b16 0
        %v1444 = vunpack.c.h.b16 0
        %vm1445 = vcmp.ne.s32.totalorder %v1441, %v1443
        %vm1446 = vcmp.ne.s32.totalorder %v1442, %v1444
        %vm1447 = vmpackc.low %vm1446, %vm1445
        %v1448 = vsel %vm1447, %v1425, 0
        %v1449 = vrot.slane %v1358, 1
        %v1450 = vor.u32 %v1355, %v1449
        %vm1452 = vcmask 1047552
        %vm1453 = vsmask.f32 7424
        %vm1454 = vmand %vm1452, %vm1453
        %v1455 = vsel %vm1454, %v1450, 0
        %v1456 = vadd.s32 %v1347, 1
        %v1457 = vadd.s32 %v1348, 1
        %vm1458 = vcmp.ge.s32.totalorder %v1456, 0
        %vm1459 = vcmp.ge.s32.totalorder %v1457, 0
        %vm1460 = vcmp.lt.s32.totalorder %v1456, 16
        %vm1461 = vcmp.lt.s32.totalorder %v1457, 16
        %vm1462 = vmand %vm1458, %vm1460
        %vm1463 = vmand %vm1459, %vm1461
        %vm1464 = vmpackc.low %vm1462, %vm1462
        %vm1465 = vmpackc.low %vm1463, %vm1463
        %v1466 = vsel %vm1464, 65537, 0
        %v1467 = vsel %vm1465, 65537, 0
        %v1468 = vunpack.c.l.b16 %v1466
        %v1469 = vunpack.c.l.b16 %v1467
        %v1470 = vpack.c.b16 %v1469, %v1468
        %v1471 = vunpack.c.l.b16 %v1470
        %v1472 = vunpack.c.h.b16 %v1470
        %v1473 = vunpack.c.l.b16 0
        %v1474 = vunpack.c.h.b16 0
        %vm1475 = vcmp.ne.s32.totalorder %v1471, %v1473
        %vm1476 = vcmp.ne.s32.totalorder %v1472, %v1474
        %vm1477 = vmpackc.low %vm1476, %vm1475
        %v1478 = vsel %vm1477, %v1455, 0
        %v1479 = vrot.slane %v1353, 1
        %vm1480 = vcmask 1046528
        %v1482 = vsel %vm1480, %v1479, 0
        %v1484 = vadd.s32 %v1347, 2
        %v1485 = vadd.s32 %v1348, 2
        %vm1486 = vcmp.ge.s32.totalorder %v1484, 0
        %vm1487 = vcmp.ge.s32.totalorder %v1485, 0
        %vm1488 = vcmp.lt.s32.totalorder %v1484, 16
        %vm1489 = vcmp.lt.s32.totalorder %v1485, 16
        %vm1490 = vmand %vm1486, %vm1488
        %vm1491 = vmand %vm1487, %vm1489
        %vm1492 = vmpackc.low %vm1490, %vm1490
        %vm1493 = vmpackc.low %vm1491, %vm1491
        %v1494 = vsel %vm1492, 65537, 0
        %v1495 = vsel %vm1493, 65537, 0
        %v1496 = vunpack.c.l.b16 %v1494
        %v1497 = vunpack.c.l.b16 %v1495
        %v1498 = vpack.c.b16 %v1497, %v1496
        %v1499 = vunpack.c.l.b16 %v1498
        %v1500 = vunpack.c.h.b16 %v1498
        %v1501 = vunpack.c.l.b16 0
        %v1502 = vunpack.c.h.b16 0
        %vm1503 = vcmp.ne.s32.totalorder %v1499, %v1501
        %vm1504 = vcmp.ne.s32.totalorder %v1500, %v1502
        %vm1505 = vmpackc.low %vm1504, %vm1503
        %v1506 = vsel %vm1505, %v1482, 0
        %v1507 = vrot.slane %v1355, 1
        %v1508 = vrot.slane %v1358, 2
        %v1509 = vor.u32 %v1507, %v1508
        %vm1511 = vcmask 1046528
        %vm1512 = vsmask.f32 6400
        %vm1513 = vmand %vm1511, %vm1512
        %v1514 = vsel %vm1513, %v1509, 0
        %v1515 = vadd.s32 %v1347, 3
        %v1516 = vadd.s32 %v1348, 3
        %vm1517 = vcmp.ge.s32.totalorder %v1515, 0
        %vm1518 = vcmp.ge.s32.totalorder %v1516, 0
        %vm1519 = vcmp.lt.s32.totalorder %v1515, 16
        %vm1520 = vcmp.lt.s32.totalorder %v1516, 16
        %vm1521 = vmand %vm1517, %vm1519
        %vm1522 = vmand %vm1518, %vm1520
        %vm1523 = vmpackc.low %vm1521, %vm1521
        %vm1524 = vmpackc.low %vm1522, %vm1522
        %v1525 = vsel %vm1523, 65537, 0
        %v1526 = vsel %vm1524, 65537, 0
        %v1527 = vunpack.c.l.b16 %v1525
        %v1528 = vunpack.c.l.b16 %v1526
        %v1529 = vpack.c.b16 %v1528, %v1527
        %v1530 = vunpack.c.l.b16 %v1529
        %v1531 = vunpack.c.h.b16 %v1529
        %v1532 = vunpack.c.l.b16 0
        %v1533 = vunpack.c.h.b16 0
        %vm1534 = vcmp.ne.s32.totalorder %v1530, %v1532
        %vm1535 = vcmp.ne.s32.totalorder %v1531, %v1533
        %vm1536 = vmpackc.low %vm1535, %vm1534
        %v1537 = vsel %vm1536, %v1514, 0
        %1539 = vrot.lane.b32.xlu0 %v1418, 8
        %v1540 = vpop.permute.xlu0 %1539
        %1542 = vrot.lane.b32.xlu0 %v1448, 16
        %v1543 = vpop.permute.xlu0 %1542
        %1544 = vrot.lane.b32.xlu0 %v1353, 24
        %v1545 = vpop.permute.xlu0 %1544
        %1547 = vrot.lane.b32.xlu0 %v1478, 32
        %v1548 = vpop.permute.xlu0 %1547
        %1550 = vrot.lane.b32.xlu0 %v1506, 40
        %v1551 = vpop.permute.xlu0 %1550
        %1553 = vrot.lane.b32.xlu0 %v1537, 48
        %v1554 = vpop.permute.xlu0 %1553
        %vm1555 = vcmask 64512
        %v1558 = vsel %vm1555, %v1389, %v1540
        %vm1559 = vcmask 130048
        %v1561 = vsel %vm1559, %v1558, %v1543
        %vm1562 = vcmask 195584
        %v1564 = vsel %vm1562, %v1561, %v1545
        %vm1565 = vcmask 261120
        %v1567 = vsel %vm1565, %v1564, %v1548
        %vm1568 = vcmask 326656
        %v1570 = vsel %vm1568, %v1567, %v1551
        %vm1571 = vcmask 392192
        %v1573 = vsel %vm1571, %v1570, %v1554
        %v1576 = vsel %vm1559, %v1216, 0
        %1578 = vmatpush.bf16.msra.mxu0 0
        %1579 = vmatpush.bf16.msra.mxu0 0
        %1580 = vmatpush.bf16.msra.mxu0 0
        %1581 = vmatpush.bf16.msra.mxu0 0
        %1582 = vmatpush.bf16.msra.mxu0 0
        %1583 = vmatpush.bf16.msra.mxu0 0
        %1584 = vmatpush.bf16.msra.mxu0 0
        %1585 = vmatpush.bf16.msra.mxu0 %v1573
        %1586 = vmatmul.bf16.gmra.mxu0 %v1576
        %v1587 = vpop.f32.mrf.mxu0
        %v1588 = vadd.f32 0.0, %v1587
        %v1589 = vpop.f32.mrf.mxu0
        %1590 = vdwg.mxu0
        %v1591 = vpack.c.bf16 %v1588, %v1588
        %v1592 = vld [vmem:[%s9] sm:$0xf]
        %v1593 = vld [vmem:[%s9 + $0x4] sm:$0xf]
        %v1594 = vld [vmem:[%s9 + $0x8] sm:$0xf]
        %v1595 = vld [vmem:[%s9 + $0xc] sm:$0xf]
        %v1596 = vld [vmem:[%s9 + $0x10] sm:$0xf]
        %v1597 = vld [vmem:[%s9 + $0x14] sm:$0xf]
        %v1598 = vld [vmem:[%s9 + $0x18] sm:$0xf]
        %v1600 = vperm.slane %v1215, 0
        %v1609 = vunpack.c.l.b16 %v1592
        %v1610 = vunpack.c.l.b16 %v1593
        %v1611 = vunpack.c.l.b16 %v1594
        %v1612 = vunpack.c.l.b16 %v1595
        %v1613 = vunpack.c.l.b16 %v1596
        %v1614 = vunpack.c.l.b16 %v1597
        %v1615 = vunpack.c.l.b16 %v1598
        %v1616 = vpack.c.b16 %v1610, %v1609
        %v1617 = vpack.c.b16 %v1612, %v1611
        %v1618 = vpack.c.b16 %v1614, %v1613
        %v1619 = vpack.c.b16 %v1615, %v1615
        %vm1623 = vcmask 457728
        %v1625 = vsel %vm1623, %v1591, 0
        %vm1627 = vcmask 1043456
        %v1629 = vsel %vm1627, %v1619, 0
        %1631 = vmatpush.bf16.msra.mxu0 0
        %1632 = vmatpush.bf16.msra.mxu0 0
        %1633 = vmatpush.bf16.msra.mxu0 0
        %1634 = vmatpush.bf16.msra.mxu0 0
        %1635 = vmatpush.bf16.msra.mxu0 %v1629
        %1636 = vmatpush.bf16.msra.mxu0 %v1618
        %1637 = vmatpush.bf16.msra.mxu0 %v1617
        %1638 = vmatpush.bf16.msra.mxu0 %v1616
        %1639 = vmatmul.bf16.gmra.mxu0 %v1625
        %v1640 = vpop.f32.mrf.mxu0
        %v1641 = vadd.f32 %v1600, %v1640
        %v1642 = vpop.f32.mrf.mxu0
        %1643 = vdwg.mxu0
        %v1644 = vmax.f32 %v1641, 0.0
        %v1646 = vrot.slane %v1644, 7
        %v1648 = vsel %vm1391, -1e+30, %v1646
        %vm1649 = vcmp.lt.s32.totalorder %v1426, 8
        %vm1650 = vmand %vm1428, %vm1649
        %v1651 = vsel %vm1650, %v1648, -1e+30
        %v1652 = vmax.f32 %v1644, %v1651
        %v1653 = vrot.slane %v1644, 1
        %v1655 = vsel %vm1480, %v1653, -1e+30
        %vm1656 = vcmp.lt.s32.totalorder %v1456, 8
        %vm1657 = vmand %vm1458, %vm1656
        %v1658 = vsel %vm1657, %v1655, -1e+30
        %v1659 = vmax.f32 %v1652, %v1658
        %v1661 = vsel %vm1555, %v1217, 0
        %1663 = vmatpush.msra.mxu0 0.0
        %1664 = vmatpush.msra.mxu0 0.0
        %1665 = vmatpush.msra.mxu0 0.0
        %1666 = vmatpush.msra.mxu0 0.0
        %1667 = vmatpush.msra.mxu0 0.0
        %1668 = vmatpush.msra.mxu0 0.0
        %1669 = vmatpush.msra.mxu0 0.0
        %1670 = vmatpush.msra.mxu0 0.0
        %1671 = vmatpush.msra.mxu0 0.0
        %1672 = vmatpush.msra.mxu0 0.0
        %1673 = vmatpush.msra.mxu0 0.0
        %1674 = vmatpush.msra.mxu0 0.0
        %1675 = vmatpush.msra.mxu0 0.0
        %1676 = vmatpush.msra.mxu0 0.0
        %1677 = vmatpush.msra.mxu0 0.0
        %1678 = vmatpush.msra.mxu0 %v1659
        %1679 = vmatmul.f32.gmra.mxu0 %v1661
        %v1680 = vpop.f32.mrf.mxu0
        %v1681 = vadd.f32 0.0, %v1680
        %1682 = vdwg.mxu0
        %v1683 = vpack.c.bf16 %v1681, %v1681
        %v1685 = vunpack.c.l.b16 %v1683
        %v1686 = vpack.c.b16 %v1685, %v1685
        %v1688 = vshrl.u32 %v1686, 16
        %v1690 = vrot.slane %v1688, 7
        %v1691 = vshll.u32 %v1686, 16
        %v1693 = vor.u32 %v1690, %v1691
        %v1695 = vsel %vm1424, 0, %v1693
        %vm1696 = vcmp.lt.s32.totalorder %v1426, 4
        %vm1697 = vmand %vm1428, %vm1696
        %vm1698 = vmpackc.low %vm1697, %vm1697
        %v1699 = vsel %vm1698, %v1695, 0
        %v1700 = vrot.slane %v1691, 1
        %v1701 = vor.u32 %v1688, %v1700
        %v1703 = vsel %vm1365, %v1701, 0
        %vm1704 = vcmp.lt.s32.totalorder %v1456, 4
        %vm1705 = vmand %vm1458, %vm1704
        %vm1706 = vmpackc.low %vm1705, %vm1705
        %v1707 = vsel %vm1706, %v1703, 0
        %1708 = vrot.lane.b32.xlu0 %v1686, 64
        %v1709 = vpop.permute.xlu0 %1708
        %vm1710 = vcmask 523264
        %v1713 = vsel %vm1710, %v1699, %v1709
        %v1715 = vld [vmem:[%s17] sm:$0xf]
        %v1716 = vld [vmem:[%s17 + $0x4] sm:$0xf]
        %v1717 = vld [vmem:[%s17 + $0x8] sm:$0xf]
        %v1718 = vld [vmem:[%s17 + $0xc] sm:$0xf]
        %v1719 = vld [vmem:[%s17 + $0x10] sm:$0xf]
        %v1720 = vld [vmem:[%s17 + $0x14] sm:$0xf]
        %v1721 = vld [vmem:[%s17 + $0x18] sm:$0xf]
        %v1722 = vld [vmem:[%s17 + $0x1c] sm:$0xf]
        %v1723 = vld [vmem:[%s17 + $0x20] sm:$0xf]
        %v1724 = vld [vmem:[%s17 + $0x24] sm:$0xf]
        %v1725 = vld [vmem:[%s17 + $0x28] sm:$0xf]
        %v1726 = vld [vmem:[%s17 + $0x2c] sm:$0xf]
        %v1727 = vld [vmem:[%s17 + $0x30] sm:$0xf]
        %v1728 = vld [vmem:[%s17 + $0x34] sm:$0xf]
        %v1729 = vld [vmem:[%s17 + $0x38] sm:$0xf]
        %v1730 = vld [vmem:[%s17 + $0x3c] sm:$0xf]
        %v1731 = vld [vmem:[%s17 + $0x40] sm:$0xf]
        %v1732 = vld [vmem:[%s17 + $0x44] sm:$0xf]
        %v1733 = vld [vmem:[%s17 + $0x48] sm:$0xf]
        %v1734 = vld [vmem:[%s17 + $0x4c] sm:$0xf]
        %v1735 = vld [vmem:[%s17 + $0x50] sm:$0xf]
        %v1736 = vld [vmem:[%s17 + $0x54] sm:$0xf]
        %v1737 = vld [vmem:[%s17 + $0x58] sm:$0xf]
        %v1738 = vld [vmem:[%s17 + $0x5c] sm:$0xf]
        %v1740 = vperm.slane %v1218, 0
        %v1766 = vunpack.c.l.b16 %v1715
        %v1767 = vunpack.c.l.b16 %v1716
        %v1768 = vunpack.c.l.b16 %v1717
        %v1769 = vunpack.c.l.b16 %v1718
        %v1770 = vunpack.c.l.b16 %v1719
        %v1771 = vunpack.c.l.b16 %v1720
        %v1772 = vunpack.c.l.b16 %v1721
        %v1773 = vunpack.c.l.b16 %v1722
        %v1774 = vunpack.c.l.b16 %v1723
        %v1775 = vunpack.c.l.b16 %v1724
        %v1776 = vunpack.c.l.b16 %v1725
        %v1777 = vunpack.c.l.b16 %v1726
        %v1778 = vunpack.c.l.b16 %v1727
        %v1779 = vunpack.c.l.b16 %v1728
        %v1780 = vunpack.c.l.b16 %v1729
        %v1781 = vunpack.c.l.b16 %v1730
        %v1782 = vunpack.c.l.b16 %v1731
        %v1783 = vunpack.c.l.b16 %v1732
        %v1784 = vunpack.c.l.b16 %v1733
        %v1785 = vunpack.c.l.b16 %v1734
        %v1786 = vunpack.c.l.b16 %v1735
        %v1787 = vunpack.c.l.b16 %v1736
        %v1788 = vunpack.c.l.b16 %v1737
        %v1789 = vunpack.c.l.b16 %v1738
        %v1790 = vpack.c.b16 %v1767, %v1766
        %v1791 = vpack.c.b16 %v1769, %v1768
        %v1792 = vpack.c.b16 %v1771, %v1770
        %v1793 = vpack.c.b16 %v1773, %v1772
        %v1794 = vpack.c.b16 %v1775, %v1774
        %v1795 = vpack.c.b16 %v1777, %v1776
        %v1796 = vpack.c.b16 %v1779, %v1778
        %v1797 = vpack.c.b16 %v1781, %v1780
        %v1798 = vpack.c.b16 %v1783, %v1782
        %v1799 = vpack.c.b16 %v1785, %v1784
        %v1800 = vpack.c.b16 %v1787, %v1786
        %v1801 = vpack.c.b16 %v1789, %v1788
        %v1815 = vsel %vm1710, %v1707, 0
        %1817 = vmatpush.bf16.msra.mxu0 %v1797
        %1818 = vmatpush.bf16.msra.mxu0 %v1796
        %1819 = vmatpush.bf16.msra.mxu0 %v1795
        %1820 = vmatpush.bf16.msra.mxu0 %v1794
        %1821 = vmatpush.bf16.msra.mxu0 %v1793
        %1822 = vmatpush.bf16.msra.mxu0 %v1792
        %1823 = vmatpush.bf16.msra.mxu0 %v1791
        %1824 = vmatpush.bf16.msra.mxu0 %v1790
        %1825 = vmatmul.bf16.gmra.mxu0 %v1713
        %v1826 = vpop.f32.mrf.mxu0
        %v1827 = vadd.f32 %v1740, %v1826
        %v1828 = vpop.f32.mrf.mxu0
        %1829 = vdwg.mxu0
        %1830 = vmatpush.bf16.msra.mxu0 0
        %1831 = vmatpush.bf16.msra.mxu0 0
        %1832 = vmatpush.bf16.msra.mxu0 0
        %1833 = vmatpush.bf16.msra.mxu0 0
        %1834 = vmatpush.bf16.msra.mxu0 %v1801
        %1835 = vmatpush.bf16.msra.mxu0 %v1800
        %1836 = vmatpush.bf16.msra.mxu0 %v1799
        %1837 = vmatpush.bf16.msra.mxu0 %v1798
        %1838 = vmatmul.bf16.gmra.mxu0 %v1815
        %v1839 = vpop.f32.mrf.mxu0
        %v1840 = vadd.f32 %v1827, %v1839
        %v1841 = vpop.f32.mrf.mxu0
        %1842 = vdwg.mxu0
        %v1843 = vmax.f32 %v1840, 0.0
        %v1844 = vpack.c.bf16 %v1843, %v1843
        %v1846 = vunpack.c.l.b16 %v1844
        %v1847 = vpack.c.b16 %v1846, %v1846
        %v1849 = vshrl.u32 %v1847, 16
        %v1851 = vrot.slane %v1849, 7
        %v1852 = vshll.u32 %v1847, 16
        %v1854 = vor.u32 %v1851, %v1852
        %v1856 = vsel %vm1424, 0, %v1854
        %v1857 = vsel %vm1698, %v1856, 0
        %v1858 = vrot.slane %v1852, 1
        %v1859 = vor.u32 %v1849, %v1858
        %v1861 = vsel %vm1365, %v1859, 0
        %v1862 = vsel %vm1706, %v1861, 0
        %1863 = vrot.lane.b32.xlu0 %v1847, 64
        %v1864 = vpop.permute.xlu0 %1863
        %v1867 = vsel %vm1710, %v1857, %v1864
        %v1869 = vld [vmem:[%s21] sm:$0xf]
        %v1870 = vld [vmem:[%s21 + $0x4] sm:$0xf]
        %v1871 = vld [vmem:[%s21 + $0x8] sm:$0xf]
        %v1872 = vld [vmem:[%s21 + $0xc] sm:$0xf]
        %v1873 = vld [vmem:[%s21 + $0x10] sm:$0xf]
        %v1874 = vld [vmem:[%s21 + $0x14] sm:$0xf]
        %v1875 = vld [vmem:[%s21 + $0x18] sm:$0xf]
        %v1876 = vld [vmem:[%s21 + $0x1c] sm:$0xf]
        %v1877 = vld [vmem:[%s21 + $0x20] sm:$0xf]
        %v1878 = vld [vmem:[%s21 + $0x24] sm:$0xf]
        %v1879 = vld [vmem:[%s21 + $0x28] sm:$0xf]
        %v1880 = vld [vmem:[%s21 + $0x2c] sm:$0xf]
        %v1881 = vld [vmem:[%s21 + $0x30] sm:$0xf]
        %v1882 = vld [vmem:[%s21 + $0x34] sm:$0xf]
        %v1883 = vld [vmem:[%s21 + $0x38] sm:$0xf]
        %v1884 = vld [vmem:[%s21 + $0x3c] sm:$0xf]
        %v1885 = vld [vmem:[%s21 + $0x40] sm:$0xf]
        %v1886 = vld [vmem:[%s21 + $0x44] sm:$0xf]
        %v1887 = vld [vmem:[%s21 + $0x48] sm:$0xf]
        %v1888 = vld [vmem:[%s21 + $0x4c] sm:$0xf]
        %v1889 = vld [vmem:[%s21 + $0x50] sm:$0xf]
        %v1890 = vld [vmem:[%s21 + $0x54] sm:$0xf]
        %v1891 = vld [vmem:[%s21 + $0x58] sm:$0xf]
        %v1892 = vld [vmem:[%s21 + $0x5c] sm:$0xf]
        %v1894 = vperm.slane %v1219, 0
        %v1920 = vunpack.c.l.b16 %v1869
        %v1921 = vunpack.c.l.b16 %v1870
        %v1922 = vunpack.c.l.b16 %v1871
        %v1923 = vunpack.c.l.b16 %v1872
        %v1924 = vunpack.c.l.b16 %v1873
        %v1925 = vunpack.c.l.b16 %v1874
        %v1926 = vunpack.c.l.b16 %v1875
        %v1927 = vunpack.c.l.b16 %v1876
        %v1928 = vunpack.c.l.b16 %v1877
        %v1929 = vunpack.c.l.b16 %v1878
        %v1930 = vunpack.c.l.b16 %v1879
        %v1931 = vunpack.c.l.b16 %v1880
        %v1932 = vunpack.c.l.b16 %v1881
        %v1933 = vunpack.c.l.b16 %v1882
        %v1934 = vunpack.c.l.b16 %v1883
        %v1935 = vunpack.c.l.b16 %v1884
        %v1936 = vunpack.c.l.b16 %v1885
        %v1937 = vunpack.c.l.b16 %v1886
        %v1938 = vunpack.c.l.b16 %v1887
        %v1939 = vunpack.c.l.b16 %v1888
        %v1940 = vunpack.c.l.b16 %v1889
        %v1941 = vunpack.c.l.b16 %v1890
        %v1942 = vunpack.c.l.b16 %v1891
        %v1943 = vunpack.c.l.b16 %v1892
        %v1944 = vpack.c.b16 %v1921, %v1920
        %v1945 = vpack.c.b16 %v1923, %v1922
        %v1946 = vpack.c.b16 %v1925, %v1924
        %v1947 = vpack.c.b16 %v1927, %v1926
        %v1948 = vpack.c.b16 %v1929, %v1928
        %v1949 = vpack.c.b16 %v1931, %v1930
        %v1950 = vpack.c.b16 %v1933, %v1932
        %v1951 = vpack.c.b16 %v1935, %v1934
        %v1952 = vpack.c.b16 %v1937, %v1936
        %v1953 = vpack.c.b16 %v1939, %v1938
        %v1954 = vpack.c.b16 %v1941, %v1940
        %v1955 = vpack.c.b16 %v1943, %v1942
        %v1969 = vsel %vm1710, %v1862, 0
        %1971 = vmatpush.bf16.msra.mxu0 %v1951
        %1972 = vmatpush.bf16.msra.mxu0 %v1950
        %1973 = vmatpush.bf16.msra.mxu0 %v1949
        %1974 = vmatpush.bf16.msra.mxu0 %v1948
        %1975 = vmatpush.bf16.msra.mxu0 %v1947
        %1976 = vmatpush.bf16.msra.mxu0 %v1946
        %1977 = vmatpush.bf16.msra.mxu0 %v1945
        %1978 = vmatpush.bf16.msra.mxu0 %v1944
        %1979 = vmatmul.bf16.gmra.mxu0 %v1867
        %v1980 = vpop.f32.mrf.mxu0
        %v1981 = vadd.f32 %v1894, %v1980
        %v1982 = vpop.f32.mrf.mxu0
        %1983 = vdwg.mxu0
        %1984 = vmatpush.bf16.msra.mxu0 0
        %1985 = vmatpush.bf16.msra.mxu0 0
        %1986 = vmatpush.bf16.msra.mxu0 0
        %1987 = vmatpush.bf16.msra.mxu0 0
        %1988 = vmatpush.bf16.msra.mxu0 %v1955
        %1989 = vmatpush.bf16.msra.mxu0 %v1954
        %1990 = vmatpush.bf16.msra.mxu0 %v1953
        %1991 = vmatpush.bf16.msra.mxu0 %v1952
        %1992 = vmatmul.bf16.gmra.mxu0 %v1969
        %v1993 = vpop.f32.mrf.mxu0
        %v1994 = vadd.f32 %v1981, %v1993
        %v1995 = vpop.f32.mrf.mxu0
        %1996 = vdwg.mxu0
        %v1997 = vadd.f32 %v1994, %v1681
        %v1998 = vmax.f32 %v1997, 0.0
        %v1999 = vpack.c.bf16 %v1998, %v1998
        %v2001 = vunpack.c.l.b16 %v1999
        %v2002 = vpack.c.b16 %v2001, %v2001
        %v2004 = vshrl.u32 %v2002, 16
        %v2006 = vrot.slane %v2004, 7
        %v2007 = vshll.u32 %v2002, 16
        %v2009 = vor.u32 %v2006, %v2007
        %v2011 = vsel %vm1424, 0, %v2009
        %v2012 = vsel %vm1698, %v2011, 0
        %v2013 = vrot.slane %v2007, 1
        %v2014 = vor.u32 %v2004, %v2013
        %v2016 = vsel %vm1365, %v2014, 0
        %v2017 = vsel %vm1706, %v2016, 0
        %2018 = vrot.lane.b32.xlu0 %v2002, 64
        %v2019 = vpop.permute.xlu0 %2018
        %v2022 = vsel %vm1710, %v2012, %v2019
        %v2024 = vld [vmem:[%s25] sm:$0xf]
        %v2025 = vld [vmem:[%s25 + $0x4] sm:$0xf]
        %v2026 = vld [vmem:[%s25 + $0x8] sm:$0xf]
        %v2027 = vld [vmem:[%s25 + $0xc] sm:$0xf]
        %v2028 = vld [vmem:[%s25 + $0x10] sm:$0xf]
        %v2029 = vld [vmem:[%s25 + $0x14] sm:$0xf]
        %v2030 = vld [vmem:[%s25 + $0x18] sm:$0xf]
        %v2031 = vld [vmem:[%s25 + $0x1c] sm:$0xf]
        %v2032 = vld [vmem:[%s25 + $0x20] sm:$0xf]
        %v2033 = vld [vmem:[%s25 + $0x24] sm:$0xf]
        %v2034 = vld [vmem:[%s25 + $0x28] sm:$0xf]
        %v2035 = vld [vmem:[%s25 + $0x2c] sm:$0xf]
        %v2036 = vld [vmem:[%s25 + $0x30] sm:$0xf]
        %v2037 = vld [vmem:[%s25 + $0x34] sm:$0xf]
        %v2038 = vld [vmem:[%s25 + $0x38] sm:$0xf]
        %v2039 = vld [vmem:[%s25 + $0x3c] sm:$0xf]
        %v2040 = vld [vmem:[%s25 + $0x40] sm:$0xf]
        %v2041 = vld [vmem:[%s25 + $0x44] sm:$0xf]
        %v2042 = vld [vmem:[%s25 + $0x48] sm:$0xf]
        %v2043 = vld [vmem:[%s25 + $0x4c] sm:$0xf]
        %v2044 = vld [vmem:[%s25 + $0x50] sm:$0xf]
        %v2045 = vld [vmem:[%s25 + $0x54] sm:$0xf]
        %v2046 = vld [vmem:[%s25 + $0x58] sm:$0xf]
        %v2047 = vld [vmem:[%s25 + $0x5c] sm:$0xf]
        %v2049 = vperm.slane %v1220, 0
        %v2075 = vunpack.c.l.b16 %v2024
        %v2076 = vunpack.c.l.b16 %v2025
        %v2077 = vunpack.c.l.b16 %v2026
        %v2078 = vunpack.c.l.b16 %v2027
        %v2079 = vunpack.c.l.b16 %v2028
        %v2080 = vunpack.c.l.b16 %v2029
        %v2081 = vunpack.c.l.b16 %v2030
        %v2082 = vunpack.c.l.b16 %v2031
        %v2083 = vunpack.c.l.b16 %v2032
        %v2084 = vunpack.c.l.b16 %v2033
        %v2085 = vunpack.c.l.b16 %v2034
        %v2086 = vunpack.c.l.b16 %v2035
        %v2087 = vunpack.c.l.b16 %v2036
        %v2088 = vunpack.c.l.b16 %v2037
        %v2089 = vunpack.c.l.b16 %v2038
        %v2090 = vunpack.c.l.b16 %v2039
        %v2091 = vunpack.c.l.b16 %v2040
        %v2092 = vunpack.c.l.b16 %v2041
        %v2093 = vunpack.c.l.b16 %v2042
        %v2094 = vunpack.c.l.b16 %v2043
        %v2095 = vunpack.c.l.b16 %v2044
        %v2096 = vunpack.c.l.b16 %v2045
        %v2097 = vunpack.c.l.b16 %v2046
        %v2098 = vunpack.c.l.b16 %v2047
        %v2099 = vpack.c.b16 %v2076, %v2075
        %v2100 = vpack.c.b16 %v2078, %v2077
        %v2101 = vpack.c.b16 %v2080, %v2079
        %v2102 = vpack.c.b16 %v2082, %v2081
        %v2103 = vpack.c.b16 %v2084, %v2083
        %v2104 = vpack.c.b16 %v2086, %v2085
        %v2105 = vpack.c.b16 %v2088, %v2087
        %v2106 = vpack.c.b16 %v2090, %v2089
        %v2107 = vpack.c.b16 %v2092, %v2091
        %v2108 = vpack.c.b16 %v2094, %v2093
        %v2109 = vpack.c.b16 %v2096, %v2095
        %v2110 = vpack.c.b16 %v2098, %v2097
        %v2124 = vsel %vm1710, %v2017, 0
        %2126 = vmatpush.bf16.msra.mxu0 %v2106
        %2127 = vmatpush.bf16.msra.mxu0 %v2105
        %2128 = vmatpush.bf16.msra.mxu0 %v2104
        %2129 = vmatpush.bf16.msra.mxu0 %v2103
        %2130 = vmatpush.bf16.msra.mxu0 %v2102
        %2131 = vmatpush.bf16.msra.mxu0 %v2101
        %2132 = vmatpush.bf16.msra.mxu0 %v2100
        %2133 = vmatpush.bf16.msra.mxu0 %v2099
        %2134 = vmatmul.bf16.gmra.mxu0 %v2022
        %v2135 = vpop.f32.mrf.mxu0
        %v2136 = vadd.f32 %v2049, %v2135
        %v2137 = vpop.f32.mrf.mxu0
        %2138 = vdwg.mxu0
        %2139 = vmatpush.bf16.msra.mxu0 0
        %2140 = vmatpush.bf16.msra.mxu0 0
        %2141 = vmatpush.bf16.msra.mxu0 0
        %2142 = vmatpush.bf16.msra.mxu0 0
        %2143 = vmatpush.bf16.msra.mxu0 %v2110
        %2144 = vmatpush.bf16.msra.mxu0 %v2109
        %2145 = vmatpush.bf16.msra.mxu0 %v2108
        %2146 = vmatpush.bf16.msra.mxu0 %v2107
        %2147 = vmatmul.bf16.gmra.mxu0 %v2124
        %v2148 = vpop.f32.mrf.mxu0
        %v2149 = vadd.f32 %v2136, %v2148
        %v2150 = vpop.f32.mrf.mxu0
        %2151 = vdwg.mxu0
        %v2152 = vmax.f32 %v2149, 0.0
        %v2153 = vpack.c.bf16 %v2152, %v2152
        %v2155 = vunpack.c.l.b16 %v2153
        %v2156 = vpack.c.b16 %v2155, %v2155
        %v2158 = vshrl.u32 %v2156, 16
        %v2160 = vrot.slane %v2158, 7
        %v2161 = vshll.u32 %v2156, 16
        %v2163 = vor.u32 %v2160, %v2161
        %v2165 = vsel %vm1424, 0, %v2163
        %v2166 = vsel %vm1698, %v2165, 0
        %v2167 = vrot.slane %v2161, 1
        %v2168 = vor.u32 %v2158, %v2167
        %v2170 = vsel %vm1365, %v2168, 0
        %v2171 = vsel %vm1706, %v2170, 0
        %2172 = vrot.lane.b32.xlu0 %v2156, 64
        %v2173 = vpop.permute.xlu0 %2172
        %v2176 = vsel %vm1710, %v2166, %v2173
        %v2178 = vld [vmem:[%s29] sm:$0xf]
        %v2179 = vld [vmem:[%s29 + $0x4] sm:$0xf]
        %v2180 = vld [vmem:[%s29 + $0x8] sm:$0xf]
        %v2181 = vld [vmem:[%s29 + $0xc] sm:$0xf]
        %v2182 = vld [vmem:[%s29 + $0x10] sm:$0xf]
        %v2183 = vld [vmem:[%s29 + $0x14] sm:$0xf]
        %v2184 = vld [vmem:[%s29 + $0x18] sm:$0xf]
        %v2185 = vld [vmem:[%s29 + $0x1c] sm:$0xf]
        %v2186 = vld [vmem:[%s29 + $0x20] sm:$0xf]
        %v2187 = vld [vmem:[%s29 + $0x24] sm:$0xf]
        %v2188 = vld [vmem:[%s29 + $0x28] sm:$0xf]
        %v2189 = vld [vmem:[%s29 + $0x2c] sm:$0xf]
        %v2190 = vld [vmem:[%s29 + $0x30] sm:$0xf]
        %v2191 = vld [vmem:[%s29 + $0x34] sm:$0xf]
        %v2192 = vld [vmem:[%s29 + $0x38] sm:$0xf]
        %v2193 = vld [vmem:[%s29 + $0x3c] sm:$0xf]
        %v2194 = vld [vmem:[%s29 + $0x40] sm:$0xf]
        %v2195 = vld [vmem:[%s29 + $0x44] sm:$0xf]
        %v2196 = vld [vmem:[%s29 + $0x48] sm:$0xf]
        %v2197 = vld [vmem:[%s29 + $0x4c] sm:$0xf]
        %v2198 = vld [vmem:[%s29 + $0x50] sm:$0xf]
        %v2199 = vld [vmem:[%s29 + $0x54] sm:$0xf]
        %v2200 = vld [vmem:[%s29 + $0x58] sm:$0xf]
        %v2201 = vld [vmem:[%s29 + $0x5c] sm:$0xf]
        %v2203 = vperm.slane %v1221, 0
        %v2229 = vunpack.c.l.b16 %v2178
        %v2230 = vunpack.c.l.b16 %v2179
        %v2231 = vunpack.c.l.b16 %v2180
        %v2232 = vunpack.c.l.b16 %v2181
        %v2233 = vunpack.c.l.b16 %v2182
        %v2234 = vunpack.c.l.b16 %v2183
        %v2235 = vunpack.c.l.b16 %v2184
        %v2236 = vunpack.c.l.b16 %v2185
        %v2237 = vunpack.c.l.b16 %v2186
        %v2238 = vunpack.c.l.b16 %v2187
        %v2239 = vunpack.c.l.b16 %v2188
        %v2240 = vunpack.c.l.b16 %v2189
        %v2241 = vunpack.c.l.b16 %v2190
        %v2242 = vunpack.c.l.b16 %v2191
        %v2243 = vunpack.c.l.b16 %v2192
        %v2244 = vunpack.c.l.b16 %v2193
        %v2245 = vunpack.c.l.b16 %v2194
        %v2246 = vunpack.c.l.b16 %v2195
        %v2247 = vunpack.c.l.b16 %v2196
        %v2248 = vunpack.c.l.b16 %v2197
        %v2249 = vunpack.c.l.b16 %v2198
        %v2250 = vunpack.c.l.b16 %v2199
        %v2251 = vunpack.c.l.b16 %v2200
        %v2252 = vunpack.c.l.b16 %v2201
        %v2253 = vpack.c.b16 %v2230, %v2229
        %v2254 = vpack.c.b16 %v2232, %v2231
        %v2255 = vpack.c.b16 %v2234, %v2233
        %v2256 = vpack.c.b16 %v2236, %v2235
        %v2257 = vpack.c.b16 %v2238, %v2237
        %v2258 = vpack.c.b16 %v2240, %v2239
        %v2259 = vpack.c.b16 %v2242, %v2241
        %v2260 = vpack.c.b16 %v2244, %v2243
        %v2261 = vpack.c.b16 %v2246, %v2245
        %v2262 = vpack.c.b16 %v2248, %v2247
        %v2263 = vpack.c.b16 %v2250, %v2249
        %v2264 = vpack.c.b16 %v2252, %v2251
        %v2278 = vsel %vm1710, %v2171, 0
        %2280 = vmatpush.bf16.msra.mxu0 %v2260
        %2281 = vmatpush.bf16.msra.mxu0 %v2259
        %2282 = vmatpush.bf16.msra.mxu0 %v2258
        %2283 = vmatpush.bf16.msra.mxu0 %v2257
        %2284 = vmatpush.bf16.msra.mxu0 %v2256
        %2285 = vmatpush.bf16.msra.mxu0 %v2255
        %2286 = vmatpush.bf16.msra.mxu0 %v2254
        %2287 = vmatpush.bf16.msra.mxu0 %v2253
        %2288 = vmatmul.bf16.gmra.mxu0 %v2176
        %v2289 = vpop.f32.mrf.mxu0
        %v2290 = vadd.f32 %v2203, %v2289
        %v2291 = vpop.f32.mrf.mxu0
        %2292 = vdwg.mxu0
        %2293 = vmatpush.bf16.msra.mxu0 0
        %2294 = vmatpush.bf16.msra.mxu0 0
        %2295 = vmatpush.bf16.msra.mxu0 0
        %2296 = vmatpush.bf16.msra.mxu0 0
        %2297 = vmatpush.bf16.msra.mxu0 %v2264
        %2298 = vmatpush.bf16.msra.mxu0 %v2263
        %2299 = vmatpush.bf16.msra.mxu0 %v2262
        %2300 = vmatpush.bf16.msra.mxu0 %v2261
        %2301 = vmatmul.bf16.gmra.mxu0 %v2278
        %v2302 = vpop.f32.mrf.mxu0
        %v2303 = vadd.f32 %v2290, %v2302
        %v2304 = vpop.f32.mrf.mxu0
        %2305 = vdwg.mxu0
        %v2306 = vadd.f32 %v2303, %v1998
        %v2307 = vmax.f32 %v2306, 0.0
        %v2308 = vpack.c.bf16 %v2307, %v2307
        %v2310 = vunpack.c.l.b16 %v2308
        %v2311 = vpack.c.b16 %v2310, %v2310
        %v2313 = vshrl.u32 %v2311, 16
        %v2315 = vrot.slane %v2313, 7
        %v2316 = vshll.u32 %v2311, 16
        %v2318 = vor.u32 %v2315, %v2316
        %v2320 = vsel %vm1424, 0, %v2318
        %v2321 = vsel %vm1698, %v2320, 0
        %v2322 = vrot.slane %v2316, 1
        %v2323 = vor.u32 %v2313, %v2322
        %v2325 = vsel %vm1365, %v2323, 0
        %v2326 = vsel %vm1706, %v2325, 0
        %2327 = vrot.lane.b32.xlu0 %v2311, 64
        %v2328 = vpop.permute.xlu0 %2327
        %v2331 = vsel %vm1710, %v2321, %v2328
        %vm2332 = vcmask 31744
        %v2334 = vsel %vm2332, %v1225, 0
        %vm2336 = vcmask 1041408
        %v2337 = vsel %vm2336, %v2331, 0
        %v2340 = vsel %vm2336, %v2326, 0
        %2342 = vmatpush.bf16.msra.mxu0 0
        %2343 = vmatpush.bf16.msra.mxu0 0
        %2344 = vmatpush.bf16.msra.mxu0 0
        %2345 = vmatpush.bf16.msra.mxu0 0
        %2346 = vmatpush.bf16.msra.mxu0 0
        %2347 = vmatpush.bf16.msra.mxu0 0
        %2348 = vmatpush.bf16.msra.mxu0 0
        %2349 = vmatpush.bf16.msra.mxu0 %v2337
        %2350 = vmatmul.bf16.gmra.mxu0 %v2334
        %v2351 = vpop.f32.mrf.mxu0
        %v2352 = vadd.f32 0.0, %v2351
        %v2353 = vpop.f32.mrf.mxu0
        %2354 = vdwg.mxu0
        %2355 = vmatpush.bf16.msra.mxu0 0
        %2356 = vmatpush.bf16.msra.mxu0 0
        %2357 = vmatpush.bf16.msra.mxu0 0
        %2358 = vmatpush.bf16.msra.mxu0 0
        %2359 = vmatpush.bf16.msra.mxu0 0
        %2360 = vmatpush.bf16.msra.mxu0 0
        %2361 = vmatpush.bf16.msra.mxu0 0
        %2362 = vmatpush.bf16.msra.mxu0 %v2340
        %2363 = vmatmul.bf16.gmra.mxu0 %v2334
        %v2364 = vpop.f32.mrf.mxu0
        %v2365 = vadd.f32 0.0, %v2364
        %v2366 = vpop.f32.mrf.mxu0
        %2367 = vdwg.mxu0
        %v2368 = vpack.c.bf16 %v2352, %v2352
        %v2369 = vpack.c.bf16 %v2365, %v2365
        %v2370 = vld [vmem:[%s33] sm:$0xf]
        %v2371 = vld [vmem:[%s33 + $0x4] sm:$0xf]
        %v2372 = vld [vmem:[%s33 + $0x8] sm:$0xf]
        %v2373 = vld [vmem:[%s33 + $0xc] sm:$0xf]
        %v2374 = vld [vmem:[%s33 + $0x10] sm:$0xf]
        %v2375 = vld [vmem:[%s33 + $0x14] sm:$0xf]
        %v2376 = vld [vmem:[%s33 + $0x18] sm:$0xf]
        %v2377 = vld [vmem:[%s33 + $0x1c] sm:$0xf]
        %v2378 = vld [vmem:[%s33 + $0x20] sm:$0xf]
        %v2379 = vld [vmem:[%s33 + $0x24] sm:$0xf]
        %v2380 = vld [vmem:[%s33 + $0x28] sm:$0xf]
        %v2381 = vld [vmem:[%s33 + $0x2c] sm:$0xf]
        %v2382 = vld [vmem:[%s33 + $0x30] sm:$0xf]
        %v2383 = vld [vmem:[%s33 + $0x34] sm:$0xf]
        %v2384 = vld [vmem:[%s33 + $0x38] sm:$0xf]
        %v2385 = vld [vmem:[%s33 + $0x3c] sm:$0xf]
        %v2386 = vld [vmem:[%s33 + $0x40] sm:$0xf]
        %v2387 = vld [vmem:[%s33 + $0x44] sm:$0xf]
        %v2388 = vld [vmem:[%s33 + $0x48] sm:$0xf]
        %v2389 = vld [vmem:[%s33 + $0x4c] sm:$0xf]
        %v2390 = vld [vmem:[%s33 + $0x50] sm:$0xf]
        %v2391 = vld [vmem:[%s33 + $0x54] sm:$0xf]
        %v2392 = vld [vmem:[%s33 + $0x58] sm:$0xf]
        %v2393 = vld [vmem:[%s33 + $0x5c] sm:$0xf]
        %v2395 = vperm.slane %v1222, 0
        %v2421 = vunpack.c.l.b16 %v2370
        %v2422 = vunpack.c.l.b16 %v2371
        %v2423 = vunpack.c.l.b16 %v2372
        %v2424 = vunpack.c.l.b16 %v2373
        %v2425 = vunpack.c.l.b16 %v2374
        %v2426 = vunpack.c.l.b16 %v2375
        %v2427 = vunpack.c.l.b16 %v2376
        %v2428 = vunpack.c.l.b16 %v2377
        %v2429 = vunpack.c.l.b16 %v2378
        %v2430 = vunpack.c.l.b16 %v2379
        %v2431 = vunpack.c.l.b16 %v2380
        %v2432 = vunpack.c.l.b16 %v2381
        %v2433 = vunpack.c.l.b16 %v2382
        %v2434 = vunpack.c.l.b16 %v2383
        %v2435 = vunpack.c.l.b16 %v2384
        %v2436 = vunpack.c.l.b16 %v2385
        %v2437 = vunpack.c.l.b16 %v2386
        %v2438 = vunpack.c.l.b16 %v2387
        %v2439 = vunpack.c.l.b16 %v2388
        %v2440 = vunpack.c.l.b16 %v2389
        %v2441 = vunpack.c.l.b16 %v2390
        %v2442 = vunpack.c.l.b16 %v2391
        %v2443 = vunpack.c.l.b16 %v2392
        %v2444 = vunpack.c.l.b16 %v2393
        %v2445 = vpack.c.b16 %v2422, %v2421
        %v2446 = vpack.c.b16 %v2424, %v2423
        %v2447 = vpack.c.b16 %v2426, %v2425
        %v2448 = vpack.c.b16 %v2428, %v2427
        %v2449 = vpack.c.b16 %v2430, %v2429
        %v2450 = vpack.c.b16 %v2432, %v2431
        %v2451 = vpack.c.b16 %v2434, %v2433
        %v2452 = vpack.c.b16 %v2436, %v2435
        %v2453 = vpack.c.b16 %v2438, %v2437
        %v2454 = vpack.c.b16 %v2440, %v2439
        %v2455 = vpack.c.b16 %v2442, %v2441
        %v2456 = vpack.c.b16 %v2444, %v2443
        %v2470 = vsel %vm1710, %v2369, 0
        %2472 = vmatpush.bf16.msra.mxu0 %v2452
        %2473 = vmatpush.bf16.msra.mxu0 %v2451
        %2474 = vmatpush.bf16.msra.mxu0 %v2450
        %2475 = vmatpush.bf16.msra.mxu0 %v2449
        %2476 = vmatpush.bf16.msra.mxu0 %v2448
        %2477 = vmatpush.bf16.msra.mxu0 %v2447
        %2478 = vmatpush.bf16.msra.mxu0 %v2446
        %2479 = vmatpush.bf16.msra.mxu0 %v2445
        %2480 = vmatmul.bf16.gmra.mxu0 %v2368
        %v2481 = vpop.f32.mrf.mxu0
        %v2482 = vadd.f32 %v2395, %v2481
        %v2483 = vpop.f32.mrf.mxu0
        %2484 = vdwg.mxu0
        %2485 = vmatpush.bf16.msra.mxu0 0
        %2486 = vmatpush.bf16.msra.mxu0 0
        %2487 = vmatpush.bf16.msra.mxu0 0
        %2488 = vmatpush.bf16.msra.mxu0 0
        %2489 = vmatpush.bf16.msra.mxu0 %v2456
        %2490 = vmatpush.bf16.msra.mxu0 %v2455
        %2491 = vmatpush.bf16.msra.mxu0 %v2454
        %2492 = vmatpush.bf16.msra.mxu0 %v2453
        %2493 = vmatmul.bf16.gmra.mxu0 %v2470
        %v2494 = vpop.f32.mrf.mxu0
        %v2495 = vadd.f32 %v2482, %v2494
        %v2496 = vpop.f32.mrf.mxu0
        %2497 = vdwg.mxu0
        %v2498 = vmax.f32 %v2495, 0.0
        %v2500 = vsel %vm2336, %v2308, 0
        %2502 = vmatpush.bf16.msra.mxu0 0
        %2503 = vmatpush.bf16.msra.mxu0 0
        %2504 = vmatpush.bf16.msra.mxu0 0
        %2505 = vmatpush.bf16.msra.mxu0 0
        %2506 = vmatpush.bf16.msra.mxu0 0
        %2507 = vmatpush.bf16.msra.mxu0 0
        %2508 = vmatpush.bf16.msra.mxu0 0
        %2509 = vmatpush.bf16.msra.mxu0 %v2500
        %2510 = vmatmul.bf16.gmra.mxu0 %v2334
        %v2511 = vpop.f32.mrf.mxu0
        %v2512 = vadd.f32 0.0, %v2511
        %v2513 = vpop.f32.mrf.mxu0
        %2514 = vdwg.mxu0
        %v2515 = vpack.c.bf16 %v2512, %v2512
        %v2516 = vld [vmem:[%s41] sm:$0xf]
        %v2517 = vld [vmem:[%s41 + $0x4] sm:$0xf]
        %v2518 = vld [vmem:[%s41 + $0x8] sm:$0xf]
        %v2519 = vld [vmem:[%s41 + $0xc] sm:$0xf]
        %v2520 = vld [vmem:[%s41 + $0x10] sm:$0xf]
        %v2521 = vld [vmem:[%s41 + $0x14] sm:$0xf]
        %v2522 = vld [vmem:[%s41 + $0x18] sm:$0xf]
        %v2523 = vld [vmem:[%s41 + $0x1c] sm:$0xf]
        %v2525 = vperm.slane %v1224, 0
        %v2535 = vunpack.c.l.b16 %v2516
        %v2536 = vunpack.c.l.b16 %v2517
        %v2537 = vunpack.c.l.b16 %v2518
        %v2538 = vunpack.c.l.b16 %v2519
        %v2539 = vunpack.c.l.b16 %v2520
        %v2540 = vunpack.c.l.b16 %v2521
        %v2541 = vunpack.c.l.b16 %v2522
        %v2542 = vunpack.c.l.b16 %v2523
        %v2543 = vpack.c.b16 %v2536, %v2535
        %v2544 = vpack.c.b16 %v2538, %v2537
        %v2545 = vpack.c.b16 %v2540, %v2539
        %v2546 = vpack.c.b16 %v2542, %v2541
        %v2552 = vsel %vm1710, %v2515, 0
        %2554 = vmatpush.bf16.msra.mxu0 0
        %2555 = vmatpush.bf16.msra.mxu0 0
        %2556 = vmatpush.bf16.msra.mxu0 0
        %2557 = vmatpush.bf16.msra.mxu0 0
        %2558 = vmatpush.bf16.msra.mxu0 %v2546
        %2559 = vmatpush.bf16.msra.mxu0 %v2545
        %2560 = vmatpush.bf16.msra.mxu0 %v2544
        %2561 = vmatpush.bf16.msra.mxu0 %v2543
        %2562 = vmatmul.bf16.gmra.mxu0 %v2552
        %v2563 = vpop.f32.mrf.mxu0
        %v2564 = vadd.f32 %v2525, %v2563
        %v2565 = vpop.f32.mrf.mxu0
        %2566 = vdwg.mxu0
        %v2567 = vpack.c.bf16 %v2498, %v2498
        %v2569 = vunpack.c.l.b16 %v2567
        %v2570 = vpack.c.b16 %v2569, %v2569
        %v2572 = vshll.u32 %v2570, 16
        %v2575 = vsel %vm1424, 0, %v2572
        %vm2576 = vcmp.lt.s32.totalorder %v1426, 2
        %vm2577 = vmand %vm1428, %vm2576
        %vm2578 = vmpackc.low %vm2577, %vm2577
        %v2579 = vsel %vm2578, %v2575, 0
        %v2580 = vshrl.u32 %v2570, 16
        %v2583 = vsel %vm1424, %v2580, 0
        %vm2584 = vcmp.lt.s32.totalorder %v1456, 2
        %vm2585 = vmand %vm1458, %vm2584
        %vm2586 = vmpackc.low %vm2585, %vm2585
        %v2587 = vsel %vm2586, %v2583, 0
        %v2588 = vld [vmem:[%s37] sm:$0xf]
        %v2589 = vld [vmem:[%s37 + $0x4] sm:$0xf]
        %v2590 = vld [vmem:[%s37 + $0x8] sm:$0xf]
        %v2591 = vld [vmem:[%s37 + $0xc] sm:$0xf]
        %v2592 = vld [vmem:[%s37 + $0x10] sm:$0xf]
        %v2593 = vld [vmem:[%s37 + $0x14] sm:$0xf]
        %v2594 = vld [vmem:[%s37 + $0x18] sm:$0xf]
        %v2595 = vld [vmem:[%s37 + $0x1c] sm:$0xf]
        %v2596 = vld [vmem:[%s37 + $0x20] sm:$0xf]
        %v2597 = vld [vmem:[%s37 + $0x24] sm:$0xf]
        %v2598 = vld [vmem:[%s37 + $0x28] sm:$0xf]
        %v2599 = vld [vmem:[%s37 + $0x2c] sm:$0xf]
        %v2600 = vld [vmem:[%s37 + $0x30] sm:$0xf]
        %v2601 = vld [vmem:[%s37 + $0x34] sm:$0xf]
        %v2602 = vld [vmem:[%s37 + $0x38] sm:$0xf]
        %v2603 = vld [vmem:[%s37 + $0x3c] sm:$0xf]
        %v2604 = vld [vmem:[%s37 + $0x40] sm:$0xf]
        %v2605 = vld [vmem:[%s37 + $0x44] sm:$0xf]
        %v2606 = vld [vmem:[%s37 + $0x48] sm:$0xf]
        %v2607 = vld [vmem:[%s37 + $0x4c] sm:$0xf]
        %v2608 = vld [vmem:[%s37 + $0x50] sm:$0xf]
        %v2609 = vld [vmem:[%s37 + $0x54] sm:$0xf]
        %v2610 = vld [vmem:[%s37 + $0x58] sm:$0xf]
        %v2611 = vld [vmem:[%s37 + $0x5c] sm:$0xf]
        %v2612 = vld [vmem:[%s37 + $0x60] sm:$0xf]
        %v2613 = vld [vmem:[%s37 + $0x64] sm:$0xf]
        %v2614 = vld [vmem:[%s37 + $0x68] sm:$0xf]
        %v2615 = vld [vmem:[%s37 + $0x6c] sm:$0xf]
        %v2616 = vld [vmem:[%s37 + $0x70] sm:$0xf]
        %v2617 = vld [vmem:[%s37 + $0x74] sm:$0xf]
        %v2618 = vld [vmem:[%s37 + $0x78] sm:$0xf]
        %v2619 = vld [vmem:[%s37 + $0x7c] sm:$0xf]
        %v2620 = vld [vmem:[%s37 + $0x80] sm:$0xf]
        %v2621 = vld [vmem:[%s37 + $0x84] sm:$0xf]
        %v2622 = vld [vmem:[%s37 + $0x88] sm:$0xf]
        %v2623 = vld [vmem:[%s37 + $0x8c] sm:$0xf]
        %v2624 = vld [vmem:[%s37 + $0x90] sm:$0xf]
        %v2625 = vld [vmem:[%s37 + $0x94] sm:$0xf]
        %v2626 = vld [vmem:[%s37 + $0x98] sm:$0xf]
        %v2627 = vld [vmem:[%s37 + $0x9c] sm:$0xf]
        %v2628 = vld [vmem:[%s37 + $0xa0] sm:$0xf]
        %v2629 = vld [vmem:[%s37 + $0xa4] sm:$0xf]
        %v2630 = vld [vmem:[%s37 + $0xa8] sm:$0xf]
        %v2631 = vld [vmem:[%s37 + $0xac] sm:$0xf]
        %v2632 = vld [vmem:[%s37 + $0xb0] sm:$0xf]
        %v2633 = vld [vmem:[%s37 + $0xb4] sm:$0xf]
        %v2634 = vld [vmem:[%s37 + $0xb8] sm:$0xf]
        %v2635 = vld [vmem:[%s37 + $0xbc] sm:$0xf]
        %v2637 = vperm.slane %v1223, 0
        %v2687 = vunpack.c.l.b16 %v2588
        %v2688 = vunpack.c.l.b16 %v2589
        %v2689 = vunpack.c.l.b16 %v2590
        %v2690 = vunpack.c.l.b16 %v2591
        %v2691 = vunpack.c.l.b16 %v2592
        %v2692 = vunpack.c.l.b16 %v2593
        %v2693 = vunpack.c.l.b16 %v2594
        %v2694 = vunpack.c.l.b16 %v2595
        %v2695 = vunpack.c.l.b16 %v2596
        %v2696 = vunpack.c.l.b16 %v2597
        %v2697 = vunpack.c.l.b16 %v2598
        %v2698 = vunpack.c.l.b16 %v2599
        %v2699 = vunpack.c.l.b16 %v2600
        %v2700 = vunpack.c.l.b16 %v2601
        %v2701 = vunpack.c.l.b16 %v2602
        %v2702 = vunpack.c.l.b16 %v2603
        %v2703 = vunpack.c.l.b16 %v2604
        %v2704 = vunpack.c.l.b16 %v2605
        %v2705 = vunpack.c.l.b16 %v2606
        %v2706 = vunpack.c.l.b16 %v2607
        %v2707 = vunpack.c.l.b16 %v2608
        %v2708 = vunpack.c.l.b16 %v2609
        %v2709 = vunpack.c.l.b16 %v2610
        %v2710 = vunpack.c.l.b16 %v2611
        %v2711 = vunpack.c.l.b16 %v2612
        %v2712 = vunpack.c.l.b16 %v2613
        %v2713 = vunpack.c.l.b16 %v2614
        %v2714 = vunpack.c.l.b16 %v2615
        %v2715 = vunpack.c.l.b16 %v2616
        %v2716 = vunpack.c.l.b16 %v2617
        %v2717 = vunpack.c.l.b16 %v2618
        %v2718 = vunpack.c.l.b16 %v2619
        %v2719 = vunpack.c.l.b16 %v2620
        %v2720 = vunpack.c.l.b16 %v2621
        %v2721 = vunpack.c.l.b16 %v2622
        %v2722 = vunpack.c.l.b16 %v2623
        %v2723 = vunpack.c.l.b16 %v2624
        %v2724 = vunpack.c.l.b16 %v2625
        %v2725 = vunpack.c.l.b16 %v2626
        %v2726 = vunpack.c.l.b16 %v2627
        %v2727 = vunpack.c.l.b16 %v2628
        %v2728 = vunpack.c.l.b16 %v2629
        %v2729 = vunpack.c.l.b16 %v2630
        %v2730 = vunpack.c.l.b16 %v2631
        %v2731 = vunpack.c.l.b16 %v2632
        %v2732 = vunpack.c.l.b16 %v2633
        %v2733 = vunpack.c.l.b16 %v2634
        %v2734 = vunpack.c.l.b16 %v2635
        %v2735 = vpack.c.b16 %v2688, %v2687
        %v2736 = vpack.c.b16 %v2690, %v2689
        %v2737 = vpack.c.b16 %v2692, %v2691
        %v2738 = vpack.c.b16 %v2694, %v2693
        %v2739 = vpack.c.b16 %v2696, %v2695
        %v2740 = vpack.c.b16 %v2698, %v2697
        %v2741 = vpack.c.b16 %v2700, %v2699
        %v2742 = vpack.c.b16 %v2702, %v2701
        %v2743 = vpack.c.b16 %v2704, %v2703
        %v2744 = vpack.c.b16 %v2706, %v2705
        %v2745 = vpack.c.b16 %v2708, %v2707
        %v2746 = vpack.c.b16 %v2710, %v2709
        %v2747 = vpack.c.b16 %v2712, %v2711
        %v2748 = vpack.c.b16 %v2714, %v2713
        %v2749 = vpack.c.b16 %v2716, %v2715
        %v2750 = vpack.c.b16 %v2718, %v2717
        %v2751 = vpack.c.b16 %v2720, %v2719
        %v2752 = vpack.c.b16 %v2722, %v2721
        %v2753 = vpack.c.b16 %v2724, %v2723
        %v2754 = vpack.c.b16 %v2726, %v2725
        %v2755 = vpack.c.b16 %v2728, %v2727
        %v2756 = vpack.c.b16 %v2730, %v2729
        %v2757 = vpack.c.b16 %v2732, %v2731
        %v2758 = vpack.c.b16 %v2734, %v2733
        %2783 = vmatpush.bf16.msra.mxu0 %v2742
        %2784 = vmatpush.bf16.msra.mxu0 %v2741
        %2785 = vmatpush.bf16.msra.mxu0 %v2740
        %2786 = vmatpush.bf16.msra.mxu0 %v2739
        %2787 = vmatpush.bf16.msra.mxu0 %v2738
        %2788 = vmatpush.bf16.msra.mxu0 %v2737
        %2789 = vmatpush.bf16.msra.mxu0 %v2736
        %2790 = vmatpush.bf16.msra.mxu0 %v2735
        %2791 = vmatmul.bf16.gmra.mxu0 %v2579
        %v2792 = vpop.f32.mrf.mxu0
        %v2793 = vadd.f32 %v2637, %v2792
        %v2794 = vpop.f32.mrf.mxu0
        %2795 = vdwg.mxu0
        %2796 = vmatpush.bf16.msra.mxu0 %v2750
        %2797 = vmatpush.bf16.msra.mxu0 %v2749
        %2798 = vmatpush.bf16.msra.mxu0 %v2748
        %2799 = vmatpush.bf16.msra.mxu0 %v2747
        %2800 = vmatpush.bf16.msra.mxu0 %v2746
        %2801 = vmatpush.bf16.msra.mxu0 %v2745
        %2802 = vmatpush.bf16.msra.mxu0 %v2744
        %2803 = vmatpush.bf16.msra.mxu0 %v2743
        %2804 = vmatmul.bf16.gmra.mxu0 %v2567
        %v2805 = vpop.f32.mrf.mxu0
        %v2806 = vadd.f32 %v2793, %v2805
        %v2807 = vpop.f32.mrf.mxu0
        %2808 = vdwg.mxu0
        %2809 = vmatpush.bf16.msra.mxu0 %v2758
        %2810 = vmatpush.bf16.msra.mxu0 %v2757
        %2811 = vmatpush.bf16.msra.mxu0 %v2756
        %2812 = vmatpush.bf16.msra.mxu0 %v2755
        %2813 = vmatpush.bf16.msra.mxu0 %v2754
        %2814 = vmatpush.bf16.msra.mxu0 %v2753
        %2815 = vmatpush.bf16.msra.mxu0 %v2752
        %2816 = vmatpush.bf16.msra.mxu0 %v2751
        %2817 = vmatmul.bf16.gmra.mxu0 %v2587
        %v2818 = vpop.f32.mrf.mxu0
        %v2819 = vadd.f32 %v2806, %v2818
        %v2820 = vpop.f32.mrf.mxu0
        %2821 = vdwg.mxu0
        %v2822 = vadd.f32 %v2819, %v2564
        %v2823 = vmax.f32 %v2822, 0.0
        %v2824 = vpack.c.bf16 %v2823, %v2823
        %v2826 = vunpack.c.l.b16 %v2824
        %v2827 = vpack.c.b16 %v2826, %v2826
        %v2829 = vshll.u32 %v2827, 16
        %v2832 = vsel %vm1424, 0, %v2829
        %v2833 = vsel %vm2578, %v2832, 0
        %v2834 = vshrl.u32 %v2827, 16
        %v2837 = vsel %vm1424, %v2834, 0
        %v2838 = vsel %vm2586, %v2837, 0
        %v2839 = vld [vmem:[%s47] sm:$0xf]
        %v2840 = vld [vmem:[%s47 + $0x4] sm:$0xf]
        %v2841 = vld [vmem:[%s47 + $0x8] sm:$0xf]
        %v2842 = vld [vmem:[%s47 + $0xc] sm:$0xf]
        %v2843 = vld [vmem:[%s47 + $0x10] sm:$0xf]
        %v2844 = vld [vmem:[%s47 + $0x14] sm:$0xf]
        %v2845 = vld [vmem:[%s47 + $0x18] sm:$0xf]
        %v2846 = vld [vmem:[%s47 + $0x1c] sm:$0xf]
        %v2847 = vld [vmem:[%s47 + $0x20] sm:$0xf]
        %v2848 = vld [vmem:[%s47 + $0x24] sm:$0xf]
        %v2849 = vld [vmem:[%s47 + $0x28] sm:$0xf]
        %v2850 = vld [vmem:[%s47 + $0x2c] sm:$0xf]
        %v2851 = vld [vmem:[%s47 + $0x30] sm:$0xf]
        %v2852 = vld [vmem:[%s47 + $0x34] sm:$0xf]
        %v2853 = vld [vmem:[%s47 + $0x38] sm:$0xf]
        %v2854 = vld [vmem:[%s47 + $0x3c] sm:$0xf]
        %v2855 = vld [vmem:[%s47 + $0x40] sm:$0xf]
        %v2856 = vld [vmem:[%s47 + $0x44] sm:$0xf]
        %v2857 = vld [vmem:[%s47 + $0x48] sm:$0xf]
        %v2858 = vld [vmem:[%s47 + $0x4c] sm:$0xf]
        %v2859 = vld [vmem:[%s47 + $0x50] sm:$0xf]
        %v2860 = vld [vmem:[%s47 + $0x54] sm:$0xf]
        %v2861 = vld [vmem:[%s47 + $0x58] sm:$0xf]
        %v2862 = vld [vmem:[%s47 + $0x5c] sm:$0xf]
        %v2863 = vld [vmem:[%s47 + $0x60] sm:$0xf]
        %v2864 = vld [vmem:[%s47 + $0x64] sm:$0xf]
        %v2865 = vld [vmem:[%s47 + $0x68] sm:$0xf]
        %v2866 = vld [vmem:[%s47 + $0x6c] sm:$0xf]
        %v2867 = vld [vmem:[%s47 + $0x70] sm:$0xf]
        %v2868 = vld [vmem:[%s47 + $0x74] sm:$0xf]
        %v2869 = vld [vmem:[%s47 + $0x78] sm:$0xf]
        %v2870 = vld [vmem:[%s47 + $0x7c] sm:$0xf]
        %v2871 = vld [vmem:[%s47 + $0x80] sm:$0xf]
        %v2872 = vld [vmem:[%s47 + $0x84] sm:$0xf]
        %v2873 = vld [vmem:[%s47 + $0x88] sm:$0xf]
        %v2874 = vld [vmem:[%s47 + $0x8c] sm:$0xf]
        %v2875 = vld [vmem:[%s47 + $0x90] sm:$0xf]
        %v2876 = vld [vmem:[%s47 + $0x94] sm:$0xf]
        %v2877 = vld [vmem:[%s47 + $0x98] sm:$0xf]
        %v2878 = vld [vmem:[%s47 + $0x9c] sm:$0xf]
        %v2879 = vld [vmem:[%s47 + $0xa0] sm:$0xf]
        %v2880 = vld [vmem:[%s47 + $0xa4] sm:$0xf]
        %v2881 = vld [vmem:[%s47 + $0xa8] sm:$0xf]
        %v2882 = vld [vmem:[%s47 + $0xac] sm:$0xf]
        %v2883 = vld [vmem:[%s47 + $0xb0] sm:$0xf]
        %v2884 = vld [vmem:[%s47 + $0xb4] sm:$0xf]
        %v2885 = vld [vmem:[%s47 + $0xb8] sm:$0xf]
        %v2886 = vld [vmem:[%s47 + $0xbc] sm:$0xf]
        %v2888 = vperm.slane %v1226, 0
        %v2938 = vunpack.c.l.b16 %v2839
        %v2939 = vunpack.c.l.b16 %v2840
        %v2940 = vunpack.c.l.b16 %v2841
        %v2941 = vunpack.c.l.b16 %v2842
        %v2942 = vunpack.c.l.b16 %v2843
        %v2943 = vunpack.c.l.b16 %v2844
        %v2944 = vunpack.c.l.b16 %v2845
        %v2945 = vunpack.c.l.b16 %v2846
        %v2946 = vunpack.c.l.b16 %v2847
        %v2947 = vunpack.c.l.b16 %v2848
        %v2948 = vunpack.c.l.b16 %v2849
        %v2949 = vunpack.c.l.b16 %v2850
        %v2950 = vunpack.c.l.b16 %v2851
        %v2951 = vunpack.c.l.b16 %v2852
        %v2952 = vunpack.c.l.b16 %v2853
        %v2953 = vunpack.c.l.b16 %v2854
        %v2954 = vunpack.c.l.b16 %v2855
        %v2955 = vunpack.c.l.b16 %v2856
        %v2956 = vunpack.c.l.b16 %v2857
        %v2957 = vunpack.c.l.b16 %v2858
        %v2958 = vunpack.c.l.b16 %v2859
        %v2959 = vunpack.c.l.b16 %v2860
        %v2960 = vunpack.c.l.b16 %v2861
        %v2961 = vunpack.c.l.b16 %v2862
        %v2962 = vunpack.c.l.b16 %v2863
        %v2963 = vunpack.c.l.b16 %v2864
        %v2964 = vunpack.c.l.b16 %v2865
        %v2965 = vunpack.c.l.b16 %v2866
        %v2966 = vunpack.c.l.b16 %v2867
        %v2967 = vunpack.c.l.b16 %v2868
        %v2968 = vunpack.c.l.b16 %v2869
        %v2969 = vunpack.c.l.b16 %v2870
        %v2970 = vunpack.c.l.b16 %v2871
        %v2971 = vunpack.c.l.b16 %v2872
        %v2972 = vunpack.c.l.b16 %v2873
        %v2973 = vunpack.c.l.b16 %v2874
        %v2974 = vunpack.c.l.b16 %v2875
        %v2975 = vunpack.c.l.b16 %v2876
        %v2976 = vunpack.c.l.b16 %v2877
        %v2977 = vunpack.c.l.b16 %v2878
        %v2978 = vunpack.c.l.b16 %v2879
        %v2979 = vunpack.c.l.b16 %v2880
        %v2980 = vunpack.c.l.b16 %v2881
        %v2981 = vunpack.c.l.b16 %v2882
        %v2982 = vunpack.c.l.b16 %v2883
        %v2983 = vunpack.c.l.b16 %v2884
        %v2984 = vunpack.c.l.b16 %v2885
        %v2985 = vunpack.c.l.b16 %v2886
        %v2986 = vpack.c.b16 %v2939, %v2938
        %v2987 = vpack.c.b16 %v2941, %v2940
        %v2988 = vpack.c.b16 %v2943, %v2942
        %v2989 = vpack.c.b16 %v2945, %v2944
        %v2990 = vpack.c.b16 %v2947, %v2946
        %v2991 = vpack.c.b16 %v2949, %v2948
        %v2992 = vpack.c.b16 %v2951, %v2950
        %v2993 = vpack.c.b16 %v2953, %v2952
        %v2994 = vpack.c.b16 %v2955, %v2954
        %v2995 = vpack.c.b16 %v2957, %v2956
        %v2996 = vpack.c.b16 %v2959, %v2958
        %v2997 = vpack.c.b16 %v2961, %v2960
        %v2998 = vpack.c.b16 %v2963, %v2962
        %v2999 = vpack.c.b16 %v2965, %v2964
        %v3000 = vpack.c.b16 %v2967, %v2966
        %v3001 = vpack.c.b16 %v2969, %v2968
        %v3002 = vpack.c.b16 %v2971, %v2970
        %v3003 = vpack.c.b16 %v2973, %v2972
        %v3004 = vpack.c.b16 %v2975, %v2974
        %v3005 = vpack.c.b16 %v2977, %v2976
        %v3006 = vpack.c.b16 %v2979, %v2978
        %v3007 = vpack.c.b16 %v2981, %v2980
        %v3008 = vpack.c.b16 %v2983, %v2982
        %v3009 = vpack.c.b16 %v2985, %v2984
        %3034 = vmatpush.bf16.msra.mxu0 %v2993
        %3035 = vmatpush.bf16.msra.mxu0 %v2992
        %3036 = vmatpush.bf16.msra.mxu0 %v2991
        %3037 = vmatpush.bf16.msra.mxu0 %v2990
        %3038 = vmatpush.bf16.msra.mxu0 %v2989
        %3039 = vmatpush.bf16.msra.mxu0 %v2988
        %3040 = vmatpush.bf16.msra.mxu0 %v2987
        %3041 = vmatpush.bf16.msra.mxu0 %v2986
        %3042 = vmatmul.bf16.gmra.mxu0 %v2833
        %v3043 = vpop.f32.mrf.mxu0
        %v3044 = vadd.f32 %v2888, %v3043
        %v3045 = vpop.f32.mrf.mxu0
        %3046 = vdwg.mxu0
        %3047 = vmatpush.bf16.msra.mxu0 %v3001
        %3048 = vmatpush.bf16.msra.mxu0 %v3000
        %3049 = vmatpush.bf16.msra.mxu0 %v2999
        %3050 = vmatpush.bf16.msra.mxu0 %v2998
        %3051 = vmatpush.bf16.msra.mxu0 %v2997
        %3052 = vmatpush.bf16.msra.mxu0 %v2996
        %3053 = vmatpush.bf16.msra.mxu0 %v2995
        %3054 = vmatpush.bf16.msra.mxu0 %v2994
        %3055 = vmatmul.bf16.gmra.mxu0 %v2824
        %v3056 = vpop.f32.mrf.mxu0
        %v3057 = vadd.f32 %v3044, %v3056
        %v3058 = vpop.f32.mrf.mxu0
        %3059 = vdwg.mxu0
        %3060 = vmatpush.bf16.msra.mxu0 %v3009
        %3061 = vmatpush.bf16.msra.mxu0 %v3008
        %3062 = vmatpush.bf16.msra.mxu0 %v3007
        %3063 = vmatpush.bf16.msra.mxu0 %v3006
        %3064 = vmatpush.bf16.msra.mxu0 %v3005
        %3065 = vmatpush.bf16.msra.mxu0 %v3004
        %3066 = vmatpush.bf16.msra.mxu0 %v3003
        %3067 = vmatpush.bf16.msra.mxu0 %v3002
        %3068 = vmatmul.bf16.gmra.mxu0 %v2838
        %v3069 = vpop.f32.mrf.mxu0
        %v3070 = vadd.f32 %v3057, %v3069
        %v3071 = vpop.f32.mrf.mxu0
        %3072 = vdwg.mxu0
        %v3073 = vmax.f32 %v3070, 0.0
        %v3074 = vpack.c.bf16 %v3073, %v3073
        %v3076 = vunpack.c.l.b16 %v3074
        %v3077 = vpack.c.b16 %v3076, %v3076
        %v3079 = vshll.u32 %v3077, 16
        %v3082 = vsel %vm1424, 0, %v3079
        %v3083 = vsel %vm2578, %v3082, 0
        %v3084 = vshrl.u32 %v3077, 16
        %v3087 = vsel %vm1424, %v3084, 0
        %v3088 = vsel %vm2586, %v3087, 0
        %v3089 = vld [vmem:[%s51] sm:$0xf]
        %v3090 = vld [vmem:[%s51 + $0x4] sm:$0xf]
        %v3091 = vld [vmem:[%s51 + $0x8] sm:$0xf]
        %v3092 = vld [vmem:[%s51 + $0xc] sm:$0xf]
        %v3093 = vld [vmem:[%s51 + $0x10] sm:$0xf]
        %v3094 = vld [vmem:[%s51 + $0x14] sm:$0xf]
        %v3095 = vld [vmem:[%s51 + $0x18] sm:$0xf]
        %v3096 = vld [vmem:[%s51 + $0x1c] sm:$0xf]
        %v3097 = vld [vmem:[%s51 + $0x20] sm:$0xf]
        %v3098 = vld [vmem:[%s51 + $0x24] sm:$0xf]
        %v3099 = vld [vmem:[%s51 + $0x28] sm:$0xf]
        %v3100 = vld [vmem:[%s51 + $0x2c] sm:$0xf]
        %v3101 = vld [vmem:[%s51 + $0x30] sm:$0xf]
        %v3102 = vld [vmem:[%s51 + $0x34] sm:$0xf]
        %v3103 = vld [vmem:[%s51 + $0x38] sm:$0xf]
        %v3104 = vld [vmem:[%s51 + $0x3c] sm:$0xf]
        %v3105 = vld [vmem:[%s51 + $0x40] sm:$0xf]
        %v3106 = vld [vmem:[%s51 + $0x44] sm:$0xf]
        %v3107 = vld [vmem:[%s51 + $0x48] sm:$0xf]
        %v3108 = vld [vmem:[%s51 + $0x4c] sm:$0xf]
        %v3109 = vld [vmem:[%s51 + $0x50] sm:$0xf]
        %v3110 = vld [vmem:[%s51 + $0x54] sm:$0xf]
        %v3111 = vld [vmem:[%s51 + $0x58] sm:$0xf]
        %v3112 = vld [vmem:[%s51 + $0x5c] sm:$0xf]
        %v3113 = vld [vmem:[%s51 + $0x60] sm:$0xf]
        %v3114 = vld [vmem:[%s51 + $0x64] sm:$0xf]
        %v3115 = vld [vmem:[%s51 + $0x68] sm:$0xf]
        %v3116 = vld [vmem:[%s51 + $0x6c] sm:$0xf]
        %v3117 = vld [vmem:[%s51 + $0x70] sm:$0xf]
        %v3118 = vld [vmem:[%s51 + $0x74] sm:$0xf]
        %v3119 = vld [vmem:[%s51 + $0x78] sm:$0xf]
        %v3120 = vld [vmem:[%s51 + $0x7c] sm:$0xf]
        %v3121 = vld [vmem:[%s51 + $0x80] sm:$0xf]
        %v3122 = vld [vmem:[%s51 + $0x84] sm:$0xf]
        %v3123 = vld [vmem:[%s51 + $0x88] sm:$0xf]
        %v3124 = vld [vmem:[%s51 + $0x8c] sm:$0xf]
        %v3125 = vld [vmem:[%s51 + $0x90] sm:$0xf]
        %v3126 = vld [vmem:[%s51 + $0x94] sm:$0xf]
        %v3127 = vld [vmem:[%s51 + $0x98] sm:$0xf]
        %v3128 = vld [vmem:[%s51 + $0x9c] sm:$0xf]
        %v3129 = vld [vmem:[%s51 + $0xa0] sm:$0xf]
        %v3130 = vld [vmem:[%s51 + $0xa4] sm:$0xf]
        %v3131 = vld [vmem:[%s51 + $0xa8] sm:$0xf]
        %v3132 = vld [vmem:[%s51 + $0xac] sm:$0xf]
        %v3133 = vld [vmem:[%s51 + $0xb0] sm:$0xf]
        %v3134 = vld [vmem:[%s51 + $0xb4] sm:$0xf]
        %v3135 = vld [vmem:[%s51 + $0xb8] sm:$0xf]
        %v3136 = vld [vmem:[%s51 + $0xbc] sm:$0xf]
        %v3138 = vperm.slane %v1227, 0
        %v3188 = vunpack.c.l.b16 %v3089
        %v3189 = vunpack.c.l.b16 %v3090
        %v3190 = vunpack.c.l.b16 %v3091
        %v3191 = vunpack.c.l.b16 %v3092
        %v3192 = vunpack.c.l.b16 %v3093
        %v3193 = vunpack.c.l.b16 %v3094
        %v3194 = vunpack.c.l.b16 %v3095
        %v3195 = vunpack.c.l.b16 %v3096
        %v3196 = vunpack.c.l.b16 %v3097
        %v3197 = vunpack.c.l.b16 %v3098
        %v3198 = vunpack.c.l.b16 %v3099
        %v3199 = vunpack.c.l.b16 %v3100
        %v3200 = vunpack.c.l.b16 %v3101
        %v3201 = vunpack.c.l.b16 %v3102
        %v3202 = vunpack.c.l.b16 %v3103
        %v3203 = vunpack.c.l.b16 %v3104
        %v3204 = vunpack.c.l.b16 %v3105
        %v3205 = vunpack.c.l.b16 %v3106
        %v3206 = vunpack.c.l.b16 %v3107
        %v3207 = vunpack.c.l.b16 %v3108
        %v3208 = vunpack.c.l.b16 %v3109
        %v3209 = vunpack.c.l.b16 %v3110
        %v3210 = vunpack.c.l.b16 %v3111
        %v3211 = vunpack.c.l.b16 %v3112
        %v3212 = vunpack.c.l.b16 %v3113
        %v3213 = vunpack.c.l.b16 %v3114
        %v3214 = vunpack.c.l.b16 %v3115
        %v3215 = vunpack.c.l.b16 %v3116
        %v3216 = vunpack.c.l.b16 %v3117
        %v3217 = vunpack.c.l.b16 %v3118
        %v3218 = vunpack.c.l.b16 %v3119
        %v3219 = vunpack.c.l.b16 %v3120
        %v3220 = vunpack.c.l.b16 %v3121
        %v3221 = vunpack.c.l.b16 %v3122
        %v3222 = vunpack.c.l.b16 %v3123
        %v3223 = vunpack.c.l.b16 %v3124
        %v3224 = vunpack.c.l.b16 %v3125
        %v3225 = vunpack.c.l.b16 %v3126
        %v3226 = vunpack.c.l.b16 %v3127
        %v3227 = vunpack.c.l.b16 %v3128
        %v3228 = vunpack.c.l.b16 %v3129
        %v3229 = vunpack.c.l.b16 %v3130
        %v3230 = vunpack.c.l.b16 %v3131
        %v3231 = vunpack.c.l.b16 %v3132
        %v3232 = vunpack.c.l.b16 %v3133
        %v3233 = vunpack.c.l.b16 %v3134
        %v3234 = vunpack.c.l.b16 %v3135
        %v3235 = vunpack.c.l.b16 %v3136
        %v3236 = vpack.c.b16 %v3189, %v3188
        %v3237 = vpack.c.b16 %v3191, %v3190
        %v3238 = vpack.c.b16 %v3193, %v3192
        %v3239 = vpack.c.b16 %v3195, %v3194
        %v3240 = vpack.c.b16 %v3197, %v3196
        %v3241 = vpack.c.b16 %v3199, %v3198
        %v3242 = vpack.c.b16 %v3201, %v3200
        %v3243 = vpack.c.b16 %v3203, %v3202
        %v3244 = vpack.c.b16 %v3205, %v3204
        %v3245 = vpack.c.b16 %v3207, %v3206
        %v3246 = vpack.c.b16 %v3209, %v3208
        %v3247 = vpack.c.b16 %v3211, %v3210
        %v3248 = vpack.c.b16 %v3213, %v3212
        %v3249 = vpack.c.b16 %v3215, %v3214
        %v3250 = vpack.c.b16 %v3217, %v3216
        %v3251 = vpack.c.b16 %v3219, %v3218
        %v3252 = vpack.c.b16 %v3221, %v3220
        %v3253 = vpack.c.b16 %v3223, %v3222
        %v3254 = vpack.c.b16 %v3225, %v3224
        %v3255 = vpack.c.b16 %v3227, %v3226
        %v3256 = vpack.c.b16 %v3229, %v3228
        %v3257 = vpack.c.b16 %v3231, %v3230
        %v3258 = vpack.c.b16 %v3233, %v3232
        %v3259 = vpack.c.b16 %v3235, %v3234
        %3284 = vmatpush.bf16.msra.mxu0 %v3243
        %3285 = vmatpush.bf16.msra.mxu0 %v3242
        %3286 = vmatpush.bf16.msra.mxu0 %v3241
        %3287 = vmatpush.bf16.msra.mxu0 %v3240
        %3288 = vmatpush.bf16.msra.mxu0 %v3239
        %3289 = vmatpush.bf16.msra.mxu0 %v3238
        %3290 = vmatpush.bf16.msra.mxu0 %v3237
        %3291 = vmatpush.bf16.msra.mxu0 %v3236
        %3292 = vmatmul.bf16.gmra.mxu0 %v3083
        %v3293 = vpop.f32.mrf.mxu0
        %v3294 = vadd.f32 %v3138, %v3293
        %v3295 = vpop.f32.mrf.mxu0
        %3296 = vdwg.mxu0
        %3297 = vmatpush.bf16.msra.mxu0 %v3251
        %3298 = vmatpush.bf16.msra.mxu0 %v3250
        %3299 = vmatpush.bf16.msra.mxu0 %v3249
        %3300 = vmatpush.bf16.msra.mxu0 %v3248
        %3301 = vmatpush.bf16.msra.mxu0 %v3247
        %3302 = vmatpush.bf16.msra.mxu0 %v3246
        %3303 = vmatpush.bf16.msra.mxu0 %v3245
        %3304 = vmatpush.bf16.msra.mxu0 %v3244
        %3305 = vmatmul.bf16.gmra.mxu0 %v3074
        %v3306 = vpop.f32.mrf.mxu0
        %v3307 = vadd.f32 %v3294, %v3306
        %v3308 = vpop.f32.mrf.mxu0
        %3309 = vdwg.mxu0
        %3310 = vmatpush.bf16.msra.mxu0 %v3259
        %3311 = vmatpush.bf16.msra.mxu0 %v3258
        %3312 = vmatpush.bf16.msra.mxu0 %v3257
        %3313 = vmatpush.bf16.msra.mxu0 %v3256
        %3314 = vmatpush.bf16.msra.mxu0 %v3255
        %3315 = vmatpush.bf16.msra.mxu0 %v3254
        %3316 = vmatpush.bf16.msra.mxu0 %v3253
        %3317 = vmatpush.bf16.msra.mxu0 %v3252
        %3318 = vmatmul.bf16.gmra.mxu0 %v3088
        %v3319 = vpop.f32.mrf.mxu0
        %v3320 = vadd.f32 %v3307, %v3319
        %v3321 = vpop.f32.mrf.mxu0
        %3322 = vdwg.mxu0
        %v3323 = vadd.f32 %v3320, %v2823
        %v3324 = vmax.f32 %v3323, 0.0
        %v3325 = vpack.c.bf16 %v3324, %v3324
        %v3327 = vunpack.c.l.b16 %v3325
        %v3328 = vpack.c.b16 %v3327, %v3327
        %v3330 = vshll.u32 %v3328, 16
        %v3333 = vsel %vm1424, 0, %v3330
        %v3334 = vsel %vm2578, %v3333, 0
        %v3335 = vshrl.u32 %v3328, 16
        %v3338 = vsel %vm1424, %v3335, 0
        %v3339 = vsel %vm2586, %v3338, 0
        %vm3340 = vcmask 15360
        %v3342 = vsel %vm3340, %v1231, 0
        %v3345 = vsel %vm1391, %v3334, 0
        %v3348 = vsel %vm1391, %v3325, 0
        %v3351 = vsel %vm1391, %v3339, 0
        %3353 = vmatpush.bf16.msra.mxu0 0
        %3354 = vmatpush.bf16.msra.mxu0 0
        %3355 = vmatpush.bf16.msra.mxu0 0
        %3356 = vmatpush.bf16.msra.mxu0 0
        %3357 = vmatpush.bf16.msra.mxu0 0
        %3358 = vmatpush.bf16.msra.mxu0 0
        %3359 = vmatpush.bf16.msra.mxu0 0
        %3360 = vmatpush.bf16.msra.mxu0 %v3345
        %3361 = vmatmul.bf16.gmra.mxu0 %v3342
        %v3362 = vpop.f32.mrf.mxu0
        %v3363 = vadd.f32 0.0, %v3362
        %v3364 = vpop.f32.mrf.mxu0
        %3365 = vdwg.mxu0
        %3366 = vmatpush.bf16.msra.mxu0 0
        %3367 = vmatpush.bf16.msra.mxu0 0
        %3368 = vmatpush.bf16.msra.mxu0 0
        %3369 = vmatpush.bf16.msra.mxu0 0
        %3370 = vmatpush.bf16.msra.mxu0 0
        %3371 = vmatpush.bf16.msra.mxu0 0
        %3372 = vmatpush.bf16.msra.mxu0 0
        %3373 = vmatpush.bf16.msra.mxu0 %v3348
        %3374 = vmatmul.bf16.gmra.mxu0 %v3342
        %v3375 = vpop.f32.mrf.mxu0
        %v3376 = vadd.f32 0.0, %v3375
        %v3377 = vpop.f32.mrf.mxu0
        %3378 = vdwg.mxu0
        %3379 = vmatpush.bf16.msra.mxu0 0
        %3380 = vmatpush.bf16.msra.mxu0 0
        %3381 = vmatpush.bf16.msra.mxu0 0
        %3382 = vmatpush.bf16.msra.mxu0 0
        %3383 = vmatpush.bf16.msra.mxu0 0
        %3384 = vmatpush.bf16.msra.mxu0 0
        %3385 = vmatpush.bf16.msra.mxu0 0
        %3386 = vmatpush.bf16.msra.mxu0 %v3351
        %3387 = vmatmul.bf16.gmra.mxu0 %v3342
        %v3388 = vpop.f32.mrf.mxu0
        %v3389 = vadd.f32 0.0, %v3388
        %v3390 = vpop.f32.mrf.mxu0
        %3391 = vdwg.mxu0
        %v3392 = vpack.c.bf16 %v3363, %v3363
        %v3393 = vpack.c.bf16 %v3376, %v3376
        %v3394 = vpack.c.bf16 %v3389, %v3389
        %v3395 = vld [vmem:[%s55] sm:$0xff]
        %v3396 = vld [vmem:[%s55 + $0x8] sm:$0xff]
        %v3397 = vld [vmem:[%s55 + $0x10] sm:$0xff]
        %v3398 = vld [vmem:[%s55 + $0x18] sm:$0xff]
        %v3399 = vld [vmem:[%s55 + $0x20] sm:$0xff]
        %v3400 = vld [vmem:[%s55 + $0x28] sm:$0xff]
        %v3401 = vld [vmem:[%s55 + $0x30] sm:$0xff]
        %v3402 = vld [vmem:[%s55 + $0x38] sm:$0xff]
        %v3403 = vld [vmem:[%s55 + $0x40] sm:$0xff]
        %v3404 = vld [vmem:[%s55 + $0x48] sm:$0xff]
        %v3405 = vld [vmem:[%s55 + $0x50] sm:$0xff]
        %v3406 = vld [vmem:[%s55 + $0x58] sm:$0xff]
        %v3407 = vld [vmem:[%s55 + $0x60] sm:$0xff]
        %v3408 = vld [vmem:[%s55 + $0x68] sm:$0xff]
        %v3409 = vld [vmem:[%s55 + $0x70] sm:$0xff]
        %v3410 = vld [vmem:[%s55 + $0x78] sm:$0xff]
        %v3411 = vld [vmem:[%s55 + $0x80] sm:$0xff]
        %v3412 = vld [vmem:[%s55 + $0x88] sm:$0xff]
        %v3413 = vld [vmem:[%s55 + $0x90] sm:$0xff]
        %v3414 = vld [vmem:[%s55 + $0x98] sm:$0xff]
        %v3415 = vld [vmem:[%s55 + $0xa0] sm:$0xff]
        %v3416 = vld [vmem:[%s55 + $0xa8] sm:$0xff]
        %v3417 = vld [vmem:[%s55 + $0xb0] sm:$0xff]
        %v3418 = vld [vmem:[%s55 + $0xb8] sm:$0xff]
        %v3419 = vld [vmem:[%s55 + $0xc0] sm:$0xff]
        %v3420 = vld [vmem:[%s55 + $0xc8] sm:$0xff]
        %v3421 = vld [vmem:[%s55 + $0xd0] sm:$0xff]
        %v3422 = vld [vmem:[%s55 + $0xd8] sm:$0xff]
        %v3423 = vld [vmem:[%s55 + $0xe0] sm:$0xff]
        %v3424 = vld [vmem:[%s55 + $0xe8] sm:$0xff]
        %v3425 = vld [vmem:[%s55 + $0xf0] sm:$0xff]
        %v3426 = vld [vmem:[%s55 + $0xf8] sm:$0xff]
        %v3427 = vld [vmem:[%s55 + $0x100] sm:$0xff]
        %v3428 = vld [vmem:[%s55 + $0x108] sm:$0xff]
        %v3429 = vld [vmem:[%s55 + $0x110] sm:$0xff]
        %v3430 = vld [vmem:[%s55 + $0x118] sm:$0xff]
        %v3431 = vld [vmem:[%s55 + $0x120] sm:$0xff]
        %v3432 = vld [vmem:[%s55 + $0x128] sm:$0xff]
        %v3433 = vld [vmem:[%s55 + $0x130] sm:$0xff]
        %v3434 = vld [vmem:[%s55 + $0x138] sm:$0xff]
        %v3435 = vld [vmem:[%s55 + $0x140] sm:$0xff]
        %v3436 = vld [vmem:[%s55 + $0x148] sm:$0xff]
        %v3437 = vld [vmem:[%s55 + $0x150] sm:$0xff]
        %v3438 = vld [vmem:[%s55 + $0x158] sm:$0xff]
        %v3439 = vld [vmem:[%s55 + $0x160] sm:$0xff]
        %v3440 = vld [vmem:[%s55 + $0x168] sm:$0xff]
        %v3441 = vld [vmem:[%s55 + $0x170] sm:$0xff]
        %v3442 = vld [vmem:[%s55 + $0x178] sm:$0xff]
        %v3491 = vunpack.c.l.b16 %v3395
        %v3492 = vunpack.c.h.b16 %v3395
        %v3493 = vunpack.c.l.b16 %v3396
        %v3494 = vunpack.c.h.b16 %v3396
        %v3495 = vunpack.c.l.b16 %v3397
        %v3496 = vunpack.c.h.b16 %v3397
        %v3497 = vunpack.c.l.b16 %v3398
        %v3498 = vunpack.c.h.b16 %v3398
        %v3499 = vunpack.c.l.b16 %v3399
        %v3500 = vunpack.c.h.b16 %v3399
        %v3501 = vunpack.c.l.b16 %v3400
        %v3502 = vunpack.c.h.b16 %v3400
        %v3503 = vunpack.c.l.b16 %v3401
        %v3504 = vunpack.c.h.b16 %v3401
        %v3505 = vunpack.c.l.b16 %v3402
        %v3506 = vunpack.c.h.b16 %v3402
        %v3507 = vunpack.c.l.b16 %v3403
        %v3508 = vunpack.c.h.b16 %v3403
        %v3509 = vunpack.c.l.b16 %v3404
        %v3510 = vunpack.c.h.b16 %v3404
        %v3511 = vunpack.c.l.b16 %v3405
        %v3512 = vunpack.c.h.b16 %v3405
        %v3513 = vunpack.c.l.b16 %v3406
        %v3514 = vunpack.c.h.b16 %v3406
        %v3515 = vunpack.c.l.b16 %v3407
        %v3516 = vunpack.c.h.b16 %v3407
        %v3517 = vunpack.c.l.b16 %v3408
        %v3518 = vunpack.c.h.b16 %v3408
        %v3519 = vunpack.c.l.b16 %v3409
        %v3520 = vunpack.c.h.b16 %v3409
        %v3521 = vunpack.c.l.b16 %v3410
        %v3522 = vunpack.c.h.b16 %v3410
        %v3523 = vunpack.c.l.b16 %v3411
        %v3524 = vunpack.c.h.b16 %v3411
        %v3525 = vunpack.c.l.b16 %v3412
        %v3526 = vunpack.c.h.b16 %v3412
        %v3527 = vunpack.c.l.b16 %v3413
        %v3528 = vunpack.c.h.b16 %v3413
        %v3529 = vunpack.c.l.b16 %v3414
        %v3530 = vunpack.c.h.b16 %v3414
        %v3531 = vunpack.c.l.b16 %v3415
        %v3532 = vunpack.c.h.b16 %v3415
        %v3533 = vunpack.c.l.b16 %v3416
        %v3534 = vunpack.c.h.b16 %v3416
        %v3535 = vunpack.c.l.b16 %v3417
        %v3536 = vunpack.c.h.b16 %v3417
        %v3537 = vunpack.c.l.b16 %v3418
        %v3538 = vunpack.c.h.b16 %v3418
        %v3539 = vunpack.c.l.b16 %v3419
        %v3540 = vunpack.c.h.b16 %v3419
        %v3541 = vunpack.c.l.b16 %v3420
        %v3542 = vunpack.c.h.b16 %v3420
        %v3543 = vunpack.c.l.b16 %v3421
        %v3544 = vunpack.c.h.b16 %v3421
        %v3545 = vunpack.c.l.b16 %v3422
        %v3546 = vunpack.c.h.b16 %v3422
        %v3547 = vunpack.c.l.b16 %v3423
        %v3548 = vunpack.c.h.b16 %v3423
        %v3549 = vunpack.c.l.b16 %v3424
        %v3550 = vunpack.c.h.b16 %v3424
        %v3551 = vunpack.c.l.b16 %v3425
        %v3552 = vunpack.c.h.b16 %v3425
        %v3553 = vunpack.c.l.b16 %v3426
        %v3554 = vunpack.c.h.b16 %v3426
        %v3555 = vunpack.c.l.b16 %v3427
        %v3556 = vunpack.c.h.b16 %v3427
        %v3557 = vunpack.c.l.b16 %v3428
        %v3558 = vunpack.c.h.b16 %v3428
        %v3559 = vunpack.c.l.b16 %v3429
        %v3560 = vunpack.c.h.b16 %v3429
        %v3561 = vunpack.c.l.b16 %v3430
        %v3562 = vunpack.c.h.b16 %v3430
        %v3563 = vunpack.c.l.b16 %v3431
        %v3564 = vunpack.c.h.b16 %v3431
        %v3565 = vunpack.c.l.b16 %v3432
        %v3566 = vunpack.c.h.b16 %v3432
        %v3567 = vunpack.c.l.b16 %v3433
        %v3568 = vunpack.c.h.b16 %v3433
        %v3569 = vunpack.c.l.b16 %v3434
        %v3570 = vunpack.c.h.b16 %v3434
        %v3571 = vunpack.c.l.b16 %v3435
        %v3572 = vunpack.c.h.b16 %v3435
        %v3573 = vunpack.c.l.b16 %v3436
        %v3574 = vunpack.c.h.b16 %v3436
        %v3575 = vunpack.c.l.b16 %v3437
        %v3576 = vunpack.c.h.b16 %v3437
        %v3577 = vunpack.c.l.b16 %v3438
        %v3578 = vunpack.c.h.b16 %v3438
        %v3579 = vunpack.c.l.b16 %v3439
        %v3580 = vunpack.c.h.b16 %v3439
        %v3581 = vunpack.c.l.b16 %v3440
        %v3582 = vunpack.c.h.b16 %v3440
        %v3583 = vunpack.c.l.b16 %v3441
        %v3584 = vunpack.c.h.b16 %v3441
        %v3585 = vunpack.c.l.b16 %v3442
        %v3586 = vunpack.c.h.b16 %v3442
        %v3587 = vpack.c.b16 %v3493, %v3491
        %v3588 = vpack.c.b16 %v3494, %v3492
        %v3589 = vpack.c.b16 %v3497, %v3495
        %v3590 = vpack.c.b16 %v3498, %v3496
        %v3591 = vpack.c.b16 %v3501, %v3499
        %v3592 = vpack.c.b16 %v3502, %v3500
        %v3593 = vpack.c.b16 %v3505, %v3503
        %v3594 = vpack.c.b16 %v3506, %v3504
        %v3595 = vpack.c.b16 %v3509, %v3507
        %v3596 = vpack.c.b16 %v3510, %v3508
        %v3597 = vpack.c.b16 %v3513, %v3511
        %v3598 = vpack.c.b16 %v3514, %v3512
        %v3599 = vpack.c.b16 %v3517, %v3515
        %v3600 = vpack.c.b16 %v3518, %v3516
        %v3601 = vpack.c.b16 %v3521, %v3519
        %v3602 = vpack.c.b16 %v3522, %v3520
        %v3603 = vpack.c.b16 %v3525, %v3523
        %v3604 = vpack.c.b16 %v3526, %v3524
        %v3605 = vpack.c.b16 %v3529, %v3527
        %v3606 = vpack.c.b16 %v3530, %v3528
        %v3607 = vpack.c.b16 %v3533, %v3531
        %v3608 = vpack.c.b16 %v3534, %v3532
        %v3609 = vpack.c.b16 %v3537, %v3535
        %v3610 = vpack.c.b16 %v3538, %v3536
        %v3611 = vpack.c.b16 %v3541, %v3539
        %v3612 = vpack.c.b16 %v3542, %v3540
        %v3613 = vpack.c.b16 %v3545, %v3543
        %v3614 = vpack.c.b16 %v3546, %v3544
        %v3615 = vpack.c.b16 %v3549, %v3547
        %v3616 = vpack.c.b16 %v3550, %v3548
        %v3617 = vpack.c.b16 %v3553, %v3551
        %v3618 = vpack.c.b16 %v3554, %v3552
        %v3619 = vpack.c.b16 %v3557, %v3555
        %v3620 = vpack.c.b16 %v3558, %v3556
        %v3621 = vpack.c.b16 %v3561, %v3559
        %v3622 = vpack.c.b16 %v3562, %v3560
        %v3623 = vpack.c.b16 %v3565, %v3563
        %v3624 = vpack.c.b16 %v3566, %v3564
        %v3625 = vpack.c.b16 %v3569, %v3567
        %v3626 = vpack.c.b16 %v3570, %v3568
        %v3627 = vpack.c.b16 %v3573, %v3571
        %v3628 = vpack.c.b16 %v3574, %v3572
        %v3629 = vpack.c.b16 %v3577, %v3575
        %v3630 = vpack.c.b16 %v3578, %v3576
        %v3631 = vpack.c.b16 %v3581, %v3579
        %v3632 = vpack.c.b16 %v3582, %v3580
        %v3633 = vpack.c.b16 %v3585, %v3583
        %v3634 = vpack.c.b16 %v3586, %v3584
        %v3684 = vperm.slane %v1228, 0
        %v3685 = vperm.slane %v1228, 1
        %3688 = vmatpush.bf16.msra.mxu0 %v3601
        %3689 = vmatpush.bf16.msra.mxu0 %v3599
        %3690 = vmatpush.bf16.msra.mxu0 %v3597
        %3691 = vmatpush.bf16.msra.mxu0 %v3595
        %3692 = vmatpush.bf16.msra.mxu0 %v3593
        %3693 = vmatpush.bf16.msra.mxu0 %v3591
        %3694 = vmatpush.bf16.msra.mxu0 %v3589
        %3695 = vmatpush.bf16.msra.mxu0 %v3587
        %3696 = vmatmul.bf16.gmra.mxu0 %v3392
        %v3697 = vpop.f32.mrf.mxu0
        %v3698 = vadd.f32 %v3684, %v3697
        %v3699 = vpop.f32.mrf.mxu0
        %3700 = vdwg.mxu0
        %3701 = vmatpush.bf16.msra.mxu0 %v3617
        %3702 = vmatpush.bf16.msra.mxu0 %v3615
        %3703 = vmatpush.bf16.msra.mxu0 %v3613
        %3704 = vmatpush.bf16.msra.mxu0 %v3611
        %3705 = vmatpush.bf16.msra.mxu0 %v3609
        %3706 = vmatpush.bf16.msra.mxu0 %v3607
        %3707 = vmatpush.bf16.msra.mxu0 %v3605
        %3708 = vmatpush.bf16.msra.mxu0 %v3603
        %3709 = vmatmul.bf16.gmra.mxu0 %v3393
        %v3710 = vpop.f32.mrf.mxu0
        %v3711 = vadd.f32 %v3698, %v3710
        %v3712 = vpop.f32.mrf.mxu0
        %3713 = vdwg.mxu0
        %3714 = vmatpush.bf16.msra.mxu0 %v3633
        %3715 = vmatpush.bf16.msra.mxu0 %v3631
        %3716 = vmatpush.bf16.msra.mxu0 %v3629
        %3717 = vmatpush.bf16.msra.mxu0 %v3627
        %3718 = vmatpush.bf16.msra.mxu0 %v3625
        %3719 = vmatpush.bf16.msra.mxu0 %v3623
        %3720 = vmatpush.bf16.msra.mxu0 %v3621
        %3721 = vmatpush.bf16.msra.mxu0 %v3619
        %3722 = vmatmul.bf16.gmra.mxu0 %v3394
        %v3723 = vpop.f32.mrf.mxu0
        %v3724 = vadd.f32 %v3711, %v3723
        %v3725 = vpop.f32.mrf.mxu0
        %3726 = vdwg.mxu0
        %3727 = vmatpush.bf16.msra.mxu0 %v3602
        %3728 = vmatpush.bf16.msra.mxu0 %v3600
        %3729 = vmatpush.bf16.msra.mxu0 %v3598
        %3730 = vmatpush.bf16.msra.mxu0 %v3596
        %3731 = vmatpush.bf16.msra.mxu0 %v3594
        %3732 = vmatpush.bf16.msra.mxu0 %v3592
        %3733 = vmatpush.bf16.msra.mxu0 %v3590
        %3734 = vmatpush.bf16.msra.mxu0 %v3588
        %3735 = vmatmul.bf16.gmra.mxu0 %v3392
        %v3736 = vpop.f32.mrf.mxu0
        %v3737 = vadd.f32 %v3685, %v3736
        %v3738 = vpop.f32.mrf.mxu0
        %3739 = vdwg.mxu0
        %3740 = vmatpush.bf16.msra.mxu0 %v3618
        %3741 = vmatpush.bf16.msra.mxu0 %v3616
        %3742 = vmatpush.bf16.msra.mxu0 %v3614
        %3743 = vmatpush.bf16.msra.mxu0 %v3612
        %3744 = vmatpush.bf16.msra.mxu0 %v3610
        %3745 = vmatpush.bf16.msra.mxu0 %v3608
        %3746 = vmatpush.bf16.msra.mxu0 %v3606
        %3747 = vmatpush.bf16.msra.mxu0 %v3604
        %3748 = vmatmul.bf16.gmra.mxu0 %v3393
        %v3749 = vpop.f32.mrf.mxu0
        %v3750 = vadd.f32 %v3737, %v3749
        %v3751 = vpop.f32.mrf.mxu0
        %3752 = vdwg.mxu0
        %3753 = vmatpush.bf16.msra.mxu0 %v3634
        %3754 = vmatpush.bf16.msra.mxu0 %v3632
        %3755 = vmatpush.bf16.msra.mxu0 %v3630
        %3756 = vmatpush.bf16.msra.mxu0 %v3628
        %3757 = vmatpush.bf16.msra.mxu0 %v3626
        %3758 = vmatpush.bf16.msra.mxu0 %v3624
        %3759 = vmatpush.bf16.msra.mxu0 %v3622
        %3760 = vmatpush.bf16.msra.mxu0 %v3620
        %3761 = vmatmul.bf16.gmra.mxu0 %v3394
        %v3762 = vpop.f32.mrf.mxu0
        %v3763 = vadd.f32 %v3750, %v3762
        %v3764 = vpop.f32.mrf.mxu0
        %3765 = vdwg.mxu0
        %v3766 = vmax.f32 %v3724, 0.0
        %v3767 = vmax.f32 %v3763, 0.0
        %v3768 = vld [vmem:[%s63] sm:$0xff]
        %v3769 = vld [vmem:[%s63 + $0x8] sm:$0xff]
        %v3770 = vld [vmem:[%s63 + $0x10] sm:$0xff]
        %v3771 = vld [vmem:[%s63 + $0x18] sm:$0xff]
        %v3772 = vld [vmem:[%s63 + $0x20] sm:$0xff]
        %v3773 = vld [vmem:[%s63 + $0x28] sm:$0xff]
        %v3774 = vld [vmem:[%s63 + $0x30] sm:$0xff]
        %v3775 = vld [vmem:[%s63 + $0x38] sm:$0xff]
        %v3776 = vld [vmem:[%s63 + $0x40] sm:$0xff]
        %v3777 = vld [vmem:[%s63 + $0x48] sm:$0xff]
        %v3778 = vld [vmem:[%s63 + $0x50] sm:$0xff]
        %v3779 = vld [vmem:[%s63 + $0x58] sm:$0xff]
        %v3780 = vld [vmem:[%s63 + $0x60] sm:$0xff]
        %v3781 = vld [vmem:[%s63 + $0x68] sm:$0xff]
        %v3782 = vld [vmem:[%s63 + $0x70] sm:$0xff]
        %v3783 = vld [vmem:[%s63 + $0x78] sm:$0xff]
        %v3800 = vunpack.c.l.b16 %v3768
        %v3801 = vunpack.c.h.b16 %v3768
        %v3802 = vunpack.c.l.b16 %v3769
        %v3803 = vunpack.c.h.b16 %v3769
        %v3804 = vunpack.c.l.b16 %v3770
        %v3805 = vunpack.c.h.b16 %v3770
        %v3806 = vunpack.c.l.b16 %v3771
        %v3807 = vunpack.c.h.b16 %v3771
        %v3808 = vunpack.c.l.b16 %v3772
        %v3809 = vunpack.c.h.b16 %v3772
        %v3810 = vunpack.c.l.b16 %v3773
        %v3811 = vunpack.c.h.b16 %v3773
        %v3812 = vunpack.c.l.b16 %v3774
        %v3813 = vunpack.c.h.b16 %v3774
        %v3814 = vunpack.c.l.b16 %v3775
        %v3815 = vunpack.c.h.b16 %v3775
        %v3816 = vunpack.c.l.b16 %v3776
        %v3817 = vunpack.c.h.b16 %v3776
        %v3818 = vunpack.c.l.b16 %v3777
        %v3819 = vunpack.c.h.b16 %v3777
        %v3820 = vunpack.c.l.b16 %v3778
        %v3821 = vunpack.c.h.b16 %v3778
        %v3822 = vunpack.c.l.b16 %v3779
        %v3823 = vunpack.c.h.b16 %v3779
        %v3824 = vunpack.c.l.b16 %v3780
        %v3825 = vunpack.c.h.b16 %v3780
        %v3826 = vunpack.c.l.b16 %v3781
        %v3827 = vunpack.c.h.b16 %v3781
        %v3828 = vunpack.c.l.b16 %v3782
        %v3829 = vunpack.c.h.b16 %v3782
        %v3830 = vunpack.c.l.b16 %v3783
        %v3831 = vunpack.c.h.b16 %v3783
        %v3832 = vpack.c.b16 %v3802, %v3800
        %v3833 = vpack.c.b16 %v3803, %v3801
        %v3834 = vpack.c.b16 %v3806, %v3804
        %v3835 = vpack.c.b16 %v3807, %v3805
        %v3836 = vpack.c.b16 %v3810, %v3808
        %v3837 = vpack.c.b16 %v3811, %v3809
        %v3838 = vpack.c.b16 %v3814, %v3812
        %v3839 = vpack.c.b16 %v3815, %v3813
        %v3840 = vpack.c.b16 %v3818, %v3816
        %v3841 = vpack.c.b16 %v3819, %v3817
        %v3842 = vpack.c.b16 %v3822, %v3820
        %v3843 = vpack.c.b16 %v3823, %v3821
        %v3844 = vpack.c.b16 %v3826, %v3824
        %v3845 = vpack.c.b16 %v3827, %v3825
        %v3846 = vpack.c.b16 %v3830, %v3828
        %v3847 = vpack.c.b16 %v3831, %v3829
        %v3865 = vperm.slane %v1230, 0
        %v3866 = vperm.slane %v1230, 1
        %3869 = vmatpush.bf16.msra.mxu0 %v3846
        %3870 = vmatpush.bf16.msra.mxu0 %v3844
        %3871 = vmatpush.bf16.msra.mxu0 %v3842
        %3872 = vmatpush.bf16.msra.mxu0 %v3840
        %3873 = vmatpush.bf16.msra.mxu0 %v3838
        %3874 = vmatpush.bf16.msra.mxu0 %v3836
        %3875 = vmatpush.bf16.msra.mxu0 %v3834
        %3876 = vmatpush.bf16.msra.mxu0 %v3832
        %3877 = vmatmul.bf16.gmra.mxu0 %v3393
        %v3878 = vpop.f32.mrf.mxu0
        %v3879 = vadd.f32 %v3865, %v3878
        %v3880 = vpop.f32.mrf.mxu0
        %3881 = vdwg.mxu0
        %3882 = vmatpush.bf16.msra.mxu0 %v3847
        %3883 = vmatpush.bf16.msra.mxu0 %v3845
        %3884 = vmatpush.bf16.msra.mxu0 %v3843
        %3885 = vmatpush.bf16.msra.mxu0 %v3841
        %3886 = vmatpush.bf16.msra.mxu0 %v3839
        %3887 = vmatpush.bf16.msra.mxu0 %v3837
        %3888 = vmatpush.bf16.msra.mxu0 %v3835
        %3889 = vmatpush.bf16.msra.mxu0 %v3833
        %3890 = vmatmul.bf16.gmra.mxu0 %v3393
        %v3891 = vpop.f32.mrf.mxu0
        %v3892 = vadd.f32 %v3866, %v3891
        %v3893 = vpop.f32.mrf.mxu0
        %3894 = vdwg.mxu0
        %v3895 = vpack.c.bf16 %v3767, %v3766
        %v3897 = vunpack.c.l.b16 %v3895
        %v3898 = vunpack.c.h.b16 %v3895
        %v3899 = vpack.c.b16 %v3897, %v3897
        %v3900 = vpack.c.b16 %v3898, %v3898
        %v3903 = vld [vmem:[%s59] sm:$0xff]
        %v3904 = vld [vmem:[%s59 + $0x8] sm:$0xff]
        %v3905 = vld [vmem:[%s59 + $0x10] sm:$0xff]
        %v3906 = vld [vmem:[%s59 + $0x18] sm:$0xff]
        %v3907 = vld [vmem:[%s59 + $0x20] sm:$0xff]
        %v3908 = vld [vmem:[%s59 + $0x28] sm:$0xff]
        %v3909 = vld [vmem:[%s59 + $0x30] sm:$0xff]
        %v3910 = vld [vmem:[%s59 + $0x38] sm:$0xff]
        %v3911 = vld [vmem:[%s59 + $0x40] sm:$0xff]
        %v3912 = vld [vmem:[%s59 + $0x48] sm:$0xff]
        %v3913 = vld [vmem:[%s59 + $0x50] sm:$0xff]
        %v3914 = vld [vmem:[%s59 + $0x58] sm:$0xff]
        %v3915 = vld [vmem:[%s59 + $0x60] sm:$0xff]
        %v3916 = vld [vmem:[%s59 + $0x68] sm:$0xff]
        %v3917 = vld [vmem:[%s59 + $0x70] sm:$0xff]
        %v3918 = vld [vmem:[%s59 + $0x78] sm:$0xff]
        %v3919 = vld [vmem:[%s59 + $0x80] sm:$0xff]
        %v3920 = vld [vmem:[%s59 + $0x88] sm:$0xff]
        %v3921 = vld [vmem:[%s59 + $0x90] sm:$0xff]
        %v3922 = vld [vmem:[%s59 + $0x98] sm:$0xff]
        %v3923 = vld [vmem:[%s59 + $0xa0] sm:$0xff]
        %v3924 = vld [vmem:[%s59 + $0xa8] sm:$0xff]
        %v3925 = vld [vmem:[%s59 + $0xb0] sm:$0xff]
        %v3926 = vld [vmem:[%s59 + $0xb8] sm:$0xff]
        %v3927 = vld [vmem:[%s59 + $0xc0] sm:$0xff]
        %v3928 = vld [vmem:[%s59 + $0xc8] sm:$0xff]
        %v3929 = vld [vmem:[%s59 + $0xd0] sm:$0xff]
        %v3930 = vld [vmem:[%s59 + $0xd8] sm:$0xff]
        %v3931 = vld [vmem:[%s59 + $0xe0] sm:$0xff]
        %v3932 = vld [vmem:[%s59 + $0xe8] sm:$0xff]
        %v3933 = vld [vmem:[%s59 + $0xf0] sm:$0xff]
        %v3934 = vld [vmem:[%s59 + $0xf8] sm:$0xff]
        %v3935 = vld [vmem:[%s59 + $0x100] sm:$0xff]
        %v3936 = vld [vmem:[%s59 + $0x108] sm:$0xff]
        %v3937 = vld [vmem:[%s59 + $0x110] sm:$0xff]
        %v3938 = vld [vmem:[%s59 + $0x118] sm:$0xff]
        %v3939 = vld [vmem:[%s59 + $0x120] sm:$0xff]
        %v3940 = vld [vmem:[%s59 + $0x128] sm:$0xff]
        %v3941 = vld [vmem:[%s59 + $0x130] sm:$0xff]
        %v3942 = vld [vmem:[%s59 + $0x138] sm:$0xff]
        %v3943 = vld [vmem:[%s59 + $0x140] sm:$0xff]
        %v3944 = vld [vmem:[%s59 + $0x148] sm:$0xff]
        %v3945 = vld [vmem:[%s59 + $0x150] sm:$0xff]
        %v3946 = vld [vmem:[%s59 + $0x158] sm:$0xff]
        %v3947 = vld [vmem:[%s59 + $0x160] sm:$0xff]
        %v3948 = vld [vmem:[%s59 + $0x168] sm:$0xff]
        %v3949 = vld [vmem:[%s59 + $0x170] sm:$0xff]
        %v3950 = vld [vmem:[%s59 + $0x178] sm:$0xff]
        %v3951 = vld [vmem:[%s59 + $0x180] sm:$0xff]
        %v3952 = vld [vmem:[%s59 + $0x188] sm:$0xff]
        %v3953 = vld [vmem:[%s59 + $0x190] sm:$0xff]
        %v3954 = vld [vmem:[%s59 + $0x198] sm:$0xff]
        %v3955 = vld [vmem:[%s59 + $0x1a0] sm:$0xff]
        %v3956 = vld [vmem:[%s59 + $0x1a8] sm:$0xff]
        %v3957 = vld [vmem:[%s59 + $0x1b0] sm:$0xff]
        %v3958 = vld [vmem:[%s59 + $0x1b8] sm:$0xff]
        %v3959 = vld [vmem:[%s59 + $0x1c0] sm:$0xff]
        %v3960 = vld [vmem:[%s59 + $0x1c8] sm:$0xff]
        %v3961 = vld [vmem:[%s59 + $0x1d0] sm:$0xff]
        %v3962 = vld [vmem:[%s59 + $0x1d8] sm:$0xff]
        %v3963 = vld [vmem:[%s59 + $0x1e0] sm:$0xff]
        %v3964 = vld [vmem:[%s59 + $0x1e8] sm:$0xff]
        %v3965 = vld [vmem:[%s59 + $0x1f0] sm:$0xff]
        %v3966 = vld [vmem:[%s59 + $0x1f8] sm:$0xff]
        %v3967 = vld [vmem:[%s59 + $0x200] sm:$0xff]
        %v3968 = vld [vmem:[%s59 + $0x208] sm:$0xff]
        %v3969 = vld [vmem:[%s59 + $0x210] sm:$0xff]
        %v3970 = vld [vmem:[%s59 + $0x218] sm:$0xff]
        %v3971 = vld [vmem:[%s59 + $0x220] sm:$0xff]
        %v3972 = vld [vmem:[%s59 + $0x228] sm:$0xff]
        %v3973 = vld [vmem:[%s59 + $0x230] sm:$0xff]
        %v3974 = vld [vmem:[%s59 + $0x238] sm:$0xff]
        %v3975 = vld [vmem:[%s59 + $0x240] sm:$0xff]
        %v3976 = vld [vmem:[%s59 + $0x248] sm:$0xff]
        %v3977 = vld [vmem:[%s59 + $0x250] sm:$0xff]
        %v3978 = vld [vmem:[%s59 + $0x258] sm:$0xff]
        %v3979 = vld [vmem:[%s59 + $0x260] sm:$0xff]
        %v3980 = vld [vmem:[%s59 + $0x268] sm:$0xff]
        %v3981 = vld [vmem:[%s59 + $0x270] sm:$0xff]
        %v3982 = vld [vmem:[%s59 + $0x278] sm:$0xff]
        %v3983 = vld [vmem:[%s59 + $0x280] sm:$0xff]
        %v3984 = vld [vmem:[%s59 + $0x288] sm:$0xff]
        %v3985 = vld [vmem:[%s59 + $0x290] sm:$0xff]
        %v3986 = vld [vmem:[%s59 + $0x298] sm:$0xff]
        %v3987 = vld [vmem:[%s59 + $0x2a0] sm:$0xff]
        %v3988 = vld [vmem:[%s59 + $0x2a8] sm:$0xff]
        %v3989 = vld [vmem:[%s59 + $0x2b0] sm:$0xff]
        %v3990 = vld [vmem:[%s59 + $0x2b8] sm:$0xff]
        %v3991 = vld [vmem:[%s59 + $0x2c0] sm:$0xff]
        %v3992 = vld [vmem:[%s59 + $0x2c8] sm:$0xff]
        %v3993 = vld [vmem:[%s59 + $0x2d0] sm:$0xff]
        %v3994 = vld [vmem:[%s59 + $0x2d8] sm:$0xff]
        %v3995 = vld [vmem:[%s59 + $0x2e0] sm:$0xff]
        %v3996 = vld [vmem:[%s59 + $0x2e8] sm:$0xff]
        %v3997 = vld [vmem:[%s59 + $0x2f0] sm:$0xff]
        %v3998 = vld [vmem:[%s59 + $0x2f8] sm:$0xff]
        %v4095 = vunpack.c.l.b16 %v3903
        %v4096 = vunpack.c.h.b16 %v3903
        %v4097 = vunpack.c.l.b16 %v3904
        %v4098 = vunpack.c.h.b16 %v3904
        %v4099 = vunpack.c.l.b16 %v3905
        %v4100 = vunpack.c.h.b16 %v3905
        %v4101 = vunpack.c.l.b16 %v3906
        %v4102 = vunpack.c.h.b16 %v3906
        %v4103 = vunpack.c.l.b16 %v3907
        %v4104 = vunpack.c.h.b16 %v3907
        %v4105 = vunpack.c.l.b16 %v3908
        %v4106 = vunpack.c.h.b16 %v3908
        %v4107 = vunpack.c.l.b16 %v3909
        %v4108 = vunpack.c.h.b16 %v3909
        %v4109 = vunpack.c.l.b16 %v3910
        %v4110 = vunpack.c.h.b16 %v3910
        %v4111 = vunpack.c.l.b16 %v3911
        %v4112 = vunpack.c.h.b16 %v3911
        %v4113 = vunpack.c.l.b16 %v3912
        %v4114 = vunpack.c.h.b16 %v3912
        %v4115 = vunpack.c.l.b16 %v3913
        %v4116 = vunpack.c.h.b16 %v3913
        %v4117 = vunpack.c.l.b16 %v3914
        %v4118 = vunpack.c.h.b16 %v3914
        %v4119 = vunpack.c.l.b16 %v3915
        %v4120 = vunpack.c.h.b16 %v3915
        %v4121 = vunpack.c.l.b16 %v3916
        %v4122 = vunpack.c.h.b16 %v3916
        %v4123 = vunpack.c.l.b16 %v3917
        %v4124 = vunpack.c.h.b16 %v3917
        %v4125 = vunpack.c.l.b16 %v3918
        %v4126 = vunpack.c.h.b16 %v3918
        %v4127 = vunpack.c.l.b16 %v3919
        %v4128 = vunpack.c.h.b16 %v3919
        %v4129 = vunpack.c.l.b16 %v3920
        %v4130 = vunpack.c.h.b16 %v3920
        %v4131 = vunpack.c.l.b16 %v3921
        %v4132 = vunpack.c.h.b16 %v3921
        %v4133 = vunpack.c.l.b16 %v3922
        %v4134 = vunpack.c.h.b16 %v3922
        %v4135 = vunpack.c.l.b16 %v3923
        %v4136 = vunpack.c.h.b16 %v3923
        %v4137 = vunpack.c.l.b16 %v3924
        %v4138 = vunpack.c.h.b16 %v3924
        %v4139 = vunpack.c.l.b16 %v3925
        %v4140 = vunpack.c.h.b16 %v3925
        %v4141 = vunpack.c.l.b16 %v3926
        %v4142 = vunpack.c.h.b16 %v3926
        %v4143 = vunpack.c.l.b16 %v3927
        %v4144 = vunpack.c.h.b16 %v3927
        %v4145 = vunpack.c.l.b16 %v3928
        %v4146 = vunpack.c.h.b16 %v3928
        %v4147 = vunpack.c.l.b16 %v3929
        %v4148 = vunpack.c.h.b16 %v3929
        %v4149 = vunpack.c.l.b16 %v3930
        %v4150 = vunpack.c.h.b16 %v3930
        %v4151 = vunpack.c.l.b16 %v3931
        %v4152 = vunpack.c.h.b16 %v3931
        %v4153 = vunpack.c.l.b16 %v3932
        %v4154 = vunpack.c.h.b16 %v3932
        %v4155 = vunpack.c.l.b16 %v3933
        %v4156 = vunpack.c.h.b16 %v3933
        %v4157 = vunpack.c.l.b16 %v3934
        %v4158 = vunpack.c.h.b16 %v3934
        %v4159 = vunpack.c.l.b16 %v3935
        %v4160 = vunpack.c.h.b16 %v3935
        %v4161 = vunpack.c.l.b16 %v3936
        %v4162 = vunpack.c.h.b16 %v3936
        %v4163 = vunpack.c.l.b16 %v3937
        %v4164 = vunpack.c.h.b16 %v3937
        %v4165 = vunpack.c.l.b16 %v3938
        %v4166 = vunpack.c.h.b16 %v3938
        %v4167 = vunpack.c.l.b16 %v3939
        %v4168 = vunpack.c.h.b16 %v3939
        %v4169 = vunpack.c.l.b16 %v3940
        %v4170 = vunpack.c.h.b16 %v3940
        %v4171 = vunpack.c.l.b16 %v3941
        %v4172 = vunpack.c.h.b16 %v3941
        %v4173 = vunpack.c.l.b16 %v3942
        %v4174 = vunpack.c.h.b16 %v3942
        %v4175 = vunpack.c.l.b16 %v3943
        %v4176 = vunpack.c.h.b16 %v3943
        %v4177 = vunpack.c.l.b16 %v3944
        %v4178 = vunpack.c.h.b16 %v3944
        %v4179 = vunpack.c.l.b16 %v3945
        %v4180 = vunpack.c.h.b16 %v3945
        %v4181 = vunpack.c.l.b16 %v3946
        %v4182 = vunpack.c.h.b16 %v3946
        %v4183 = vunpack.c.l.b16 %v3947
        %v4184 = vunpack.c.h.b16 %v3947
        %v4185 = vunpack.c.l.b16 %v3948
        %v4186 = vunpack.c.h.b16 %v3948
        %v4187 = vunpack.c.l.b16 %v3949
        %v4188 = vunpack.c.h.b16 %v3949
        %v4189 = vunpack.c.l.b16 %v3950
        %v4190 = vunpack.c.h.b16 %v3950
        %v4191 = vunpack.c.l.b16 %v3951
        %v4192 = vunpack.c.h.b16 %v3951
        %v4193 = vunpack.c.l.b16 %v3952
        %v4194 = vunpack.c.h.b16 %v3952
        %v4195 = vunpack.c.l.b16 %v3953
        %v4196 = vunpack.c.h.b16 %v3953
        %v4197 = vunpack.c.l.b16 %v3954
        %v4198 = vunpack.c.h.b16 %v3954
        %v4199 = vunpack.c.l.b16 %v3955
        %v4200 = vunpack.c.h.b16 %v3955
        %v4201 = vunpack.c.l.b16 %v3956
        %v4202 = vunpack.c.h.b16 %v3956
        %v4203 = vunpack.c.l.b16 %v3957
        %v4204 = vunpack.c.h.b16 %v3957
        %v4205 = vunpack.c.l.b16 %v3958
        %v4206 = vunpack.c.h.b16 %v3958
        %v4207 = vunpack.c.l.b16 %v3959
        %v4208 = vunpack.c.h.b16 %v3959
        %v4209 = vunpack.c.l.b16 %v3960
        %v4210 = vunpack.c.h.b16 %v3960
        %v4211 = vunpack.c.l.b16 %v3961
        %v4212 = vunpack.c.h.b16 %v3961
        %v4213 = vunpack.c.l.b16 %v3962
        %v4214 = vunpack.c.h.b16 %v3962
        %v4215 = vunpack.c.l.b16 %v3963
        %v4216 = vunpack.c.h.b16 %v3963
        %v4217 = vunpack.c.l.b16 %v3964
        %v4218 = vunpack.c.h.b16 %v3964
        %v4219 = vunpack.c.l.b16 %v3965
        %v4220 = vunpack.c.h.b16 %v3965
        %v4221 = vunpack.c.l.b16 %v3966
        %v4222 = vunpack.c.h.b16 %v3966
        %v4223 = vunpack.c.l.b16 %v3967
        %v4224 = vunpack.c.h.b16 %v3967
        %v4225 = vunpack.c.l.b16 %v3968
        %v4226 = vunpack.c.h.b16 %v3968
        %v4227 = vunpack.c.l.b16 %v3969
        %v4228 = vunpack.c.h.b16 %v3969
        %v4229 = vunpack.c.l.b16 %v3970
        %v4230 = vunpack.c.h.b16 %v3970
        %v4231 = vunpack.c.l.b16 %v3971
        %v4232 = vunpack.c.h.b16 %v3971
        %v4233 = vunpack.c.l.b16 %v3972
        %v4234 = vunpack.c.h.b16 %v3972
        %v4235 = vunpack.c.l.b16 %v3973
        %v4236 = vunpack.c.h.b16 %v3973
        %v4237 = vunpack.c.l.b16 %v3974
        %v4238 = vunpack.c.h.b16 %v3974
        %v4239 = vunpack.c.l.b16 %v3975
        %v4240 = vunpack.c.h.b16 %v3975
        %v4241 = vunpack.c.l.b16 %v3976
        %v4242 = vunpack.c.h.b16 %v3976
        %v4243 = vunpack.c.l.b16 %v3977
        %v4244 = vunpack.c.h.b16 %v3977
        %v4245 = vunpack.c.l.b16 %v3978
        %v4246 = vunpack.c.h.b16 %v3978
        %v4247 = vunpack.c.l.b16 %v3979
        %v4248 = vunpack.c.h.b16 %v3979
        %v4249 = vunpack.c.l.b16 %v3980
        %v4250 = vunpack.c.h.b16 %v3980
        %v4251 = vunpack.c.l.b16 %v3981
        %v4252 = vunpack.c.h.b16 %v3981
        %v4253 = vunpack.c.l.b16 %v3982
        %v4254 = vunpack.c.h.b16 %v3982
        %v4255 = vunpack.c.l.b16 %v3983
        %v4256 = vunpack.c.h.b16 %v3983
        %v4257 = vunpack.c.l.b16 %v3984
        %v4258 = vunpack.c.h.b16 %v3984
        %v4259 = vunpack.c.l.b16 %v3985
        %v4260 = vunpack.c.h.b16 %v3985
        %v4261 = vunpack.c.l.b16 %v3986
        %v4262 = vunpack.c.h.b16 %v3986
        %v4263 = vunpack.c.l.b16 %v3987
        %v4264 = vunpack.c.h.b16 %v3987
        %v4265 = vunpack.c.l.b16 %v3988
        %v4266 = vunpack.c.h.b16 %v3988
        %v4267 = vunpack.c.l.b16 %v3989
        %v4268 = vunpack.c.h.b16 %v3989
        %v4269 = vunpack.c.l.b16 %v3990
        %v4270 = vunpack.c.h.b16 %v3990
        %v4271 = vunpack.c.l.b16 %v3991
        %v4272 = vunpack.c.h.b16 %v3991
        %v4273 = vunpack.c.l.b16 %v3992
        %v4274 = vunpack.c.h.b16 %v3992
        %v4275 = vunpack.c.l.b16 %v3993
        %v4276 = vunpack.c.h.b16 %v3993
        %v4277 = vunpack.c.l.b16 %v3994
        %v4278 = vunpack.c.h.b16 %v3994
        %v4279 = vunpack.c.l.b16 %v3995
        %v4280 = vunpack.c.h.b16 %v3995
        %v4281 = vunpack.c.l.b16 %v3996
        %v4282 = vunpack.c.h.b16 %v3996
        %v4283 = vunpack.c.l.b16 %v3997
        %v4284 = vunpack.c.h.b16 %v3997
        %v4285 = vunpack.c.l.b16 %v3998
        %v4286 = vunpack.c.h.b16 %v3998
        %v4287 = vpack.c.b16 %v4097, %v4095
        %v4288 = vpack.c.b16 %v4098, %v4096
        %v4289 = vpack.c.b16 %v4101, %v4099
        %v4290 = vpack.c.b16 %v4102, %v4100
        %v4291 = vpack.c.b16 %v4105, %v4103
        %v4292 = vpack.c.b16 %v4106, %v4104
        %v4293 = vpack.c.b16 %v4109, %v4107
        %v4294 = vpack.c.b16 %v4110, %v4108
        %v4295 = vpack.c.b16 %v4113, %v4111
        %v4296 = vpack.c.b16 %v4114, %v4112
        %v4297 = vpack.c.b16 %v4117, %v4115
        %v4298 = vpack.c.b16 %v4118, %v4116
        %v4299 = vpack.c.b16 %v4121, %v4119
        %v4300 = vpack.c.b16 %v4122, %v4120
        %v4301 = vpack.c.b16 %v4125, %v4123
        %v4302 = vpack.c.b16 %v4126, %v4124
        %v4303 = vpack.c.b16 %v4129, %v4127
        %v4304 = vpack.c.b16 %v4130, %v4128
        %v4305 = vpack.c.b16 %v4133, %v4131
        %v4306 = vpack.c.b16 %v4134, %v4132
        %v4307 = vpack.c.b16 %v4137, %v4135
        %v4308 = vpack.c.b16 %v4138, %v4136
        %v4309 = vpack.c.b16 %v4141, %v4139
        %v4310 = vpack.c.b16 %v4142, %v4140
        %v4311 = vpack.c.b16 %v4145, %v4143
        %v4312 = vpack.c.b16 %v4146, %v4144
        %v4313 = vpack.c.b16 %v4149, %v4147
        %v4314 = vpack.c.b16 %v4150, %v4148
        %v4315 = vpack.c.b16 %v4153, %v4151
        %v4316 = vpack.c.b16 %v4154, %v4152
        %v4317 = vpack.c.b16 %v4157, %v4155
        %v4318 = vpack.c.b16 %v4158, %v4156
        %v4319 = vpack.c.b16 %v4161, %v4159
        %v4320 = vpack.c.b16 %v4162, %v4160
        %v4321 = vpack.c.b16 %v4165, %v4163
        %v4322 = vpack.c.b16 %v4166, %v4164
        %v4323 = vpack.c.b16 %v4169, %v4167
        %v4324 = vpack.c.b16 %v4170, %v4168
        %v4325 = vpack.c.b16 %v4173, %v4171
        %v4326 = vpack.c.b16 %v4174, %v4172
        %v4327 = vpack.c.b16 %v4177, %v4175
        %v4328 = vpack.c.b16 %v4178, %v4176
        %v4329 = vpack.c.b16 %v4181, %v4179
        %v4330 = vpack.c.b16 %v4182, %v4180
        %v4331 = vpack.c.b16 %v4185, %v4183
        %v4332 = vpack.c.b16 %v4186, %v4184
        %v4333 = vpack.c.b16 %v4189, %v4187
        %v4334 = vpack.c.b16 %v4190, %v4188
        %v4335 = vpack.c.b16 %v4193, %v4191
        %v4336 = vpack.c.b16 %v4194, %v4192
        %v4337 = vpack.c.b16 %v4197, %v4195
        %v4338 = vpack.c.b16 %v4198, %v4196
        %v4339 = vpack.c.b16 %v4201, %v4199
        %v4340 = vpack.c.b16 %v4202, %v4200
        %v4341 = vpack.c.b16 %v4205, %v4203
        %v4342 = vpack.c.b16 %v4206, %v4204
        %v4343 = vpack.c.b16 %v4209, %v4207
        %v4344 = vpack.c.b16 %v4210, %v4208
        %v4345 = vpack.c.b16 %v4213, %v4211
        %v4346 = vpack.c.b16 %v4214, %v4212
        %v4347 = vpack.c.b16 %v4217, %v4215
        %v4348 = vpack.c.b16 %v4218, %v4216
        %v4349 = vpack.c.b16 %v4221, %v4219
        %v4350 = vpack.c.b16 %v4222, %v4220
        %v4351 = vpack.c.b16 %v4225, %v4223
        %v4352 = vpack.c.b16 %v4226, %v4224
        %v4353 = vpack.c.b16 %v4229, %v4227
        %v4354 = vpack.c.b16 %v4230, %v4228
        %v4355 = vpack.c.b16 %v4233, %v4231
        %v4356 = vpack.c.b16 %v4234, %v4232
        %v4357 = vpack.c.b16 %v4237, %v4235
        %v4358 = vpack.c.b16 %v4238, %v4236
        %v4359 = vpack.c.b16 %v4241, %v4239
        %v4360 = vpack.c.b16 %v4242, %v4240
        %v4361 = vpack.c.b16 %v4245, %v4243
        %v4362 = vpack.c.b16 %v4246, %v4244
        %v4363 = vpack.c.b16 %v4249, %v4247
        %v4364 = vpack.c.b16 %v4250, %v4248
        %v4365 = vpack.c.b16 %v4253, %v4251
        %v4366 = vpack.c.b16 %v4254, %v4252
        %v4367 = vpack.c.b16 %v4257, %v4255
        %v4368 = vpack.c.b16 %v4258, %v4256
        %v4369 = vpack.c.b16 %v4261, %v4259
        %v4370 = vpack.c.b16 %v4262, %v4260
        %v4371 = vpack.c.b16 %v4265, %v4263
        %v4372 = vpack.c.b16 %v4266, %v4264
        %v4373 = vpack.c.b16 %v4269, %v4267
        %v4374 = vpack.c.b16 %v4270, %v4268
        %v4375 = vpack.c.b16 %v4273, %v4271
        %v4376 = vpack.c.b16 %v4274, %v4272
        %v4377 = vpack.c.b16 %v4277, %v4275
        %v4378 = vpack.c.b16 %v4278, %v4276
        %v4379 = vpack.c.b16 %v4281, %v4279
        %v4380 = vpack.c.b16 %v4282, %v4280
        %v4381 = vpack.c.b16 %v4285, %v4283
        %v4382 = vpack.c.b16 %v4286, %v4284
        %v4480 = vperm.slane %v1229, 0
        %v4481 = vperm.slane %v1229, 1
        %4484 = vmatpush.bf16.msra.mxu0 %v4301
        %4485 = vmatpush.bf16.msra.mxu0 %v4299
        %4486 = vmatpush.bf16.msra.mxu0 %v4297
        %4487 = vmatpush.bf16.msra.mxu0 %v4295
        %4488 = vmatpush.bf16.msra.mxu0 %v4293
        %4489 = vmatpush.bf16.msra.mxu0 %v4291
        %4490 = vmatpush.bf16.msra.mxu0 %v4289
        %4491 = vmatpush.bf16.msra.mxu0 %v4287
        %4492 = vmatmul.bf16.gmra.mxu0 0
        %v4493 = vpop.f32.mrf.mxu0
        %v4494 = vadd.f32 %v4480, %v4493
        %v4495 = vpop.f32.mrf.mxu0
        %4496 = vdwg.mxu0
        %4497 = vmatpush.bf16.msra.mxu0 %v4317
        %4498 = vmatpush.bf16.msra.mxu0 %v4315
        %4499 = vmatpush.bf16.msra.mxu0 %v4313
        %4500 = vmatpush.bf16.msra.mxu0 %v4311
        %4501 = vmatpush.bf16.msra.mxu0 %v4309
        %4502 = vmatpush.bf16.msra.mxu0 %v4307
        %4503 = vmatpush.bf16.msra.mxu0 %v4305
        %4504 = vmatpush.bf16.msra.mxu0 %v4303
        %4505 = vmatmul.bf16.gmra.mxu0 0
        %v4506 = vpop.f32.mrf.mxu0
        %v4507 = vadd.f32 %v4494, %v4506
        %v4508 = vpop.f32.mrf.mxu0
        %4509 = vdwg.mxu0
        %4510 = vmatpush.bf16.msra.mxu0 %v4333
        %4511 = vmatpush.bf16.msra.mxu0 %v4331
        %4512 = vmatpush.bf16.msra.mxu0 %v4329
        %4513 = vmatpush.bf16.msra.mxu0 %v4327
        %4514 = vmatpush.bf16.msra.mxu0 %v4325
        %4515 = vmatpush.bf16.msra.mxu0 %v4323
        %4516 = vmatpush.bf16.msra.mxu0 %v4321
        %4517 = vmatpush.bf16.msra.mxu0 %v4319
        %4518 = vmatmul.bf16.gmra.mxu0 %v3899
        %v4519 = vpop.f32.mrf.mxu0
        %v4520 = vadd.f32 %v4507, %v4519
        %v4521 = vpop.f32.mrf.mxu0
        %4522 = vdwg.mxu0
        %4523 = vmatpush.bf16.msra.mxu0 %v4349
        %4524 = vmatpush.bf16.msra.mxu0 %v4347
        %4525 = vmatpush.bf16.msra.mxu0 %v4345
        %4526 = vmatpush.bf16.msra.mxu0 %v4343
        %4527 = vmatpush.bf16.msra.mxu0 %v4341
        %4528 = vmatpush.bf16.msra.mxu0 %v4339
        %4529 = vmatpush.bf16.msra.mxu0 %v4337
        %4530 = vmatpush.bf16.msra.mxu0 %v4335
        %4531 = vmatmul.bf16.gmra.mxu0 %v3900
        %v4532 = vpop.f32.mrf.mxu0
        %v4533 = vadd.f32 %v4520, %v4532
        %v4534 = vpop.f32.mrf.mxu0
        %4535 = vdwg.mxu0
        %4536 = vmatpush.bf16.msra.mxu0 %v4365
        %4537 = vmatpush.bf16.msra.mxu0 %v4363
        %4538 = vmatpush.bf16.msra.mxu0 %v4361
        %4539 = vmatpush.bf16.msra.mxu0 %v4359
        %4540 = vmatpush.bf16.msra.mxu0 %v4357
        %4541 = vmatpush.bf16.msra.mxu0 %v4355
        %4542 = vmatpush.bf16.msra.mxu0 %v4353
        %4543 = vmatpush.bf16.msra.mxu0 %v4351
        %4544 = vmatmul.bf16.gmra.mxu0 0
        %v4545 = vpop.f32.mrf.mxu0
        %v4546 = vadd.f32 %v4533, %v4545
        %v4547 = vpop.f32.mrf.mxu0
        %4548 = vdwg.mxu0
        %4549 = vmatpush.bf16.msra.mxu0 %v4381
        %4550 = vmatpush.bf16.msra.mxu0 %v4379
        %4551 = vmatpush.bf16.msra.mxu0 %v4377
        %4552 = vmatpush.bf16.msra.mxu0 %v4375
        %4553 = vmatpush.bf16.msra.mxu0 %v4373
        %4554 = vmatpush.bf16.msra.mxu0 %v4371
        %4555 = vmatpush.bf16.msra.mxu0 %v4369
        %4556 = vmatpush.bf16.msra.mxu0 %v4367
        %4557 = vmatmul.bf16.gmra.mxu0 0
        %v4558 = vpop.f32.mrf.mxu0
        %v4559 = vadd.f32 %v4546, %v4558
        %v4560 = vpop.f32.mrf.mxu0
        %4561 = vdwg.mxu0
        %4562 = vmatpush.bf16.msra.mxu0 %v4302
        %4563 = vmatpush.bf16.msra.mxu0 %v4300
        %4564 = vmatpush.bf16.msra.mxu0 %v4298
        %4565 = vmatpush.bf16.msra.mxu0 %v4296
        %4566 = vmatpush.bf16.msra.mxu0 %v4294
        %4567 = vmatpush.bf16.msra.mxu0 %v4292
        %4568 = vmatpush.bf16.msra.mxu0 %v4290
        %4569 = vmatpush.bf16.msra.mxu0 %v4288
        %4570 = vmatmul.bf16.gmra.mxu0 0
        %v4571 = vpop.f32.mrf.mxu0
        %v4572 = vadd.f32 %v4481, %v4571
        %v4573 = vpop.f32.mrf.mxu0
        %4574 = vdwg.mxu0
        %4575 = vmatpush.bf16.msra.mxu0 %v4318
        %4576 = vmatpush.bf16.msra.mxu0 %v4316
        %4577 = vmatpush.bf16.msra.mxu0 %v4314
        %4578 = vmatpush.bf16.msra.mxu0 %v4312
        %4579 = vmatpush.bf16.msra.mxu0 %v4310
        %4580 = vmatpush.bf16.msra.mxu0 %v4308
        %4581 = vmatpush.bf16.msra.mxu0 %v4306
        %4582 = vmatpush.bf16.msra.mxu0 %v4304
        %4583 = vmatmul.bf16.gmra.mxu0 0
        %v4584 = vpop.f32.mrf.mxu0
        %v4585 = vadd.f32 %v4572, %v4584
        %v4586 = vpop.f32.mrf.mxu0
        %4587 = vdwg.mxu0
        %4588 = vmatpush.bf16.msra.mxu0 %v4334
        %4589 = vmatpush.bf16.msra.mxu0 %v4332
        %4590 = vmatpush.bf16.msra.mxu0 %v4330
        %4591 = vmatpush.bf16.msra.mxu0 %v4328
        %4592 = vmatpush.bf16.msra.mxu0 %v4326
        %4593 = vmatpush.bf16.msra.mxu0 %v4324
        %4594 = vmatpush.bf16.msra.mxu0 %v4322
        %4595 = vmatpush.bf16.msra.mxu0 %v4320
        %4596 = vmatmul.bf16.gmra.mxu0 %v3899
        %v4597 = vpop.f32.mrf.mxu0
        %v4598 = vadd.f32 %v4585, %v4597
        %v4599 = vpop.f32.mrf.mxu0
        %4600 = vdwg.mxu0
        %4601 = vmatpush.bf16.msra.mxu0 %v4350
        %4602 = vmatpush.bf16.msra.mxu0 %v4348
        %4603 = vmatpush.bf16.msra.mxu0 %v4346
        %4604 = vmatpush.bf16.msra.mxu0 %v4344
        %4605 = vmatpush.bf16.msra.mxu0 %v4342
        %4606 = vmatpush.bf16.msra.mxu0 %v4340
        %4607 = vmatpush.bf16.msra.mxu0 %v4338
        %4608 = vmatpush.bf16.msra.mxu0 %v4336
        %4609 = vmatmul.bf16.gmra.mxu0 %v3900
        %v4610 = vpop.f32.mrf.mxu0
        %v4611 = vadd.f32 %v4598, %v4610
        %v4612 = vpop.f32.mrf.mxu0
        %4613 = vdwg.mxu0
        %4614 = vmatpush.bf16.msra.mxu0 %v4366
        %4615 = vmatpush.bf16.msra.mxu0 %v4364
        %4616 = vmatpush.bf16.msra.mxu0 %v4362
        %4617 = vmatpush.bf16.msra.mxu0 %v4360
        %4618 = vmatpush.bf16.msra.mxu0 %v4358
        %4619 = vmatpush.bf16.msra.mxu0 %v4356
        %4620 = vmatpush.bf16.msra.mxu0 %v4354
        %4621 = vmatpush.bf16.msra.mxu0 %v4352
        %4622 = vmatmul.bf16.gmra.mxu0 0
        %v4623 = vpop.f32.mrf.mxu0
        %v4624 = vadd.f32 %v4611, %v4623
        %v4625 = vpop.f32.mrf.mxu0
        %4626 = vdwg.mxu0
        %4627 = vmatpush.bf16.msra.mxu0 %v4382
        %4628 = vmatpush.bf16.msra.mxu0 %v4380
        %4629 = vmatpush.bf16.msra.mxu0 %v4378
        %4630 = vmatpush.bf16.msra.mxu0 %v4376
        %4631 = vmatpush.bf16.msra.mxu0 %v4374
        %4632 = vmatpush.bf16.msra.mxu0 %v4372
        %4633 = vmatpush.bf16.msra.mxu0 %v4370
        %4634 = vmatpush.bf16.msra.mxu0 %v4368
        %4635 = vmatmul.bf16.gmra.mxu0 0
        %v4636 = vpop.f32.mrf.mxu0
        %v4637 = vadd.f32 %v4624, %v4636
        %v4638 = vpop.f32.mrf.mxu0
        %4639 = vdwg.mxu0
        %v4640 = vadd.f32 %v4559, %v3879
        %v4641 = vadd.f32 %v4637, %v3892
        %v4642 = vmax.f32 %v4640, 0.0
        %v4643 = vmax.f32 %v4641, 0.0
        %v4644 = vpack.c.bf16 %v4643, %v4642
        %v4646 = vunpack.c.l.b16 %v4644
        %v4647 = vunpack.c.h.b16 %v4644
        %v4648 = vpack.c.b16 %v4646, %v4646
        %v4649 = vpack.c.b16 %v4647, %v4647
        %v4652 = vld [vmem:[%s69] sm:$0xff]
        %v4653 = vld [vmem:[%s69 + $0x8] sm:$0xff]
        %v4654 = vld [vmem:[%s69 + $0x10] sm:$0xff]
        %v4655 = vld [vmem:[%s69 + $0x18] sm:$0xff]
        %v4656 = vld [vmem:[%s69 + $0x20] sm:$0xff]
        %v4657 = vld [vmem:[%s69 + $0x28] sm:$0xff]
        %v4658 = vld [vmem:[%s69 + $0x30] sm:$0xff]
        %v4659 = vld [vmem:[%s69 + $0x38] sm:$0xff]
        %v4660 = vld [vmem:[%s69 + $0x40] sm:$0xff]
        %v4661 = vld [vmem:[%s69 + $0x48] sm:$0xff]
        %v4662 = vld [vmem:[%s69 + $0x50] sm:$0xff]
        %v4663 = vld [vmem:[%s69 + $0x58] sm:$0xff]
        %v4664 = vld [vmem:[%s69 + $0x60] sm:$0xff]
        %v4665 = vld [vmem:[%s69 + $0x68] sm:$0xff]
        %v4666 = vld [vmem:[%s69 + $0x70] sm:$0xff]
        %v4667 = vld [vmem:[%s69 + $0x78] sm:$0xff]
        %v4668 = vld [vmem:[%s69 + $0x80] sm:$0xff]
        %v4669 = vld [vmem:[%s69 + $0x88] sm:$0xff]
        %v4670 = vld [vmem:[%s69 + $0x90] sm:$0xff]
        %v4671 = vld [vmem:[%s69 + $0x98] sm:$0xff]
        %v4672 = vld [vmem:[%s69 + $0xa0] sm:$0xff]
        %v4673 = vld [vmem:[%s69 + $0xa8] sm:$0xff]
        %v4674 = vld [vmem:[%s69 + $0xb0] sm:$0xff]
        %v4675 = vld [vmem:[%s69 + $0xb8] sm:$0xff]
        %v4676 = vld [vmem:[%s69 + $0xc0] sm:$0xff]
        %v4677 = vld [vmem:[%s69 + $0xc8] sm:$0xff]
        %v4678 = vld [vmem:[%s69 + $0xd0] sm:$0xff]
        %v4679 = vld [vmem:[%s69 + $0xd8] sm:$0xff]
        %v4680 = vld [vmem:[%s69 + $0xe0] sm:$0xff]
        %v4681 = vld [vmem:[%s69 + $0xe8] sm:$0xff]
        %v4682 = vld [vmem:[%s69 + $0xf0] sm:$0xff]
        %v4683 = vld [vmem:[%s69 + $0xf8] sm:$0xff]
        %v4684 = vld [vmem:[%s69 + $0x100] sm:$0xff]
        %v4685 = vld [vmem:[%s69 + $0x108] sm:$0xff]
        %v4686 = vld [vmem:[%s69 + $0x110] sm:$0xff]
        %v4687 = vld [vmem:[%s69 + $0x118] sm:$0xff]
        %v4688 = vld [vmem:[%s69 + $0x120] sm:$0xff]
        %v4689 = vld [vmem:[%s69 + $0x128] sm:$0xff]
        %v4690 = vld [vmem:[%s69 + $0x130] sm:$0xff]
        %v4691 = vld [vmem:[%s69 + $0x138] sm:$0xff]
        %v4692 = vld [vmem:[%s69 + $0x140] sm:$0xff]
        %v4693 = vld [vmem:[%s69 + $0x148] sm:$0xff]
        %v4694 = vld [vmem:[%s69 + $0x150] sm:$0xff]
        %v4695 = vld [vmem:[%s69 + $0x158] sm:$0xff]
        %v4696 = vld [vmem:[%s69 + $0x160] sm:$0xff]
        %v4697 = vld [vmem:[%s69 + $0x168] sm:$0xff]
        %v4698 = vld [vmem:[%s69 + $0x170] sm:$0xff]
        %v4699 = vld [vmem:[%s69 + $0x178] sm:$0xff]
        %v4700 = vld [vmem:[%s69 + $0x180] sm:$0xff]
        %v4701 = vld [vmem:[%s69 + $0x188] sm:$0xff]
        %v4702 = vld [vmem:[%s69 + $0x190] sm:$0xff]
        %v4703 = vld [vmem:[%s69 + $0x198] sm:$0xff]
        %v4704 = vld [vmem:[%s69 + $0x1a0] sm:$0xff]
        %v4705 = vld [vmem:[%s69 + $0x1a8] sm:$0xff]
        %v4706 = vld [vmem:[%s69 + $0x1b0] sm:$0xff]
        %v4707 = vld [vmem:[%s69 + $0x1b8] sm:$0xff]
        %v4708 = vld [vmem:[%s69 + $0x1c0] sm:$0xff]
        %v4709 = vld [vmem:[%s69 + $0x1c8] sm:$0xff]
        %v4710 = vld [vmem:[%s69 + $0x1d0] sm:$0xff]
        %v4711 = vld [vmem:[%s69 + $0x1d8] sm:$0xff]
        %v4712 = vld [vmem:[%s69 + $0x1e0] sm:$0xff]
        %v4713 = vld [vmem:[%s69 + $0x1e8] sm:$0xff]
        %v4714 = vld [vmem:[%s69 + $0x1f0] sm:$0xff]
        %v4715 = vld [vmem:[%s69 + $0x1f8] sm:$0xff]
        %v4716 = vld [vmem:[%s69 + $0x200] sm:$0xff]
        %v4717 = vld [vmem:[%s69 + $0x208] sm:$0xff]
        %v4718 = vld [vmem:[%s69 + $0x210] sm:$0xff]
        %v4719 = vld [vmem:[%s69 + $0x218] sm:$0xff]
        %v4720 = vld [vmem:[%s69 + $0x220] sm:$0xff]
        %v4721 = vld [vmem:[%s69 + $0x228] sm:$0xff]
        %v4722 = vld [vmem:[%s69 + $0x230] sm:$0xff]
        %v4723 = vld [vmem:[%s69 + $0x238] sm:$0xff]
        %v4724 = vld [vmem:[%s69 + $0x240] sm:$0xff]
        %v4725 = vld [vmem:[%s69 + $0x248] sm:$0xff]
        %v4726 = vld [vmem:[%s69 + $0x250] sm:$0xff]
        %v4727 = vld [vmem:[%s69 + $0x258] sm:$0xff]
        %v4728 = vld [vmem:[%s69 + $0x260] sm:$0xff]
        %v4729 = vld [vmem:[%s69 + $0x268] sm:$0xff]
        %v4730 = vld [vmem:[%s69 + $0x270] sm:$0xff]
        %v4731 = vld [vmem:[%s69 + $0x278] sm:$0xff]
        %v4732 = vld [vmem:[%s69 + $0x280] sm:$0xff]
        %v4733 = vld [vmem:[%s69 + $0x288] sm:$0xff]
        %v4734 = vld [vmem:[%s69 + $0x290] sm:$0xff]
        %v4735 = vld [vmem:[%s69 + $0x298] sm:$0xff]
        %v4736 = vld [vmem:[%s69 + $0x2a0] sm:$0xff]
        %v4737 = vld [vmem:[%s69 + $0x2a8] sm:$0xff]
        %v4738 = vld [vmem:[%s69 + $0x2b0] sm:$0xff]
        %v4739 = vld [vmem:[%s69 + $0x2b8] sm:$0xff]
        %v4740 = vld [vmem:[%s69 + $0x2c0] sm:$0xff]
        %v4741 = vld [vmem:[%s69 + $0x2c8] sm:$0xff]
        %v4742 = vld [vmem:[%s69 + $0x2d0] sm:$0xff]
        %v4743 = vld [vmem:[%s69 + $0x2d8] sm:$0xff]
        %v4744 = vld [vmem:[%s69 + $0x2e0] sm:$0xff]
        %v4745 = vld [vmem:[%s69 + $0x2e8] sm:$0xff]
        %v4746 = vld [vmem:[%s69 + $0x2f0] sm:$0xff]
        %v4747 = vld [vmem:[%s69 + $0x2f8] sm:$0xff]
        %v4844 = vunpack.c.l.b16 %v4652
        %v4845 = vunpack.c.h.b16 %v4652
        %v4846 = vunpack.c.l.b16 %v4653
        %v4847 = vunpack.c.h.b16 %v4653
        %v4848 = vunpack.c.l.b16 %v4654
        %v4849 = vunpack.c.h.b16 %v4654
        %v4850 = vunpack.c.l.b16 %v4655
        %v4851 = vunpack.c.h.b16 %v4655
        %v4852 = vunpack.c.l.b16 %v4656
        %v4853 = vunpack.c.h.b16 %v4656
        %v4854 = vunpack.c.l.b16 %v4657
        %v4855 = vunpack.c.h.b16 %v4657
        %v4856 = vunpack.c.l.b16 %v4658
        %v4857 = vunpack.c.h.b16 %v4658
        %v4858 = vunpack.c.l.b16 %v4659
        %v4859 = vunpack.c.h.b16 %v4659
        %v4860 = vunpack.c.l.b16 %v4660
        %v4861 = vunpack.c.h.b16 %v4660
        %v4862 = vunpack.c.l.b16 %v4661
        %v4863 = vunpack.c.h.b16 %v4661
        %v4864 = vunpack.c.l.b16 %v4662
        %v4865 = vunpack.c.h.b16 %v4662
        %v4866 = vunpack.c.l.b16 %v4663
        %v4867 = vunpack.c.h.b16 %v4663
        %v4868 = vunpack.c.l.b16 %v4664
        %v4869 = vunpack.c.h.b16 %v4664
        %v4870 = vunpack.c.l.b16 %v4665
        %v4871 = vunpack.c.h.b16 %v4665
        %v4872 = vunpack.c.l.b16 %v4666
        %v4873 = vunpack.c.h.b16 %v4666
        %v4874 = vunpack.c.l.b16 %v4667
        %v4875 = vunpack.c.h.b16 %v4667
        %v4876 = vunpack.c.l.b16 %v4668
        %v4877 = vunpack.c.h.b16 %v4668
        %v4878 = vunpack.c.l.b16 %v4669
        %v4879 = vunpack.c.h.b16 %v4669
        %v4880 = vunpack.c.l.b16 %v4670
        %v4881 = vunpack.c.h.b16 %v4670
        %v4882 = vunpack.c.l.b16 %v4671
        %v4883 = vunpack.c.h.b16 %v4671
        %v4884 = vunpack.c.l.b16 %v4672
        %v4885 = vunpack.c.h.b16 %v4672
        %v4886 = vunpack.c.l.b16 %v4673
        %v4887 = vunpack.c.h.b16 %v4673
        %v4888 = vunpack.c.l.b16 %v4674
        %v4889 = vunpack.c.h.b16 %v4674
        %v4890 = vunpack.c.l.b16 %v4675
        %v4891 = vunpack.c.h.b16 %v4675
        %v4892 = vunpack.c.l.b16 %v4676
        %v4893 = vunpack.c.h.b16 %v4676
        %v4894 = vunpack.c.l.b16 %v4677
        %v4895 = vunpack.c.h.b16 %v4677
        %v4896 = vunpack.c.l.b16 %v4678
        %v4897 = vunpack.c.h.b16 %v4678
        %v4898 = vunpack.c.l.b16 %v4679
        %v4899 = vunpack.c.h.b16 %v4679
        %v4900 = vunpack.c.l.b16 %v4680
        %v4901 = vunpack.c.h.b16 %v4680
        %v4902 = vunpack.c.l.b16 %v4681
        %v4903 = vunpack.c.h.b16 %v4681
        %v4904 = vunpack.c.l.b16 %v4682
        %v4905 = vunpack.c.h.b16 %v4682
        %v4906 = vunpack.c.l.b16 %v4683
        %v4907 = vunpack.c.h.b16 %v4683
        %v4908 = vunpack.c.l.b16 %v4684
        %v4909 = vunpack.c.h.b16 %v4684
        %v4910 = vunpack.c.l.b16 %v4685
        %v4911 = vunpack.c.h.b16 %v4685
        %v4912 = vunpack.c.l.b16 %v4686
        %v4913 = vunpack.c.h.b16 %v4686
        %v4914 = vunpack.c.l.b16 %v4687
        %v4915 = vunpack.c.h.b16 %v4687
        %v4916 = vunpack.c.l.b16 %v4688
        %v4917 = vunpack.c.h.b16 %v4688
        %v4918 = vunpack.c.l.b16 %v4689
        %v4919 = vunpack.c.h.b16 %v4689
        %v4920 = vunpack.c.l.b16 %v4690
        %v4921 = vunpack.c.h.b16 %v4690
        %v4922 = vunpack.c.l.b16 %v4691
        %v4923 = vunpack.c.h.b16 %v4691
        %v4924 = vunpack.c.l.b16 %v4692
        %v4925 = vunpack.c.h.b16 %v4692
        %v4926 = vunpack.c.l.b16 %v4693
        %v4927 = vunpack.c.h.b16 %v4693
        %v4928 = vunpack.c.l.b16 %v4694
        %v4929 = vunpack.c.h.b16 %v4694
        %v4930 = vunpack.c.l.b16 %v4695
        %v4931 = vunpack.c.h.b16 %v4695
        %v4932 = vunpack.c.l.b16 %v4696
        %v4933 = vunpack.c.h.b16 %v4696
        %v4934 = vunpack.c.l.b16 %v4697
        %v4935 = vunpack.c.h.b16 %v4697
        %v4936 = vunpack.c.l.b16 %v4698
        %v4937 = vunpack.c.h.b16 %v4698
        %v4938 = vunpack.c.l.b16 %v4699
        %v4939 = vunpack.c.h.b16 %v4699
        %v4940 = vunpack.c.l.b16 %v4700
        %v4941 = vunpack.c.h.b16 %v4700
        %v4942 = vunpack.c.l.b16 %v4701
        %v4943 = vunpack.c.h.b16 %v4701
        %v4944 = vunpack.c.l.b16 %v4702
        %v4945 = vunpack.c.h.b16 %v4702
        %v4946 = vunpack.c.l.b16 %v4703
        %v4947 = vunpack.c.h.b16 %v4703
        %v4948 = vunpack.c.l.b16 %v4704
        %v4949 = vunpack.c.h.b16 %v4704
        %v4950 = vunpack.c.l.b16 %v4705
        %v4951 = vunpack.c.h.b16 %v4705
        %v4952 = vunpack.c.l.b16 %v4706
        %v4953 = vunpack.c.h.b16 %v4706
        %v4954 = vunpack.c.l.b16 %v4707
        %v4955 = vunpack.c.h.b16 %v4707
        %v4956 = vunpack.c.l.b16 %v4708
        %v4957 = vunpack.c.h.b16 %v4708
        %v4958 = vunpack.c.l.b16 %v4709
        %v4959 = vunpack.c.h.b16 %v4709
        %v4960 = vunpack.c.l.b16 %v4710
        %v4961 = vunpack.c.h.b16 %v4710
        %v4962 = vunpack.c.l.b16 %v4711
        %v4963 = vunpack.c.h.b16 %v4711
        %v4964 = vunpack.c.l.b16 %v4712
        %v4965 = vunpack.c.h.b16 %v4712
        %v4966 = vunpack.c.l.b16 %v4713
        %v4967 = vunpack.c.h.b16 %v4713
        %v4968 = vunpack.c.l.b16 %v4714
        %v4969 = vunpack.c.h.b16 %v4714
        %v4970 = vunpack.c.l.b16 %v4715
        %v4971 = vunpack.c.h.b16 %v4715
        %v4972 = vunpack.c.l.b16 %v4716
        %v4973 = vunpack.c.h.b16 %v4716
        %v4974 = vunpack.c.l.b16 %v4717
        %v4975 = vunpack.c.h.b16 %v4717
        %v4976 = vunpack.c.l.b16 %v4718
        %v4977 = vunpack.c.h.b16 %v4718
        %v4978 = vunpack.c.l.b16 %v4719
        %v4979 = vunpack.c.h.b16 %v4719
        %v4980 = vunpack.c.l.b16 %v4720
        %v4981 = vunpack.c.h.b16 %v4720
        %v4982 = vunpack.c.l.b16 %v4721
        %v4983 = vunpack.c.h.b16 %v4721
        %v4984 = vunpack.c.l.b16 %v4722
        %v4985 = vunpack.c.h.b16 %v4722
        %v4986 = vunpack.c.l.b16 %v4723
        %v4987 = vunpack.c.h.b16 %v4723
        %v4988 = vunpack.c.l.b16 %v4724
        %v4989 = vunpack.c.h.b16 %v4724
        %v4990 = vunpack.c.l.b16 %v4725
        %v4991 = vunpack.c.h.b16 %v4725
        %v4992 = vunpack.c.l.b16 %v4726
        %v4993 = vunpack.c.h.b16 %v4726
        %v4994 = vunpack.c.l.b16 %v4727
        %v4995 = vunpack.c.h.b16 %v4727
        %v4996 = vunpack.c.l.b16 %v4728
        %v4997 = vunpack.c.h.b16 %v4728
        %v4998 = vunpack.c.l.b16 %v4729
        %v4999 = vunpack.c.h.b16 %v4729
        %v5000 = vunpack.c.l.b16 %v4730
        %v5001 = vunpack.c.h.b16 %v4730
        %v5002 = vunpack.c.l.b16 %v4731
        %v5003 = vunpack.c.h.b16 %v4731
        %v5004 = vunpack.c.l.b16 %v4732
        %v5005 = vunpack.c.h.b16 %v4732
        %v5006 = vunpack.c.l.b16 %v4733
        %v5007 = vunpack.c.h.b16 %v4733
        %v5008 = vunpack.c.l.b16 %v4734
        %v5009 = vunpack.c.h.b16 %v4734
        %v5010 = vunpack.c.l.b16 %v4735
        %v5011 = vunpack.c.h.b16 %v4735
        %v5012 = vunpack.c.l.b16 %v4736
        %v5013 = vunpack.c.h.b16 %v4736
        %v5014 = vunpack.c.l.b16 %v4737
        %v5015 = vunpack.c.h.b16 %v4737
        %v5016 = vunpack.c.l.b16 %v4738
        %v5017 = vunpack.c.h.b16 %v4738
        %v5018 = vunpack.c.l.b16 %v4739
        %v5019 = vunpack.c.h.b16 %v4739
        %v5020 = vunpack.c.l.b16 %v4740
        %v5021 = vunpack.c.h.b16 %v4740
        %v5022 = vunpack.c.l.b16 %v4741
        %v5023 = vunpack.c.h.b16 %v4741
        %v5024 = vunpack.c.l.b16 %v4742
        %v5025 = vunpack.c.h.b16 %v4742
        %v5026 = vunpack.c.l.b16 %v4743
        %v5027 = vunpack.c.h.b16 %v4743
        %v5028 = vunpack.c.l.b16 %v4744
        %v5029 = vunpack.c.h.b16 %v4744
        %v5030 = vunpack.c.l.b16 %v4745
        %v5031 = vunpack.c.h.b16 %v4745
        %v5032 = vunpack.c.l.b16 %v4746
        %v5033 = vunpack.c.h.b16 %v4746
        %v5034 = vunpack.c.l.b16 %v4747
        %v5035 = vunpack.c.h.b16 %v4747
        %v5036 = vpack.c.b16 %v4846, %v4844
        %v5037 = vpack.c.b16 %v4847, %v4845
        %v5038 = vpack.c.b16 %v4850, %v4848
        %v5039 = vpack.c.b16 %v4851, %v4849
        %v5040 = vpack.c.b16 %v4854, %v4852
        %v5041 = vpack.c.b16 %v4855, %v4853
        %v5042 = vpack.c.b16 %v4858, %v4856
        %v5043 = vpack.c.b16 %v4859, %v4857
        %v5044 = vpack.c.b16 %v4862, %v4860
        %v5045 = vpack.c.b16 %v4863, %v4861
        %v5046 = vpack.c.b16 %v4866, %v4864
        %v5047 = vpack.c.b16 %v4867, %v4865
        %v5048 = vpack.c.b16 %v4870, %v4868
        %v5049 = vpack.c.b16 %v4871, %v4869
        %v5050 = vpack.c.b16 %v4874, %v4872
        %v5051 = vpack.c.b16 %v4875, %v4873
        %v5052 = vpack.c.b16 %v4878, %v4876
        %v5053 = vpack.c.b16 %v4879, %v4877
        %v5054 = vpack.c.b16 %v4882, %v4880
        %v5055 = vpack.c.b16 %v4883, %v4881
        %v5056 = vpack.c.b16 %v4886, %v4884
        %v5057 = vpack.c.b16 %v4887, %v4885
        %v5058 = vpack.c.b16 %v4890, %v4888
        %v5059 = vpack.c.b16 %v4891, %v4889
        %v5060 = vpack.c.b16 %v4894, %v4892
        %v5061 = vpack.c.b16 %v4895, %v4893
        %v5062 = vpack.c.b16 %v4898, %v4896
        %v5063 = vpack.c.b16 %v4899, %v4897
        %v5064 = vpack.c.b16 %v4902, %v4900
        %v5065 = vpack.c.b16 %v4903, %v4901
        %v5066 = vpack.c.b16 %v4906, %v4904
        %v5067 = vpack.c.b16 %v4907, %v4905
        %v5068 = vpack.c.b16 %v4910, %v4908
        %v5069 = vpack.c.b16 %v4911, %v4909
        %v5070 = vpack.c.b16 %v4914, %v4912
        %v5071 = vpack.c.b16 %v4915, %v4913
        %v5072 = vpack.c.b16 %v4918, %v4916
        %v5073 = vpack.c.b16 %v4919, %v4917
        %v5074 = vpack.c.b16 %v4922, %v4920
        %v5075 = vpack.c.b16 %v4923, %v4921
        %v5076 = vpack.c.b16 %v4926, %v4924
        %v5077 = vpack.c.b16 %v4927, %v4925
        %v5078 = vpack.c.b16 %v4930, %v4928
        %v5079 = vpack.c.b16 %v4931, %v4929
        %v5080 = vpack.c.b16 %v4934, %v4932
        %v5081 = vpack.c.b16 %v4935, %v4933
        %v5082 = vpack.c.b16 %v4938, %v4936
        %v5083 = vpack.c.b16 %v4939, %v4937
        %v5084 = vpack.c.b16 %v4942, %v4940
        %v5085 = vpack.c.b16 %v4943, %v4941
        %v5086 = vpack.c.b16 %v4946, %v4944
        %v5087 = vpack.c.b16 %v4947, %v4945
        %v5088 = vpack.c.b16 %v4950, %v4948
        %v5089 = vpack.c.b16 %v4951, %v4949
        %v5090 = vpack.c.b16 %v4954, %v4952
        %v5091 = vpack.c.b16 %v4955, %v4953
        %v5092 = vpack.c.b16 %v4958, %v4956
        %v5093 = vpack.c.b16 %v4959, %v4957
        %v5094 = vpack.c.b16 %v4962, %v4960
        %v5095 = vpack.c.b16 %v4963, %v4961
        %v5096 = vpack.c.b16 %v4966, %v4964
        %v5097 = vpack.c.b16 %v4967, %v4965
        %v5098 = vpack.c.b16 %v4970, %v4968
        %v5099 = vpack.c.b16 %v4971, %v4969
        %v5100 = vpack.c.b16 %v4974, %v4972
        %v5101 = vpack.c.b16 %v4975, %v4973
        %v5102 = vpack.c.b16 %v4978, %v4976
        %v5103 = vpack.c.b16 %v4979, %v4977
        %v5104 = vpack.c.b16 %v4982, %v4980
        %v5105 = vpack.c.b16 %v4983, %v4981
        %v5106 = vpack.c.b16 %v4986, %v4984
        %v5107 = vpack.c.b16 %v4987, %v4985
        %v5108 = vpack.c.b16 %v4990, %v4988
        %v5109 = vpack.c.b16 %v4991, %v4989
        %v5110 = vpack.c.b16 %v4994, %v4992
        %v5111 = vpack.c.b16 %v4995, %v4993
        %v5112 = vpack.c.b16 %v4998, %v4996
        %v5113 = vpack.c.b16 %v4999, %v4997
        %v5114 = vpack.c.b16 %v5002, %v5000
        %v5115 = vpack.c.b16 %v5003, %v5001
        %v5116 = vpack.c.b16 %v5006, %v5004
        %v5117 = vpack.c.b16 %v5007, %v5005
        %v5118 = vpack.c.b16 %v5010, %v5008
        %v5119 = vpack.c.b16 %v5011, %v5009
        %v5120 = vpack.c.b16 %v5014, %v5012
        %v5121 = vpack.c.b16 %v5015, %v5013
        %v5122 = vpack.c.b16 %v5018, %v5016
        %v5123 = vpack.c.b16 %v5019, %v5017
        %v5124 = vpack.c.b16 %v5022, %v5020
        %v5125 = vpack.c.b16 %v5023, %v5021
        %v5126 = vpack.c.b16 %v5026, %v5024
        %v5127 = vpack.c.b16 %v5027, %v5025
        %v5128 = vpack.c.b16 %v5030, %v5028
        %v5129 = vpack.c.b16 %v5031, %v5029
        %v5130 = vpack.c.b16 %v5034, %v5032
        %v5131 = vpack.c.b16 %v5035, %v5033
        %v5229 = vperm.slane %v1232, 0
        %v5230 = vperm.slane %v1232, 1
        %5233 = vmatpush.bf16.msra.mxu0 %v5050
        %5234 = vmatpush.bf16.msra.mxu0 %v5048
        %5235 = vmatpush.bf16.msra.mxu0 %v5046
        %5236 = vmatpush.bf16.msra.mxu0 %v5044
        %5237 = vmatpush.bf16.msra.mxu0 %v5042
        %5238 = vmatpush.bf16.msra.mxu0 %v5040
        %5239 = vmatpush.bf16.msra.mxu0 %v5038
        %5240 = vmatpush.bf16.msra.mxu0 %v5036
        %5241 = vmatmul.bf16.gmra.mxu0 0
        %v5242 = vpop.f32.mrf.mxu0
        %v5243 = vadd.f32 %v5229, %v5242
        %v5244 = vpop.f32.mrf.mxu0
        %5245 = vdwg.mxu0
        %5246 = vmatpush.bf16.msra.mxu0 %v5066
        %5247 = vmatpush.bf16.msra.mxu0 %v5064
        %5248 = vmatpush.bf16.msra.mxu0 %v5062
        %5249 = vmatpush.bf16.msra.mxu0 %v5060
        %5250 = vmatpush.bf16.msra.mxu0 %v5058
        %5251 = vmatpush.bf16.msra.mxu0 %v5056
        %5252 = vmatpush.bf16.msra.mxu0 %v5054
        %5253 = vmatpush.bf16.msra.mxu0 %v5052
        %5254 = vmatmul.bf16.gmra.mxu0 0
        %v5255 = vpop.f32.mrf.mxu0
        %v5256 = vadd.f32 %v5243, %v5255
        %v5257 = vpop.f32.mrf.mxu0
        %5258 = vdwg.mxu0
        %5259 = vmatpush.bf16.msra.mxu0 %v5082
        %5260 = vmatpush.bf16.msra.mxu0 %v5080
        %5261 = vmatpush.bf16.msra.mxu0 %v5078
        %5262 = vmatpush.bf16.msra.mxu0 %v5076
        %5263 = vmatpush.bf16.msra.mxu0 %v5074
        %5264 = vmatpush.bf16.msra.mxu0 %v5072
        %5265 = vmatpush.bf16.msra.mxu0 %v5070
        %5266 = vmatpush.bf16.msra.mxu0 %v5068
        %5267 = vmatmul.bf16.gmra.mxu0 %v4648
        %v5268 = vpop.f32.mrf.mxu0
        %v5269 = vadd.f32 %v5256, %v5268
        %v5270 = vpop.f32.mrf.mxu0
        %5271 = vdwg.mxu0
        %5272 = vmatpush.bf16.msra.mxu0 %v5098
        %5273 = vmatpush.bf16.msra.mxu0 %v5096
        %5274 = vmatpush.bf16.msra.mxu0 %v5094
        %5275 = vmatpush.bf16.msra.mxu0 %v5092
        %5276 = vmatpush.bf16.msra.mxu0 %v5090
        %5277 = vmatpush.bf16.msra.mxu0 %v5088
        %5278 = vmatpush.bf16.msra.mxu0 %v5086
        %5279 = vmatpush.bf16.msra.mxu0 %v5084
        %5280 = vmatmul.bf16.gmra.mxu0 %v4649
        %v5281 = vpop.f32.mrf.mxu0
        %v5282 = vadd.f32 %v5269, %v5281
        %v5283 = vpop.f32.mrf.mxu0
        %5284 = vdwg.mxu0
        %5285 = vmatpush.bf16.msra.mxu0 %v5114
        %5286 = vmatpush.bf16.msra.mxu0 %v5112
        %5287 = vmatpush.bf16.msra.mxu0 %v5110
        %5288 = vmatpush.bf16.msra.mxu0 %v5108
        %5289 = vmatpush.bf16.msra.mxu0 %v5106
        %5290 = vmatpush.bf16.msra.mxu0 %v5104
        %5291 = vmatpush.bf16.msra.mxu0 %v5102
        %5292 = vmatpush.bf16.msra.mxu0 %v5100
        %5293 = vmatmul.bf16.gmra.mxu0 0
        %v5294 = vpop.f32.mrf.mxu0
        %v5295 = vadd.f32 %v5282, %v5294
        %v5296 = vpop.f32.mrf.mxu0
        %5297 = vdwg.mxu0
        %5298 = vmatpush.bf16.msra.mxu0 %v5130
        %5299 = vmatpush.bf16.msra.mxu0 %v5128
        %5300 = vmatpush.bf16.msra.mxu0 %v5126
        %5301 = vmatpush.bf16.msra.mxu0 %v5124
        %5302 = vmatpush.bf16.msra.mxu0 %v5122
        %5303 = vmatpush.bf16.msra.mxu0 %v5120
        %5304 = vmatpush.bf16.msra.mxu0 %v5118
        %5305 = vmatpush.bf16.msra.mxu0 %v5116
        %5306 = vmatmul.bf16.gmra.mxu0 0
        %v5307 = vpop.f32.mrf.mxu0
        %v5308 = vadd.f32 %v5295, %v5307
        %v5309 = vpop.f32.mrf.mxu0
        %5310 = vdwg.mxu0
        %5311 = vmatpush.bf16.msra.mxu0 %v5051
        %5312 = vmatpush.bf16.msra.mxu0 %v5049
        %5313 = vmatpush.bf16.msra.mxu0 %v5047
        %5314 = vmatpush.bf16.msra.mxu0 %v5045
        %5315 = vmatpush.bf16.msra.mxu0 %v5043
        %5316 = vmatpush.bf16.msra.mxu0 %v5041
        %5317 = vmatpush.bf16.msra.mxu0 %v5039
        %5318 = vmatpush.bf16.msra.mxu0 %v5037
        %5319 = vmatmul.bf16.gmra.mxu0 0
        %v5320 = vpop.f32.mrf.mxu0
        %v5321 = vadd.f32 %v5230, %v5320
        %v5322 = vpop.f32.mrf.mxu0
        %5323 = vdwg.mxu0
        %5324 = vmatpush.bf16.msra.mxu0 %v5067
        %5325 = vmatpush.bf16.msra.mxu0 %v5065
        %5326 = vmatpush.bf16.msra.mxu0 %v5063
        %5327 = vmatpush.bf16.msra.mxu0 %v5061
        %5328 = vmatpush.bf16.msra.mxu0 %v5059
        %5329 = vmatpush.bf16.msra.mxu0 %v5057
        %5330 = vmatpush.bf16.msra.mxu0 %v5055
        %5331 = vmatpush.bf16.msra.mxu0 %v5053
        %5332 = vmatmul.bf16.gmra.mxu0 0
        %v5333 = vpop.f32.mrf.mxu0
        %v5334 = vadd.f32 %v5321, %v5333
        %v5335 = vpop.f32.mrf.mxu0
        %5336 = vdwg.mxu0
        %5337 = vmatpush.bf16.msra.mxu0 %v5083
        %5338 = vmatpush.bf16.msra.mxu0 %v5081
        %5339 = vmatpush.bf16.msra.mxu0 %v5079
        %5340 = vmatpush.bf16.msra.mxu0 %v5077
        %5341 = vmatpush.bf16.msra.mxu0 %v5075
        %5342 = vmatpush.bf16.msra.mxu0 %v5073
        %5343 = vmatpush.bf16.msra.mxu0 %v5071
        %5344 = vmatpush.bf16.msra.mxu0 %v5069
        %5345 = vmatmul.bf16.gmra.mxu0 %v4648
        %v5346 = vpop.f32.mrf.mxu0
        %v5347 = vadd.f32 %v5334, %v5346
        %v5348 = vpop.f32.mrf.mxu0
        %5349 = vdwg.mxu0
        %5350 = vmatpush.bf16.msra.mxu0 %v5099
        %5351 = vmatpush.bf16.msra.mxu0 %v5097
        %5352 = vmatpush.bf16.msra.mxu0 %v5095
        %5353 = vmatpush.bf16.msra.mxu0 %v5093
        %5354 = vmatpush.bf16.msra.mxu0 %v5091
        %5355 = vmatpush.bf16.msra.mxu0 %v5089
        %5356 = vmatpush.bf16.msra.mxu0 %v5087
        %5357 = vmatpush.bf16.msra.mxu0 %v5085
        %5358 = vmatmul.bf16.gmra.mxu0 %v4649
        %v5359 = vpop.f32.mrf.mxu0
        %v5360 = vadd.f32 %v5347, %v5359
        %v5361 = vpop.f32.mrf.mxu0
        %5362 = vdwg.mxu0
        %5363 = vmatpush.bf16.msra.mxu0 %v5115
        %5364 = vmatpush.bf16.msra.mxu0 %v5113
        %5365 = vmatpush.bf16.msra.mxu0 %v5111
        %5366 = vmatpush.bf16.msra.mxu0 %v5109
        %5367 = vmatpush.bf16.msra.mxu0 %v5107
        %5368 = vmatpush.bf16.msra.mxu0 %v5105
        %5369 = vmatpush.bf16.msra.mxu0 %v5103
        %5370 = vmatpush.bf16.msra.mxu0 %v5101
        %5371 = vmatmul.bf16.gmra.mxu0 0
        %v5372 = vpop.f32.mrf.mxu0
        %v5373 = vadd.f32 %v5360, %v5372
        %v5374 = vpop.f32.mrf.mxu0
        %5375 = vdwg.mxu0
        %5376 = vmatpush.bf16.msra.mxu0 %v5131
        %5377 = vmatpush.bf16.msra.mxu0 %v5129
        %5378 = vmatpush.bf16.msra.mxu0 %v5127
        %5379 = vmatpush.bf16.msra.mxu0 %v5125
        %5380 = vmatpush.bf16.msra.mxu0 %v5123
        %5381 = vmatpush.bf16.msra.mxu0 %v5121
        %5382 = vmatpush.bf16.msra.mxu0 %v5119
        %5383 = vmatpush.bf16.msra.mxu0 %v5117
        %5384 = vmatmul.bf16.gmra.mxu0 0
        %v5385 = vpop.f32.mrf.mxu0
        %v5386 = vadd.f32 %v5373, %v5385
        %v5387 = vpop.f32.mrf.mxu0
        %5388 = vdwg.mxu0
        %v5389 = vmax.f32 %v5308, 0.0
        %v5390 = vmax.f32 %v5386, 0.0
        %v5391 = vpack.c.bf16 %v5390, %v5389
        %v5393 = vunpack.c.l.b16 %v5391
        %v5394 = vunpack.c.h.b16 %v5391
        %v5395 = vpack.c.b16 %v5393, %v5393
        %v5396 = vpack.c.b16 %v5394, %v5394
        %v5399 = vld [vmem:[%s73] sm:$0xff]
        %v5400 = vld [vmem:[%s73 + $0x8] sm:$0xff]
        %v5401 = vld [vmem:[%s73 + $0x10] sm:$0xff]
        %v5402 = vld [vmem:[%s73 + $0x18] sm:$0xff]
        %v5403 = vld [vmem:[%s73 + $0x20] sm:$0xff]
        %v5404 = vld [vmem:[%s73 + $0x28] sm:$0xff]
        %v5405 = vld [vmem:[%s73 + $0x30] sm:$0xff]
        %v5406 = vld [vmem:[%s73 + $0x38] sm:$0xff]
        %v5407 = vld [vmem:[%s73 + $0x40] sm:$0xff]
        %v5408 = vld [vmem:[%s73 + $0x48] sm:$0xff]
        %v5409 = vld [vmem:[%s73 + $0x50] sm:$0xff]
        %v5410 = vld [vmem:[%s73 + $0x58] sm:$0xff]
        %v5411 = vld [vmem:[%s73 + $0x60] sm:$0xff]
        %v5412 = vld [vmem:[%s73 + $0x68] sm:$0xff]
        %v5413 = vld [vmem:[%s73 + $0x70] sm:$0xff]
        %v5414 = vld [vmem:[%s73 + $0x78] sm:$0xff]
        %v5415 = vld [vmem:[%s73 + $0x80] sm:$0xff]
        %v5416 = vld [vmem:[%s73 + $0x88] sm:$0xff]
        %v5417 = vld [vmem:[%s73 + $0x90] sm:$0xff]
        %v5418 = vld [vmem:[%s73 + $0x98] sm:$0xff]
        %v5419 = vld [vmem:[%s73 + $0xa0] sm:$0xff]
        %v5420 = vld [vmem:[%s73 + $0xa8] sm:$0xff]
        %v5421 = vld [vmem:[%s73 + $0xb0] sm:$0xff]
        %v5422 = vld [vmem:[%s73 + $0xb8] sm:$0xff]
        %v5423 = vld [vmem:[%s73 + $0xc0] sm:$0xff]
        %v5424 = vld [vmem:[%s73 + $0xc8] sm:$0xff]
        %v5425 = vld [vmem:[%s73 + $0xd0] sm:$0xff]
        %v5426 = vld [vmem:[%s73 + $0xd8] sm:$0xff]
        %v5427 = vld [vmem:[%s73 + $0xe0] sm:$0xff]
        %v5428 = vld [vmem:[%s73 + $0xe8] sm:$0xff]
        %v5429 = vld [vmem:[%s73 + $0xf0] sm:$0xff]
        %v5430 = vld [vmem:[%s73 + $0xf8] sm:$0xff]
        %v5431 = vld [vmem:[%s73 + $0x100] sm:$0xff]
        %v5432 = vld [vmem:[%s73 + $0x108] sm:$0xff]
        %v5433 = vld [vmem:[%s73 + $0x110] sm:$0xff]
        %v5434 = vld [vmem:[%s73 + $0x118] sm:$0xff]
        %v5435 = vld [vmem:[%s73 + $0x120] sm:$0xff]
        %v5436 = vld [vmem:[%s73 + $0x128] sm:$0xff]
        %v5437 = vld [vmem:[%s73 + $0x130] sm:$0xff]
        %v5438 = vld [vmem:[%s73 + $0x138] sm:$0xff]
        %v5439 = vld [vmem:[%s73 + $0x140] sm:$0xff]
        %v5440 = vld [vmem:[%s73 + $0x148] sm:$0xff]
        %v5441 = vld [vmem:[%s73 + $0x150] sm:$0xff]
        %v5442 = vld [vmem:[%s73 + $0x158] sm:$0xff]
        %v5443 = vld [vmem:[%s73 + $0x160] sm:$0xff]
        %v5444 = vld [vmem:[%s73 + $0x168] sm:$0xff]
        %v5445 = vld [vmem:[%s73 + $0x170] sm:$0xff]
        %v5446 = vld [vmem:[%s73 + $0x178] sm:$0xff]
        %v5447 = vld [vmem:[%s73 + $0x180] sm:$0xff]
        %v5448 = vld [vmem:[%s73 + $0x188] sm:$0xff]
        %v5449 = vld [vmem:[%s73 + $0x190] sm:$0xff]
        %v5450 = vld [vmem:[%s73 + $0x198] sm:$0xff]
        %v5451 = vld [vmem:[%s73 + $0x1a0] sm:$0xff]
        %v5452 = vld [vmem:[%s73 + $0x1a8] sm:$0xff]
        %v5453 = vld [vmem:[%s73 + $0x1b0] sm:$0xff]
        %v5454 = vld [vmem:[%s73 + $0x1b8] sm:$0xff]
        %v5455 = vld [vmem:[%s73 + $0x1c0] sm:$0xff]
        %v5456 = vld [vmem:[%s73 + $0x1c8] sm:$0xff]
        %v5457 = vld [vmem:[%s73 + $0x1d0] sm:$0xff]
        %v5458 = vld [vmem:[%s73 + $0x1d8] sm:$0xff]
        %v5459 = vld [vmem:[%s73 + $0x1e0] sm:$0xff]
        %v5460 = vld [vmem:[%s73 + $0x1e8] sm:$0xff]
        %v5461 = vld [vmem:[%s73 + $0x1f0] sm:$0xff]
        %v5462 = vld [vmem:[%s73 + $0x1f8] sm:$0xff]
        %v5463 = vld [vmem:[%s73 + $0x200] sm:$0xff]
        %v5464 = vld [vmem:[%s73 + $0x208] sm:$0xff]
        %v5465 = vld [vmem:[%s73 + $0x210] sm:$0xff]
        %v5466 = vld [vmem:[%s73 + $0x218] sm:$0xff]
        %v5467 = vld [vmem:[%s73 + $0x220] sm:$0xff]
        %v5468 = vld [vmem:[%s73 + $0x228] sm:$0xff]
        %v5469 = vld [vmem:[%s73 + $0x230] sm:$0xff]
        %v5470 = vld [vmem:[%s73 + $0x238] sm:$0xff]
        %v5471 = vld [vmem:[%s73 + $0x240] sm:$0xff]
        %v5472 = vld [vmem:[%s73 + $0x248] sm:$0xff]
        %v5473 = vld [vmem:[%s73 + $0x250] sm:$0xff]
        %v5474 = vld [vmem:[%s73 + $0x258] sm:$0xff]
        %v5475 = vld [vmem:[%s73 + $0x260] sm:$0xff]
        %v5476 = vld [vmem:[%s73 + $0x268] sm:$0xff]
        %v5477 = vld [vmem:[%s73 + $0x270] sm:$0xff]
        %v5478 = vld [vmem:[%s73 + $0x278] sm:$0xff]
        %v5479 = vld [vmem:[%s73 + $0x280] sm:$0xff]
        %v5480 = vld [vmem:[%s73 + $0x288] sm:$0xff]
        %v5481 = vld [vmem:[%s73 + $0x290] sm:$0xff]
        %v5482 = vld [vmem:[%s73 + $0x298] sm:$0xff]
        %v5483 = vld [vmem:[%s73 + $0x2a0] sm:$0xff]
        %v5484 = vld [vmem:[%s73 + $0x2a8] sm:$0xff]
        %v5485 = vld [vmem:[%s73 + $0x2b0] sm:$0xff]
        %v5486 = vld [vmem:[%s73 + $0x2b8] sm:$0xff]
        %v5487 = vld [vmem:[%s73 + $0x2c0] sm:$0xff]
        %v5488 = vld [vmem:[%s73 + $0x2c8] sm:$0xff]
        %v5489 = vld [vmem:[%s73 + $0x2d0] sm:$0xff]
        %v5490 = vld [vmem:[%s73 + $0x2d8] sm:$0xff]
        %v5491 = vld [vmem:[%s73 + $0x2e0] sm:$0xff]
        %v5492 = vld [vmem:[%s73 + $0x2e8] sm:$0xff]
        %v5493 = vld [vmem:[%s73 + $0x2f0] sm:$0xff]
        %v5494 = vld [vmem:[%s73 + $0x2f8] sm:$0xff]
        %v5591 = vunpack.c.l.b16 %v5399
        %v5592 = vunpack.c.h.b16 %v5399
        %v5593 = vunpack.c.l.b16 %v5400
        %v5594 = vunpack.c.h.b16 %v5400
        %v5595 = vunpack.c.l.b16 %v5401
        %v5596 = vunpack.c.h.b16 %v5401
        %v5597 = vunpack.c.l.b16 %v5402
        %v5598 = vunpack.c.h.b16 %v5402
        %v5599 = vunpack.c.l.b16 %v5403
        %v5600 = vunpack.c.h.b16 %v5403
        %v5601 = vunpack.c.l.b16 %v5404
        %v5602 = vunpack.c.h.b16 %v5404
        %v5603 = vunpack.c.l.b16 %v5405
        %v5604 = vunpack.c.h.b16 %v5405
        %v5605 = vunpack.c.l.b16 %v5406
        %v5606 = vunpack.c.h.b16 %v5406
        %v5607 = vunpack.c.l.b16 %v5407
        %v5608 = vunpack.c.h.b16 %v5407
        %v5609 = vunpack.c.l.b16 %v5408
        %v5610 = vunpack.c.h.b16 %v5408
        %v5611 = vunpack.c.l.b16 %v5409
        %v5612 = vunpack.c.h.b16 %v5409
        %v5613 = vunpack.c.l.b16 %v5410
        %v5614 = vunpack.c.h.b16 %v5410
        %v5615 = vunpack.c.l.b16 %v5411
        %v5616 = vunpack.c.h.b16 %v5411
        %v5617 = vunpack.c.l.b16 %v5412
        %v5618 = vunpack.c.h.b16 %v5412
        %v5619 = vunpack.c.l.b16 %v5413
        %v5620 = vunpack.c.h.b16 %v5413
        %v5621 = vunpack.c.l.b16 %v5414
        %v5622 = vunpack.c.h.b16 %v5414
        %v5623 = vunpack.c.l.b16 %v5415
        %v5624 = vunpack.c.h.b16 %v5415
        %v5625 = vunpack.c.l.b16 %v5416
        %v5626 = vunpack.c.h.b16 %v5416
        %v5627 = vunpack.c.l.b16 %v5417
        %v5628 = vunpack.c.h.b16 %v5417
        %v5629 = vunpack.c.l.b16 %v5418
        %v5630 = vunpack.c.h.b16 %v5418
        %v5631 = vunpack.c.l.b16 %v5419
        %v5632 = vunpack.c.h.b16 %v5419
        %v5633 = vunpack.c.l.b16 %v5420
        %v5634 = vunpack.c.h.b16 %v5420
        %v5635 = vunpack.c.l.b16 %v5421
        %v5636 = vunpack.c.h.b16 %v5421
        %v5637 = vunpack.c.l.b16 %v5422
        %v5638 = vunpack.c.h.b16 %v5422
        %v5639 = vunpack.c.l.b16 %v5423
        %v5640 = vunpack.c.h.b16 %v5423
        %v5641 = vunpack.c.l.b16 %v5424
        %v5642 = vunpack.c.h.b16 %v5424
        %v5643 = vunpack.c.l.b16 %v5425
        %v5644 = vunpack.c.h.b16 %v5425
        %v5645 = vunpack.c.l.b16 %v5426
        %v5646 = vunpack.c.h.b16 %v5426
        %v5647 = vunpack.c.l.b16 %v5427
        %v5648 = vunpack.c.h.b16 %v5427
        %v5649 = vunpack.c.l.b16 %v5428
        %v5650 = vunpack.c.h.b16 %v5428
        %v5651 = vunpack.c.l.b16 %v5429
        %v5652 = vunpack.c.h.b16 %v5429
        %v5653 = vunpack.c.l.b16 %v5430
        %v5654 = vunpack.c.h.b16 %v5430
        %v5655 = vunpack.c.l.b16 %v5431
        %v5656 = vunpack.c.h.b16 %v5431
        %v5657 = vunpack.c.l.b16 %v5432
        %v5658 = vunpack.c.h.b16 %v5432
        %v5659 = vunpack.c.l.b16 %v5433
        %v5660 = vunpack.c.h.b16 %v5433
        %v5661 = vunpack.c.l.b16 %v5434
        %v5662 = vunpack.c.h.b16 %v5434
        %v5663 = vunpack.c.l.b16 %v5435
        %v5664 = vunpack.c.h.b16 %v5435
        %v5665 = vunpack.c.l.b16 %v5436
        %v5666 = vunpack.c.h.b16 %v5436
        %v5667 = vunpack.c.l.b16 %v5437
        %v5668 = vunpack.c.h.b16 %v5437
        %v5669 = vunpack.c.l.b16 %v5438
        %v5670 = vunpack.c.h.b16 %v5438
        %v5671 = vunpack.c.l.b16 %v5439
        %v5672 = vunpack.c.h.b16 %v5439
        %v5673 = vunpack.c.l.b16 %v5440
        %v5674 = vunpack.c.h.b16 %v5440
        %v5675 = vunpack.c.l.b16 %v5441
        %v5676 = vunpack.c.h.b16 %v5441
        %v5677 = vunpack.c.l.b16 %v5442
        %v5678 = vunpack.c.h.b16 %v5442
        %v5679 = vunpack.c.l.b16 %v5443
        %v5680 = vunpack.c.h.b16 %v5443
        %v5681 = vunpack.c.l.b16 %v5444
        %v5682 = vunpack.c.h.b16 %v5444
        %v5683 = vunpack.c.l.b16 %v5445
        %v5684 = vunpack.c.h.b16 %v5445
        %v5685 = vunpack.c.l.b16 %v5446
        %v5686 = vunpack.c.h.b16 %v5446
        %v5687 = vunpack.c.l.b16 %v5447
        %v5688 = vunpack.c.h.b16 %v5447
        %v5689 = vunpack.c.l.b16 %v5448
        %v5690 = vunpack.c.h.b16 %v5448
        %v5691 = vunpack.c.l.b16 %v5449
        %v5692 = vunpack.c.h.b16 %v5449
        %v5693 = vunpack.c.l.b16 %v5450
        %v5694 = vunpack.c.h.b16 %v5450
        %v5695 = vunpack.c.l.b16 %v5451
        %v5696 = vunpack.c.h.b16 %v5451
        %v5697 = vunpack.c.l.b16 %v5452
        %v5698 = vunpack.c.h.b16 %v5452
        %v5699 = vunpack.c.l.b16 %v5453
        %v5700 = vunpack.c.h.b16 %v5453
        %v5701 = vunpack.c.l.b16 %v5454
        %v5702 = vunpack.c.h.b16 %v5454
        %v5703 = vunpack.c.l.b16 %v5455
        %v5704 = vunpack.c.h.b16 %v5455
        %v5705 = vunpack.c.l.b16 %v5456
        %v5706 = vunpack.c.h.b16 %v5456
        %v5707 = vunpack.c.l.b16 %v5457
        %v5708 = vunpack.c.h.b16 %v5457
        %v5709 = vunpack.c.l.b16 %v5458
        %v5710 = vunpack.c.h.b16 %v5458
        %v5711 = vunpack.c.l.b16 %v5459
        %v5712 = vunpack.c.h.b16 %v5459
        %v5713 = vunpack.c.l.b16 %v5460
        %v5714 = vunpack.c.h.b16 %v5460
        %v5715 = vunpack.c.l.b16 %v5461
        %v5716 = vunpack.c.h.b16 %v5461
        %v5717 = vunpack.c.l.b16 %v5462
        %v5718 = vunpack.c.h.b16 %v5462
        %v5719 = vunpack.c.l.b16 %v5463
        %v5720 = vunpack.c.h.b16 %v5463
        %v5721 = vunpack.c.l.b16 %v5464
        %v5722 = vunpack.c.h.b16 %v5464
        %v5723 = vunpack.c.l.b16 %v5465
        %v5724 = vunpack.c.h.b16 %v5465
        %v5725 = vunpack.c.l.b16 %v5466
        %v5726 = vunpack.c.h.b16 %v5466
        %v5727 = vunpack.c.l.b16 %v5467
        %v5728 = vunpack.c.h.b16 %v5467
        %v5729 = vunpack.c.l.b16 %v5468
        %v5730 = vunpack.c.h.b16 %v5468
        %v5731 = vunpack.c.l.b16 %v5469
        %v5732 = vunpack.c.h.b16 %v5469
        %v5733 = vunpack.c.l.b16 %v5470
        %v5734 = vunpack.c.h.b16 %v5470
        %v5735 = vunpack.c.l.b16 %v5471
        %v5736 = vunpack.c.h.b16 %v5471
        %v5737 = vunpack.c.l.b16 %v5472
        %v5738 = vunpack.c.h.b16 %v5472
        %v5739 = vunpack.c.l.b16 %v5473
        %v5740 = vunpack.c.h.b16 %v5473
        %v5741 = vunpack.c.l.b16 %v5474
        %v5742 = vunpack.c.h.b16 %v5474
        %v5743 = vunpack.c.l.b16 %v5475
        %v5744 = vunpack.c.h.b16 %v5475
        %v5745 = vunpack.c.l.b16 %v5476
        %v5746 = vunpack.c.h.b16 %v5476
        %v5747 = vunpack.c.l.b16 %v5477
        %v5748 = vunpack.c.h.b16 %v5477
        %v5749 = vunpack.c.l.b16 %v5478
        %v5750 = vunpack.c.h.b16 %v5478
        %v5751 = vunpack.c.l.b16 %v5479
        %v5752 = vunpack.c.h.b16 %v5479
        %v5753 = vunpack.c.l.b16 %v5480
        %v5754 = vunpack.c.h.b16 %v5480
        %v5755 = vunpack.c.l.b16 %v5481
        %v5756 = vunpack.c.h.b16 %v5481
        %v5757 = vunpack.c.l.b16 %v5482
        %v5758 = vunpack.c.h.b16 %v5482
        %v5759 = vunpack.c.l.b16 %v5483
        %v5760 = vunpack.c.h.b16 %v5483
        %v5761 = vunpack.c.l.b16 %v5484
        %v5762 = vunpack.c.h.b16 %v5484
        %v5763 = vunpack.c.l.b16 %v5485
        %v5764 = vunpack.c.h.b16 %v5485
        %v5765 = vunpack.c.l.b16 %v5486
        %v5766 = vunpack.c.h.b16 %v5486
        %v5767 = vunpack.c.l.b16 %v5487
        %v5768 = vunpack.c.h.b16 %v5487
        %v5769 = vunpack.c.l.b16 %v5488
        %v5770 = vunpack.c.h.b16 %v5488
        %v5771 = vunpack.c.l.b16 %v5489
        %v5772 = vunpack.c.h.b16 %v5489
        %v5773 = vunpack.c.l.b16 %v5490
        %v5774 = vunpack.c.h.b16 %v5490
        %v5775 = vunpack.c.l.b16 %v5491
        %v5776 = vunpack.c.h.b16 %v5491
        %v5777 = vunpack.c.l.b16 %v5492
        %v5778 = vunpack.c.h.b16 %v5492
        %v5779 = vunpack.c.l.b16 %v5493
        %v5780 = vunpack.c.h.b16 %v5493
        %v5781 = vunpack.c.l.b16 %v5494
        %v5782 = vunpack.c.h.b16 %v5494
        %v5783 = vpack.c.b16 %v5593, %v5591
        %v5784 = vpack.c.b16 %v5594, %v5592
        %v5785 = vpack.c.b16 %v5597, %v5595
        %v5786 = vpack.c.b16 %v5598, %v5596
        %v5787 = vpack.c.b16 %v5601, %v5599
        %v5788 = vpack.c.b16 %v5602, %v5600
        %v5789 = vpack.c.b16 %v5605, %v5603
        %v5790 = vpack.c.b16 %v5606, %v5604
        %v5791 = vpack.c.b16 %v5609, %v5607
        %v5792 = vpack.c.b16 %v5610, %v5608
        %v5793 = vpack.c.b16 %v5613, %v5611
        %v5794 = vpack.c.b16 %v5614, %v5612
        %v5795 = vpack.c.b16 %v5617, %v5615
        %v5796 = vpack.c.b16 %v5618, %v5616
        %v5797 = vpack.c.b16 %v5621, %v5619
        %v5798 = vpack.c.b16 %v5622, %v5620
        %v5799 = vpack.c.b16 %v5625, %v5623
        %v5800 = vpack.c.b16 %v5626, %v5624
        %v5801 = vpack.c.b16 %v5629, %v5627
        %v5802 = vpack.c.b16 %v5630, %v5628
        %v5803 = vpack.c.b16 %v5633, %v5631
        %v5804 = vpack.c.b16 %v5634, %v5632
        %v5805 = vpack.c.b16 %v5637, %v5635
        %v5806 = vpack.c.b16 %v5638, %v5636
        %v5807 = vpack.c.b16 %v5641, %v5639
        %v5808 = vpack.c.b16 %v5642, %v5640
        %v5809 = vpack.c.b16 %v5645, %v5643
        %v5810 = vpack.c.b16 %v5646, %v5644
        %v5811 = vpack.c.b16 %v5649, %v5647
        %v5812 = vpack.c.b16 %v5650, %v5648
        %v5813 = vpack.c.b16 %v5653, %v5651
        %v5814 = vpack.c.b16 %v5654, %v5652
        %v5815 = vpack.c.b16 %v5657, %v5655
        %v5816 = vpack.c.b16 %v5658, %v5656
        %v5817 = vpack.c.b16 %v5661, %v5659
        %v5818 = vpack.c.b16 %v5662, %v5660
        %v5819 = vpack.c.b16 %v5665, %v5663
        %v5820 = vpack.c.b16 %v5666, %v5664
        %v5821 = vpack.c.b16 %v5669, %v5667
        %v5822 = vpack.c.b16 %v5670, %v5668
        %v5823 = vpack.c.b16 %v5673, %v5671
        %v5824 = vpack.c.b16 %v5674, %v5672
        %v5825 = vpack.c.b16 %v5677, %v5675
        %v5826 = vpack.c.b16 %v5678, %v5676
        %v5827 = vpack.c.b16 %v5681, %v5679
        %v5828 = vpack.c.b16 %v5682, %v5680
        %v5829 = vpack.c.b16 %v5685, %v5683
        %v5830 = vpack.c.b16 %v5686, %v5684
        %v5831 = vpack.c.b16 %v5689, %v5687
        %v5832 = vpack.c.b16 %v5690, %v5688
        %v5833 = vpack.c.b16 %v5693, %v5691
        %v5834 = vpack.c.b16 %v5694, %v5692
        %v5835 = vpack.c.b16 %v5697, %v5695
        %v5836 = vpack.c.b16 %v5698, %v5696
        %v5837 = vpack.c.b16 %v5701, %v5699
        %v5838 = vpack.c.b16 %v5702, %v5700
        %v5839 = vpack.c.b16 %v5705, %v5703
        %v5840 = vpack.c.b16 %v5706, %v5704
        %v5841 = vpack.c.b16 %v5709, %v5707
        %v5842 = vpack.c.b16 %v5710, %v5708
        %v5843 = vpack.c.b16 %v5713, %v5711
        %v5844 = vpack.c.b16 %v5714, %v5712
        %v5845 = vpack.c.b16 %v5717, %v5715
        %v5846 = vpack.c.b16 %v5718, %v5716
        %v5847 = vpack.c.b16 %v5721, %v5719
        %v5848 = vpack.c.b16 %v5722, %v5720
        %v5849 = vpack.c.b16 %v5725, %v5723
        %v5850 = vpack.c.b16 %v5726, %v5724
        %v5851 = vpack.c.b16 %v5729, %v5727
        %v5852 = vpack.c.b16 %v5730, %v5728
        %v5853 = vpack.c.b16 %v5733, %v5731
        %v5854 = vpack.c.b16 %v5734, %v5732
        %v5855 = vpack.c.b16 %v5737, %v5735
        %v5856 = vpack.c.b16 %v5738, %v5736
        %v5857 = vpack.c.b16 %v5741, %v5739
        %v5858 = vpack.c.b16 %v5742, %v5740
        %v5859 = vpack.c.b16 %v5745, %v5743
        %v5860 = vpack.c.b16 %v5746, %v5744
        %v5861 = vpack.c.b16 %v5749, %v5747
        %v5862 = vpack.c.b16 %v5750, %v5748
        %v5863 = vpack.c.b16 %v5753, %v5751
        %v5864 = vpack.c.b16 %v5754, %v5752
        %v5865 = vpack.c.b16 %v5757, %v5755
        %v5866 = vpack.c.b16 %v5758, %v5756
        %v5867 = vpack.c.b16 %v5761, %v5759
        %v5868 = vpack.c.b16 %v5762, %v5760
        %v5869 = vpack.c.b16 %v5765, %v5763
        %v5870 = vpack.c.b16 %v5766, %v5764
        %v5871 = vpack.c.b16 %v5769, %v5767
        %v5872 = vpack.c.b16 %v5770, %v5768
        %v5873 = vpack.c.b16 %v5773, %v5771
        %v5874 = vpack.c.b16 %v5774, %v5772
        %v5875 = vpack.c.b16 %v5777, %v5775
        %v5876 = vpack.c.b16 %v5778, %v5776
        %v5877 = vpack.c.b16 %v5781, %v5779
        %v5878 = vpack.c.b16 %v5782, %v5780
        %v5976 = vperm.slane %v1233, 0
        %v5977 = vperm.slane %v1233, 1
        %5980 = vmatpush.bf16.msra.mxu0 %v5797
        %5981 = vmatpush.bf16.msra.mxu0 %v5795
        %5982 = vmatpush.bf16.msra.mxu0 %v5793
        %5983 = vmatpush.bf16.msra.mxu0 %v5791
        %5984 = vmatpush.bf16.msra.mxu0 %v5789
        %5985 = vmatpush.bf16.msra.mxu0 %v5787
        %5986 = vmatpush.bf16.msra.mxu0 %v5785
        %5987 = vmatpush.bf16.msra.mxu0 %v5783
        %5988 = vmatmul.bf16.gmra.mxu0 0
        %v5989 = vpop.f32.mrf.mxu0
        %v5990 = vadd.f32 %v5976, %v5989
        %v5991 = vpop.f32.mrf.mxu0
        %5992 = vdwg.mxu0
        %5993 = vmatpush.bf16.msra.mxu0 %v5813
        %5994 = vmatpush.bf16.msra.mxu0 %v5811
        %5995 = vmatpush.bf16.msra.mxu0 %v5809
        %5996 = vmatpush.bf16.msra.mxu0 %v5807
        %5997 = vmatpush.bf16.msra.mxu0 %v5805
        %5998 = vmatpush.bf16.msra.mxu0 %v5803
        %5999 = vmatpush.bf16.msra.mxu0 %v5801
        %6000 = vmatpush.bf16.msra.mxu0 %v5799
        %6001 = vmatmul.bf16.gmra.mxu0 0
        %v6002 = vpop.f32.mrf.mxu0
        %v6003 = vadd.f32 %v5990, %v6002
        %v6004 = vpop.f32.mrf.mxu0
        %6005 = vdwg.mxu0
        %6006 = vmatpush.bf16.msra.mxu0 %v5829
        %6007 = vmatpush.bf16.msra.mxu0 %v5827
        %6008 = vmatpush.bf16.msra.mxu0 %v5825
        %6009 = vmatpush.bf16.msra.mxu0 %v5823
        %6010 = vmatpush.bf16.msra.mxu0 %v5821
        %6011 = vmatpush.bf16.msra.mxu0 %v5819
        %6012 = vmatpush.bf16.msra.mxu0 %v5817
        %6013 = vmatpush.bf16.msra.mxu0 %v5815
        %6014 = vmatmul.bf16.gmra.mxu0 %v5395
        %v6015 = vpop.f32.mrf.mxu0
        %v6016 = vadd.f32 %v6003, %v6015
        %v6017 = vpop.f32.mrf.mxu0
        %6018 = vdwg.mxu0
        %6019 = vmatpush.bf16.msra.mxu0 %v5845
        %6020 = vmatpush.bf16.msra.mxu0 %v5843
        %6021 = vmatpush.bf16.msra.mxu0 %v5841
        %6022 = vmatpush.bf16.msra.mxu0 %v5839
        %6023 = vmatpush.bf16.msra.mxu0 %v5837
        %6024 = vmatpush.bf16.msra.mxu0 %v5835
        %6025 = vmatpush.bf16.msra.mxu0 %v5833
        %6026 = vmatpush.bf16.msra.mxu0 %v5831
        %6027 = vmatmul.bf16.gmra.mxu0 %v5396
        %v6028 = vpop.f32.mrf.mxu0
        %v6029 = vadd.f32 %v6016, %v6028
        %v6030 = vpop.f32.mrf.mxu0
        %6031 = vdwg.mxu0
        %6032 = vmatpush.bf16.msra.mxu0 %v5861
        %6033 = vmatpush.bf16.msra.mxu0 %v5859
        %6034 = vmatpush.bf16.msra.mxu0 %v5857
        %6035 = vmatpush.bf16.msra.mxu0 %v5855
        %6036 = vmatpush.bf16.msra.mxu0 %v5853
        %6037 = vmatpush.bf16.msra.mxu0 %v5851
        %6038 = vmatpush.bf16.msra.mxu0 %v5849
        %6039 = vmatpush.bf16.msra.mxu0 %v5847
        %6040 = vmatmul.bf16.gmra.mxu0 0
        %v6041 = vpop.f32.mrf.mxu0
        %v6042 = vadd.f32 %v6029, %v6041
        %v6043 = vpop.f32.mrf.mxu0
        %6044 = vdwg.mxu0
        %6045 = vmatpush.bf16.msra.mxu0 %v5877
        %6046 = vmatpush.bf16.msra.mxu0 %v5875
        %6047 = vmatpush.bf16.msra.mxu0 %v5873
        %6048 = vmatpush.bf16.msra.mxu0 %v5871
        %6049 = vmatpush.bf16.msra.mxu0 %v5869
        %6050 = vmatpush.bf16.msra.mxu0 %v5867
        %6051 = vmatpush.bf16.msra.mxu0 %v5865
        %6052 = vmatpush.bf16.msra.mxu0 %v5863
        %6053 = vmatmul.bf16.gmra.mxu0 0
        %v6054 = vpop.f32.mrf.mxu0
        %v6055 = vadd.f32 %v6042, %v6054
        %v6056 = vpop.f32.mrf.mxu0
        %6057 = vdwg.mxu0
        %6058 = vmatpush.bf16.msra.mxu0 %v5798
        %6059 = vmatpush.bf16.msra.mxu0 %v5796
        %6060 = vmatpush.bf16.msra.mxu0 %v5794
        %6061 = vmatpush.bf16.msra.mxu0 %v5792
        %6062 = vmatpush.bf16.msra.mxu0 %v5790
        %6063 = vmatpush.bf16.msra.mxu0 %v5788
        %6064 = vmatpush.bf16.msra.mxu0 %v5786
        %6065 = vmatpush.bf16.msra.mxu0 %v5784
        %6066 = vmatmul.bf16.gmra.mxu0 0
        %v6067 = vpop.f32.mrf.mxu0
        %v6068 = vadd.f32 %v5977, %v6067
        %v6069 = vpop.f32.mrf.mxu0
        %6070 = vdwg.mxu0
        %6071 = vmatpush.bf16.msra.mxu0 %v5814
        %6072 = vmatpush.bf16.msra.mxu0 %v5812
        %6073 = vmatpush.bf16.msra.mxu0 %v5810
        %6074 = vmatpush.bf16.msra.mxu0 %v5808
        %6075 = vmatpush.bf16.msra.mxu0 %v5806
        %6076 = vmatpush.bf16.msra.mxu0 %v5804
        %6077 = vmatpush.bf16.msra.mxu0 %v5802
        %6078 = vmatpush.bf16.msra.mxu0 %v5800
        %6079 = vmatmul.bf16.gmra.mxu0 0
        %v6080 = vpop.f32.mrf.mxu0
        %v6081 = vadd.f32 %v6068, %v6080
        %v6082 = vpop.f32.mrf.mxu0
        %6083 = vdwg.mxu0
        %6084 = vmatpush.bf16.msra.mxu0 %v5830
        %6085 = vmatpush.bf16.msra.mxu0 %v5828
        %6086 = vmatpush.bf16.msra.mxu0 %v5826
        %6087 = vmatpush.bf16.msra.mxu0 %v5824
        %6088 = vmatpush.bf16.msra.mxu0 %v5822
        %6089 = vmatpush.bf16.msra.mxu0 %v5820
        %6090 = vmatpush.bf16.msra.mxu0 %v5818
        %6091 = vmatpush.bf16.msra.mxu0 %v5816
        %6092 = vmatmul.bf16.gmra.mxu0 %v5395
        %v6093 = vpop.f32.mrf.mxu0
        %v6094 = vadd.f32 %v6081, %v6093
        %v6095 = vpop.f32.mrf.mxu0
        %6096 = vdwg.mxu0
        %6097 = vmatpush.bf16.msra.mxu0 %v5846
        %6098 = vmatpush.bf16.msra.mxu0 %v5844
        %6099 = vmatpush.bf16.msra.mxu0 %v5842
        %6100 = vmatpush.bf16.msra.mxu0 %v5840
        %6101 = vmatpush.bf16.msra.mxu0 %v5838
        %6102 = vmatpush.bf16.msra.mxu0 %v5836
        %6103 = vmatpush.bf16.msra.mxu0 %v5834
        %6104 = vmatpush.bf16.msra.mxu0 %v5832
        %6105 = vmatmul.bf16.gmra.mxu0 %v5396
        %v6106 = vpop.f32.mrf.mxu0
        %v6107 = vadd.f32 %v6094, %v6106
        %v6108 = vpop.f32.mrf.mxu0
        %6109 = vdwg.mxu0
        %6110 = vmatpush.bf16.msra.mxu0 %v5862
        %6111 = vmatpush.bf16.msra.mxu0 %v5860
        %6112 = vmatpush.bf16.msra.mxu0 %v5858
        %6113 = vmatpush.bf16.msra.mxu0 %v5856
        %6114 = vmatpush.bf16.msra.mxu0 %v5854
        %6115 = vmatpush.bf16.msra.mxu0 %v5852
        %6116 = vmatpush.bf16.msra.mxu0 %v5850
        %6117 = vmatpush.bf16.msra.mxu0 %v5848
        %6118 = vmatmul.bf16.gmra.mxu0 0
        %v6119 = vpop.f32.mrf.mxu0
        %v6120 = vadd.f32 %v6107, %v6119
        %v6121 = vpop.f32.mrf.mxu0
        %6122 = vdwg.mxu0
        %6123 = vmatpush.bf16.msra.mxu0 %v5878
        %6124 = vmatpush.bf16.msra.mxu0 %v5876
        %6125 = vmatpush.bf16.msra.mxu0 %v5874
        %6126 = vmatpush.bf16.msra.mxu0 %v5872
        %6127 = vmatpush.bf16.msra.mxu0 %v5870
        %6128 = vmatpush.bf16.msra.mxu0 %v5868
        %6129 = vmatpush.bf16.msra.mxu0 %v5866
        %6130 = vmatpush.bf16.msra.mxu0 %v5864
        %6131 = vmatmul.bf16.gmra.mxu0 0
        %v6132 = vpop.f32.mrf.mxu0
        %v6133 = vadd.f32 %v6120, %v6132
        %v6134 = vpop.f32.mrf.mxu0
        %6135 = vdwg.mxu0
        %v6136 = vadd.f32 %v6055, %v4642
        %v6137 = vadd.f32 %v6133, %v4643
        %v6138 = vmax.f32 %v6136, 0.0
        %v6139 = vmax.f32 %v6137, 0.0
        %v6140 = vpack.c.bf16 %v6138, %v6138
        %v6141 = vpack.c.bf16 %v6139, %v6139
        %v6174 = vunpack.c.l.b16 %v1234
        %v6175 = vunpack.c.l.b16 %v1235
        %v6176 = vunpack.c.l.b16 %v1236
        %v6177 = vunpack.c.l.b16 %v1237
        %v6178 = vunpack.c.l.b16 %v1238
        %v6179 = vunpack.c.l.b16 %v1239
        %v6180 = vunpack.c.l.b16 %v1240
        %v6181 = vunpack.c.l.b16 %v1241
        %v6182 = vunpack.c.l.b16 %v1242
        %v6183 = vunpack.c.l.b16 %v1243
        %v6184 = vunpack.c.l.b16 %v1244
        %v6185 = vunpack.c.l.b16 %v1245
        %v6186 = vunpack.c.l.b16 %v1246
        %v6187 = vunpack.c.l.b16 %v1247
        %v6188 = vunpack.c.l.b16 %v1248
        %v6189 = vunpack.c.l.b16 %v1249
        %v6190 = vunpack.c.l.b16 %v1250
        %v6191 = vunpack.c.l.b16 %v1251
        %v6192 = vunpack.c.l.b16 %v1252
        %v6193 = vunpack.c.l.b16 %v1253
        %v6194 = vunpack.c.l.b16 %v1254
        %v6195 = vunpack.c.l.b16 %v1255
        %v6196 = vunpack.c.l.b16 %v1256
        %v6197 = vunpack.c.l.b16 %v1257
        %v6198 = vunpack.c.l.b16 %v1258
        %v6199 = vunpack.c.l.b16 %v1259
        %v6200 = vunpack.c.l.b16 %v1260
        %v6201 = vunpack.c.l.b16 %v1261
        %v6202 = vunpack.c.l.b16 %v1262
        %v6203 = vunpack.c.l.b16 %v1263
        %v6204 = vunpack.c.l.b16 %v1264
        %v6205 = vunpack.c.l.b16 %v1265
        %v6206 = vpack.c.b16 %v6175, %v6174
        %v6207 = vpack.c.b16 %v6177, %v6176
        %v6208 = vpack.c.b16 %v6179, %v6178
        %v6209 = vpack.c.b16 %v6181, %v6180
        %v6210 = vpack.c.b16 %v6183, %v6182
        %v6211 = vpack.c.b16 %v6185, %v6184
        %v6212 = vpack.c.b16 %v6187, %v6186
        %v6213 = vpack.c.b16 %v6189, %v6188
        %v6214 = vpack.c.b16 %v6191, %v6190
        %v6215 = vpack.c.b16 %v6193, %v6192
        %v6216 = vpack.c.b16 %v6195, %v6194
        %v6217 = vpack.c.b16 %v6197, %v6196
        %v6218 = vpack.c.b16 %v6199, %v6198
        %v6219 = vpack.c.b16 %v6201, %v6200
        %v6220 = vpack.c.b16 %v6203, %v6202
        %v6221 = vpack.c.b16 %v6205, %v6204
        %6238 = vmatpush.bf16.msra.mxu0 %v6213
        %6239 = vmatpush.bf16.msra.mxu0 %v6212
        %6240 = vmatpush.bf16.msra.mxu0 %v6211
        %6241 = vmatpush.bf16.msra.mxu0 %v6210
        %6242 = vmatpush.bf16.msra.mxu0 %v6209
        %6243 = vmatpush.bf16.msra.mxu0 %v6208
        %6244 = vmatpush.bf16.msra.mxu0 %v6207
        %6245 = vmatpush.bf16.msra.mxu0 %v6206
        %6246 = vmatmul.bf16.gmra.mxu0 %v6140
        %v6247 = vpop.f32.mrf.mxu0
        %v6248 = vadd.f32 %v1266, %v6247
        %v6249 = vpop.f32.mrf.mxu0
        %6250 = vdwg.mxu0
        %6251 = vmatpush.bf16.msra.mxu0 %v6221
        %6252 = vmatpush.bf16.msra.mxu0 %v6220
        %6253 = vmatpush.bf16.msra.mxu0 %v6219
        %6254 = vmatpush.bf16.msra.mxu0 %v6218
        %6255 = vmatpush.bf16.msra.mxu0 %v6217
        %6256 = vmatpush.bf16.msra.mxu0 %v6216
        %6257 = vmatpush.bf16.msra.mxu0 %v6215
        %6258 = vmatpush.bf16.msra.mxu0 %v6214
        %6259 = vmatmul.bf16.gmra.mxu0 %v6141
        %v6260 = vpop.f32.mrf.mxu0
        %v6261 = vadd.f32 %v6248, %v6260
        %v6262 = vpop.f32.mrf.mxu0
        %6263 = vdwg.mxu0
        %6264 = vst [vmem:[%s1202] sm:$0x1] %v6261
        %s6265 = sand.u32 %s948, 1
        %s6266 = scalar_lea.sflag [#allocation3], %s6265
        %s6267 = sand.u32 %s948, 1
        %s6268 = scalar_lea.vmem [#allocation2], %s6267
        // Predicated region
        $region181: #{resnet_wifi_forward.1} parent=179 // pred_check
          %p6269 = pneg %p958
        $region182: #{resnet_wifi_forward.1} parent=179 // pred_check_branch
          %6271 = sbr.rel (%p6269) target = $region184
        $region183: #{resnet_wifi_forward.1} parent=179 // pred_region
          %6273 = vsyncadd %s6266, 0
          %s6274 = scalar_lea.hbm %s81, %s95
          %s6276 = sshll.u32 %s6268, 4
          %s6277 = int_to_ptr.vmem [resolvable:$true] %s6276
          %s6278 = sshll.u32 %s6274, 4
          %s6279 = int_to_ptr.hbm [resolvable:$true] %s6278
          %6281 = dma.vmem_to_hbm [thread:$0]  %s6277, 16, %s6279, %s6266
        $region184: #{resnet_wifi_forward.1} parent=179 // pred_fallthru
          _
      $region180: #{resnet_wifi_forward.1} parent=5 // pred_fallthru
        _
      %p6282 = scmp.le.s32.totalorder 2, %s90
      // Predicated region
      $region185: #{resnet_wifi_forward.1} parent=5 // pred_check
        %p6283 = pneg %p6282
      $region186: #{resnet_wifi_forward.1} parent=5 // pred_check_branch
        %6285 = sbr.rel (%p6283) target = $region188
      $region187: #{resnet_wifi_forward.1} parent=5 // pred_region
        %s6286 = ssub.s32 %s90, 2
        // Predicated region
        $region189: #{resnet_wifi_forward.1} parent=187 // pred_check
          %p6287 = pneg %p964
        $region190: #{resnet_wifi_forward.1} parent=187 // pred_check_branch
          %6289 = sbr.rel (%p6287) target = $region192
        $region191: #{resnet_wifi_forward.1} parent=187 // pred_region
          %s6290 = sand.u32 %s949, 1
          %s6291 = scalar_lea.sflag [#allocation3], %s6290
          %s6292 = sand.u32 %s949, 1
          %s6293 = scalar_lea.vmem [#allocation2], %s6292
          %6295 = dma.done %s6291, 16
        $region192: #{resnet_wifi_forward.1} parent=187 // pred_fallthru
          _
      $region188: #{resnet_wifi_forward.1} parent=5 // pred_fallthru
        _
    $region6: #{resnet_wifi_forward.1} parent=1 // loop_footer
      %s94 = sadd.s32 1, %s90
    $region7: #{resnet_wifi_forward.1} parent=1 // loop_footer_branch
      %89 = sbr.rel target = $region3
    $region8: #{resnet_wifi_forward.1} parent=1 // loop_exit
      _
    %6296 = vsyncpa [#allocation3], 1
    %s6297 = scalar_lea.sflag [#allocation3], 1
    %6298 = vsyncpa %s6297, 1

</llo_original>
